<compile_context>
chip_gen: v6e
topology: v6e:2x2x1
jax: 0.10.0
libtpu: 0.0.40
codegen_flags: <defaults>
</compile_context>

<pallas_src>
import jax
import jax.numpy as jnp
import numpy as np
from jax.experimental import pallas as pl
from jax.experimental.pallas import tpu as pltpu

# ---------------- model configuration (mirrors ImageTransformer.__init__) -----
PATCH      = 4
C_IN       = 4
H_IMG      = 32
W_IMG      = 32
EMBED_DIM  = 32
NUM_HEADS  = 4
FFN_DIM    = 64
NUM_LAYERS = 2
DROPOUT_P  = 0.0
STRIDE_A   = 16                                    # TransformerEncoder.a

B   = 2
E   = EMBED_DIM
E2  = 2 * EMBED_DIM
L   = (H_IMG // PATCH) * (W_IMG // PATCH)          # 64 tokens
LK  = (L - 1) // STRIDE_A + 1                      # Conv1d(k=1, stride=a) output len = 4
HD  = E2 // NUM_HEADS                              # per-head dim = 16
CPP = C_IN * PATCH * PATCH                         # 64
LN_EPS = 1e-5

LAYER_PARAM_SHAPES = {
    "wq_lin": (E, E2), "bq_lin": (1, E2),          # linear_Q
    "wk_conv": (E, E2), "bk_conv": (1, E2),        # conv_K (k=1, stride=a)  as (in,out)
    "wv_conv": (E, E2), "bv_conv": (1, E2),        # conv_V
    "wq_mha": (E2, E2), "bq_mha": (1, E2),         # attn in_proj Q
    "wk_mha": (E2, E2), "bk_mha": (1, E2),         # attn in_proj K
    "wv_mha": (E2, E2), "bv_mha": (1, E2),         # attn in_proj V
    "wo_mha": (E2, E2), "bo_mha": (1, E2),         # attn out_proj
    "w_attn": (E2, E), "b_attn": (1, E),           # linear_attn
    "g1": (1, E), "be1": (1, E),                   # ln1
    "w1": (E, FFN_DIM), "b1": (1, FFN_DIM),        # ffn[0]
    "w2": (FFN_DIM, E), "b2": (1, E),              # ffn[2]
    "g2": (1, E), "be2": (1, E),                   # ln2
}

FUSED_NAMES = ["wq_h", "bq_h", "wk_h", "bk_h", "wv_h", "bv_h",
               "wo_h", "bo", "g1", "be1", "w1", "b1", "w2", "b2", "g2", "be2"]


# ---------------- parameter init ----------------------------------------------
def init_layer_params(key):
    names = list(LAYER_PARAM_SHAPES)
    keys = jax.random.split(key, len(names))
    p = {}
    for name, k in zip(names, keys):
        shp = LAYER_PARAM_SHAPES[name]
        if name in ("g1", "g2"):
            p[name] = jnp.ones(shp, jnp.float32)
        elif name in ("be1", "be2"):
            p[name] = jnp.zeros(shp, jnp.float32)
        elif name.startswith("b"):
            p[name] = (0.02 * jax.random.normal(k, shp)).astype(jnp.float32)
        else:
            p[name] = (0.08 * jax.random.normal(k, shp)).astype(jnp.float32)
    return p


def init_params(key):
    kdw, kpw, kpe, kre, klay = jax.random.split(key, 5)
    kd1, kd2 = jax.random.split(kdw)
    kp1, kp2 = jax.random.split(kpw)
    ke1, ke2 = jax.random.split(kpe)
    kr1, kr2 = jax.random.split(kre)
    return {
        # LPU (DWConv): depthwise 3x3 + pointwise 1x1
        "dw_w": (0.2 * jax.random.normal(kd1, (C_IN, 1, 3, 3))).astype(jnp.float32),
        "dw_b": (0.02 * jax.random.normal(kd2, (C_IN,))).astype(jnp.float32),
        "pw_w": (0.2 * jax.random.normal(kp1, (C_IN, C_IN, 1, 1))).astype(jnp.float32),
        "pw_b": (0.02 * jax.random.normal(kp2, (C_IN,))).astype(jnp.float32),
        # patch embedding Conv2d(C, E, k=P, s=P)
        "pe_w": (0.08 * jax.random.normal(ke1, (E, C_IN, PATCH, PATCH))).astype(jnp.float32),
        "pe_b": (0.02 * jax.random.normal(ke2, (E,))).astype(jnp.float32),
        # reconstruct ConvTranspose2d(E, C, k=P, s=P)
        "re_w": (0.08 * jax.random.normal(kr1, (E, C_IN, PATCH, PATCH))).astype(jnp.float32),
        "re_b": (0.02 * jax.random.normal(kr2, (C_IN,))).astype(jnp.float32),
        "layers": [init_layer_params(k) for k in jax.random.split(klay, NUM_LAYERS)],
    }


# ---------------- small in-kernel helpers --------------------------------------
def _mm(a, b):      # a @ b, f32 accumulation
    return jax.lax.dot_general(a, b, (((1,), (0,)), ((), ())),
                               preferred_element_type=jnp.float32)


def _mm_t(a, b):    # a @ b.T (no explicit transpose -> no XLU shuffle)
    return jax.lax.dot_general(a, b, (((1,), (1,)), ((), ())),
                               preferred_element_type=jnp.float32)


def _layernorm(x, gamma, beta):
    mu = jnp.mean(x, axis=-1, keepdims=True)
    xc = x - mu
    var = jnp.mean(xc * xc, axis=-1, keepdims=True)
    return xc * jax.lax.rsqrt(var + LN_EPS) * gamma + beta


# ---------------- fully fused ImageTransformer kernel (per batch row) ----------
def model_kernel(tok_ref, sel_ref, pe_w_ref, pe_b_ref,
                 wq_ref, bq_ref, wk_ref, bk_ref, wv_ref, bv_ref,
                 wo_ref, bo_ref, g1_ref, be1_ref,
                 w1_ref, b1_ref, w2_ref, b2_ref, g2_ref, be2_ref,
                 re_w_ref, re_b_ref, out_ref):
    tok = tok_ref[0]                                        # (L, CPP) f32
    # patch-embed: Conv2d(k=P, s=P) == per-patch linear
    x = _mm(tok, pe_w_ref[...]) + pe_b_ref[...]             # (L, E) f32
    sel = sel_ref[...]                                      # (LK, L) bf16 0/1 row selector

    for li in range(NUM_LAYERS):                            # static unroll over layers
        x_bf = x.astype(jnp.bfloat16)
        # rows x[::a, :] for conv_K / conv_V via a tiny selection matmul (MXU, no gather)
        xs_bf = _mm(sel, x_bf).astype(jnp.bfloat16)         # (LK, E)

        # per-head attention; fused weights, scale folded into Q; accumulate the
        # (already out-projected) contribution into a lane-contiguous (L, E) register.
        acc = jnp.zeros((L, E), jnp.float32)
        for hh in range(NUM_HEADS):                         # static unroll over heads
            qh = _mm(x_bf, wq_ref[li, hh]) + bq_ref[li, hh]     # (L, HD), scale folded in
            kh = _mm(xs_bf, wk_ref[li, hh]) + bk_ref[li, hh]    # (LK, HD)
            vh = _mm(xs_bf, wv_ref[li, hh]) + bv_ref[li, hh]    # (LK, HD)
            s = _mm_t(qh, kh)                                   # (L, LK)
            s = s - jnp.max(s, axis=-1, keepdims=True)
            p = jnp.exp(s)
            p = p / jnp.sum(p, axis=-1, keepdims=True)
            ctx = _mm(p, vh)                                    # (L, HD)
            acc = acc + _mm(ctx.astype(jnp.bfloat16), wo_ref[li, hh])   # (L, E)

        attn = acc + bo_ref[li]                             # fused out_proj+linear_attn bias
        # TODO(synk): F.dropout is stochastic (p=0 on attn, default p=0.5 on ffn in the
        # original); treated as identity (inference semantics).

        x1 = _layernorm(x + attn, g1_ref[li], be1_ref[li])  # ln1

        h1 = _mm(x1.astype(jnp.bfloat16), w1_ref[li]) + b1_ref[li]
        # TODO(synk): exact erf-GELU (PyTorch nn.GELU default) is not guaranteed to lower
        # in Mosaic; tanh approximation used (<~2e-3 abs deviation).
        h1 = jax.nn.gelu(h1, approximate=True)
        ffn = _mm(h1.astype(jnp.bfloat16), w2_ref[li]) + b2_ref[li]

        x = _layernorm(x1 + ffn, g2_ref[li], be2_ref[li])   # ln2

    # reconstruct: ConvTranspose2d(E, C, k=P, s=P) == per-position linear E -> C*P*P
    out_ref[0, :, :] = (_mm(x, re_w_ref[...]) + re_b_ref[...]).astype(out_ref.dtype)


def fuse_layer_params(lp):
    """Trace-time fusion of the cascaded linear layers + per-head weight split."""
    wq = lp["wq_lin"] @ lp["wq_mha"]                       # (E, 2E)
    bq = lp["bq_lin"] @ lp["wq_mha"] + lp["bq_mha"]        # (1, 2E)
    wk = lp["wk_conv"] @ lp["wk_mha"]
    bk = lp["bk_conv"] @ lp["wk_mha"] + lp["bk_mha"]
    wv = lp["wv_conv"] @ lp["wv_mha"]
    bv = lp["bv_conv"] @ lp["wv_mha"] + lp["bv_mha"]
    wo = lp["wo_mha"] @ lp["w_attn"]                       # (2E, E)
    bo = lp["bo_mha"] @ lp["w_attn"] + lp["b_attn"]        # (1, E)
    scale = 1.0 / float(np.sqrt(HD))

    def split_cols(w, s=1.0):
        return jnp.stack([w[:, h * HD:(h + 1) * HD] * s for h in range(NUM_HEADS)])

    return {
        "wq_h": split_cols(wq, scale).astype(jnp.bfloat16),    # (H, E, HD)
        "bq_h": split_cols(bq, scale),                         # (H, 1, HD) f32
        "wk_h": split_cols(wk).astype(jnp.bfloat16),
        "bk_h": split_cols(bk),
        "wv_h": split_cols(wv).astype(jnp.bfloat16),
        "bv_h": split_cols(bv),
        "wo_h": jnp.stack([wo[h * HD:(h + 1) * HD, :]
                           for h in range(NUM_HEADS)]).astype(jnp.bfloat16),  # (H, HD, E)
        "bo": bo,
        "g1": lp["g1"], "be1": lp["be1"],
        "w1": lp["w1"].astype(jnp.bfloat16), "b1": lp["b1"],
        "w2": lp["w2"].astype(jnp.bfloat16), "b2": lp["b2"],
        "g2": lp["g2"], "be2": lp["be2"],
    }


# ---------------- plain-JAX layout / conv pieces shared by both paths -----------
def _lpu(x, params):
    # TODO(synk): LPU depthwise 3x3 conv runs as a plain lax.conv in the wrapper
    # (spatial conv on a 32-lane image is not worth a Pallas kernel at this size).
    dw = jax.lax.conv_general_dilated(
        x, params["dw_w"], window_strides=(1, 1), padding=((1, 1), (1, 1)),
        dimension_numbers=("NCHW", "OIHW", "NCHW"), feature_group_count=C_IN)
    dw = dw + params["dw_b"][None, :, None, None]
    pw = jnp.einsum("oc,nchw->nohw", params["pw_w"][:, :, 0, 0], dw)
    return pw + params["pw_b"][None, :, None, None]


def _patchify(x):                 # Conv2d(k=P, s=P) input -> per-patch feature rows
    Bn = x.shape[0]
    x = x.reshape(Bn, C_IN, H_IMG // PATCH, PATCH, W_IMG // PATCH, PATCH)
    x = x.transpose(0, 2, 4, 1, 3, 5)
    return x.reshape(Bn, L, CPP)


def _unpatch_reconstruct(y_flat, Bn):
    # y_flat: (Bn*L, C*P*P), feature order (c, ky, kx); replicate the PyTorch
    # ConvTranspose2d output (B, C, L, P*P) then the raw reshape to (B, C, H, W).
    y = y_flat.reshape(Bn, L // PATCH, PATCH, C_IN, PATCH, PATCH)
    y = y.transpose(0, 3, 1, 4, 2, 5).reshape(Bn, C_IN, L, PATCH * PATCH)
    return y.reshape(Bn, C_IN, H_IMG, W_IMG)


# ---------------- full ImageTransformer forward (Pallas path) -------------------
def image_transformer_pallas(x, params):
    Bn = x.shape[0]
    x = _lpu(x, params) + x                                         # LPU residual
    tokens = _patchify(x)                                           # (B, L, CPP) f32

    pe_w = params["pe_w"].reshape(E, CPP).T                         # (CPP, E)
    pe_b = params["pe_b"].reshape(1, E)
    re_w = params["re_w"].reshape(E, CPP)
    re_b = jnp.repeat(params["re_b"], PATCH * PATCH).reshape(1, CPP)

    # 0/1 selection matrix picking rows 0, a, 2a, ... (the Conv1d stride) — constant.
    sel_np = np.zeros((LK, L), np.float32)
    sel_np[np.arange(LK), np.arange(LK) * STRIDE_A] = 1.0
    sel = jnp.asarray(sel_np).astype(jnp.bfloat16)

    per_layer = [fuse_layer_params(lp) for lp in params["layers"]]
    stacked = {n: jnp.stack([f[n] for f in per_layer]) for n in FUSED_NAMES}
    plist = [stacked[n] for n in FUSED_NAMES]

    def full_spec(arr):
        nd = arr.ndim
        return pl.BlockSpec(arr.shape, lambda b, _nd=nd: (0,) * _nd)

    weights = [sel, pe_w, pe_b] + plist + [re_w, re_b]
    in_specs = ([pl.BlockSpec((1, L, CPP), lambda b: (b, 0, 0))]
                + [full_spec(w) for w in weights])

    grid_spec = pltpu.PrefetchScalarGridSpec(
        num_scalar_prefetch=0,
        grid=(Bn,),
        in_specs=in_specs,
        out_specs=pl.BlockSpec((1, L, CPP), lambda b: (b, 0, 0)),
    )
    y = pl.pallas_call(
        model_kernel,
        out_shape=jax.ShapeDtypeStruct((Bn, L, CPP), jnp.float32),
        grid_spec=grid_spec,
        compiler_params=pltpu.CompilerParams(dimension_semantics=("parallel",)),
    )(tokens, *weights)

    return _unpatch_reconstruct(y.reshape(Bn * L, CPP), Bn)


# ---------------- pure-JAX reference (same math, unfused, f32) ------------------
def _encoder_layer_ref(x, p):
    xs = x[:, ::STRIDE_A, :]
    Q = x @ p["wq_lin"] + p["bq_lin"]
    K = xs @ p["wk_conv"] + p["bk_conv"]
    V = xs @ p["wv_conv"] + p["bv_conv"]
    q = Q @ p["wq_mha"] + p["bq_mha"]
    k = K @ p["wk_mha"] + p["bk_mha"]
    v = V @ p["wv_mha"] + p["bv_mha"]
    Bn = x.shape[0]
    qh = q.reshape(Bn, L, NUM_HEADS, HD).transpose(0, 2, 1, 3) / np.sqrt(HD)
    kh = k.reshape(Bn, LK, NUM_HEADS, HD).transpose(0, 2, 1, 3)
    vh = v.reshape(Bn, LK, NUM_HEADS, HD).transpose(0, 2, 1, 3)
    s = jnp.einsum("bhqd,bhkd->bhqk", qh, kh)
    a = jax.nn.softmax(s, axis=-1)
    o = jnp.einsum("bhqk,bhkd->bhqd", a, vh).transpose(0, 2, 1, 3).reshape(Bn, L, E2)
    o = o @ p["wo_mha"] + p["bo_mha"]
    attn = o @ p["w_attn"] + p["b_attn"]

    def ln(z, g, b):
        mu = jnp.mean(z, axis=-1, keepdims=True)
        var = jnp.mean((z - mu) ** 2, axis=-1, keepdims=True)
        return (z - mu) * jax.lax.rsqrt(var + LN_EPS) * g + b

    x1 = ln(x + attn, p["g1"], p["be1"])
    h1 = jax.nn.gelu(x1 @ p["w1"] + p["b1"], approximate=False)
    ffn = h1 @ p["w2"] + p["b2"]
    return ln(x1 + ffn, p["g2"], p["be2"])


def image_transformer_ref(x, params):
    Bn = x.shape[0]
    x = _lpu(x, params) + x
    tokens = _patchify(x)
    h = tokens @ params["pe_w"].reshape(E, CPP).T + params["pe_b"]
    for lp in params["layers"]:
        h = _encoder_layer_ref(h, lp)
    feat = h.transpose(0, 2, 1).reshape(Bn, E, L // PATCH, PATCH)
    feat = feat.transpose(0, 2, 3, 1).reshape(Bn * L, E)
    y = feat @ params["re_w"].reshape(E, CPP) + jnp.repeat(params["re_b"], PATCH * PATCH)
    return _unpatch_reconstruct(y, Bn)


# ---------------- main ----------------------------------------------------------
if __name__ == "__main__":
    key = jax.random.PRNGKey(0)
    kx, kp = jax.random.split(key)
    x = jax.random.normal(kx, (B, C_IN, H_IMG, W_IMG), jnp.float32)
    params = init_params(kp)

    out = jax.jit(image_transformer_pallas)(x, params)
    out = jax.block_until_ready(out)

    ref = jax.jit(image_transformer_ref)(x, params)
    ref = jax.block_until_ready(ref)

    assert out.shape == (B, C_IN, H_IMG, W_IMG)
    np.testing.assert_allclose(np.asarray(out), np.asarray(ref), rtol=5e-2, atol=5e-2)
    print("KERNEL_OK")
</pallas_src>

<mosaic_0001>
module attributes {stable_mosaic.version = 11 : i64} {
  func.func @model_kernel(%arg0: i32, %arg1: memref<1x64x64xf32, #tpu.memory_space<vmem>>, %arg2: memref<4x64xbf16, #tpu.memory_space<vmem>>, %arg3: memref<64x32xf32, #tpu.memory_space<vmem>>, %arg4: memref<1x32xf32, #tpu.memory_space<vmem>>, %arg5: memref<2x4x32x16xbf16, #tpu.memory_space<vmem>>, %arg6: memref<2x4x1x16xf32, #tpu.memory_space<vmem>>, %arg7: memref<2x4x32x16xbf16, #tpu.memory_space<vmem>>, %arg8: memref<2x4x1x16xf32, #tpu.memory_space<vmem>>, %arg9: memref<2x4x32x16xbf16, #tpu.memory_space<vmem>>, %arg10: memref<2x4x1x16xf32, #tpu.memory_space<vmem>>, %arg11: memref<2x4x16x32xbf16, #tpu.memory_space<vmem>>, %arg12: memref<2x1x32xf32, #tpu.memory_space<vmem>>, %arg13: memref<2x1x32xf32, #tpu.memory_space<vmem>>, %arg14: memref<2x1x32xf32, #tpu.memory_space<vmem>>, %arg15: memref<2x32x64xbf16, #tpu.memory_space<vmem>>, %arg16: memref<2x1x64xf32, #tpu.memory_space<vmem>>, %arg17: memref<2x64x32xbf16, #tpu.memory_space<vmem>>, %arg18: memref<2x1x32xf32, #tpu.memory_space<vmem>>, %arg19: memref<2x1x32xf32, #tpu.memory_space<vmem>>, %arg20: memref<2x1x32xf32, #tpu.memory_space<vmem>>, %arg21: memref<32x64xf32, #tpu.memory_space<vmem>>, %arg22: memref<1x64xf32, #tpu.memory_space<vmem>>, %arg23: memref<1x64x64xf32, #tpu.memory_space<vmem>>) attributes {dimension_semantics = [#tpu.dimension_semantics<parallel>], iteration_bounds = array<i64: 2>, scalar_prefetch = 0 : i64, scratch_operands = 0 : i64, tpu.core_type = #tpu.core_type<tc>, window_params = [{transform_indices = @transform_0, window_bounds = array<i64: 1, 64, 64>}, {pipeline_mode = #tpu.pipeline_mode<synchronous>, transform_indices = @transform_1, window_bounds = array<i64: 4, 64>}, {pipeline_mode = #tpu.pipeline_mode<synchronous>, transform_indices = @transform_2, window_bounds = array<i64: 64, 32>}, {pipeline_mode = #tpu.pipeline_mode<synchronous>, transform_indices = @transform_3, window_bounds = array<i64: 1, 32>}, {pipeline_mode = #tpu.pipeline_mode<synchronous>, transform_indices = @transform_4, window_bounds = array<i64: 2, 4, 32, 16>}, {pipeline_mode = #tpu.pipeline_mode<synchronous>, transform_indices = @transform_5, window_bounds = array<i64: 2, 4, 1, 16>}, {pipeline_mode = #tpu.pipeline_mode<synchronous>, transform_indices = @transform_6, window_bounds = array<i64: 2, 4, 32, 16>}, {pipeline_mode = #tpu.pipeline_mode<synchronous>, transform_indices = @transform_7, window_bounds = array<i64: 2, 4, 1, 16>}, {pipeline_mode = #tpu.pipeline_mode<synchronous>, transform_indices = @transform_8, window_bounds = array<i64: 2, 4, 32, 16>}, {pipeline_mode = #tpu.pipeline_mode<synchronous>, transform_indices = @transform_9, window_bounds = array<i64: 2, 4, 1, 16>}, {pipeline_mode = #tpu.pipeline_mode<synchronous>, transform_indices = @transform_10, window_bounds = array<i64: 2, 4, 16, 32>}, {pipeline_mode = #tpu.pipeline_mode<synchronous>, transform_indices = @transform_11, window_bounds = array<i64: 2, 1, 32>}, {pipeline_mode = #tpu.pipeline_mode<synchronous>, transform_indices = @transform_12, window_bounds = array<i64: 2, 1, 32>}, {pipeline_mode = #tpu.pipeline_mode<synchronous>, transform_indices = @transform_13, window_bounds = array<i64: 2, 1, 32>}, {pipeline_mode = #tpu.pipeline_mode<synchronous>, transform_indices = @transform_14, window_bounds = array<i64: 2, 32, 64>}, {pipeline_mode = #tpu.pipeline_mode<synchronous>, transform_indices = @transform_15, window_bounds = array<i64: 2, 1, 64>}, {pipeline_mode = #tpu.pipeline_mode<synchronous>, transform_indices = @transform_16, window_bounds = array<i64: 2, 64, 32>}, {pipeline_mode = #tpu.pipeline_mode<synchronous>, transform_indices = @transform_17, window_bounds = array<i64: 2, 1, 32>}, {pipeline_mode = #tpu.pipeline_mode<synchronous>, transform_indices = @transform_18, window_bounds = array<i64: 2, 1, 32>}, {pipeline_mode = #tpu.pipeline_mode<synchronous>, transform_indices = @transform_19, window_bounds = array<i64: 2, 1, 32>}, {pipeline_mode = #tpu.pipeline_mode<synchronous>, transform_indices = @transform_20, window_bounds = array<i64: 32, 64>}, {pipeline_mode = #tpu.pipeline_mode<synchronous>, transform_indices = @transform_21, window_bounds = array<i64: 1, 64>}, {transform_indices = @transform_22, window_bounds = array<i64: 1, 64, 64>}]} {
    %c0 = arith.constant 0 : index
    %c0_0 = arith.constant 0 : index
    %c0_1 = arith.constant 0 : index
    %0 = vector.load %arg1[%c0, %c0_0, %c0_1] : memref<1x64x64xf32, #tpu.memory_space<vmem>>, vector<1x64x64xf32>
    %1 = vector.shape_cast %0 : vector<1x64x64xf32> to vector<64x64xf32>
    %c0_2 = arith.constant 0 : index
    %c0_3 = arith.constant 0 : index
    %2 = vector.load %arg3[%c0_2, %c0_3] : memref<64x32xf32, #tpu.memory_space<vmem>>, vector<64x32xf32>
    %cst = arith.constant dense<0.000000e+00> : vector<64x32xf32>
    %3 = tpu.matmul %1, %2, %cst {dimension_numbers = #tpu.dot_dimension_numbers<[1], [0], [0], [1], [0, 0, 1, 1], [], []>} : vector<64x64xf32>, vector<64x32xf32>, vector<64x32xf32> -> vector<64x32xf32>
    %c0_4 = arith.constant 0 : index
    %c0_5 = arith.constant 0 : index
    %4 = vector.load %arg4[%c0_4, %c0_5] : memref<1x32xf32, #tpu.memory_space<vmem>>, vector<1x32xf32>
    %5 = vector.broadcast %4 : vector<1x32xf32> to vector<64x32xf32>
    %6 = arith.addf %3, %5 : vector<64x32xf32>
    %c0_6 = arith.constant 0 : index
    %c0_7 = arith.constant 0 : index
    %7 = vector.load %arg2[%c0_6, %c0_7] : memref<4x64xbf16, #tpu.memory_space<vmem>>, vector<4x64xbf16>
    %8 = arith.truncf %6 : vector<64x32xf32> to vector<64x32xbf16>
    %cst_8 = arith.constant dense<0.000000e+00> : vector<4x32xf32>
    %9 = tpu.matmul %7, %8, %cst_8 {dimension_numbers = #tpu.dot_dimension_numbers<[1], [0], [0], [1], [0, 0, 1, 1], [], []>} : vector<4x64xbf16>, vector<64x32xbf16>, vector<4x32xf32> -> vector<4x32xf32>
    %10 = arith.truncf %9 : vector<4x32xf32> to vector<4x32xbf16>
    %cst_9 = arith.constant 0.000000e+00 : f32
    %11 = vector.broadcast %cst_9 : f32 to vector<64x32xf32>
    %c0_10 = arith.constant 0 : index
    %c0_11 = arith.constant 0 : index
    %c0_12 = arith.constant 0 : index
    %c0_13 = arith.constant 0 : index
    %12 = vector.load %arg5[%c0_10, %c0_11, %c0_12, %c0_13] : memref<2x4x32x16xbf16, #tpu.memory_space<vmem>>, vector<1x1x32x16xbf16>
    %13 = vector.shape_cast %12 : vector<1x1x32x16xbf16> to vector<32x16xbf16>
    %cst_14 = arith.constant dense<0.000000e+00> : vector<64x16xf32>
    %14 = tpu.matmul %8, %13, %cst_14 {dimension_numbers = #tpu.dot_dimension_numbers<[1], [0], [0], [1], [0, 0, 1, 1], [], []>} : vector<64x32xbf16>, vector<32x16xbf16>, vector<64x16xf32> -> vector<64x16xf32>
    %c0_15 = arith.constant 0 : index
    %c0_16 = arith.constant 0 : index
    %c0_17 = arith.constant 0 : index
    %c0_18 = arith.constant 0 : index
    %15 = vector.load %arg6[%c0_15, %c0_16, %c0_17, %c0_18] : memref<2x4x1x16xf32, #tpu.memory_space<vmem>>, vector<1x1x1x16xf32>
    %16 = vector.shape_cast %15 : vector<1x1x1x16xf32> to vector<1x16xf32>
    %17 = vector.broadcast %16 : vector<1x16xf32> to vector<64x16xf32>
    %18 = arith.addf %14, %17 : vector<64x16xf32>
    %c0_19 = arith.constant 0 : index
    %c0_20 = arith.constant 0 : index
    %c0_21 = arith.constant 0 : index
    %c0_22 = arith.constant 0 : index
    %19 = vector.load %arg7[%c0_19, %c0_20, %c0_21, %c0_22] : memref<2x4x32x16xbf16, #tpu.memory_space<vmem>>, vector<1x1x32x16xbf16>
    %20 = vector.shape_cast %19 : vector<1x1x32x16xbf16> to vector<32x16xbf16>
    %cst_23 = arith.constant dense<0.000000e+00> : vector<4x16xf32>
    %21 = tpu.matmul %10, %20, %cst_23 {dimension_numbers = #tpu.dot_dimension_numbers<[1], [0], [0], [1], [0, 0, 1, 1], [], []>} : vector<4x32xbf16>, vector<32x16xbf16>, vector<4x16xf32> -> vector<4x16xf32>
    %c0_24 = arith.constant 0 : index
    %c0_25 = arith.constant 0 : index
    %c0_26 = arith.constant 0 : index
    %c0_27 = arith.constant 0 : index
    %22 = vector.load %arg8[%c0_24, %c0_25, %c0_26, %c0_27] : memref<2x4x1x16xf32, #tpu.memory_space<vmem>>, vector<1x1x1x16xf32>
    %23 = vector.shape_cast %22 : vector<1x1x1x16xf32> to vector<1x16xf32>
    %24 = vector.broadcast %23 : vector<1x16xf32> to vector<4x16xf32>
    %25 = arith.addf %21, %24 : vector<4x16xf32>
    %c0_28 = arith.constant 0 : index
    %c0_29 = arith.constant 0 : index
    %c0_30 = arith.constant 0 : index
    %c0_31 = arith.constant 0 : index
    %26 = vector.load %arg9[%c0_28, %c0_29, %c0_30, %c0_31] : memref<2x4x32x16xbf16, #tpu.memory_space<vmem>>, vector<1x1x32x16xbf16>
    %27 = vector.shape_cast %26 : vector<1x1x32x16xbf16> to vector<32x16xbf16>
    %cst_32 = arith.constant dense<0.000000e+00> : vector<4x16xf32>
    %28 = tpu.matmul %10, %27, %cst_32 {dimension_numbers = #tpu.dot_dimension_numbers<[1], [0], [0], [1], [0, 0, 1, 1], [], []>} : vector<4x32xbf16>, vector<32x16xbf16>, vector<4x16xf32> -> vector<4x16xf32>
    %c0_33 = arith.constant 0 : index
    %c0_34 = arith.constant 0 : index
    %c0_35 = arith.constant 0 : index
    %c0_36 = arith.constant 0 : index
    %29 = vector.load %arg10[%c0_33, %c0_34, %c0_35, %c0_36] : memref<2x4x1x16xf32, #tpu.memory_space<vmem>>, vector<1x1x1x16xf32>
    %30 = vector.shape_cast %29 : vector<1x1x1x16xf32> to vector<1x16xf32>
    %31 = vector.broadcast %30 : vector<1x16xf32> to vector<4x16xf32>
    %32 = arith.addf %28, %31 : vector<4x16xf32>
    %cst_37 = arith.constant dense<0.000000e+00> : vector<64x4xf32>
    %33 = tpu.matmul %18, %25, %cst_37 {dimension_numbers = #tpu.dot_dimension_numbers<[1], [1], [0], [0], [0, 0, 1, 0], [], []>} : vector<64x16xf32>, vector<4x16xf32>, vector<64x4xf32> -> vector<64x4xf32>
    %cst_38 = arith.constant dense<0xFF800000> : vector<64xf32>
    %34 = vector.multi_reduction <maximumf>, %33, %cst_38 [1] : vector<64x4xf32> to vector<64xf32>
    %35 = vector.shape_cast %34 : vector<64xf32> to vector<64x1xf32>
    %36 = vector.broadcast %35 : vector<64x1xf32> to vector<64x4xf32>
    %37 = arith.subf %33, %36 : vector<64x4xf32>
    %38 = math.exp %37 : vector<64x4xf32>
    %cst_39 = arith.constant dense<0.000000e+00> : vector<64xf32>
    %39 = vector.multi_reduction <add>, %38, %cst_39 [1] : vector<64x4xf32> to vector<64xf32>
    %40 = vector.shape_cast %39 : vector<64xf32> to vector<64x1xf32>
    %41 = vector.broadcast %40 : vector<64x1xf32> to vector<64x4xf32>
    %42 = arith.divf %38, %41 : vector<64x4xf32>
    %cst_40 = arith.constant dense<0.000000e+00> : vector<64x16xf32>
    %43 = tpu.matmul %42, %32, %cst_40 {dimension_numbers = #tpu.dot_dimension_numbers<[1], [0], [0], [1], [0, 0, 1, 1], [], []>} : vector<64x4xf32>, vector<4x16xf32>, vector<64x16xf32> -> vector<64x16xf32>
    %44 = arith.truncf %43 : vector<64x16xf32> to vector<64x16xbf16>
    %c0_41 = arith.constant 0 : index
    %c0_42 = arith.constant 0 : index
    %c0_43 = arith.constant 0 : index
    %c0_44 = arith.constant 0 : index
    %45 = vector.load %arg11[%c0_41, %c0_42, %c0_43, %c0_44] : memref<2x4x16x32xbf16, #tpu.memory_space<vmem>>, vector<1x1x16x32xbf16>
    %46 = vector.shape_cast %45 : vector<1x1x16x32xbf16> to vector<16x32xbf16>
    %cst_45 = arith.constant dense<0.000000e+00> : vector<64x32xf32>
    %47 = tpu.matmul %44, %46, %cst_45 {dimension_numbers = #tpu.dot_dimension_numbers<[1], [0], [0], [1], [0, 0, 1, 1], [], []>} : vector<64x16xbf16>, vector<16x32xbf16>, vector<64x32xf32> -> vector<64x32xf32>
    %48 = arith.addf %11, %47 : vector<64x32xf32>
    %c0_46 = arith.constant 0 : index
    %c1 = arith.constant 1 : index
    %c0_47 = arith.constant 0 : index
    %c0_48 = arith.constant 0 : index
    %49 = vector.load %arg5[%c0_46, %c1, %c0_47, %c0_48] : memref<2x4x32x16xbf16, #tpu.memory_space<vmem>>, vector<1x1x32x16xbf16>
    %50 = vector.shape_cast %49 : vector<1x1x32x16xbf16> to vector<32x16xbf16>
    %cst_49 = arith.constant dense<0.000000e+00> : vector<64x16xf32>
    %51 = tpu.matmul %8, %50, %cst_49 {dimension_numbers = #tpu.dot_dimension_numbers<[1], [0], [0], [1], [0, 0, 1, 1], [], []>} : vector<64x32xbf16>, vector<32x16xbf16>, vector<64x16xf32> -> vector<64x16xf32>
    %c0_50 = arith.constant 0 : index
    %c1_51 = arith.constant 1 : index
    %c0_52 = arith.constant 0 : index
    %c0_53 = arith.constant 0 : index
    %52 = vector.load %arg6[%c0_50, %c1_51, %c0_52, %c0_53] : memref<2x4x1x16xf32, #tpu.memory_space<vmem>>, vector<1x1x1x16xf32>
    %53 = vector.shape_cast %52 : vector<1x1x1x16xf32> to vector<1x16xf32>
    %54 = vector.broadcast %53 : vector<1x16xf32> to vector<64x16xf32>
    %55 = arith.addf %51, %54 : vector<64x16xf32>
    %c0_54 = arith.constant 0 : index
    %c1_55 = arith.constant 1 : index
    %c0_56 = arith.constant 0 : index
    %c0_57 = arith.constant 0 : index
    %56 = vector.load %arg7[%c0_54, %c1_55, %c0_56, %c0_57] : memref<2x4x32x16xbf16, #tpu.memory_space<vmem>>, vector<1x1x32x16xbf16>
    %57 = vector.shape_cast %56 : vector<1x1x32x16xbf16> to vector<32x16xbf16>
    %cst_58 = arith.constant dense<0.000000e+00> : vector<4x16xf32>
    %58 = tpu.matmul %10, %57, %cst_58 {dimension_numbers = #tpu.dot_dimension_numbers<[1], [0], [0], [1], [0, 0, 1, 1], [], []>} : vector<4x32xbf16>, vector<32x16xbf16>, vector<4x16xf32> -> vector<4x16xf32>
    %c0_59 = arith.constant 0 : index
    %c1_60 = arith.constant 1 : index
    %c0_61 = arith.constant 0 : index
    %c0_62 = arith.constant 0 : index
    %59 = vector.load %arg8[%c0_59, %c1_60, %c0_61, %c0_62] : memref<2x4x1x16xf32, #tpu.memory_space<vmem>>, vector<1x1x1x16xf32>
    %60 = vector.shape_cast %59 : vector<1x1x1x16xf32> to vector<1x16xf32>
    %61 = vector.broadcast %60 : vector<1x16xf32> to vector<4x16xf32>
    %62 = arith.addf %58, %61 : vector<4x16xf32>
    %c0_63 = arith.constant 0 : index
    %c1_64 = arith.constant 1 : index
    %c0_65 = arith.constant 0 : index
    %c0_66 = arith.constant 0 : index
    %63 = vector.load %arg9[%c0_63, %c1_64, %c0_65, %c0_66] : memref<2x4x32x16xbf16, #tpu.memory_space<vmem>>, vector<1x1x32x16xbf16>
    %64 = vector.shape_cast %63 : vector<1x1x32x16xbf16> to vector<32x16xbf16>
    %cst_67 = arith.constant dense<0.000000e+00> : vector<4x16xf32>
    %65 = tpu.matmul %10, %64, %cst_67 {dimension_numbers = #tpu.dot_dimension_numbers<[1], [0], [0], [1], [0, 0, 1, 1], [], []>} : vector<4x32xbf16>, vector<32x16xbf16>, vector<4x16xf32> -> vector<4x16xf32>
    %c0_68 = arith.constant 0 : index
    %c1_69 = arith.constant 1 : index
    %c0_70 = arith.constant 0 : index
    %c0_71 = arith.constant 0 : index
    %66 = vector.load %arg10[%c0_68, %c1_69, %c0_70, %c0_71] : memref<2x4x1x16xf32, #tpu.memory_space<vmem>>, vector<1x1x1x16xf32>
    %67 = vector.shape_cast %66 : vector<1x1x1x16xf32> to vector<1x16xf32>
    %68 = vector.broadcast %67 : vector<1x16xf32> to vector<4x16xf32>
    %69 = arith.addf %65, %68 : vector<4x16xf32>
    %cst_72 = arith.constant dense<0.000000e+00> : vector<64x4xf32>
    %70 = tpu.matmul %55, %62, %cst_72 {dimension_numbers = #tpu.dot_dimension_numbers<[1], [1], [0], [0], [0, 0, 1, 0], [], []>} : vector<64x16xf32>, vector<4x16xf32>, vector<64x4xf32> -> vector<64x4xf32>
    %cst_73 = arith.constant dense<0xFF800000> : vector<64xf32>
    %71 = vector.multi_reduction <maximumf>, %70, %cst_73 [1] : vector<64x4xf32> to vector<64xf32>
    %72 = vector.shape_cast %71 : vector<64xf32> to vector<64x1xf32>
    %73 = vector.broadcast %72 : vector<64x1xf32> to vector<64x4xf32>
    %74 = arith.subf %70, %73 : vector<64x4xf32>
    %75 = math.exp %74 : vector<64x4xf32>
    %cst_74 = arith.constant dense<0.000000e+00> : vector<64xf32>
    %76 = vector.multi_reduction <add>, %75, %cst_74 [1] : vector<64x4xf32> to vector<64xf32>
    %77 = vector.shape_cast %76 : vector<64xf32> to vector<64x1xf32>
    %78 = vector.broadcast %77 : vector<64x1xf32> to vector<64x4xf32>
    %79 = arith.divf %75, %78 : vector<64x4xf32>
    %cst_75 = arith.constant dense<0.000000e+00> : vector<64x16xf32>
    %80 = tpu.matmul %79, %69, %cst_75 {dimension_numbers = #tpu.dot_dimension_numbers<[1], [0], [0], [1], [0, 0, 1, 1], [], []>} : vector<64x4xf32>, vector<4x16xf32>, vector<64x16xf32> -> vector<64x16xf32>
    %81 = arith.truncf %80 : vector<64x16xf32> to vector<64x16xbf16>
    %c0_76 = arith.constant 0 : index
    %c1_77 = arith.constant 1 : index
    %c0_78 = arith.constant 0 : index
    %c0_79 = arith.constant 0 : index
    %82 = vector.load %arg11[%c0_76, %c1_77, %c0_78, %c0_79] : memref<2x4x16x32xbf16, #tpu.memory_space<vmem>>, vector<1x1x16x32xbf16>
    %83 = vector.shape_cast %82 : vector<1x1x16x32xbf16> to vector<16x32xbf16>
    %cst_80 = arith.constant dense<0.000000e+00> : vector<64x32xf32>
    %84 = tpu.matmul %81, %83, %cst_80 {dimension_numbers = #tpu.dot_dimension_numbers<[1], [0], [0], [1], [0, 0, 1, 1], [], []>} : vector<64x16xbf16>, vector<16x32xbf16>, vector<64x32xf32> -> vector<64x32xf32>
    %85 = arith.addf %48, %84 : vector<64x32xf32>
    %c0_81 = arith.constant 0 : index
    %c2 = arith.constant 2 : index
    %c0_82 = arith.constant 0 : index
    %c0_83 = arith.constant 0 : index
    %86 = vector.load %arg5[%c0_81, %c2, %c0_82, %c0_83] : memref<2x4x32x16xbf16, #tpu.memory_space<vmem>>, vector<1x1x32x16xbf16>
    %87 = vector.shape_cast %86 : vector<1x1x32x16xbf16> to vector<32x16xbf16>
    %cst_84 = arith.constant dense<0.000000e+00> : vector<64x16xf32>
    %88 = tpu.matmul %8, %87, %cst_84 {dimension_numbers = #tpu.dot_dimension_numbers<[1], [0], [0], [1], [0, 0, 1, 1], [], []>} : vector<64x32xbf16>, vector<32x16xbf16>, vector<64x16xf32> -> vector<64x16xf32>
    %c0_85 = arith.constant 0 : index
    %c2_86 = arith.constant 2 : index
    %c0_87 = arith.constant 0 : index
    %c0_88 = arith.constant 0 : index
    %89 = vector.load %arg6[%c0_85, %c2_86, %c0_87, %c0_88] : memref<2x4x1x16xf32, #tpu.memory_space<vmem>>, vector<1x1x1x16xf32>
    %90 = vector.shape_cast %89 : vector<1x1x1x16xf32> to vector<1x16xf32>
    %91 = vector.broadcast %90 : vector<1x16xf32> to vector<64x16xf32>
    %92 = arith.addf %88, %91 : vector<64x16xf32>
    %c0_89 = arith.constant 0 : index
    %c2_90 = arith.constant 2 : index
    %c0_91 = arith.constant 0 : index
    %c0_92 = arith.constant 0 : index
    %93 = vector.load %arg7[%c0_89, %c2_90, %c0_91, %c0_92] : memref<2x4x32x16xbf16, #tpu.memory_space<vmem>>, vector<1x1x32x16xbf16>
    %94 = vector.shape_cast %93 : vector<1x1x32x16xbf16> to vector<32x16xbf16>
    %cst_93 = arith.constant dense<0.000000e+00> : vector<4x16xf32>
    %95 = tpu.matmul %10, %94, %cst_93 {dimension_numbers = #tpu.dot_dimension_numbers<[1], [0], [0], [1], [0, 0, 1, 1], [], []>} : vector<4x32xbf16>, vector<32x16xbf16>, vector<4x16xf32> -> vector<4x16xf32>
    %c0_94 = arith.constant 0 : index
    %c2_95 = arith.constant 2 : index
    %c0_96 = arith.constant 0 : index
    %c0_97 = arith.constant 0 : index
    %96 = vector.load %arg8[%c0_94, %c2_95, %c0_96, %c0_97] : memref<2x4x1x16xf32, #tpu.memory_space<vmem>>, vector<1x1x1x16xf32>
    %97 = vector.shape_cast %96 : vector<1x1x1x16xf32> to vector<1x16xf32>
    %98 = vector.broadcast %97 : vector<1x16xf32> to vector<4x16xf32>
    %99 = arith.addf %95, %98 : vector<4x16xf32>
    %c0_98 = arith.constant 0 : index
    %c2_99 = arith.constant 2 : index
    %c0_100 = arith.constant 0 : index
    %c0_101 = arith.constant 0 : index
    %100 = vector.load %arg9[%c0_98, %c2_99, %c0_100, %c0_101] : memref<2x4x32x16xbf16, #tpu.memory_space<vmem>>, vector<1x1x32x16xbf16>
    %101 = vector.shape_cast %100 : vector<1x1x32x16xbf16> to vector<32x16xbf16>
    %cst_102 = arith.constant dense<0.000000e+00> : vector<4x16xf32>
    %102 = tpu.matmul %10, %101, %cst_102 {dimension_numbers = #tpu.dot_dimension_numbers<[1], [0], [0], [1], [0, 0, 1, 1], [], []>} : vector<4x32xbf16>, vector<32x16xbf16>, vector<4x16xf32> -> vector<4x16xf32>
    %c0_103 = arith.constant 0 : index
    %c2_104 = arith.constant 2 : index
    %c0_105 = arith.constant 0 : index
    %c0_106 = arith.constant 0 : index
    %103 = vector.load %arg10[%c0_103, %c2_104, %c0_105, %c0_106] : memref<2x4x1x16xf32, #tpu.memory_space<vmem>>, vector<1x1x1x16xf32>
    %104 = vector.shape_cast %103 : vector<1x1x1x16xf32> to vector<1x16xf32>
    %105 = vector.broadcast %104 : vector<1x16xf32> to vector<4x16xf32>
    %106 = arith.addf %102, %105 : vector<4x16xf32>
    %cst_107 = arith.constant dense<0.000000e+00> : vector<64x4xf32>
    %107 = tpu.matmul %92, %99, %cst_107 {dimension_numbers = #tpu.dot_dimension_numbers<[1], [1], [0], [0], [0, 0, 1, 0], [], []>} : vector<64x16xf32>, vector<4x16xf32>, vector<64x4xf32> -> vector<64x4xf32>
    %cst_108 = arith.constant dense<0xFF800000> : vector<64xf32>
    %108 = vector.multi_reduction <maximumf>, %107, %cst_108 [1] : vector<64x4xf32> to vector<64xf32>
    %109 = vector.shape_cast %108 : vector<64xf32> to vector<64x1xf32>
    %110 = vector.broadcast %109 : vector<64x1xf32> to vector<64x4xf32>
    %111 = arith.subf %107, %110 : vector<64x4xf32>
    %112 = math.exp %111 : vector<64x4xf32>
    %cst_109 = arith.constant dense<0.000000e+00> : vector<64xf32>
    %113 = vector.multi_reduction <add>, %112, %cst_109 [1] : vector<64x4xf32> to vector<64xf32>
    %114 = vector.shape_cast %113 : vector<64xf32> to vector<64x1xf32>
    %115 = vector.broadcast %114 : vector<64x1xf32> to vector<64x4xf32>
    %116 = arith.divf %112, %115 : vector<64x4xf32>
    %cst_110 = arith.constant dense<0.000000e+00> : vector<64x16xf32>
    %117 = tpu.matmul %116, %106, %cst_110 {dimension_numbers = #tpu.dot_dimension_numbers<[1], [0], [0], [1], [0, 0, 1, 1], [], []>} : vector<64x4xf32>, vector<4x16xf32>, vector<64x16xf32> -> vector<64x16xf32>
    %118 = arith.truncf %117 : vector<64x16xf32> to vector<64x16xbf16>
    %c0_111 = arith.constant 0 : index
    %c2_112 = arith.constant 2 : index
    %c0_113 = arith.constant 0 : index
    %c0_114 = arith.constant 0 : index
    %119 = vector.load %arg11[%c0_111, %c2_112, %c0_113, %c0_114] : memref<2x4x16x32xbf16, #tpu.memory_space<vmem>>, vector<1x1x16x32xbf16>
    %120 = vector.shape_cast %119 : vector<1x1x16x32xbf16> to vector<16x32xbf16>
    %cst_115 = arith.constant dense<0.000000e+00> : vector<64x32xf32>
    %121 = tpu.matmul %118, %120, %cst_115 {dimension_numbers = #tpu.dot_dimension_numbers<[1], [0], [0], [1], [0, 0, 1, 1], [], []>} : vector<64x16xbf16>, vector<16x32xbf16>, vector<64x32xf32> -> vector<64x32xf32>
    %122 = arith.addf %85, %121 : vector<64x32xf32>
    %c0_116 = arith.constant 0 : index
    %c3 = arith.constant 3 : index
    %c0_117 = arith.constant 0 : index
    %c0_118 = arith.constant 0 : index
    %123 = vector.load %arg5[%c0_116, %c3, %c0_117, %c0_118] : memref<2x4x32x16xbf16, #tpu.memory_space<vmem>>, vector<1x1x32x16xbf16>
    %124 = vector.shape_cast %123 : vector<1x1x32x16xbf16> to vector<32x16xbf16>
    %cst_119 = arith.constant dense<0.000000e+00> : vector<64x16xf32>
    %125 = tpu.matmul %8, %124, %cst_119 {dimension_numbers = #tpu.dot_dimension_numbers<[1], [0], [0], [1], [0, 0, 1, 1], [], []>} : vector<64x32xbf16>, vector<32x16xbf16>, vector<64x16xf32> -> vector<64x16xf32>
    %c0_120 = arith.constant 0 : index
    %c3_121 = arith.constant 3 : index
    %c0_122 = arith.constant 0 : index
    %c0_123 = arith.constant 0 : index
    %126 = vector.load %arg6[%c0_120, %c3_121, %c0_122, %c0_123] : memref<2x4x1x16xf32, #tpu.memory_space<vmem>>, vector<1x1x1x16xf32>
    %127 = vector.shape_cast %126 : vector<1x1x1x16xf32> to vector<1x16xf32>
    %128 = vector.broadcast %127 : vector<1x16xf32> to vector<64x16xf32>
    %129 = arith.addf %125, %128 : vector<64x16xf32>
    %c0_124 = arith.constant 0 : index
    %c3_125 = arith.constant 3 : index
    %c0_126 = arith.constant 0 : index
    %c0_127 = arith.constant 0 : index
    %130 = vector.load %arg7[%c0_124, %c3_125, %c0_126, %c0_127] : memref<2x4x32x16xbf16, #tpu.memory_space<vmem>>, vector<1x1x32x16xbf16>
    %131 = vector.shape_cast %130 : vector<1x1x32x16xbf16> to vector<32x16xbf16>
    %cst_128 = arith.constant dense<0.000000e+00> : vector<4x16xf32>
    %132 = tpu.matmul %10, %131, %cst_128 {dimension_numbers = #tpu.dot_dimension_numbers<[1], [0], [0], [1], [0, 0, 1, 1], [], []>} : vector<4x32xbf16>, vector<32x16xbf16>, vector<4x16xf32> -> vector<4x16xf32>
    %c0_129 = arith.constant 0 : index
    %c3_130 = arith.constant 3 : index
    %c0_131 = arith.constant 0 : index
    %c0_132 = arith.constant 0 : index
    %133 = vector.load %arg8[%c0_129, %c3_130, %c0_131, %c0_132] : memref<2x4x1x16xf32, #tpu.memory_space<vmem>>, vector<1x1x1x16xf32>
    %134 = vector.shape_cast %133 : vector<1x1x1x16xf32> to vector<1x16xf32>
    %135 = vector.broadcast %134 : vector<1x16xf32> to vector<4x16xf32>
    %136 = arith.addf %132, %135 : vector<4x16xf32>
    %c0_133 = arith.constant 0 : index
    %c3_134 = arith.constant 3 : index
    %c0_135 = arith.constant 0 : index
    %c0_136 = arith.constant 0 : index
    %137 = vector.load %arg9[%c0_133, %c3_134, %c0_135, %c0_136] : memref<2x4x32x16xbf16, #tpu.memory_space<vmem>>, vector<1x1x32x16xbf16>
    %138 = vector.shape_cast %137 : vector<1x1x32x16xbf16> to vector<32x16xbf16>
    %cst_137 = arith.constant dense<0.000000e+00> : vector<4x16xf32>
    %139 = tpu.matmul %10, %138, %cst_137 {dimension_numbers = #tpu.dot_dimension_numbers<[1], [0], [0], [1], [0, 0, 1, 1], [], []>} : vector<4x32xbf16>, vector<32x16xbf16>, vector<4x16xf32> -> vector<4x16xf32>
    %c0_138 = arith.constant 0 : index
    %c3_139 = arith.constant 3 : index
    %c0_140 = arith.constant 0 : index
    %c0_141 = arith.constant 0 : index
    %140 = vector.load %arg10[%c0_138, %c3_139, %c0_140, %c0_141] : memref<2x4x1x16xf32, #tpu.memory_space<vmem>>, vector<1x1x1x16xf32>
    %141 = vector.shape_cast %140 : vector<1x1x1x16xf32> to vector<1x16xf32>
    %142 = vector.broadcast %141 : vector<1x16xf32> to vector<4x16xf32>
    %143 = arith.addf %139, %142 : vector<4x16xf32>
    %cst_142 = arith.constant dense<0.000000e+00> : vector<64x4xf32>
    %144 = tpu.matmul %129, %136, %cst_142 {dimension_numbers = #tpu.dot_dimension_numbers<[1], [1], [0], [0], [0, 0, 1, 0], [], []>} : vector<64x16xf32>, vector<4x16xf32>, vector<64x4xf32> -> vector<64x4xf32>
    %cst_143 = arith.constant dense<0xFF800000> : vector<64xf32>
    %145 = vector.multi_reduction <maximumf>, %144, %cst_143 [1] : vector<64x4xf32> to vector<64xf32>
    %146 = vector.shape_cast %145 : vector<64xf32> to vector<64x1xf32>
    %147 = vector.broadcast %146 : vector<64x1xf32> to vector<64x4xf32>
    %148 = arith.subf %144, %147 : vector<64x4xf32>
    %149 = math.exp %148 : vector<64x4xf32>
    %cst_144 = arith.constant dense<0.000000e+00> : vector<64xf32>
    %150 = vector.multi_reduction <add>, %149, %cst_144 [1] : vector<64x4xf32> to vector<64xf32>
    %151 = vector.shape_cast %150 : vector<64xf32> to vector<64x1xf32>
    %152 = vector.broadcast %151 : vector<64x1xf32> to vector<64x4xf32>
    %153 = arith.divf %149, %152 : vector<64x4xf32>
    %cst_145 = arith.constant dense<0.000000e+00> : vector<64x16xf32>
    %154 = tpu.matmul %153, %143, %cst_145 {dimension_numbers = #tpu.dot_dimension_numbers<[1], [0], [0], [1], [0, 0, 1, 1], [], []>} : vector<64x4xf32>, vector<4x16xf32>, vector<64x16xf32> -> vector<64x16xf32>
    %155 = arith.truncf %154 : vector<64x16xf32> to vector<64x16xbf16>
    %c0_146 = arith.constant 0 : index
    %c3_147 = arith.constant 3 : index
    %c0_148 = arith.constant 0 : index
    %c0_149 = arith.constant 0 : index
    %156 = vector.load %arg11[%c0_146, %c3_147, %c0_148, %c0_149] : memref<2x4x16x32xbf16, #tpu.memory_space<vmem>>, vector<1x1x16x32xbf16>
    %157 = vector.shape_cast %156 : vector<1x1x16x32xbf16> to vector<16x32xbf16>
    %cst_150 = arith.constant dense<0.000000e+00> : vector<64x32xf32>
    %158 = tpu.matmul %155, %157, %cst_150 {dimension_numbers = #tpu.dot_dimension_numbers<[1], [0], [0], [1], [0, 0, 1, 1], [], []>} : vector<64x16xbf16>, vector<16x32xbf16>, vector<64x32xf32> -> vector<64x32xf32>
    %159 = arith.addf %122, %158 : vector<64x32xf32>
    %c0_151 = arith.constant 0 : index
    %c0_152 = arith.constant 0 : index
    %c0_153 = arith.constant 0 : index
    %160 = vector.load %arg12[%c0_151, %c0_152, %c0_153] : memref<2x1x32xf32, #tpu.memory_space<vmem>>, vector<1x1x32xf32>
    %161 = vector.shape_cast %160 : vector<1x1x32xf32> to vector<1x32xf32>
    %162 = vector.broadcast %161 : vector<1x32xf32> to vector<64x32xf32>
    %163 = arith.addf %159, %162 : vector<64x32xf32>
    %164 = arith.addf %6, %163 : vector<64x32xf32>
    %c0_154 = arith.constant 0 : index
    %c0_155 = arith.constant 0 : index
    %c0_156 = arith.constant 0 : index
    %165 = vector.load %arg13[%c0_154, %c0_155, %c0_156] : memref<2x1x32xf32, #tpu.memory_space<vmem>>, vector<1x1x32xf32>
    %166 = vector.shape_cast %165 : vector<1x1x32xf32> to vector<1x32xf32>
    %c0_157 = arith.constant 0 : index
    %c0_158 = arith.constant 0 : index
    %c0_159 = arith.constant 0 : index
    %167 = vector.load %arg14[%c0_157, %c0_158, %c0_159] : memref<2x1x32xf32, #tpu.memory_space<vmem>>, vector<1x1x32xf32>
    %168 = vector.shape_cast %167 : vector<1x1x32xf32> to vector<1x32xf32>
    %cst_160 = arith.constant dense<0.000000e+00> : vector<64xf32>
    %169 = vector.multi_reduction <add>, %164, %cst_160 [1] : vector<64x32xf32> to vector<64xf32>
    %170 = vector.shape_cast %169 : vector<64xf32> to vector<64x1xf32>
    %cst_161 = arith.constant 3.200000e+01 : f32
    %171 = vector.broadcast %cst_161 : f32 to vector<64x1xf32>
    %172 = arith.divf %170, %171 : vector<64x1xf32>
    %173 = vector.broadcast %172 : vector<64x1xf32> to vector<64x32xf32>
    %174 = arith.subf %164, %173 : vector<64x32xf32>
    %175 = arith.mulf %174, %174 : vector<64x32xf32>
    %cst_162 = arith.constant dense<0.000000e+00> : vector<64xf32>
    %176 = vector.multi_reduction <add>, %175, %cst_162 [1] : vector<64x32xf32> to vector<64xf32>
    %177 = vector.shape_cast %176 : vector<64xf32> to vector<64x1xf32>
    %cst_163 = arith.constant 3.200000e+01 : f32
    %178 = vector.broadcast %cst_163 : f32 to vector<64x1xf32>
    %179 = arith.divf %177, %178 : vector<64x1xf32>
    %cst_164 = arith.constant 9.99999974E-6 : f32
    %180 = vector.broadcast %cst_164 : f32 to vector<64x1xf32>
    %181 = arith.addf %179, %180 : vector<64x1xf32>
    %182 = math.rsqrt %181 : vector<64x1xf32>
    %183 = vector.broadcast %182 : vector<64x1xf32> to vector<64x32xf32>
    %184 = arith.mulf %174, %183 : vector<64x32xf32>
    %185 = vector.broadcast %166 : vector<1x32xf32> to vector<64x32xf32>
    %186 = arith.mulf %184, %185 : vector<64x32xf32>
    %187 = vector.broadcast %168 : vector<1x32xf32> to vector<64x32xf32>
    %188 = arith.addf %186, %187 : vector<64x32xf32>
    %189 = arith.truncf %188 : vector<64x32xf32> to vector<64x32xbf16>
    %c0_165 = arith.constant 0 : index
    %c0_166 = arith.constant 0 : index
    %c0_167 = arith.constant 0 : index
    %190 = vector.load %arg15[%c0_165, %c0_166, %c0_167] : memref<2x32x64xbf16, #tpu.memory_space<vmem>>, vector<1x32x64xbf16>
    %191 = vector.shape_cast %190 : vector<1x32x64xbf16> to vector<32x64xbf16>
    %cst_168 = arith.constant dense<0.000000e+00> : vector<64x64xf32>
    %192 = tpu.matmul %189, %191, %cst_168 {dimension_numbers = #tpu.dot_dimension_numbers<[1], [0], [0], [1], [0, 0, 1, 1], [], []>} : vector<64x32xbf16>, vector<32x64xbf16>, vector<64x64xf32> -> vector<64x64xf32>
    %c0_169 = arith.constant 0 : index
    %c0_170 = arith.constant 0 : index
    %c0_171 = arith.constant 0 : index
    %193 = vector.load %arg16[%c0_169, %c0_170, %c0_171] : memref<2x1x64xf32, #tpu.memory_space<vmem>>, vector<1x1x64xf32>
    %194 = vector.shape_cast %193 : vector<1x1x64xf32> to vector<1x64xf32>
    %195 = vector.broadcast %194 : vector<1x64xf32> to vector<64x64xf32>
    %196 = arith.addf %192, %195 : vector<64x64xf32>
    %197 = arith.mulf %196, %196 : vector<64x64xf32>
    %198 = arith.mulf %196, %197 : vector<64x64xf32>
    %cst_172 = arith.constant 4.471500e-02 : f32
    %199 = vector.broadcast %cst_172 : f32 to vector<64x64xf32>
    %200 = arith.mulf %199, %198 : vector<64x64xf32>
    %201 = arith.addf %196, %200 : vector<64x64xf32>
    %cst_173 = arith.constant 0.797884583 : f32
    %202 = vector.broadcast %cst_173 : f32 to vector<64x64xf32>
    %203 = arith.mulf %202, %201 : vector<64x64xf32>
    %204 = math.tanh %203 : vector<64x64xf32>
    %cst_174 = arith.constant 1.000000e+00 : f32
    %205 = vector.broadcast %cst_174 : f32 to vector<64x64xf32>
    %206 = arith.addf %205, %204 : vector<64x64xf32>
    %cst_175 = arith.constant 5.000000e-01 : f32
    %207 = vector.broadcast %cst_175 : f32 to vector<64x64xf32>
    %208 = arith.mulf %207, %206 : vector<64x64xf32>
    %209 = arith.mulf %196, %208 : vector<64x64xf32>
    %210 = arith.truncf %209 : vector<64x64xf32> to vector<64x64xbf16>
    %c0_176 = arith.constant 0 : index
    %c0_177 = arith.constant 0 : index
    %c0_178 = arith.constant 0 : index
    %211 = vector.load %arg17[%c0_176, %c0_177, %c0_178] : memref<2x64x32xbf16, #tpu.memory_space<vmem>>, vector<1x64x32xbf16>
    %212 = vector.shape_cast %211 : vector<1x64x32xbf16> to vector<64x32xbf16>
    %cst_179 = arith.constant dense<0.000000e+00> : vector<64x32xf32>
    %213 = tpu.matmul %210, %212, %cst_179 {dimension_numbers = #tpu.dot_dimension_numbers<[1], [0], [0], [1], [0, 0, 1, 1], [], []>} : vector<64x64xbf16>, vector<64x32xbf16>, vector<64x32xf32> -> vector<64x32xf32>
    %c0_180 = arith.constant 0 : index
    %c0_181 = arith.constant 0 : index
    %c0_182 = arith.constant 0 : index
    %214 = vector.load %arg18[%c0_180, %c0_181, %c0_182] : memref<2x1x32xf32, #tpu.memory_space<vmem>>, vector<1x1x32xf32>
    %215 = vector.shape_cast %214 : vector<1x1x32xf32> to vector<1x32xf32>
    %216 = vector.broadcast %215 : vector<1x32xf32> to vector<64x32xf32>
    %217 = arith.addf %213, %216 : vector<64x32xf32>
    %218 = arith.addf %188, %217 : vector<64x32xf32>
    %c0_183 = arith.constant 0 : index
    %c0_184 = arith.constant 0 : index
    %c0_185 = arith.constant 0 : index
    %219 = vector.load %arg19[%c0_183, %c0_184, %c0_185] : memref<2x1x32xf32, #tpu.memory_space<vmem>>, vector<1x1x32xf32>
    %220 = vector.shape_cast %219 : vector<1x1x32xf32> to vector<1x32xf32>
    %c0_186 = arith.constant 0 : index
    %c0_187 = arith.constant 0 : index
    %c0_188 = arith.constant 0 : index
    %221 = vector.load %arg20[%c0_186, %c0_187, %c0_188] : memref<2x1x32xf32, #tpu.memory_space<vmem>>, vector<1x1x32xf32>
    %222 = vector.shape_cast %221 : vector<1x1x32xf32> to vector<1x32xf32>
    %cst_189 = arith.constant dense<0.000000e+00> : vector<64xf32>
    %223 = vector.multi_reduction <add>, %218, %cst_189 [1] : vector<64x32xf32> to vector<64xf32>
    %224 = vector.shape_cast %223 : vector<64xf32> to vector<64x1xf32>
    %cst_190 = arith.constant 3.200000e+01 : f32
    %225 = vector.broadcast %cst_190 : f32 to vector<64x1xf32>
    %226 = arith.divf %224, %225 : vector<64x1xf32>
    %227 = vector.broadcast %226 : vector<64x1xf32> to vector<64x32xf32>
    %228 = arith.subf %218, %227 : vector<64x32xf32>
    %229 = arith.mulf %228, %228 : vector<64x32xf32>
    %cst_191 = arith.constant dense<0.000000e+00> : vector<64xf32>
    %230 = vector.multi_reduction <add>, %229, %cst_191 [1] : vector<64x32xf32> to vector<64xf32>
    %231 = vector.shape_cast %230 : vector<64xf32> to vector<64x1xf32>
    %cst_192 = arith.constant 3.200000e+01 : f32
    %232 = vector.broadcast %cst_192 : f32 to vector<64x1xf32>
    %233 = arith.divf %231, %232 : vector<64x1xf32>
    %cst_193 = arith.constant 9.99999974E-6 : f32
    %234 = vector.broadcast %cst_193 : f32 to vector<64x1xf32>
    %235 = arith.addf %233, %234 : vector<64x1xf32>
    %236 = math.rsqrt %235 : vector<64x1xf32>
    %237 = vector.broadcast %236 : vector<64x1xf32> to vector<64x32xf32>
    %238 = arith.mulf %228, %237 : vector<64x32xf32>
    %239 = vector.broadcast %220 : vector<1x32xf32> to vector<64x32xf32>
    %240 = arith.mulf %238, %239 : vector<64x32xf32>
    %241 = vector.broadcast %222 : vector<1x32xf32> to vector<64x32xf32>
    %242 = arith.addf %240, %241 : vector<64x32xf32>
    %243 = arith.truncf %242 : vector<64x32xf32> to vector<64x32xbf16>
    %cst_194 = arith.constant dense<0.000000e+00> : vector<4x32xf32>
    %244 = tpu.matmul %7, %243, %cst_194 {dimension_numbers = #tpu.dot_dimension_numbers<[1], [0], [0], [1], [0, 0, 1, 1], [], []>} : vector<4x64xbf16>, vector<64x32xbf16>, vector<4x32xf32> -> vector<4x32xf32>
    %245 = arith.truncf %244 : vector<4x32xf32> to vector<4x32xbf16>
    %cst_195 = arith.constant 0.000000e+00 : f32
    %246 = vector.broadcast %cst_195 : f32 to vector<64x32xf32>
    %c1_196 = arith.constant 1 : index
    %c0_197 = arith.constant 0 : index
    %c0_198 = arith.constant 0 : index
    %c0_199 = arith.constant 0 : index
    %247 = vector.load %arg5[%c1_196, %c0_197, %c0_198, %c0_199] : memref<2x4x32x16xbf16, #tpu.memory_space<vmem>>, vector<1x1x32x16xbf16>
    %248 = vector.shape_cast %247 : vector<1x1x32x16xbf16> to vector<32x16xbf16>
    %cst_200 = arith.constant dense<0.000000e+00> : vector<64x16xf32>
    %249 = tpu.matmul %243, %248, %cst_200 {dimension_numbers = #tpu.dot_dimension_numbers<[1], [0], [0], [1], [0, 0, 1, 1], [], []>} : vector<64x32xbf16>, vector<32x16xbf16>, vector<64x16xf32> -> vector<64x16xf32>
    %c1_201 = arith.constant 1 : index
    %c0_202 = arith.constant 0 : index
    %c0_203 = arith.constant 0 : index
    %c0_204 = arith.constant 0 : index
    %250 = vector.load %arg6[%c1_201, %c0_202, %c0_203, %c0_204] : memref<2x4x1x16xf32, #tpu.memory_space<vmem>>, vector<1x1x1x16xf32>
    %251 = vector.shape_cast %250 : vector<1x1x1x16xf32> to vector<1x16xf32>
    %252 = vector.broadcast %251 : vector<1x16xf32> to vector<64x16xf32>
    %253 = arith.addf %249, %252 : vector<64x16xf32>
    %c1_205 = arith.constant 1 : index
    %c0_206 = arith.constant 0 : index
    %c0_207 = arith.constant 0 : index
    %c0_208 = arith.constant 0 : index
    %254 = vector.load %arg7[%c1_205, %c0_206, %c0_207, %c0_208] : memref<2x4x32x16xbf16, #tpu.memory_space<vmem>>, vector<1x1x32x16xbf16>
    %255 = vector.shape_cast %254 : vector<1x1x32x16xbf16> to vector<32x16xbf16>
    %cst_209 = arith.constant dense<0.000000e+00> : vector<4x16xf32>
    %256 = tpu.matmul %245, %255, %cst_209 {dimension_numbers = #tpu.dot_dimension_numbers<[1], [0], [0], [1], [0, 0, 1, 1], [], []>} : vector<4x32xbf16>, vector<32x16xbf16>, vector<4x16xf32> -> vector<4x16xf32>
    %c1_210 = arith.constant 1 : index
    %c0_211 = arith.constant 0 : index
    %c0_212 = arith.constant 0 : index
    %c0_213 = arith.constant 0 : index
    %257 = vector.load %arg8[%c1_210, %c0_211, %c0_212, %c0_213] : memref<2x4x1x16xf32, #tpu.memory_space<vmem>>, vector<1x1x1x16xf32>
    %258 = vector.shape_cast %257 : vector<1x1x1x16xf32> to vector<1x16xf32>
    %259 = vector.broadcast %258 : vector<1x16xf32> to vector<4x16xf32>
    %260 = arith.addf %256, %259 : vector<4x16xf32>
    %c1_214 = arith.constant 1 : index
    %c0_215 = arith.constant 0 : index
    %c0_216 = arith.constant 0 : index
    %c0_217 = arith.constant 0 : index
    %261 = vector.load %arg9[%c1_214, %c0_215, %c0_216, %c0_217] : memref<2x4x32x16xbf16, #tpu.memory_space<vmem>>, vector<1x1x32x16xbf16>
    %262 = vector.shape_cast %261 : vector<1x1x32x16xbf16> to vector<32x16xbf16>
    %cst_218 = arith.constant dense<0.000000e+00> : vector<4x16xf32>
    %263 = tpu.matmul %245, %262, %cst_218 {dimension_numbers = #tpu.dot_dimension_numbers<[1], [0], [0], [1], [0, 0, 1, 1], [], []>} : vector<4x32xbf16>, vector<32x16xbf16>, vector<4x16xf32> -> vector<4x16xf32>
    %c1_219 = arith.constant 1 : index
    %c0_220 = arith.constant 0 : index
    %c0_221 = arith.constant 0 : index
    %c0_222 = arith.constant 0 : index
    %264 = vector.load %arg10[%c1_219, %c0_220, %c0_221, %c0_222] : memref<2x4x1x16xf32, #tpu.memory_space<vmem>>, vector<1x1x1x16xf32>
    %265 = vector.shape_cast %264 : vector<1x1x1x16xf32> to vector<1x16xf32>
    %266 = vector.broadcast %265 : vector<1x16xf32> to vector<4x16xf32>
    %267 = arith.addf %263, %266 : vector<4x16xf32>
    %cst_223 = arith.constant dense<0.000000e+00> : vector<64x4xf32>
    %268 = tpu.matmul %253, %260, %cst_223 {dimension_numbers = #tpu.dot_dimension_numbers<[1], [1], [0], [0], [0, 0, 1, 0], [], []>} : vector<64x16xf32>, vector<4x16xf32>, vector<64x4xf32> -> vector<64x4xf32>
    %cst_224 = arith.constant dense<0xFF800000> : vector<64xf32>
    %269 = vector.multi_reduction <maximumf>, %268, %cst_224 [1] : vector<64x4xf32> to vector<64xf32>
    %270 = vector.shape_cast %269 : vector<64xf32> to vector<64x1xf32>
    %271 = vector.broadcast %270 : vector<64x1xf32> to vector<64x4xf32>
    %272 = arith.subf %268, %271 : vector<64x4xf32>
    %273 = math.exp %272 : vector<64x4xf32>
    %cst_225 = arith.constant dense<0.000000e+00> : vector<64xf32>
    %274 = vector.multi_reduction <add>, %273, %cst_225 [1] : vector<64x4xf32> to vector<64xf32>
    %275 = vector.shape_cast %274 : vector<64xf32> to vector<64x1xf32>
    %276 = vector.broadcast %275 : vector<64x1xf32> to vector<64x4xf32>
    %277 = arith.divf %273, %276 : vector<64x4xf32>
    %cst_226 = arith.constant dense<0.000000e+00> : vector<64x16xf32>
    %278 = tpu.matmul %277, %267, %cst_226 {dimension_numbers = #tpu.dot_dimension_numbers<[1], [0], [0], [1], [0, 0, 1, 1], [], []>} : vector<64x4xf32>, vector<4x16xf32>, vector<64x16xf32> -> vector<64x16xf32>
    %279 = arith.truncf %278 : vector<64x16xf32> to vector<64x16xbf16>
    %c1_227 = arith.constant 1 : index
    %c0_228 = arith.constant 0 : index
    %c0_229 = arith.constant 0 : index
    %c0_230 = arith.constant 0 : index
    %280 = vector.load %arg11[%c1_227, %c0_228, %c0_229, %c0_230] : memref<2x4x16x32xbf16, #tpu.memory_space<vmem>>, vector<1x1x16x32xbf16>
    %281 = vector.shape_cast %280 : vector<1x1x16x32xbf16> to vector<16x32xbf16>
    %cst_231 = arith.constant dense<0.000000e+00> : vector<64x32xf32>
    %282 = tpu.matmul %279, %281, %cst_231 {dimension_numbers = #tpu.dot_dimension_numbers<[1], [0], [0], [1], [0, 0, 1, 1], [], []>} : vector<64x16xbf16>, vector<16x32xbf16>, vector<64x32xf32> -> vector<64x32xf32>
    %283 = arith.addf %246, %282 : vector<64x32xf32>
    %c1_232 = arith.constant 1 : index
    %c1_233 = arith.constant 1 : index
    %c0_234 = arith.constant 0 : index
    %c0_235 = arith.constant 0 : index
    %284 = vector.load %arg5[%c1_232, %c1_233, %c0_234, %c0_235] : memref<2x4x32x16xbf16, #tpu.memory_space<vmem>>, vector<1x1x32x16xbf16>
    %285 = vector.shape_cast %284 : vector<1x1x32x16xbf16> to vector<32x16xbf16>
    %cst_236 = arith.constant dense<0.000000e+00> : vector<64x16xf32>
    %286 = tpu.matmul %243, %285, %cst_236 {dimension_numbers = #tpu.dot_dimension_numbers<[1], [0], [0], [1], [0, 0, 1, 1], [], []>} : vector<64x32xbf16>, vector<32x16xbf16>, vector<64x16xf32> -> vector<64x16xf32>
    %c1_237 = arith.constant 1 : index
    %c1_238 = arith.constant 1 : index
    %c0_239 = arith.constant 0 : index
    %c0_240 = arith.constant 0 : index
    %287 = vector.load %arg6[%c1_237, %c1_238, %c0_239, %c0_240] : memref<2x4x1x16xf32, #tpu.memory_space<vmem>>, vector<1x1x1x16xf32>
    %288 = vector.shape_cast %287 : vector<1x1x1x16xf32> to vector<1x16xf32>
    %289 = vector.broadcast %288 : vector<1x16xf32> to vector<64x16xf32>
    %290 = arith.addf %286, %289 : vector<64x16xf32>
    %c1_241 = arith.constant 1 : index
    %c1_242 = arith.constant 1 : index
    %c0_243 = arith.constant 0 : index
    %c0_244 = arith.constant 0 : index
    %291 = vector.load %arg7[%c1_241, %c1_242, %c0_243, %c0_244] : memref<2x4x32x16xbf16, #tpu.memory_space<vmem>>, vector<1x1x32x16xbf16>
    %292 = vector.shape_cast %291 : vector<1x1x32x16xbf16> to vector<32x16xbf16>
    %cst_245 = arith.constant dense<0.000000e+00> : vector<4x16xf32>
    %293 = tpu.matmul %245, %292, %cst_245 {dimension_numbers = #tpu.dot_dimension_numbers<[1], [0], [0], [1], [0, 0, 1, 1], [], []>} : vector<4x32xbf16>, vector<32x16xbf16>, vector<4x16xf32> -> vector<4x16xf32>
    %c1_246 = arith.constant 1 : index
    %c1_247 = arith.constant 1 : index
    %c0_248 = arith.constant 0 : index
    %c0_249 = arith.constant 0 : index
    %294 = vector.load %arg8[%c1_246, %c1_247, %c0_248, %c0_249] : memref<2x4x1x16xf32, #tpu.memory_space<vmem>>, vector<1x1x1x16xf32>
    %295 = vector.shape_cast %294 : vector<1x1x1x16xf32> to vector<1x16xf32>
    %296 = vector.broadcast %295 : vector<1x16xf32> to vector<4x16xf32>
    %297 = arith.addf %293, %296 : vector<4x16xf32>
    %c1_250 = arith.constant 1 : index
    %c1_251 = arith.constant 1 : index
    %c0_252 = arith.constant 0 : index
    %c0_253 = arith.constant 0 : index
    %298 = vector.load %arg9[%c1_250, %c1_251, %c0_252, %c0_253] : memref<2x4x32x16xbf16, #tpu.memory_space<vmem>>, vector<1x1x32x16xbf16>
    %299 = vector.shape_cast %298 : vector<1x1x32x16xbf16> to vector<32x16xbf16>
    %cst_254 = arith.constant dense<0.000000e+00> : vector<4x16xf32>
    %300 = tpu.matmul %245, %299, %cst_254 {dimension_numbers = #tpu.dot_dimension_numbers<[1], [0], [0], [1], [0, 0, 1, 1], [], []>} : vector<4x32xbf16>, vector<32x16xbf16>, vector<4x16xf32> -> vector<4x16xf32>
    %c1_255 = arith.constant 1 : index
    %c1_256 = arith.constant 1 : index
    %c0_257 = arith.constant 0 : index
    %c0_258 = arith.constant 0 : index
    %301 = vector.load %arg10[%c1_255, %c1_256, %c0_257, %c0_258] : memref<2x4x1x16xf32, #tpu.memory_space<vmem>>, vector<1x1x1x16xf32>
    %302 = vector.shape_cast %301 : vector<1x1x1x16xf32> to vector<1x16xf32>
    %303 = vector.broadcast %302 : vector<1x16xf32> to vector<4x16xf32>
    %304 = arith.addf %300, %303 : vector<4x16xf32>
    %cst_259 = arith.constant dense<0.000000e+00> : vector<64x4xf32>
    %305 = tpu.matmul %290, %297, %cst_259 {dimension_numbers = #tpu.dot_dimension_numbers<[1], [1], [0], [0], [0, 0, 1, 0], [], []>} : vector<64x16xf32>, vector<4x16xf32>, vector<64x4xf32> -> vector<64x4xf32>
    %cst_260 = arith.constant dense<0xFF800000> : vector<64xf32>
    %306 = vector.multi_reduction <maximumf>, %305, %cst_260 [1] : vector<64x4xf32> to vector<64xf32>
    %307 = vector.shape_cast %306 : vector<64xf32> to vector<64x1xf32>
    %308 = vector.broadcast %307 : vector<64x1xf32> to vector<64x4xf32>
    %309 = arith.subf %305, %308 : vector<64x4xf32>
    %310 = math.exp %309 : vector<64x4xf32>
    %cst_261 = arith.constant dense<0.000000e+00> : vector<64xf32>
    %311 = vector.multi_reduction <add>, %310, %cst_261 [1] : vector<64x4xf32> to vector<64xf32>
    %312 = vector.shape_cast %311 : vector<64xf32> to vector<64x1xf32>
    %313 = vector.broadcast %312 : vector<64x1xf32> to vector<64x4xf32>
    %314 = arith.divf %310, %313 : vector<64x4xf32>
    %cst_262 = arith.constant dense<0.000000e+00> : vector<64x16xf32>
    %315 = tpu.matmul %314, %304, %cst_262 {dimension_numbers = #tpu.dot_dimension_numbers<[1], [0], [0], [1], [0, 0, 1, 1], [], []>} : vector<64x4xf32>, vector<4x16xf32>, vector<64x16xf32> -> vector<64x16xf32>
    %316 = arith.truncf %315 : vector<64x16xf32> to vector<64x16xbf16>
    %c1_263 = arith.constant 1 : index
    %c1_264 = arith.constant 1 : index
    %c0_265 = arith.constant 0 : index
    %c0_266 = arith.constant 0 : index
    %317 = vector.load %arg11[%c1_263, %c1_264, %c0_265, %c0_266] : memref<2x4x16x32xbf16, #tpu.memory_space<vmem>>, vector<1x1x16x32xbf16>
    %318 = vector.shape_cast %317 : vector<1x1x16x32xbf16> to vector<16x32xbf16>
    %cst_267 = arith.constant dense<0.000000e+00> : vector<64x32xf32>
    %319 = tpu.matmul %316, %318, %cst_267 {dimension_numbers = #tpu.dot_dimension_numbers<[1], [0], [0], [1], [0, 0, 1, 1], [], []>} : vector<64x16xbf16>, vector<16x32xbf16>, vector<64x32xf32> -> vector<64x32xf32>
    %320 = arith.addf %283, %319 : vector<64x32xf32>
    %c1_268 = arith.constant 1 : index
    %c2_269 = arith.constant 2 : index
    %c0_270 = arith.constant 0 : index
    %c0_271 = arith.constant 0 : index
    %321 = vector.load %arg5[%c1_268, %c2_269, %c0_270, %c0_271] : memref<2x4x32x16xbf16, #tpu.memory_space<vmem>>, vector<1x1x32x16xbf16>
    %322 = vector.shape_cast %321 : vector<1x1x32x16xbf16> to vector<32x16xbf16>
    %cst_272 = arith.constant dense<0.000000e+00> : vector<64x16xf32>
    %323 = tpu.matmul %243, %322, %cst_272 {dimension_numbers = #tpu.dot_dimension_numbers<[1], [0], [0], [1], [0, 0, 1, 1], [], []>} : vector<64x32xbf16>, vector<32x16xbf16>, vector<64x16xf32> -> vector<64x16xf32>
    %c1_273 = arith.constant 1 : index
    %c2_274 = arith.constant 2 : index
    %c0_275 = arith.constant 0 : index
    %c0_276 = arith.constant 0 : index
    %324 = vector.load %arg6[%c1_273, %c2_274, %c0_275, %c0_276] : memref<2x4x1x16xf32, #tpu.memory_space<vmem>>, vector<1x1x1x16xf32>
    %325 = vector.shape_cast %324 : vector<1x1x1x16xf32> to vector<1x16xf32>
    %326 = vector.broadcast %325 : vector<1x16xf32> to vector<64x16xf32>
    %327 = arith.addf %323, %326 : vector<64x16xf32>
    %c1_277 = arith.constant 1 : index
    %c2_278 = arith.constant 2 : index
    %c0_279 = arith.constant 0 : index
    %c0_280 = arith.constant 0 : index
    %328 = vector.load %arg7[%c1_277, %c2_278, %c0_279, %c0_280] : memref<2x4x32x16xbf16, #tpu.memory_space<vmem>>, vector<1x1x32x16xbf16>
    %329 = vector.shape_cast %328 : vector<1x1x32x16xbf16> to vector<32x16xbf16>
    %cst_281 = arith.constant dense<0.000000e+00> : vector<4x16xf32>
    %330 = tpu.matmul %245, %329, %cst_281 {dimension_numbers = #tpu.dot_dimension_numbers<[1], [0], [0], [1], [0, 0, 1, 1], [], []>} : vector<4x32xbf16>, vector<32x16xbf16>, vector<4x16xf32> -> vector<4x16xf32>
    %c1_282 = arith.constant 1 : index
    %c2_283 = arith.constant 2 : index
    %c0_284 = arith.constant 0 : index
    %c0_285 = arith.constant 0 : index
    %331 = vector.load %arg8[%c1_282, %c2_283, %c0_284, %c0_285] : memref<2x4x1x16xf32, #tpu.memory_space<vmem>>, vector<1x1x1x16xf32>
    %332 = vector.shape_cast %331 : vector<1x1x1x16xf32> to vector<1x16xf32>
    %333 = vector.broadcast %332 : vector<1x16xf32> to vector<4x16xf32>
    %334 = arith.addf %330, %333 : vector<4x16xf32>
    %c1_286 = arith.constant 1 : index
    %c2_287 = arith.constant 2 : index
    %c0_288 = arith.constant 0 : index
    %c0_289 = arith.constant 0 : index
    %335 = vector.load %arg9[%c1_286, %c2_287, %c0_288, %c0_289] : memref<2x4x32x16xbf16, #tpu.memory_space<vmem>>, vector<1x1x32x16xbf16>
    %336 = vector.shape_cast %335 : vector<1x1x32x16xbf16> to vector<32x16xbf16>
    %cst_290 = arith.constant dense<0.000000e+00> : vector<4x16xf32>
    %337 = tpu.matmul %245, %336, %cst_290 {dimension_numbers = #tpu.dot_dimension_numbers<[1], [0], [0], [1], [0, 0, 1, 1], [], []>} : vector<4x32xbf16>, vector<32x16xbf16>, vector<4x16xf32> -> vector<4x16xf32>
    %c1_291 = arith.constant 1 : index
    %c2_292 = arith.constant 2 : index
    %c0_293 = arith.constant 0 : index
    %c0_294 = arith.constant 0 : index
    %338 = vector.load %arg10[%c1_291, %c2_292, %c0_293, %c0_294] : memref<2x4x1x16xf32, #tpu.memory_space<vmem>>, vector<1x1x1x16xf32>
    %339 = vector.shape_cast %338 : vector<1x1x1x16xf32> to vector<1x16xf32>
    %340 = vector.broadcast %339 : vector<1x16xf32> to vector<4x16xf32>
    %341 = arith.addf %337, %340 : vector<4x16xf32>
    %cst_295 = arith.constant dense<0.000000e+00> : vector<64x4xf32>
    %342 = tpu.matmul %327, %334, %cst_295 {dimension_numbers = #tpu.dot_dimension_numbers<[1], [1], [0], [0], [0, 0, 1, 0], [], []>} : vector<64x16xf32>, vector<4x16xf32>, vector<64x4xf32> -> vector<64x4xf32>
    %cst_296 = arith.constant dense<0xFF800000> : vector<64xf32>
    %343 = vector.multi_reduction <maximumf>, %342, %cst_296 [1] : vector<64x4xf32> to vector<64xf32>
    %344 = vector.shape_cast %343 : vector<64xf32> to vector<64x1xf32>
    %345 = vector.broadcast %344 : vector<64x1xf32> to vector<64x4xf32>
    %346 = arith.subf %342, %345 : vector<64x4xf32>
    %347 = math.exp %346 : vector<64x4xf32>
    %cst_297 = arith.constant dense<0.000000e+00> : vector<64xf32>
    %348 = vector.multi_reduction <add>, %347, %cst_297 [1] : vector<64x4xf32> to vector<64xf32>
    %349 = vector.shape_cast %348 : vector<64xf32> to vector<64x1xf32>
    %350 = vector.broadcast %349 : vector<64x1xf32> to vector<64x4xf32>
    %351 = arith.divf %347, %350 : vector<64x4xf32>
    %cst_298 = arith.constant dense<0.000000e+00> : vector<64x16xf32>
    %352 = tpu.matmul %351, %341, %cst_298 {dimension_numbers = #tpu.dot_dimension_numbers<[1], [0], [0], [1], [0, 0, 1, 1], [], []>} : vector<64x4xf32>, vector<4x16xf32>, vector<64x16xf32> -> vector<64x16xf32>
    %353 = arith.truncf %352 : vector<64x16xf32> to vector<64x16xbf16>
    %c1_299 = arith.constant 1 : index
    %c2_300 = arith.constant 2 : index
    %c0_301 = arith.constant 0 : index
    %c0_302 = arith.constant 0 : index
    %354 = vector.load %arg11[%c1_299, %c2_300, %c0_301, %c0_302] : memref<2x4x16x32xbf16, #tpu.memory_space<vmem>>, vector<1x1x16x32xbf16>
    %355 = vector.shape_cast %354 : vector<1x1x16x32xbf16> to vector<16x32xbf16>
    %cst_303 = arith.constant dense<0.000000e+00> : vector<64x32xf32>
    %356 = tpu.matmul %353, %355, %cst_303 {dimension_numbers = #tpu.dot_dimension_numbers<[1], [0], [0], [1], [0, 0, 1, 1], [], []>} : vector<64x16xbf16>, vector<16x32xbf16>, vector<64x32xf32> -> vector<64x32xf32>
    %357 = arith.addf %320, %356 : vector<64x32xf32>
    %c1_304 = arith.constant 1 : index
    %c3_305 = arith.constant 3 : index
    %c0_306 = arith.constant 0 : index
    %c0_307 = arith.constant 0 : index
    %358 = vector.load %arg5[%c1_304, %c3_305, %c0_306, %c0_307] : memref<2x4x32x16xbf16, #tpu.memory_space<vmem>>, vector<1x1x32x16xbf16>
    %359 = vector.shape_cast %358 : vector<1x1x32x16xbf16> to vector<32x16xbf16>
    %cst_308 = arith.constant dense<0.000000e+00> : vector<64x16xf32>
    %360 = tpu.matmul %243, %359, %cst_308 {dimension_numbers = #tpu.dot_dimension_numbers<[1], [0], [0], [1], [0, 0, 1, 1], [], []>} : vector<64x32xbf16>, vector<32x16xbf16>, vector<64x16xf32> -> vector<64x16xf32>
    %c1_309 = arith.constant 1 : index
    %c3_310 = arith.constant 3 : index
    %c0_311 = arith.constant 0 : index
    %c0_312 = arith.constant 0 : index
    %361 = vector.load %arg6[%c1_309, %c3_310, %c0_311, %c0_312] : memref<2x4x1x16xf32, #tpu.memory_space<vmem>>, vector<1x1x1x16xf32>
    %362 = vector.shape_cast %361 : vector<1x1x1x16xf32> to vector<1x16xf32>
    %363 = vector.broadcast %362 : vector<1x16xf32> to vector<64x16xf32>
    %364 = arith.addf %360, %363 : vector<64x16xf32>
    %c1_313 = arith.constant 1 : index
    %c3_314 = arith.constant 3 : index
    %c0_315 = arith.constant 0 : index
    %c0_316 = arith.constant 0 : index
    %365 = vector.load %arg7[%c1_313, %c3_314, %c0_315, %c0_316] : memref<2x4x32x16xbf16, #tpu.memory_space<vmem>>, vector<1x1x32x16xbf16>
    %366 = vector.shape_cast %365 : vector<1x1x32x16xbf16> to vector<32x16xbf16>
    %cst_317 = arith.constant dense<0.000000e+00> : vector<4x16xf32>
    %367 = tpu.matmul %245, %366, %cst_317 {dimension_numbers = #tpu.dot_dimension_numbers<[1], [0], [0], [1], [0, 0, 1, 1], [], []>} : vector<4x32xbf16>, vector<32x16xbf16>, vector<4x16xf32> -> vector<4x16xf32>
    %c1_318 = arith.constant 1 : index
    %c3_319 = arith.constant 3 : index
    %c0_320 = arith.constant 0 : index
    %c0_321 = arith.constant 0 : index
    %368 = vector.load %arg8[%c1_318, %c3_319, %c0_320, %c0_321] : memref<2x4x1x16xf32, #tpu.memory_space<vmem>>, vector<1x1x1x16xf32>
    %369 = vector.shape_cast %368 : vector<1x1x1x16xf32> to vector<1x16xf32>
    %370 = vector.broadcast %369 : vector<1x16xf32> to vector<4x16xf32>
    %371 = arith.addf %367, %370 : vector<4x16xf32>
    %c1_322 = arith.constant 1 : index
    %c3_323 = arith.constant 3 : index
    %c0_324 = arith.constant 0 : index
    %c0_325 = arith.constant 0 : index
    %372 = vector.load %arg9[%c1_322, %c3_323, %c0_324, %c0_325] : memref<2x4x32x16xbf16, #tpu.memory_space<vmem>>, vector<1x1x32x16xbf16>
    %373 = vector.shape_cast %372 : vector<1x1x32x16xbf16> to vector<32x16xbf16>
    %cst_326 = arith.constant dense<0.000000e+00> : vector<4x16xf32>
    %374 = tpu.matmul %245, %373, %cst_326 {dimension_numbers = #tpu.dot_dimension_numbers<[1], [0], [0], [1], [0, 0, 1, 1], [], []>} : vector<4x32xbf16>, vector<32x16xbf16>, vector<4x16xf32> -> vector<4x16xf32>
    %c1_327 = arith.constant 1 : index
    %c3_328 = arith.constant 3 : index
    %c0_329 = arith.constant 0 : index
    %c0_330 = arith.constant 0 : index
    %375 = vector.load %arg10[%c1_327, %c3_328, %c0_329, %c0_330] : memref<2x4x1x16xf32, #tpu.memory_space<vmem>>, vector<1x1x1x16xf32>
    %376 = vector.shape_cast %375 : vector<1x1x1x16xf32> to vector<1x16xf32>
    %377 = vector.broadcast %376 : vector<1x16xf32> to vector<4x16xf32>
    %378 = arith.addf %374, %377 : vector<4x16xf32>
    %cst_331 = arith.constant dense<0.000000e+00> : vector<64x4xf32>
    %379 = tpu.matmul %364, %371, %cst_331 {dimension_numbers = #tpu.dot_dimension_numbers<[1], [1], [0], [0], [0, 0, 1, 0], [], []>} : vector<64x16xf32>, vector<4x16xf32>, vector<64x4xf32> -> vector<64x4xf32>
    %cst_332 = arith.constant dense<0xFF800000> : vector<64xf32>
    %380 = vector.multi_reduction <maximumf>, %379, %cst_332 [1] : vector<64x4xf32> to vector<64xf32>
    %381 = vector.shape_cast %380 : vector<64xf32> to vector<64x1xf32>
    %382 = vector.broadcast %381 : vector<64x1xf32> to vector<64x4xf32>
    %383 = arith.subf %379, %382 : vector<64x4xf32>
    %384 = math.exp %383 : vector<64x4xf32>
    %cst_333 = arith.constant dense<0.000000e+00> : vector<64xf32>
    %385 = vector.multi_reduction <add>, %384, %cst_333 [1] : vector<64x4xf32> to vector<64xf32>
    %386 = vector.shape_cast %385 : vector<64xf32> to vector<64x1xf32>
    %387 = vector.broadcast %386 : vector<64x1xf32> to vector<64x4xf32>
    %388 = arith.divf %384, %387 : vector<64x4xf32>
    %cst_334 = arith.constant dense<0.000000e+00> : vector<64x16xf32>
    %389 = tpu.matmul %388, %378, %cst_334 {dimension_numbers = #tpu.dot_dimension_numbers<[1], [0], [0], [1], [0, 0, 1, 1], [], []>} : vector<64x4xf32>, vector<4x16xf32>, vector<64x16xf32> -> vector<64x16xf32>
    %390 = arith.truncf %389 : vector<64x16xf32> to vector<64x16xbf16>
    %c1_335 = arith.constant 1 : index
    %c3_336 = arith.constant 3 : index
    %c0_337 = arith.constant 0 : index
    %c0_338 = arith.constant 0 : index
    %391 = vector.load %arg11[%c1_335, %c3_336, %c0_337, %c0_338] : memref<2x4x16x32xbf16, #tpu.memory_space<vmem>>, vector<1x1x16x32xbf16>
    %392 = vector.shape_cast %391 : vector<1x1x16x32xbf16> to vector<16x32xbf16>
    %cst_339 = arith.constant dense<0.000000e+00> : vector<64x32xf32>
    %393 = tpu.matmul %390, %392, %cst_339 {dimension_numbers = #tpu.dot_dimension_numbers<[1], [0], [0], [1], [0, 0, 1, 1], [], []>} : vector<64x16xbf16>, vector<16x32xbf16>, vector<64x32xf32> -> vector<64x32xf32>
    %394 = arith.addf %357, %393 : vector<64x32xf32>
    %c1_340 = arith.constant 1 : index
    %c0_341 = arith.constant 0 : index
    %c0_342 = arith.constant 0 : index
    %395 = vector.load %arg12[%c1_340, %c0_341, %c0_342] : memref<2x1x32xf32, #tpu.memory_space<vmem>>, vector<1x1x32xf32>
    %396 = vector.shape_cast %395 : vector<1x1x32xf32> to vector<1x32xf32>
    %397 = vector.broadcast %396 : vector<1x32xf32> to vector<64x32xf32>
    %398 = arith.addf %394, %397 : vector<64x32xf32>
    %399 = arith.addf %242, %398 : vector<64x32xf32>
    %c1_343 = arith.constant 1 : index
    %c0_344 = arith.constant 0 : index
    %c0_345 = arith.constant 0 : index
    %400 = vector.load %arg13[%c1_343, %c0_344, %c0_345] : memref<2x1x32xf32, #tpu.memory_space<vmem>>, vector<1x1x32xf32>
    %401 = vector.shape_cast %400 : vector<1x1x32xf32> to vector<1x32xf32>
    %c1_346 = arith.constant 1 : index
    %c0_347 = arith.constant 0 : index
    %c0_348 = arith.constant 0 : index
    %402 = vector.load %arg14[%c1_346, %c0_347, %c0_348] : memref<2x1x32xf32, #tpu.memory_space<vmem>>, vector<1x1x32xf32>
    %403 = vector.shape_cast %402 : vector<1x1x32xf32> to vector<1x32xf32>
    %cst_349 = arith.constant dense<0.000000e+00> : vector<64xf32>
    %404 = vector.multi_reduction <add>, %399, %cst_349 [1] : vector<64x32xf32> to vector<64xf32>
    %405 = vector.shape_cast %404 : vector<64xf32> to vector<64x1xf32>
    %cst_350 = arith.constant 3.200000e+01 : f32
    %406 = vector.broadcast %cst_350 : f32 to vector<64x1xf32>
    %407 = arith.divf %405, %406 : vector<64x1xf32>
    %408 = vector.broadcast %407 : vector<64x1xf32> to vector<64x32xf32>
    %409 = arith.subf %399, %408 : vector<64x32xf32>
    %410 = arith.mulf %409, %409 : vector<64x32xf32>
    %cst_351 = arith.constant dense<0.000000e+00> : vector<64xf32>
    %411 = vector.multi_reduction <add>, %410, %cst_351 [1] : vector<64x32xf32> to vector<64xf32>
    %412 = vector.shape_cast %411 : vector<64xf32> to vector<64x1xf32>
    %cst_352 = arith.constant 3.200000e+01 : f32
    %413 = vector.broadcast %cst_352 : f32 to vector<64x1xf32>
    %414 = arith.divf %412, %413 : vector<64x1xf32>
    %cst_353 = arith.constant 9.99999974E-6 : f32
    %415 = vector.broadcast %cst_353 : f32 to vector<64x1xf32>
    %416 = arith.addf %414, %415 : vector<64x1xf32>
    %417 = math.rsqrt %416 : vector<64x1xf32>
    %418 = vector.broadcast %417 : vector<64x1xf32> to vector<64x32xf32>
    %419 = arith.mulf %409, %418 : vector<64x32xf32>
    %420 = vector.broadcast %401 : vector<1x32xf32> to vector<64x32xf32>
    %421 = arith.mulf %419, %420 : vector<64x32xf32>
    %422 = vector.broadcast %403 : vector<1x32xf32> to vector<64x32xf32>
    %423 = arith.addf %421, %422 : vector<64x32xf32>
    %424 = arith.truncf %423 : vector<64x32xf32> to vector<64x32xbf16>
    %c1_354 = arith.constant 1 : index
    %c0_355 = arith.constant 0 : index
    %c0_356 = arith.constant 0 : index
    %425 = vector.load %arg15[%c1_354, %c0_355, %c0_356] : memref<2x32x64xbf16, #tpu.memory_space<vmem>>, vector<1x32x64xbf16>
    %426 = vector.shape_cast %425 : vector<1x32x64xbf16> to vector<32x64xbf16>
    %cst_357 = arith.constant dense<0.000000e+00> : vector<64x64xf32>
    %427 = tpu.matmul %424, %426, %cst_357 {dimension_numbers = #tpu.dot_dimension_numbers<[1], [0], [0], [1], [0, 0, 1, 1], [], []>} : vector<64x32xbf16>, vector<32x64xbf16>, vector<64x64xf32> -> vector<64x64xf32>
    %c1_358 = arith.constant 1 : index
    %c0_359 = arith.constant 0 : index
    %c0_360 = arith.constant 0 : index
    %428 = vector.load %arg16[%c1_358, %c0_359, %c0_360] : memref<2x1x64xf32, #tpu.memory_space<vmem>>, vector<1x1x64xf32>
    %429 = vector.shape_cast %428 : vector<1x1x64xf32> to vector<1x64xf32>
    %430 = vector.broadcast %429 : vector<1x64xf32> to vector<64x64xf32>
    %431 = arith.addf %427, %430 : vector<64x64xf32>
    %432 = arith.mulf %431, %431 : vector<64x64xf32>
    %433 = arith.mulf %431, %432 : vector<64x64xf32>
    %cst_361 = arith.constant 4.471500e-02 : f32
    %434 = vector.broadcast %cst_361 : f32 to vector<64x64xf32>
    %435 = arith.mulf %434, %433 : vector<64x64xf32>
    %436 = arith.addf %431, %435 : vector<64x64xf32>
    %cst_362 = arith.constant 0.797884583 : f32
    %437 = vector.broadcast %cst_362 : f32 to vector<64x64xf32>
    %438 = arith.mulf %437, %436 : vector<64x64xf32>
    %439 = math.tanh %438 : vector<64x64xf32>
    %cst_363 = arith.constant 1.000000e+00 : f32
    %440 = vector.broadcast %cst_363 : f32 to vector<64x64xf32>
    %441 = arith.addf %440, %439 : vector<64x64xf32>
    %cst_364 = arith.constant 5.000000e-01 : f32
    %442 = vector.broadcast %cst_364 : f32 to vector<64x64xf32>
    %443 = arith.mulf %442, %441 : vector<64x64xf32>
    %444 = arith.mulf %431, %443 : vector<64x64xf32>
    %445 = arith.truncf %444 : vector<64x64xf32> to vector<64x64xbf16>
    %c1_365 = arith.constant 1 : index
    %c0_366 = arith.constant 0 : index
    %c0_367 = arith.constant 0 : index
    %446 = vector.load %arg17[%c1_365, %c0_366, %c0_367] : memref<2x64x32xbf16, #tpu.memory_space<vmem>>, vector<1x64x32xbf16>
    %447 = vector.shape_cast %446 : vector<1x64x32xbf16> to vector<64x32xbf16>
    %cst_368 = arith.constant dense<0.000000e+00> : vector<64x32xf32>
    %448 = tpu.matmul %445, %447, %cst_368 {dimension_numbers = #tpu.dot_dimension_numbers<[1], [0], [0], [1], [0, 0, 1, 1], [], []>} : vector<64x64xbf16>, vector<64x32xbf16>, vector<64x32xf32> -> vector<64x32xf32>
    %c1_369 = arith.constant 1 : index
    %c0_370 = arith.constant 0 : index
    %c0_371 = arith.constant 0 : index
    %449 = vector.load %arg18[%c1_369, %c0_370, %c0_371] : memref<2x1x32xf32, #tpu.memory_space<vmem>>, vector<1x1x32xf32>
    %450 = vector.shape_cast %449 : vector<1x1x32xf32> to vector<1x32xf32>
    %451 = vector.broadcast %450 : vector<1x32xf32> to vector<64x32xf32>
    %452 = arith.addf %448, %451 : vector<64x32xf32>
    %453 = arith.addf %423, %452 : vector<64x32xf32>
    %c1_372 = arith.constant 1 : index
    %c0_373 = arith.constant 0 : index
    %c0_374 = arith.constant 0 : index
    %454 = vector.load %arg19[%c1_372, %c0_373, %c0_374] : memref<2x1x32xf32, #tpu.memory_space<vmem>>, vector<1x1x32xf32>
    %455 = vector.shape_cast %454 : vector<1x1x32xf32> to vector<1x32xf32>
    %c1_375 = arith.constant 1 : index
    %c0_376 = arith.constant 0 : index
    %c0_377 = arith.constant 0 : index
    %456 = vector.load %arg20[%c1_375, %c0_376, %c0_377] : memref<2x1x32xf32, #tpu.memory_space<vmem>>, vector<1x1x32xf32>
    %457 = vector.shape_cast %456 : vector<1x1x32xf32> to vector<1x32xf32>
    %cst_378 = arith.constant dense<0.000000e+00> : vector<64xf32>
    %458 = vector.multi_reduction <add>, %453, %cst_378 [1] : vector<64x32xf32> to vector<64xf32>
    %459 = vector.shape_cast %458 : vector<64xf32> to vector<64x1xf32>
    %cst_379 = arith.constant 3.200000e+01 : f32
    %460 = vector.broadcast %cst_379 : f32 to vector<64x1xf32>
    %461 = arith.divf %459, %460 : vector<64x1xf32>
    %462 = vector.broadcast %461 : vector<64x1xf32> to vector<64x32xf32>
    %463 = arith.subf %453, %462 : vector<64x32xf32>
    %464 = arith.mulf %463, %463 : vector<64x32xf32>
    %cst_380 = arith.constant dense<0.000000e+00> : vector<64xf32>
    %465 = vector.multi_reduction <add>, %464, %cst_380 [1] : vector<64x32xf32> to vector<64xf32>
    %466 = vector.shape_cast %465 : vector<64xf32> to vector<64x1xf32>
    %cst_381 = arith.constant 3.200000e+01 : f32
    %467 = vector.broadcast %cst_381 : f32 to vector<64x1xf32>
    %468 = arith.divf %466, %467 : vector<64x1xf32>
    %cst_382 = arith.constant 9.99999974E-6 : f32
    %469 = vector.broadcast %cst_382 : f32 to vector<64x1xf32>
    %470 = arith.addf %468, %469 : vector<64x1xf32>
    %471 = math.rsqrt %470 : vector<64x1xf32>
    %472 = vector.broadcast %471 : vector<64x1xf32> to vector<64x32xf32>
    %473 = arith.mulf %463, %472 : vector<64x32xf32>
    %474 = vector.broadcast %455 : vector<1x32xf32> to vector<64x32xf32>
    %475 = arith.mulf %473, %474 : vector<64x32xf32>
    %476 = vector.broadcast %457 : vector<1x32xf32> to vector<64x32xf32>
    %477 = arith.addf %475, %476 : vector<64x32xf32>
    %c0_383 = arith.constant 0 : index
    %c0_384 = arith.constant 0 : index
    %478 = vector.load %arg21[%c0_383, %c0_384] : memref<32x64xf32, #tpu.memory_space<vmem>>, vector<32x64xf32>
    %cst_385 = arith.constant dense<0.000000e+00> : vector<64x64xf32>
    %479 = tpu.matmul %477, %478, %cst_385 {dimension_numbers = #tpu.dot_dimension_numbers<[1], [0], [0], [1], [0, 0, 1, 1], [], []>} : vector<64x32xf32>, vector<32x64xf32>, vector<64x64xf32> -> vector<64x64xf32>
    %c0_386 = arith.constant 0 : index
    %c0_387 = arith.constant 0 : index
    %480 = vector.load %arg22[%c0_386, %c0_387] : memref<1x64xf32, #tpu.memory_space<vmem>>, vector<1x64xf32>
    %481 = vector.broadcast %480 : vector<1x64xf32> to vector<64x64xf32>
    %482 = arith.addf %479, %481 : vector<64x64xf32>
    %c0_388 = arith.constant 0 : index
    %c0_389 = arith.constant 0 : index
    %c0_390 = arith.constant 0 : index
    %483 = vector.load %arg23[%c0_388, %c0_389, %c0_390] : memref<1x64x64xf32, #tpu.memory_space<vmem>>, vector<1x64x64xf32>
    %484 = vector.shape_cast %483 : vector<1x64x64xf32> to vector<64x64xf32>
    %485 = vector.shape_cast %482 : vector<64x64xf32> to vector<1x64x64xf32>
    tpu.vector_store %arg23[%c0_388, %c0_389, %c0_390], %485 {strides = array<i32>} : memref<1x64x64xf32, #tpu.memory_space<vmem>>, vector<1x64x64xf32>,
    return
  }
  func.func @transform_0(%arg0: i32) -> (i32, i32, i32) {
    %c0_i32 = arith.constant 0 : i32
    %c0_i32_0 = arith.constant 0 : i32
    %c0_i32_1 = arith.constant 0 : i32
    return %arg0, %c0_i32, %c0_i32_0 : i32, i32, i32
  }
  func.func @transform_1(%arg0: i32) -> (i32, i32) {
    %c0_i32 = arith.constant 0 : i32
    %c0_i32_0 = arith.constant 0 : i32
    %c0_i32_1 = arith.constant 0 : i32
    return %c0_i32, %c0_i32_0 : i32, i32
  }
  func.func @transform_2(%arg0: i32) -> (i32, i32) {
    %c0_i32 = arith.constant 0 : i32
    %c0_i32_0 = arith.constant 0 : i32
    %c0_i32_1 = arith.constant 0 : i32
    return %c0_i32, %c0_i32_0 : i32, i32
  }
  func.func @transform_3(%arg0: i32) -> (i32, i32) {
    %c0_i32 = arith.constant 0 : i32
    %c0_i32_0 = arith.constant 0 : i32
    %c0_i32_1 = arith.constant 0 : i32
    return %c0_i32, %c0_i32_0 : i32, i32
  }
  func.func @transform_4(%arg0: i32) -> (i32, i32, i32, i32) {
    %c0_i32 = arith.constant 0 : i32
    %c0_i32_0 = arith.constant 0 : i32
    %c0_i32_1 = arith.constant 0 : i32
    %c0_i32_2 = arith.constant 0 : i32
    %c0_i32_3 = arith.constant 0 : i32
    return %c0_i32, %c0_i32_0, %c0_i32_1, %c0_i32_2 : i32, i32, i32, i32
  }
  func.func @transform_5(%arg0: i32) -> (i32, i32, i32, i32) {
    %c0_i32 = arith.constant 0 : i32
    %c0_i32_0 = arith.constant 0 : i32
    %c0_i32_1 = arith.constant 0 : i32
    %c0_i32_2 = arith.constant 0 : i32
    %c0_i32_3 = arith.constant 0 : i32
    return %c0_i32, %c0_i32_0, %c0_i32_1, %c0_i32_2 : i32, i32, i32, i32
  }
  func.func @transform_6(%arg0: i32) -> (i32, i32, i32, i32) {
    %c0_i32 = arith.constant 0 : i32
    %c0_i32_0 = arith.constant 0 : i32
    %c0_i32_1 = arith.constant 0 : i32
    %c0_i32_2 = arith.constant 0 : i32
    %c0_i32_3 = arith.constant 0 : i32
    return %c0_i32, %c0_i32_0, %c0_i32_1, %c0_i32_2 : i32, i32, i32, i32
  }
  func.func @transform_7(%arg0: i32) -> (i32, i32, i32, i32) {
    %c0_i32 = arith.constant 0 : i32
    %c0_i32_0 = arith.constant 0 : i32
    %c0_i32_1 = arith.constant 0 : i32
    %c0_i32_2 = arith.constant 0 : i32
    %c0_i32_3 = arith.constant 0 : i32
    return %c0_i32, %c0_i32_0, %c0_i32_1, %c0_i32_2 : i32, i32, i32, i32
  }
  func.func @transform_8(%arg0: i32) -> (i32, i32, i32, i32) {
    %c0_i32 = arith.constant 0 : i32
    %c0_i32_0 = arith.constant 0 : i32
    %c0_i32_1 = arith.constant 0 : i32
    %c0_i32_2 = arith.constant 0 : i32
    %c0_i32_3 = arith.constant 0 : i32
    return %c0_i32, %c0_i32_0, %c0_i32_1, %c0_i32_2 : i32, i32, i32, i32
  }
  func.func @transform_9(%arg0: i32) -> (i32, i32, i32, i32) {
    %c0_i32 = arith.constant 0 : i32
    %c0_i32_0 = arith.constant 0 : i32
    %c0_i32_1 = arith.constant 0 : i32
    %c0_i32_2 = arith.constant 0 : i32
    %c0_i32_3 = arith.constant 0 : i32
    return %c0_i32, %c0_i32_0, %c0_i32_1, %c0_i32_2 : i32, i32, i32, i32
  }
  func.func @transform_10(%arg0: i32) -> (i32, i32, i32, i32) {
    %c0_i32 = arith.constant 0 : i32
    %c0_i32_0 = arith.constant 0 : i32
    %c0_i32_1 = arith.constant 0 : i32
    %c0_i32_2 = arith.constant 0 : i32
    %c0_i32_3 = arith.constant 0 : i32
    return %c0_i32, %c0_i32_0, %c0_i32_1, %c0_i32_2 : i32, i32, i32, i32
  }
  func.func @transform_11(%arg0: i32) -> (i32, i32, i32) {
    %c0_i32 = arith.constant 0 : i32
    %c0_i32_0 = arith.constant 0 : i32
    %c0_i32_1 = arith.constant 0 : i32
    %c0_i32_2 = arith.constant 0 : i32
    return %c0_i32, %c0_i32_0, %c0_i32_1 : i32, i32, i32
  }
  func.func @transform_12(%arg0: i32) -> (i32, i32, i32) {
    %c0_i32 = arith.constant 0 : i32
    %c0_i32_0 = arith.constant 0 : i32
    %c0_i32_1 = arith.constant 0 : i32
    %c0_i32_2 = arith.constant 0 : i32
    return %c0_i32, %c0_i32_0, %c0_i32_1 : i32, i32, i32
  }
  func.func @transform_13(%arg0: i32) -> (i32, i32, i32) {
    %c0_i32 = arith.constant 0 : i32
    %c0_i32_0 = arith.constant 0 : i32
    %c0_i32_1 = arith.constant 0 : i32
    %c0_i32_2 = arith.constant 0 : i32
    return %c0_i32, %c0_i32_0, %c0_i32_1 : i32, i32, i32
  }
  func.func @transform_14(%arg0: i32) -> (i32, i32, i32) {
    %c0_i32 = arith.constant 0 : i32
    %c0_i32_0 = arith.constant 0 : i32
    %c0_i32_1 = arith.constant 0 : i32
    %c0_i32_2 = arith.constant 0 : i32
    return %c0_i32, %c0_i32_0, %c0_i32_1 : i32, i32, i32
  }
  func.func @transform_15(%arg0: i32) -> (i32, i32, i32) {
    %c0_i32 = arith.constant 0 : i32
    %c0_i32_0 = arith.constant 0 : i32
    %c0_i32_1 = arith.constant 0 : i32
    %c0_i32_2 = arith.constant 0 : i32
    return %c0_i32, %c0_i32_0, %c0_i32_1 : i32, i32, i32
  }
  func.func @transform_16(%arg0: i32) -> (i32, i32, i32) {
    %c0_i32 = arith.constant 0 : i32
    %c0_i32_0 = arith.constant 0 : i32
    %c0_i32_1 = arith.constant 0 : i32
    %c0_i32_2 = arith.constant 0 : i32
    return %c0_i32, %c0_i32_0, %c0_i32_1 : i32, i32, i32
  }
  func.func @transform_17(%arg0: i32) -> (i32, i32, i32) {
    %c0_i32 = arith.constant 0 : i32
    %c0_i32_0 = arith.constant 0 : i32
    %c0_i32_1 = arith.constant 0 : i32
    %c0_i32_2 = arith.constant 0 : i32
    return %c0_i32, %c0_i32_0, %c0_i32_1 : i32, i32, i32
  }
  func.func @transform_18(%arg0: i32) -> (i32, i32, i32) {
    %c0_i32 = arith.constant 0 : i32
    %c0_i32_0 = arith.constant 0 : i32
    %c0_i32_1 = arith.constant 0 : i32
    %c0_i32_2 = arith.constant 0 : i32
    return %c0_i32, %c0_i32_0, %c0_i32_1 : i32, i32, i32
  }
  func.func @transform_19(%arg0: i32) -> (i32, i32, i32) {
    %c0_i32 = arith.constant 0 : i32
    %c0_i32_0 = arith.constant 0 : i32
    %c0_i32_1 = arith.constant 0 : i32
    %c0_i32_2 = arith.constant 0 : i32
    return %c0_i32, %c0_i32_0, %c0_i32_1 : i32, i32, i32
  }
  func.func @transform_20(%arg0: i32) -> (i32, i32) {
    %c0_i32 = arith.constant 0 : i32
    %c0_i32_0 = arith.constant 0 : i32
    %c0_i32_1 = arith.constant 0 : i32
    return %c0_i32, %c0_i32_0 : i32, i32
  }
  func.func @transform_21(%arg0: i32) -> (i32, i32) {
    %c0_i32 = arith.constant 0 : i32
    %c0_i32_0 = arith.constant 0 : i32
    %c0_i32_1 = arith.constant 0 : i32
    return %c0_i32, %c0_i32_0 : i32, i32
  }
  func.func @transform_22(%arg0: i32) -> (i32, i32, i32) {
    %c0_i32 = arith.constant 0 : i32
    %c0_i32_0 = arith.constant 0 : i32
    %c0_i32_1 = arith.constant 0 : i32
    return %arg0, %c0_i32, %c0_i32_0 : i32, i32, i32
  }
}

</mosaic_0001>

<llo_original>
// kernel: image_transformer_pallas.1
$region0: #{image_transformer_pallas.1}
  #allocation0 [shape = 'u32[]', space=smem, size = 0x4, offset = 0x4, fixed_abs, tag = 'smem constant byte address 0x4 - core index']
  #allocation1 [shape = 'u32[144,128]{1,0:T(1,128)}', space=vmem, size = 0x12000, scoped, tag = 'internal scratch']
  %s0 = inlined_call_operand.vmem [shape: f32[2,64,64], index: 0, kind: input, shape index: {}]
  %s1 = inlined_call_operand.vmem [shape: bf16[4,64], index: 1, kind: input, shape index: {}]
  %s2 = inlined_call_operand.vmem [shape: f32[64,32], index: 2, kind: input, shape index: {}]
  %s3 = inlined_call_operand.vmem [shape: f32[1,32], index: 3, kind: input, shape index: {}]
  %s4 = inlined_call_operand.vmem [shape: bf16[2,4,32,16], index: 4, kind: input, shape index: {}]
  %s5 = inlined_call_operand.vmem [shape: f32[2,4,1,16], index: 5, kind: input, shape index: {}]
  %s6 = inlined_call_operand.vmem [shape: bf16[2,4,32,16], index: 6, kind: input, shape index: {}]
  %s7 = inlined_call_operand.vmem [shape: f32[2,4,1,16], index: 7, kind: input, shape index: {}]
  %s8 = inlined_call_operand.vmem [shape: bf16[2,4,32,16], index: 8, kind: input, shape index: {}]
  %s9 = inlined_call_operand.vmem [shape: f32[2,4,1,16], index: 9, kind: input, shape index: {}]
  %s10 = inlined_call_operand.vmem [shape: bf16[2,4,16,32], index: 10, kind: input, shape index: {}]
  %s11 = inlined_call_operand.vmem [shape: f32[2,1,32], index: 11, kind: input, shape index: {}]
  %s12 = inlined_call_operand.vmem [shape: f32[2,1,32], index: 12, kind: input, shape index: {}]
  %s13 = inlined_call_operand.vmem [shape: f32[2,1,32], index: 13, kind: input, shape index: {}]
  %s14 = inlined_call_operand.vmem [shape: bf16[2,32,64], index: 14, kind: input, shape index: {}]
  %s15 = inlined_call_operand.vmem [shape: f32[2,1,64], index: 15, kind: input, shape index: {}]
  %s16 = inlined_call_operand.vmem [shape: bf16[2,64,32], index: 16, kind: input, shape index: {}]
  %s17 = inlined_call_operand.vmem [shape: f32[2,1,32], index: 17, kind: input, shape index: {}]
  %s18 = inlined_call_operand.vmem [shape: f32[2,1,32], index: 18, kind: input, shape index: {}]
  %s19 = inlined_call_operand.vmem [shape: f32[2,1,32], index: 19, kind: input, shape index: {}]
  %s20 = inlined_call_operand.vmem [shape: f32[32,64], index: 20, kind: input, shape index: {}]
  %s21 = inlined_call_operand.vmem [shape: f32[1,64], index: 21, kind: input, shape index: {}]
  %s22 = inlined_call_operand.vmem [shape: f32[2,64,64], index: 22, kind: output, shape index: {}]
  %s23 = sld [smem:[#allocation0]]
  $region121: #{image_transformer_pallas.1} parent=0
    _
  %s25 = ssub.s32 1, %s23
  %s26 = scalar_select 0, %s25, %s23
  loop: start=0, step=1, limit=4
  $region2: #{image_transformer_pallas.1} parent=0 // loop_pre_header
    _
  $region3: #{image_transformer_pallas.1} parent=0 // loop_header
    %s28 = sphi 0, %s32
    %p29 = scmp.ge.s32.totalorder %s28, 4
    %s38 = sphi 0, %s40
    %s41 = sphi 0, %s38
    %s42 = sphi 0, %s41
    %s58 = sphi 0, %s42
    %s62 = sphi 0, %s62
    %s64 = sphi 0, %s62
    %s65 = sphi 0, %s64
    %s79 = sphi 0, %s65
    %s83 = sphi 0, %s83
    %s85 = sphi 0, %s83
    %s86 = sphi 0, %s85
    %s100 = sphi 0, %s86
    %s104 = sphi 0, %s104
    %s106 = sphi 0, %s104
    %s107 = sphi 0, %s106
    %s121 = sphi 0, %s107
    %s125 = sphi 0, %s125
    %s127 = sphi 0, %s125
    %s128 = sphi 0, %s127
    %s142 = sphi 0, %s128
    %s146 = sphi 0, %s146
    %s148 = sphi 0, %s146
    %s149 = sphi 0, %s148
    %s163 = sphi 0, %s149
    %s167 = sphi 0, %s167
    %s169 = sphi 0, %s167
    %s170 = sphi 0, %s169
    %s184 = sphi 0, %s170
    %s188 = sphi 0, %s188
    %s190 = sphi 0, %s188
    %s191 = sphi 0, %s190
    %s205 = sphi 0, %s191
    %s209 = sphi 0, %s209
    %s211 = sphi 0, %s209
    %s212 = sphi 0, %s211
    %s226 = sphi 0, %s212
    %s230 = sphi 0, %s230
    %s232 = sphi 0, %s230
    %s233 = sphi 0, %s232
    %s247 = sphi 0, %s233
    %s251 = sphi 0, %s251
    %s253 = sphi 0, %s251
    %s254 = sphi 0, %s253
    %s268 = sphi 0, %s254
    %s272 = sphi 0, %s272
    %s274 = sphi 0, %s272
    %s275 = sphi 0, %s274
    %s289 = sphi 0, %s275
    %s293 = sphi 0, %s293
    %s295 = sphi 0, %s293
    %s296 = sphi 0, %s295
    %s310 = sphi 0, %s296
    %s314 = sphi 0, %s314
    %s316 = sphi 0, %s314
    %s317 = sphi 0, %s316
    %s331 = sphi 0, %s317
    %s335 = sphi 0, %s335
    %s337 = sphi 0, %s335
    %s338 = sphi 0, %s337
    %s352 = sphi 0, %s338
    %s356 = sphi 0, %s356
    %s358 = sphi 0, %s356
    %s359 = sphi 0, %s358
    %s373 = sphi 0, %s359
    %s377 = sphi 0, %s377
    %s379 = sphi 0, %s377
    %s380 = sphi 0, %s379
    %s394 = sphi 0, %s380
    %s398 = sphi 0, %s398
    %s400 = sphi 0, %s398
    %s401 = sphi 0, %s400
    %s415 = sphi 0, %s401
    %s419 = sphi 0, %s419
    %s421 = sphi 0, %s419
    %s422 = sphi 0, %s421
    %s436 = sphi 0, %s422
    %s440 = sphi 0, %s440
    %s442 = sphi 0, %s440
    %s443 = sphi 0, %s442
    %s457 = sphi 0, %s443
    %s461 = sphi 0, %s461
    %s463 = sphi 0, %s461
    %s464 = sphi 0, %s463
    %s478 = sphi 0, %s464
    %s482 = sphi 0, %s482
    %s484 = sphi 0, %s482
    %s485 = sphi 0, %s484
    %s499 = sphi 0, %s485
    %s505 = sphi 0, %s507
    %s508 = sphi 0, %s505
    %s509 = sphi 0, %s508
    %s525 = sphi 0, %s509
  $region4: #{image_transformer_pallas.1} parent=0 // loop_header_branch
    %31 = sbr.rel (%p29) target = $region8
  $region5: #{image_transformer_pallas.1} parent=0 // loop_body
    %s33 = ssub.s32 %s28, 1
    %s34 = ssub.s32 %s28, 2
    %s35 = sadd.s32 %s28, 1
    %s36 = ssub.s32 %s28, %s35
    %p37 = scmp.eq.s32.totalorder %s36, 0
    %s39 = sadd.s32 %s38, 1
    %s40 = scalar_select %p37, %s38, %s39
    %p43 = pneg %p37
    %p44 = scmp.eq.s32.totalorder %s28, 1
    %p45 = por %p43, %p44
    %p46 = scmp.ne.s32.totalorder %s38, %s41
    %p47 = scmp.eq.s32.totalorder %s28, 0
    %p48 = por %p46, %p47
    %p49 = scmp.ne.s32.totalorder %s38, %s41
    %p50 = scmp.eq.s32.totalorder %s33, 1
    %p51 = por %p49, %p50
    %p52 = scmp.ne.s32.totalorder %s41, %s42
    %p53 = scmp.eq.s32.totalorder %s33, 0
    %p54 = por %p52, %p53
    %p55 = scmp.ne.s32.totalorder %s41, %s42
    %p56 = scmp.eq.s32.totalorder %s34, 1
    %p57 = por %p55, %p56
    %p59 = scmp.ne.s32.totalorder %s42, %s58
    %p60 = scmp.eq.s32.totalorder %s34, 0
    %p61 = por %p59, %p60
    %s63 = sadd.s32 %s62, 1
    %p66 = scmp.eq.s32.totalorder %s28, 1
    %p67 = scmp.ne.s32.totalorder %s62, %s64
    %p68 = scmp.eq.s32.totalorder %s28, 0
    %p69 = por %p67, %p68
    %p70 = scmp.ne.s32.totalorder %s62, %s64
    %p71 = scmp.eq.s32.totalorder %s33, 1
    %p72 = por %p70, %p71
    %p73 = scmp.ne.s32.totalorder %s64, %s65
    %p74 = scmp.eq.s32.totalorder %s33, 0
    %p75 = por %p73, %p74
    %p76 = scmp.ne.s32.totalorder %s64, %s65
    %p77 = scmp.eq.s32.totalorder %s34, 1
    %p78 = por %p76, %p77
    %p80 = scmp.ne.s32.totalorder %s65, %s79
    %p81 = scmp.eq.s32.totalorder %s34, 0
    %p82 = por %p80, %p81
    %s84 = sadd.s32 %s83, 1
    %p87 = scmp.eq.s32.totalorder %s28, 1
    %p88 = scmp.ne.s32.totalorder %s83, %s85
    %p89 = scmp.eq.s32.totalorder %s28, 0
    %p90 = por %p88, %p89
    %p91 = scmp.ne.s32.totalorder %s83, %s85
    %p92 = scmp.eq.s32.totalorder %s33, 1
    %p93 = por %p91, %p92
    %p94 = scmp.ne.s32.totalorder %s85, %s86
    %p95 = scmp.eq.s32.totalorder %s33, 0
    %p96 = por %p94, %p95
    %p97 = scmp.ne.s32.totalorder %s85, %s86
    %p98 = scmp.eq.s32.totalorder %s34, 1
    %p99 = por %p97, %p98
    %p101 = scmp.ne.s32.totalorder %s86, %s100
    %p102 = scmp.eq.s32.totalorder %s34, 0
    %p103 = por %p101, %p102
    %s105 = sadd.s32 %s104, 1
    %p108 = scmp.eq.s32.totalorder %s28, 1
    %p109 = scmp.ne.s32.totalorder %s104, %s106
    %p110 = scmp.eq.s32.totalorder %s28, 0
    %p111 = por %p109, %p110
    %p112 = scmp.ne.s32.totalorder %s104, %s106
    %p113 = scmp.eq.s32.totalorder %s33, 1
    %p114 = por %p112, %p113
    %p115 = scmp.ne.s32.totalorder %s106, %s107
    %p116 = scmp.eq.s32.totalorder %s33, 0
    %p117 = por %p115, %p116
    %p118 = scmp.ne.s32.totalorder %s106, %s107
    %p119 = scmp.eq.s32.totalorder %s34, 1
    %p120 = por %p118, %p119
    %p122 = scmp.ne.s32.totalorder %s107, %s121
    %p123 = scmp.eq.s32.totalorder %s34, 0
    %p124 = por %p122, %p123
    %s126 = sadd.s32 %s125, 1
    %p129 = scmp.eq.s32.totalorder %s28, 1
    %p130 = scmp.ne.s32.totalorder %s125, %s127
    %p131 = scmp.eq.s32.totalorder %s28, 0
    %p132 = por %p130, %p131
    %p133 = scmp.ne.s32.totalorder %s125, %s127
    %p134 = scmp.eq.s32.totalorder %s33, 1
    %p135 = por %p133, %p134
    %p136 = scmp.ne.s32.totalorder %s127, %s128
    %p137 = scmp.eq.s32.totalorder %s33, 0
    %p138 = por %p136, %p137
    %p139 = scmp.ne.s32.totalorder %s127, %s128
    %p140 = scmp.eq.s32.totalorder %s34, 1
    %p141 = por %p139, %p140
    %p143 = scmp.ne.s32.totalorder %s128, %s142
    %p144 = scmp.eq.s32.totalorder %s34, 0
    %p145 = por %p143, %p144
    %s147 = sadd.s32 %s146, 1
    %p150 = scmp.eq.s32.totalorder %s28, 1
    %p151 = scmp.ne.s32.totalorder %s146, %s148
    %p152 = scmp.eq.s32.totalorder %s28, 0
    %p153 = por %p151, %p152
    %p154 = scmp.ne.s32.totalorder %s146, %s148
    %p155 = scmp.eq.s32.totalorder %s33, 1
    %p156 = por %p154, %p155
    %p157 = scmp.ne.s32.totalorder %s148, %s149
    %p158 = scmp.eq.s32.totalorder %s33, 0
    %p159 = por %p157, %p158
    %p160 = scmp.ne.s32.totalorder %s148, %s149
    %p161 = scmp.eq.s32.totalorder %s34, 1
    %p162 = por %p160, %p161
    %p164 = scmp.ne.s32.totalorder %s149, %s163
    %p165 = scmp.eq.s32.totalorder %s34, 0
    %p166 = por %p164, %p165
    %s168 = sadd.s32 %s167, 1
    %p171 = scmp.eq.s32.totalorder %s28, 1
    %p172 = scmp.ne.s32.totalorder %s167, %s169
    %p173 = scmp.eq.s32.totalorder %s28, 0
    %p174 = por %p172, %p173
    %p175 = scmp.ne.s32.totalorder %s167, %s169
    %p176 = scmp.eq.s32.totalorder %s33, 1
    %p177 = por %p175, %p176
    %p178 = scmp.ne.s32.totalorder %s169, %s170
    %p179 = scmp.eq.s32.totalorder %s33, 0
    %p180 = por %p178, %p179
    %p181 = scmp.ne.s32.totalorder %s169, %s170
    %p182 = scmp.eq.s32.totalorder %s34, 1
    %p183 = por %p181, %p182
    %p185 = scmp.ne.s32.totalorder %s170, %s184
    %p186 = scmp.eq.s32.totalorder %s34, 0
    %p187 = por %p185, %p186
    %s189 = sadd.s32 %s188, 1
    %p192 = scmp.eq.s32.totalorder %s28, 1
    %p193 = scmp.ne.s32.totalorder %s188, %s190
    %p194 = scmp.eq.s32.totalorder %s28, 0
    %p195 = por %p193, %p194
    %p196 = scmp.ne.s32.totalorder %s188, %s190
    %p197 = scmp.eq.s32.totalorder %s33, 1
    %p198 = por %p196, %p197
    %p199 = scmp.ne.s32.totalorder %s190, %s191
    %p200 = scmp.eq.s32.totalorder %s33, 0
    %p201 = por %p199, %p200
    %p202 = scmp.ne.s32.totalorder %s190, %s191
    %p203 = scmp.eq.s32.totalorder %s34, 1
    %p204 = por %p202, %p203
    %p206 = scmp.ne.s32.totalorder %s191, %s205
    %p207 = scmp.eq.s32.totalorder %s34, 0
    %p208 = por %p206, %p207
    %s210 = sadd.s32 %s209, 1
    %p213 = scmp.eq.s32.totalorder %s28, 1
    %p214 = scmp.ne.s32.totalorder %s209, %s211
    %p215 = scmp.eq.s32.totalorder %s28, 0
    %p216 = por %p214, %p215
    %p217 = scmp.ne.s32.totalorder %s209, %s211
    %p218 = scmp.eq.s32.totalorder %s33, 1
    %p219 = por %p217, %p218
    %p220 = scmp.ne.s32.totalorder %s211, %s212
    %p221 = scmp.eq.s32.totalorder %s33, 0
    %p222 = por %p220, %p221
    %p223 = scmp.ne.s32.totalorder %s211, %s212
    %p224 = scmp.eq.s32.totalorder %s34, 1
    %p225 = por %p223, %p224
    %p227 = scmp.ne.s32.totalorder %s212, %s226
    %p228 = scmp.eq.s32.totalorder %s34, 0
    %p229 = por %p227, %p228
    %s231 = sadd.s32 %s230, 1
    %p234 = scmp.eq.s32.totalorder %s28, 1
    %p235 = scmp.ne.s32.totalorder %s230, %s232
    %p236 = scmp.eq.s32.totalorder %s28, 0
    %p237 = por %p235, %p236
    %p238 = scmp.ne.s32.totalorder %s230, %s232
    %p239 = scmp.eq.s32.totalorder %s33, 1
    %p240 = por %p238, %p239
    %p241 = scmp.ne.s32.totalorder %s232, %s233
    %p242 = scmp.eq.s32.totalorder %s33, 0
    %p243 = por %p241, %p242
    %p244 = scmp.ne.s32.totalorder %s232, %s233
    %p245 = scmp.eq.s32.totalorder %s34, 1
    %p246 = por %p244, %p245
    %p248 = scmp.ne.s32.totalorder %s233, %s247
    %p249 = scmp.eq.s32.totalorder %s34, 0
    %p250 = por %p248, %p249
    %s252 = sadd.s32 %s251, 1
    %p255 = scmp.eq.s32.totalorder %s28, 1
    %p256 = scmp.ne.s32.totalorder %s251, %s253
    %p257 = scmp.eq.s32.totalorder %s28, 0
    %p258 = por %p256, %p257
    %p259 = scmp.ne.s32.totalorder %s251, %s253
    %p260 = scmp.eq.s32.totalorder %s33, 1
    %p261 = por %p259, %p260
    %p262 = scmp.ne.s32.totalorder %s253, %s254
    %p263 = scmp.eq.s32.totalorder %s33, 0
    %p264 = por %p262, %p263
    %p265 = scmp.ne.s32.totalorder %s253, %s254
    %p266 = scmp.eq.s32.totalorder %s34, 1
    %p267 = por %p265, %p266
    %p269 = scmp.ne.s32.totalorder %s254, %s268
    %p270 = scmp.eq.s32.totalorder %s34, 0
    %p271 = por %p269, %p270
    %s273 = sadd.s32 %s272, 1
    %p276 = scmp.eq.s32.totalorder %s28, 1
    %p277 = scmp.ne.s32.totalorder %s272, %s274
    %p278 = scmp.eq.s32.totalorder %s28, 0
    %p279 = por %p277, %p278
    %p280 = scmp.ne.s32.totalorder %s272, %s274
    %p281 = scmp.eq.s32.totalorder %s33, 1
    %p282 = por %p280, %p281
    %p283 = scmp.ne.s32.totalorder %s274, %s275
    %p284 = scmp.eq.s32.totalorder %s33, 0
    %p285 = por %p283, %p284
    %p286 = scmp.ne.s32.totalorder %s274, %s275
    %p287 = scmp.eq.s32.totalorder %s34, 1
    %p288 = por %p286, %p287
    %p290 = scmp.ne.s32.totalorder %s275, %s289
    %p291 = scmp.eq.s32.totalorder %s34, 0
    %p292 = por %p290, %p291
    %s294 = sadd.s32 %s293, 1
    %p297 = scmp.eq.s32.totalorder %s28, 1
    %p298 = scmp.ne.s32.totalorder %s293, %s295
    %p299 = scmp.eq.s32.totalorder %s28, 0
    %p300 = por %p298, %p299
    %p301 = scmp.ne.s32.totalorder %s293, %s295
    %p302 = scmp.eq.s32.totalorder %s33, 1
    %p303 = por %p301, %p302
    %p304 = scmp.ne.s32.totalorder %s295, %s296
    %p305 = scmp.eq.s32.totalorder %s33, 0
    %p306 = por %p304, %p305
    %p307 = scmp.ne.s32.totalorder %s295, %s296
    %p308 = scmp.eq.s32.totalorder %s34, 1
    %p309 = por %p307, %p308
    %p311 = scmp.ne.s32.totalorder %s296, %s310
    %p312 = scmp.eq.s32.totalorder %s34, 0
    %p313 = por %p311, %p312
    %s315 = sadd.s32 %s314, 1
    %p318 = scmp.eq.s32.totalorder %s28, 1
    %p319 = scmp.ne.s32.totalorder %s314, %s316
    %p320 = scmp.eq.s32.totalorder %s28, 0
    %p321 = por %p319, %p320
    %p322 = scmp.ne.s32.totalorder %s314, %s316
    %p323 = scmp.eq.s32.totalorder %s33, 1
    %p324 = por %p322, %p323
    %p325 = scmp.ne.s32.totalorder %s316, %s317
    %p326 = scmp.eq.s32.totalorder %s33, 0
    %p327 = por %p325, %p326
    %p328 = scmp.ne.s32.totalorder %s316, %s317
    %p329 = scmp.eq.s32.totalorder %s34, 1
    %p330 = por %p328, %p329
    %p332 = scmp.ne.s32.totalorder %s317, %s331
    %p333 = scmp.eq.s32.totalorder %s34, 0
    %p334 = por %p332, %p333
    %s336 = sadd.s32 %s335, 1
    %p339 = scmp.eq.s32.totalorder %s28, 1
    %p340 = scmp.ne.s32.totalorder %s335, %s337
    %p341 = scmp.eq.s32.totalorder %s28, 0
    %p342 = por %p340, %p341
    %p343 = scmp.ne.s32.totalorder %s335, %s337
    %p344 = scmp.eq.s32.totalorder %s33, 1
    %p345 = por %p343, %p344
    %p346 = scmp.ne.s32.totalorder %s337, %s338
    %p347 = scmp.eq.s32.totalorder %s33, 0
    %p348 = por %p346, %p347
    %p349 = scmp.ne.s32.totalorder %s337, %s338
    %p350 = scmp.eq.s32.totalorder %s34, 1
    %p351 = por %p349, %p350
    %p353 = scmp.ne.s32.totalorder %s338, %s352
    %p354 = scmp.eq.s32.totalorder %s34, 0
    %p355 = por %p353, %p354
    %s357 = sadd.s32 %s356, 1
    %p360 = scmp.eq.s32.totalorder %s28, 1
    %p361 = scmp.ne.s32.totalorder %s356, %s358
    %p362 = scmp.eq.s32.totalorder %s28, 0
    %p363 = por %p361, %p362
    %p364 = scmp.ne.s32.totalorder %s356, %s358
    %p365 = scmp.eq.s32.totalorder %s33, 1
    %p366 = por %p364, %p365
    %p367 = scmp.ne.s32.totalorder %s358, %s359
    %p368 = scmp.eq.s32.totalorder %s33, 0
    %p369 = por %p367, %p368
    %p370 = scmp.ne.s32.totalorder %s358, %s359
    %p371 = scmp.eq.s32.totalorder %s34, 1
    %p372 = por %p370, %p371
    %p374 = scmp.ne.s32.totalorder %s359, %s373
    %p375 = scmp.eq.s32.totalorder %s34, 0
    %p376 = por %p374, %p375
    %s378 = sadd.s32 %s377, 1
    %p381 = scmp.eq.s32.totalorder %s28, 1
    %p382 = scmp.ne.s32.totalorder %s377, %s379
    %p383 = scmp.eq.s32.totalorder %s28, 0
    %p384 = por %p382, %p383
    %p385 = scmp.ne.s32.totalorder %s377, %s379
    %p386 = scmp.eq.s32.totalorder %s33, 1
    %p387 = por %p385, %p386
    %p388 = scmp.ne.s32.totalorder %s379, %s380
    %p389 = scmp.eq.s32.totalorder %s33, 0
    %p390 = por %p388, %p389
    %p391 = scmp.ne.s32.totalorder %s379, %s380
    %p392 = scmp.eq.s32.totalorder %s34, 1
    %p393 = por %p391, %p392
    %p395 = scmp.ne.s32.totalorder %s380, %s394
    %p396 = scmp.eq.s32.totalorder %s34, 0
    %p397 = por %p395, %p396
    %s399 = sadd.s32 %s398, 1
    %p402 = scmp.eq.s32.totalorder %s28, 1
    %p403 = scmp.ne.s32.totalorder %s398, %s400
    %p404 = scmp.eq.s32.totalorder %s28, 0
    %p405 = por %p403, %p404
    %p406 = scmp.ne.s32.totalorder %s398, %s400
    %p407 = scmp.eq.s32.totalorder %s33, 1
    %p408 = por %p406, %p407
    %p409 = scmp.ne.s32.totalorder %s400, %s401
    %p410 = scmp.eq.s32.totalorder %s33, 0
    %p411 = por %p409, %p410
    %p412 = scmp.ne.s32.totalorder %s400, %s401
    %p413 = scmp.eq.s32.totalorder %s34, 1
    %p414 = por %p412, %p413
    %p416 = scmp.ne.s32.totalorder %s401, %s415
    %p417 = scmp.eq.s32.totalorder %s34, 0
    %p418 = por %p416, %p417
    %s420 = sadd.s32 %s419, 1
    %p423 = scmp.eq.s32.totalorder %s28, 1
    %p424 = scmp.ne.s32.totalorder %s419, %s421
    %p425 = scmp.eq.s32.totalorder %s28, 0
    %p426 = por %p424, %p425
    %p427 = scmp.ne.s32.totalorder %s419, %s421
    %p428 = scmp.eq.s32.totalorder %s33, 1
    %p429 = por %p427, %p428
    %p430 = scmp.ne.s32.totalorder %s421, %s422
    %p431 = scmp.eq.s32.totalorder %s33, 0
    %p432 = por %p430, %p431
    %p433 = scmp.ne.s32.totalorder %s421, %s422
    %p434 = scmp.eq.s32.totalorder %s34, 1
    %p435 = por %p433, %p434
    %p437 = scmp.ne.s32.totalorder %s422, %s436
    %p438 = scmp.eq.s32.totalorder %s34, 0
    %p439 = por %p437, %p438
    %s441 = sadd.s32 %s440, 1
    %p444 = scmp.eq.s32.totalorder %s28, 1
    %p445 = scmp.ne.s32.totalorder %s440, %s442
    %p446 = scmp.eq.s32.totalorder %s28, 0
    %p447 = por %p445, %p446
    %p448 = scmp.ne.s32.totalorder %s440, %s442
    %p449 = scmp.eq.s32.totalorder %s33, 1
    %p450 = por %p448, %p449
    %p451 = scmp.ne.s32.totalorder %s442, %s443
    %p452 = scmp.eq.s32.totalorder %s33, 0
    %p453 = por %p451, %p452
    %p454 = scmp.ne.s32.totalorder %s442, %s443
    %p455 = scmp.eq.s32.totalorder %s34, 1
    %p456 = por %p454, %p455
    %p458 = scmp.ne.s32.totalorder %s443, %s457
    %p459 = scmp.eq.s32.totalorder %s34, 0
    %p460 = por %p458, %p459
    %s462 = sadd.s32 %s461, 1
    %p465 = scmp.eq.s32.totalorder %s28, 1
    %p466 = scmp.ne.s32.totalorder %s461, %s463
    %p467 = scmp.eq.s32.totalorder %s28, 0
    %p468 = por %p466, %p467
    %p469 = scmp.ne.s32.totalorder %s461, %s463
    %p470 = scmp.eq.s32.totalorder %s33, 1
    %p471 = por %p469, %p470
    %p472 = scmp.ne.s32.totalorder %s463, %s464
    %p473 = scmp.eq.s32.totalorder %s33, 0
    %p474 = por %p472, %p473
    %p475 = scmp.ne.s32.totalorder %s463, %s464
    %p476 = scmp.eq.s32.totalorder %s34, 1
    %p477 = por %p475, %p476
    %p479 = scmp.ne.s32.totalorder %s464, %s478
    %p480 = scmp.eq.s32.totalorder %s34, 0
    %p481 = por %p479, %p480
    %s483 = sadd.s32 %s482, 1
    %p486 = scmp.eq.s32.totalorder %s28, 1
    %p487 = scmp.ne.s32.totalorder %s482, %s484
    %p488 = scmp.eq.s32.totalorder %s28, 0
    %p489 = por %p487, %p488
    %p490 = scmp.ne.s32.totalorder %s482, %s484
    %p491 = scmp.eq.s32.totalorder %s33, 1
    %p492 = por %p490, %p491
    %p493 = scmp.ne.s32.totalorder %s484, %s485
    %p494 = scmp.eq.s32.totalorder %s33, 0
    %p495 = por %p493, %p494
    %p496 = scmp.ne.s32.totalorder %s484, %s485
    %p497 = scmp.eq.s32.totalorder %s34, 1
    %p498 = por %p496, %p497
    %p500 = scmp.ne.s32.totalorder %s485, %s499
    %p501 = scmp.eq.s32.totalorder %s34, 0
    %p502 = por %p500, %p501
    %s503 = ssub.s32 %s28, %s35
    %p504 = scmp.eq.s32.totalorder %s503, 0
    %s506 = sadd.s32 %s505, 1
    %s507 = scalar_select %p504, %s505, %s506
    %p510 = pneg %p504
    %p511 = scmp.eq.s32.totalorder %s28, 1
    %p512 = por %p510, %p511
    %p513 = scmp.ne.s32.totalorder %s505, %s508
    %p514 = scmp.eq.s32.totalorder %s28, 0
    %p515 = por %p513, %p514
    %p516 = scmp.ne.s32.totalorder %s505, %s508
    %p517 = scmp.eq.s32.totalorder %s33, 1
    %p518 = por %p516, %p517
    %p519 = scmp.ne.s32.totalorder %s508, %s509
    %p520 = scmp.eq.s32.totalorder %s33, 0
    %p521 = por %p519, %p520
    %p522 = scmp.ne.s32.totalorder %s508, %s509
    %p523 = scmp.eq.s32.totalorder %s34, 1
    %p524 = por %p522, %p523
    %p526 = scmp.ne.s32.totalorder %s509, %s525
    %p527 = scmp.eq.s32.totalorder %s34, 0
    %p528 = por %p526, %p527
    %p529 = scmp.le.s32.totalorder 1, %s28
    %p530 = scmp.lt.s32.totalorder %s28, 3
    %p531 = pnand %p529, %p530
    %p532 = pneg %p531
    // Predicated region
    $region9: #{image_transformer_pallas.1} parent=5 // pred_check
      _
    $region10: #{image_transformer_pallas.1} parent=5 // pred_check_branch
      %534 = sbr.rel (%p531) target = $region12
    $region11: #{image_transformer_pallas.1} parent=5 // pred_region
      %s535 = ssub.s32 %s28, 1
      // Predicated region
      $region13: #{image_transformer_pallas.1} parent=11 // pred_check
        %p536 = pneg %p75
      $region14: #{image_transformer_pallas.1} parent=11 // pred_check_branch
        %538 = sbr.rel (%p536) target = $region16
      $region15: #{image_transformer_pallas.1} parent=11 // pred_region
        _
      $region16: #{image_transformer_pallas.1} parent=11 // pred_fallthru
        _
      // Predicated region
      $region17: #{image_transformer_pallas.1} parent=11 // pred_check
        %p539 = pneg %p96
      $region18: #{image_transformer_pallas.1} parent=11 // pred_check_branch
        %541 = sbr.rel (%p539) target = $region20
      $region19: #{image_transformer_pallas.1} parent=11 // pred_region
        _
      $region20: #{image_transformer_pallas.1} parent=11 // pred_fallthru
        _
      // Predicated region
      $region21: #{image_transformer_pallas.1} parent=11 // pred_check
        %p542 = pneg %p117
      $region22: #{image_transformer_pallas.1} parent=11 // pred_check_branch
        %544 = sbr.rel (%p542) target = $region24
      $region23: #{image_transformer_pallas.1} parent=11 // pred_region
        _
      $region24: #{image_transformer_pallas.1} parent=11 // pred_fallthru
        _
      // Predicated region
      $region25: #{image_transformer_pallas.1} parent=11 // pred_check
        %p545 = pneg %p138
      $region26: #{image_transformer_pallas.1} parent=11 // pred_check_branch
        %547 = sbr.rel (%p545) target = $region28
      $region27: #{image_transformer_pallas.1} parent=11 // pred_region
        _
      $region28: #{image_transformer_pallas.1} parent=11 // pred_fallthru
        _
      // Predicated region
      $region29: #{image_transformer_pallas.1} parent=11 // pred_check
        %p548 = pneg %p159
      $region30: #{image_transformer_pallas.1} parent=11 // pred_check_branch
        %550 = sbr.rel (%p548) target = $region32
      $region31: #{image_transformer_pallas.1} parent=11 // pred_region
        _
      $region32: #{image_transformer_pallas.1} parent=11 // pred_fallthru
        _
      // Predicated region
      $region33: #{image_transformer_pallas.1} parent=11 // pred_check
        %p551 = pneg %p180
      $region34: #{image_transformer_pallas.1} parent=11 // pred_check_branch
        %553 = sbr.rel (%p551) target = $region36
      $region35: #{image_transformer_pallas.1} parent=11 // pred_region
        _
      $region36: #{image_transformer_pallas.1} parent=11 // pred_fallthru
        _
      // Predicated region
      $region37: #{image_transformer_pallas.1} parent=11 // pred_check
        %p554 = pneg %p201
      $region38: #{image_transformer_pallas.1} parent=11 // pred_check_branch
        %556 = sbr.rel (%p554) target = $region40
      $region39: #{image_transformer_pallas.1} parent=11 // pred_region
        _
      $region40: #{image_transformer_pallas.1} parent=11 // pred_fallthru
        _
      // Predicated region
      $region41: #{image_transformer_pallas.1} parent=11 // pred_check
        %p557 = pneg %p222
      $region42: #{image_transformer_pallas.1} parent=11 // pred_check_branch
        %559 = sbr.rel (%p557) target = $region44
      $region43: #{image_transformer_pallas.1} parent=11 // pred_region
        _
      $region44: #{image_transformer_pallas.1} parent=11 // pred_fallthru
        _
      // Predicated region
      $region45: #{image_transformer_pallas.1} parent=11 // pred_check
        %p560 = pneg %p243
      $region46: #{image_transformer_pallas.1} parent=11 // pred_check_branch
        %562 = sbr.rel (%p560) target = $region48
      $region47: #{image_transformer_pallas.1} parent=11 // pred_region
        _
      $region48: #{image_transformer_pallas.1} parent=11 // pred_fallthru
        _
      // Predicated region
      $region49: #{image_transformer_pallas.1} parent=11 // pred_check
        %p563 = pneg %p264
      $region50: #{image_transformer_pallas.1} parent=11 // pred_check_branch
        %565 = sbr.rel (%p563) target = $region52
      $region51: #{image_transformer_pallas.1} parent=11 // pred_region
        _
      $region52: #{image_transformer_pallas.1} parent=11 // pred_fallthru
        _
      // Predicated region
      $region53: #{image_transformer_pallas.1} parent=11 // pred_check
        %p566 = pneg %p285
      $region54: #{image_transformer_pallas.1} parent=11 // pred_check_branch
        %568 = sbr.rel (%p566) target = $region56
      $region55: #{image_transformer_pallas.1} parent=11 // pred_region
        _
      $region56: #{image_transformer_pallas.1} parent=11 // pred_fallthru
        _
      // Predicated region
      $region57: #{image_transformer_pallas.1} parent=11 // pred_check
        %p569 = pneg %p306
      $region58: #{image_transformer_pallas.1} parent=11 // pred_check_branch
        %571 = sbr.rel (%p569) target = $region60
      $region59: #{image_transformer_pallas.1} parent=11 // pred_region
        _
      $region60: #{image_transformer_pallas.1} parent=11 // pred_fallthru
        _
      // Predicated region
      $region61: #{image_transformer_pallas.1} parent=11 // pred_check
        %p572 = pneg %p327
      $region62: #{image_transformer_pallas.1} parent=11 // pred_check_branch
        %574 = sbr.rel (%p572) target = $region64
      $region63: #{image_transformer_pallas.1} parent=11 // pred_region
        _
      $region64: #{image_transformer_pallas.1} parent=11 // pred_fallthru
        _
      // Predicated region
      $region65: #{image_transformer_pallas.1} parent=11 // pred_check
        %p575 = pneg %p348
      $region66: #{image_transformer_pallas.1} parent=11 // pred_check_branch
        %577 = sbr.rel (%p575) target = $region68
      $region67: #{image_transformer_pallas.1} parent=11 // pred_region
        _
      $region68: #{image_transformer_pallas.1} parent=11 // pred_fallthru
        _
      // Predicated region
      $region69: #{image_transformer_pallas.1} parent=11 // pred_check
        %p578 = pneg %p369
      $region70: #{image_transformer_pallas.1} parent=11 // pred_check_branch
        %580 = sbr.rel (%p578) target = $region72
      $region71: #{image_transformer_pallas.1} parent=11 // pred_region
        _
      $region72: #{image_transformer_pallas.1} parent=11 // pred_fallthru
        _
      // Predicated region
      $region73: #{image_transformer_pallas.1} parent=11 // pred_check
        %p581 = pneg %p390
      $region74: #{image_transformer_pallas.1} parent=11 // pred_check_branch
        %583 = sbr.rel (%p581) target = $region76
      $region75: #{image_transformer_pallas.1} parent=11 // pred_region
        _
      $region76: #{image_transformer_pallas.1} parent=11 // pred_fallthru
        _
      // Predicated region
      $region77: #{image_transformer_pallas.1} parent=11 // pred_check
        %p584 = pneg %p411
      $region78: #{image_transformer_pallas.1} parent=11 // pred_check_branch
        %586 = sbr.rel (%p584) target = $region80
      $region79: #{image_transformer_pallas.1} parent=11 // pred_region
        _
      $region80: #{image_transformer_pallas.1} parent=11 // pred_fallthru
        _
      // Predicated region
      $region81: #{image_transformer_pallas.1} parent=11 // pred_check
        %p587 = pneg %p432
      $region82: #{image_transformer_pallas.1} parent=11 // pred_check_branch
        %589 = sbr.rel (%p587) target = $region84
      $region83: #{image_transformer_pallas.1} parent=11 // pred_region
        _
      $region84: #{image_transformer_pallas.1} parent=11 // pred_fallthru
        _
      // Predicated region
      $region85: #{image_transformer_pallas.1} parent=11 // pred_check
        %p590 = pneg %p453
      $region86: #{image_transformer_pallas.1} parent=11 // pred_check_branch
        %592 = sbr.rel (%p590) target = $region88
      $region87: #{image_transformer_pallas.1} parent=11 // pred_region
        _
      $region88: #{image_transformer_pallas.1} parent=11 // pred_fallthru
        _
      // Predicated region
      $region89: #{image_transformer_pallas.1} parent=11 // pred_check
        %p593 = pneg %p474
      $region90: #{image_transformer_pallas.1} parent=11 // pred_check_branch
        %595 = sbr.rel (%p593) target = $region92
      $region91: #{image_transformer_pallas.1} parent=11 // pred_region
        _
      $region92: #{image_transformer_pallas.1} parent=11 // pred_fallthru
        _
      // Predicated region
      $region93: #{image_transformer_pallas.1} parent=11 // pred_check
        %p596 = pneg %p495
      $region94: #{image_transformer_pallas.1} parent=11 // pred_check_branch
        %598 = sbr.rel (%p596) target = $region96
      $region95: #{image_transformer_pallas.1} parent=11 // pred_region
        _
      $region96: #{image_transformer_pallas.1} parent=11 // pred_fallthru
        _
    $region12: #{image_transformer_pallas.1} parent=5 // pred_fallthru
      _
    %p599 = scmp.lt.s32.totalorder %s28, 2
    // Predicated region
    $region97: #{image_transformer_pallas.1} parent=5 // pred_check
      %p600 = pneg %p599
    $region98: #{image_transformer_pallas.1} parent=5 // pred_check_branch
      %602 = sbr.rel (%p600) target = $region100
    $region99: #{image_transformer_pallas.1} parent=5 // pred_region
      // Predicated region
      $region101: #{image_transformer_pallas.1} parent=99 // pred_check
        %p603 = pneg %p48
      $region102: #{image_transformer_pallas.1} parent=99 // pred_check_branch
        %605 = sbr.rel (%p603) target = $region104
      $region103: #{image_transformer_pallas.1} parent=99 // pred_region
        %p606 = scmp.lt.s32.totalorder %s28, 1
        %s607 = scalar_select %p606, %s28, 1
        %s608 = smul.addr %s607, 8
        %s609 = smul.addr %s608, 8
        %s610 = scalar_lea.vmem %s0, %s609
      $region104: #{image_transformer_pallas.1} parent=99 // pred_fallthru
        _
    $region100: #{image_transformer_pallas.1} parent=5 // pred_fallthru
      _
    %p611 = scmp.le.s32.totalorder 1, %s28
    %p612 = scmp.lt.s32.totalorder %s28, 3
    %p613 = pnand %p611, %p612
    %p614 = pneg %p613
    // Predicated region
    $region105: #{image_transformer_pallas.1} parent=5 // pred_check
      _
    $region106: #{image_transformer_pallas.1} parent=5 // pred_check_branch
      %616 = sbr.rel (%p613) target = $region108
    $region107: #{image_transformer_pallas.1} parent=5 // pred_region
      %s617 = ssub.s32 %s28, 1
      %p618 = scmp.lt.s32.totalorder %s33, 1
      %s619 = scalar_select %p618, %s33, 1
      %s620 = smul.addr %s619, 8
      %s621 = smul.addr %s620, 8
      %s622 = scalar_lea.vmem %s0, %s621
      %p623 = pneg %p54
      %p624 = pneg %p51
      %p625 = pneg %p75
      %p626 = pneg %p72
      %p627 = pneg %p96
      %p628 = pneg %p93
      %p629 = pneg %p117
      %p630 = pneg %p114
      %p631 = pneg %p138
      %p632 = pneg %p135
      %p633 = pneg %p159
      %p634 = pneg %p156
      %p635 = pneg %p180
      %p636 = pneg %p177
      %p637 = pneg %p201
      %p638 = pneg %p198
      %p639 = pneg %p222
      %p640 = pneg %p219
      %p641 = pneg %p243
      %p642 = pneg %p240
      %p643 = pneg %p264
      %p644 = pneg %p261
      %p645 = pneg %p285
      %p646 = pneg %p282
      %p647 = pneg %p306
      %p648 = pneg %p303
      %p649 = pneg %p327
      %p650 = pneg %p324
      %p651 = pneg %p348
      %p652 = pneg %p345
      %p653 = pneg %p369
      %p654 = pneg %p366
      %p655 = pneg %p390
      %p656 = pneg %p387
      %p657 = pneg %p411
      %p658 = pneg %p408
      %p659 = pneg %p432
      %p660 = pneg %p429
      %p661 = pneg %p453
      %p662 = pneg %p450
      %p663 = pneg %p474
      %p664 = pneg %p471
      %p665 = pneg %p495
      %p666 = pneg %p492
      %p667 = pneg %p521
      %p668 = pneg %p518
      %p669 = scmp.lt.s32.totalorder %s33, 1
      %s670 = scalar_select %p669, %s33, 1
      %s671 = smul.addr %s670, 8
      %s672 = smul.addr %s671, 8
      %s673 = scalar_lea.vmem %s22, %s672
      %p674 = scmp.lt.s32.totalorder %s33, 1
      %s675 = scalar_select %p674, %s33, 1
      %s676 = smul.addr %s675, 8
      %s677 = smul.addr %s676, 8
      %s678 = scalar_lea.vmem %s0, %s677
      %p679 = scmp.lt.s32.totalorder %s33, 1
      %s680 = scalar_select %p679, %s33, 1
      %s681 = smul.addr %s680, 8
      %s682 = smul.addr %s681, 8
      %s683 = scalar_lea.vmem %s22, %s682
      %v685 = vld [vmem:[%s678] sm:$0xff]
      %v686 = vld [vmem:[%s678 + $0x8] sm:$0xff]
      %v687 = vld [vmem:[%s678 + $0x10] sm:$0xff]
      %v688 = vld [vmem:[%s678 + $0x18] sm:$0xff]
      %v689 = vld [vmem:[%s678 + $0x20] sm:$0xff]
      %v690 = vld [vmem:[%s678 + $0x28] sm:$0xff]
      %v691 = vld [vmem:[%s678 + $0x30] sm:$0xff]
      %v692 = vld [vmem:[%s678 + $0x38] sm:$0xff]
      %v693 = vld [vmem:[%s2] sm:$0xff]
      %v694 = vld [vmem:[%s2 + $0x8] sm:$0xff]
      %v695 = vld [vmem:[%s2 + $0x10] sm:$0xff]
      %v696 = vld [vmem:[%s2 + $0x18] sm:$0xff]
      %v697 = vld [vmem:[%s2 + $0x20] sm:$0xff]
      %v698 = vld [vmem:[%s2 + $0x28] sm:$0xff]
      %v699 = vld [vmem:[%s2 + $0x30] sm:$0xff]
      %v700 = vld [vmem:[%s2 + $0x38] sm:$0xff]
      %v701 = vld [vmem:[%s3] sm:$0x1]
      %v703 = vlaneseq
      %v704 = vshrl.u32 %v703, 7
      %v705 = vsub.s32 0, %v704
      %v706 = vrot.slane %v701, %v705
      %vm708 = vcmask 523264
      %v710 = vsel %vm708, %v685, 0
      %v713 = vsel %vm708, %v686, 0
      %v716 = vsel %vm708, %v687, 0
      %v719 = vsel %vm708, %v688, 0
      %v722 = vsel %vm708, %v689, 0
      %v725 = vsel %vm708, %v690, 0
      %v728 = vsel %vm708, %v691, 0
      %v731 = vsel %vm708, %v692, 0
      %733 = vmatprep.subr.mxu0 0.0
      %734 = vmatpush1.msra.mxu0 0.0
      %735 = vmatprep.subr.mxu0 0.0
      %736 = vmatpush1.msra.mxu0 0.0
      %737 = vmatprep.subr.mxu0 0.0
      %738 = vmatpush1.msra.mxu0 0.0
      %739 = vmatprep.subr.mxu0 0.0
      %740 = vmatpush1.msra.mxu0 0.0
      %741 = vmatprep.subr.mxu0 0.0
      %742 = vmatpush1.msra.mxu0 0.0
      %743 = vmatprep.subr.mxu0 0.0
      %744 = vmatpush1.msra.mxu0 0.0
      %745 = vmatprep.subr.mxu0 0.0
      %746 = vmatpush1.msra.mxu0 0.0
      %747 = vmatprep.subr.mxu0 0.0
      %748 = vmatpush1.msra.mxu0 0.0
      %749 = vmatprep.subr.mxu0 0.0
      %750 = vmatpush1.msra.mxu0 %v700
      %751 = vmatprep.subr.mxu0 0.0
      %752 = vmatpush1.msra.mxu0 %v699
      %753 = vmatprep.subr.mxu0 0.0
      %754 = vmatpush1.msra.mxu0 %v698
      %755 = vmatprep.subr.mxu0 0.0
      %756 = vmatpush1.msra.mxu0 %v697
      %757 = vmatprep.subr.mxu0 0.0
      %758 = vmatpush1.msra.mxu0 %v696
      %759 = vmatprep.subr.mxu0 0.0
      %760 = vmatpush1.msra.mxu0 %v695
      %761 = vmatprep.subr.mxu0 0.0
      %762 = vmatpush1.msra.mxu0 %v694
      %763 = vmatprep.subr.mxu0 0.0
      %764 = vmatpush1.msra.mxu0 %v693
      %765 = vmatprep.subr.mxu0 0.0
      %766 = vmatpush2.msra.mxu0 0.0
      %767 = vmatprep.subr.mxu0 0.0
      %768 = vmatpush2.msra.mxu0 0.0
      %769 = vmatprep.subr.mxu0 0.0
      %770 = vmatpush2.msra.mxu0 0.0
      %771 = vmatprep.subr.mxu0 0.0
      %772 = vmatpush2.msra.mxu0 0.0
      %773 = vmatprep.subr.mxu0 0.0
      %774 = vmatpush2.msra.mxu0 0.0
      %775 = vmatprep.subr.mxu0 0.0
      %776 = vmatpush2.msra.mxu0 0.0
      %777 = vmatprep.subr.mxu0 0.0
      %778 = vmatpush2.msra.mxu0 0.0
      %779 = vmatprep.subr.mxu0 0.0
      %780 = vmatpush2.msra.mxu0 0.0
      %781 = vmatprep.subr.mxu0 0.0
      %782 = vmatpush2.msra.mxu0 0.0
      %783 = vmatprep.subr.mxu0 0.0
      %784 = vmatpush2.msra.mxu0 0.0
      %785 = vmatprep.subr.mxu0 0.0
      %786 = vmatpush2.msra.mxu0 0.0
      %787 = vmatprep.subr.mxu0 0.0
      %788 = vmatpush2.msra.mxu0 0.0
      %789 = vmatprep.subr.mxu0 0.0
      %790 = vmatpush2.msra.mxu0 0.0
      %791 = vmatprep.subr.mxu0 0.0
      %792 = vmatpush2.msra.mxu0 0.0
      %793 = vmatprep.subr.mxu0 0.0
      %794 = vmatpush2.msra.mxu0 0.0
      %795 = vmatprep.subr.mxu0 0.0
      %796 = vmatpush2.msra.mxu0 0.0
      %797 = vmatprep.mubr.f32.mxu0 0.0
      %798 = vmatmul.mubr.f32.gmra.mxu0 %v710
      %v799 = vpop.f32.mrf.mxu0
      %v800 = vadd.f32 %v706, %v799
      %v801 = vpop.f32.mrf.mxu0
      %802 = vmatprep.mubr.f32.mxu0 0.0
      %803 = vmatmul.mubr.f32.gmra.mxu0 %v713
      %v804 = vpop.f32.mrf.mxu0
      %v805 = vadd.f32 %v706, %v804
      %v806 = vpop.f32.mrf.mxu0
      %807 = vmatprep.mubr.f32.mxu0 0.0
      %808 = vmatmul.mubr.f32.gmra.mxu0 %v716
      %v809 = vpop.f32.mrf.mxu0
      %v810 = vadd.f32 %v706, %v809
      %v811 = vpop.f32.mrf.mxu0
      %812 = vmatprep.mubr.f32.mxu0 0.0
      %813 = vmatmul.mubr.f32.gmra.mxu0 %v719
      %v814 = vpop.f32.mrf.mxu0
      %v815 = vadd.f32 %v706, %v814
      %v816 = vpop.f32.mrf.mxu0
      %817 = vmatprep.mubr.f32.mxu0 0.0
      %818 = vmatmul.mubr.f32.gmra.mxu0 %v722
      %v819 = vpop.f32.mrf.mxu0
      %v820 = vadd.f32 %v706, %v819
      %v821 = vpop.f32.mrf.mxu0
      %822 = vmatprep.mubr.f32.mxu0 0.0
      %823 = vmatmul.mubr.f32.gmra.mxu0 %v725
      %v824 = vpop.f32.mrf.mxu0
      %v825 = vadd.f32 %v706, %v824
      %v826 = vpop.f32.mrf.mxu0
      %827 = vmatprep.mubr.f32.mxu0 0.0
      %828 = vmatmul.mubr.f32.gmra.mxu0 %v728
      %v829 = vpop.f32.mrf.mxu0
      %v830 = vadd.f32 %v706, %v829
      %v831 = vpop.f32.mrf.mxu0
      %832 = vmatprep.mubr.f32.mxu0 0.0
      %833 = vmatmul.mubr.f32.gmra.mxu0 %v731
      %v834 = vpop.f32.mrf.mxu0
      %v835 = vadd.f32 %v706, %v834
      %v836 = vpop.f32.mrf.mxu0
      %837 = vdwg.mxu0
      %v838 = vld [vmem:[%s1] sm:$0x3]
      %v839 = vpack.c.bf16 %v805, %v800
      %v840 = vpack.c.bf16 %v815, %v810
      %v841 = vpack.c.bf16 %v825, %v820
      %v842 = vpack.c.bf16 %v835, %v830
      %v844 = vsel %vm708, %v838, 0
      %846 = vmatprep.subr.bf16.mxu0 0
      %847 = vmatpush1.bf16.msra.mxu0 0
      %848 = vmatprep.subr.bf16.mxu0 0
      %849 = vmatpush1.bf16.msra.mxu0 0
      %850 = vmatprep.subr.bf16.mxu0 0
      %851 = vmatpush1.bf16.msra.mxu0 0
      %852 = vmatprep.subr.bf16.mxu0 0
      %853 = vmatpush1.bf16.msra.mxu0 0
      %854 = vmatprep.subr.bf16.mxu0 0
      %855 = vmatpush1.bf16.msra.mxu0 %v842
      %856 = vmatprep.subr.bf16.mxu0 0
      %857 = vmatpush1.bf16.msra.mxu0 %v841
      %858 = vmatprep.subr.bf16.mxu0 0
      %859 = vmatpush1.bf16.msra.mxu0 %v840
      %860 = vmatprep.subr.bf16.mxu0 0
      %861 = vmatpush1.bf16.msra.mxu0 %v839
      %862 = vmatprep.subr.bf16.mxu0 0
      %863 = vmatpush2.bf16.msra.mxu0 0
      %864 = vmatprep.subr.bf16.mxu0 0
      %865 = vmatpush2.bf16.msra.mxu0 0
      %866 = vmatprep.subr.bf16.mxu0 0
      %867 = vmatpush2.bf16.msra.mxu0 0
      %868 = vmatprep.subr.bf16.mxu0 0
      %869 = vmatpush2.bf16.msra.mxu0 0
      %870 = vmatprep.subr.bf16.mxu0 0
      %871 = vmatpush2.bf16.msra.mxu0 0
      %872 = vmatprep.subr.bf16.mxu0 0
      %873 = vmatpush2.bf16.msra.mxu0 0
      %874 = vmatprep.subr.bf16.mxu0 0
      %875 = vmatpush2.bf16.msra.mxu0 0
      %876 = vmatprep.subr.bf16.mxu0 0
      %877 = vmatpush2.bf16.msra.mxu0 0
      %878 = vmatprep.mubr.bf16.mxu0 0
      %879 = vmatmul.mubr.bf16.gmra.mxu0 %v844
      %v880 = vpop.f32.mrf.mxu0
      %v881 = vadd.f32 0.0, %v880
      %v882 = vpop.f32.mrf.mxu0
      %v883 = vpop.f32.mrf.mxu0
      %v884 = vpop.f32.mrf.mxu0
      %885 = vdwg.mxu0
      %v886 = vpack.c.bf16 %v881, %v881
      %v887 = vld [vmem:[%s4] sm:$0xf]
      %v888 = vld [vmem:[%s4 + $0x4] sm:$0xf]
      %v889 = vld [vmem:[%s4 + $0x8] sm:$0xf]
      %v890 = vld [vmem:[%s4 + $0xc] sm:$0xf]
      %v891 = vld [vmem:[%s5] sm:$0x1]
      %v893 = vlaneseq
      %v894 = vshrl.u32 %v893, 7
      %v895 = vsub.s32 0, %v894
      %v896 = vrot.slane %v891, %v895
      %v902 = vunpack.c.l.b16 %v887
      %v903 = vunpack.c.l.b16 %v888
      %v904 = vunpack.c.l.b16 %v889
      %v905 = vunpack.c.l.b16 %v890
      %v906 = vpack.c.b16 %v903, %v902
      %v907 = vpack.c.b16 %v905, %v904
      %vm910 = vcmask 261120
      %v912 = vsel %vm910, %v839, 0
      %v915 = vsel %vm910, %v840, 0
      %v918 = vsel %vm910, %v841, 0
      %v921 = vsel %vm910, %v842, 0
      %923 = vmatprep.subr.bf16.mxu0 0
      %924 = vmatpush1.bf16.msra.mxu0 0
      %925 = vmatprep.subr.bf16.mxu0 0
      %926 = vmatpush1.bf16.msra.mxu0 0
      %927 = vmatprep.subr.bf16.mxu0 0
      %928 = vmatpush1.bf16.msra.mxu0 0
      %929 = vmatprep.subr.bf16.mxu0 0
      %930 = vmatpush1.bf16.msra.mxu0 0
      %931 = vmatprep.subr.bf16.mxu0 0
      %932 = vmatpush1.bf16.msra.mxu0 0
      %933 = vmatprep.subr.bf16.mxu0 0
      %934 = vmatpush1.bf16.msra.mxu0 0
      %935 = vmatprep.subr.bf16.mxu0 0
      %936 = vmatpush1.bf16.msra.mxu0 %v907
      %937 = vmatprep.subr.bf16.mxu0 0
      %938 = vmatpush1.bf16.msra.mxu0 %v906
      %939 = vmatprep.subr.bf16.mxu0 0
      %940 = vmatpush2.bf16.msra.mxu0 0
      %941 = vmatprep.subr.bf16.mxu0 0
      %942 = vmatpush2.bf16.msra.mxu0 0
      %943 = vmatprep.subr.bf16.mxu0 0
      %944 = vmatpush2.bf16.msra.mxu0 0
      %945 = vmatprep.subr.bf16.mxu0 0
      %946 = vmatpush2.bf16.msra.mxu0 0
      %947 = vmatprep.subr.bf16.mxu0 0
      %948 = vmatpush2.bf16.msra.mxu0 0
      %949 = vmatprep.subr.bf16.mxu0 0
      %950 = vmatpush2.bf16.msra.mxu0 0
      %951 = vmatprep.subr.bf16.mxu0 0
      %952 = vmatpush2.bf16.msra.mxu0 0
      %953 = vmatprep.subr.bf16.mxu0 0
      %954 = vmatpush2.bf16.msra.mxu0 0
      %955 = vmatprep.mubr.bf16.mxu0 0
      %956 = vmatmul.mubr.bf16.gmra.mxu0 %v912
      %v957 = vpop.f32.mrf.mxu0
      %v958 = vadd.f32 %v896, %v957
      %v959 = vpop.f32.mrf.mxu0
      %v960 = vpop.f32.mrf.mxu0
      %v961 = vadd.f32 %v896, %v960
      %v962 = vpop.f32.mrf.mxu0
      %963 = vmatprep.mubr.bf16.mxu0 0
      %964 = vmatmul.mubr.bf16.gmra.mxu0 %v915
      %v965 = vpop.f32.mrf.mxu0
      %v966 = vadd.f32 %v896, %v965
      %v967 = vpop.f32.mrf.mxu0
      %v968 = vpop.f32.mrf.mxu0
      %v969 = vadd.f32 %v896, %v968
      %v970 = vpop.f32.mrf.mxu0
      %971 = vmatprep.mubr.bf16.mxu0 0
      %972 = vmatmul.mubr.bf16.gmra.mxu0 %v918
      %v973 = vpop.f32.mrf.mxu0
      %v974 = vadd.f32 %v896, %v973
      %v975 = vpop.f32.mrf.mxu0
      %v976 = vpop.f32.mrf.mxu0
      %v977 = vadd.f32 %v896, %v976
      %v978 = vpop.f32.mrf.mxu0
      %979 = vmatprep.mubr.bf16.mxu0 0
      %980 = vmatmul.mubr.bf16.gmra.mxu0 %v921
      %v981 = vpop.f32.mrf.mxu0
      %v982 = vadd.f32 %v896, %v981
      %v983 = vpop.f32.mrf.mxu0
      %v984 = vpop.f32.mrf.mxu0
      %v985 = vadd.f32 %v896, %v984
      %v986 = vpop.f32.mrf.mxu0
      %987 = vdwg.mxu0
      %v988 = vld [vmem:[%s6] sm:$0xf]
      %v989 = vld [vmem:[%s6 + $0x4] sm:$0xf]
      %v990 = vld [vmem:[%s6 + $0x8] sm:$0xf]
      %v991 = vld [vmem:[%s6 + $0xc] sm:$0xf]
      %v992 = vld [vmem:[%s7] sm:$0x1]
      %v994 = vlaneseq
      %v995 = vshrl.u32 %v994, 7
      %v996 = vsub.s32 0, %v995
      %v997 = vrot.slane %v992, %v996
      %v1003 = vunpack.c.l.b16 %v988
      %v1004 = vunpack.c.l.b16 %v989
      %v1005 = vunpack.c.l.b16 %v990
      %v1006 = vunpack.c.l.b16 %v991
      %v1007 = vpack.c.b16 %v1004, %v1003
      %v1008 = vpack.c.b16 %v1006, %v1005
      %v1012 = vsel %vm910, %v886, 0
      %1014 = vmatprep.subr.bf16.mxu0 0
      %1015 = vmatpush1.bf16.msra.mxu0 0
      %1016 = vmatprep.subr.bf16.mxu0 0
      %1017 = vmatpush1.bf16.msra.mxu0 0
      %1018 = vmatprep.subr.bf16.mxu0 0
      %1019 = vmatpush1.bf16.msra.mxu0 0
      %1020 = vmatprep.subr.bf16.mxu0 0
      %1021 = vmatpush1.bf16.msra.mxu0 0
      %1022 = vmatprep.subr.bf16.mxu0 0
      %1023 = vmatpush1.bf16.msra.mxu0 0
      %1024 = vmatprep.subr.bf16.mxu0 0
      %1025 = vmatpush1.bf16.msra.mxu0 0
      %1026 = vmatprep.subr.bf16.mxu0 0
      %1027 = vmatpush1.bf16.msra.mxu0 %v1008
      %1028 = vmatprep.subr.bf16.mxu0 0
      %1029 = vmatpush1.bf16.msra.mxu0 %v1007
      %1030 = vmatprep.subr.bf16.mxu0 0
      %1031 = vmatpush2.bf16.msra.mxu0 0
      %1032 = vmatprep.subr.bf16.mxu0 0
      %1033 = vmatpush2.bf16.msra.mxu0 0
      %1034 = vmatprep.subr.bf16.mxu0 0
      %1035 = vmatpush2.bf16.msra.mxu0 0
      %1036 = vmatprep.subr.bf16.mxu0 0
      %1037 = vmatpush2.bf16.msra.mxu0 0
      %1038 = vmatprep.subr.bf16.mxu0 0
      %1039 = vmatpush2.bf16.msra.mxu0 0
      %1040 = vmatprep.subr.bf16.mxu0 0
      %1041 = vmatpush2.bf16.msra.mxu0 0
      %1042 = vmatprep.subr.bf16.mxu0 0
      %1043 = vmatpush2.bf16.msra.mxu0 0
      %1044 = vmatprep.subr.bf16.mxu0 0
      %1045 = vmatpush2.bf16.msra.mxu0 0
      %1046 = vmatprep.mubr.bf16.mxu0 0
      %1047 = vmatmul.mubr.bf16.gmra.mxu0 %v1012
      %v1048 = vpop.f32.mrf.mxu0
      %v1049 = vadd.f32 %v997, %v1048
      %v1050 = vpop.f32.mrf.mxu0
      %v1051 = vpop.f32.mrf.mxu0
      %v1052 = vpop.f32.mrf.mxu0
      %1053 = vdwg.mxu0
      %v1054 = vld [vmem:[%s8] sm:$0xf]
      %v1055 = vld [vmem:[%s8 + $0x4] sm:$0xf]
      %v1056 = vld [vmem:[%s8 + $0x8] sm:$0xf]
      %v1057 = vld [vmem:[%s8 + $0xc] sm:$0xf]
      %v1058 = vld [vmem:[%s9] sm:$0x1]
      %v1060 = vlaneseq
      %v1061 = vshrl.u32 %v1060, 7
      %v1062 = vsub.s32 0, %v1061
      %v1063 = vrot.slane %v1058, %v1062
      %v1069 = vunpack.c.l.b16 %v1054
      %v1070 = vunpack.c.l.b16 %v1055
      %v1071 = vunpack.c.l.b16 %v1056
      %v1072 = vunpack.c.l.b16 %v1057
      %v1073 = vpack.c.b16 %v1070, %v1069
      %v1074 = vpack.c.b16 %v1072, %v1071
      %1077 = vmatprep.subr.bf16.mxu0 0
      %1078 = vmatpush1.bf16.msra.mxu0 0
      %1079 = vmatprep.subr.bf16.mxu0 0
      %1080 = vmatpush1.bf16.msra.mxu0 0
      %1081 = vmatprep.subr.bf16.mxu0 0
      %1082 = vmatpush1.bf16.msra.mxu0 0
      %1083 = vmatprep.subr.bf16.mxu0 0
      %1084 = vmatpush1.bf16.msra.mxu0 0
      %1085 = vmatprep.subr.bf16.mxu0 0
      %1086 = vmatpush1.bf16.msra.mxu0 0
      %1087 = vmatprep.subr.bf16.mxu0 0
      %1088 = vmatpush1.bf16.msra.mxu0 0
      %1089 = vmatprep.subr.bf16.mxu0 0
      %1090 = vmatpush1.bf16.msra.mxu0 %v1074
      %1091 = vmatprep.subr.bf16.mxu0 0
      %1092 = vmatpush1.bf16.msra.mxu0 %v1073
      %1093 = vmatprep.subr.bf16.mxu0 0
      %1094 = vmatpush2.bf16.msra.mxu0 0
      %1095 = vmatprep.subr.bf16.mxu0 0
      %1096 = vmatpush2.bf16.msra.mxu0 0
      %1097 = vmatprep.subr.bf16.mxu0 0
      %1098 = vmatpush2.bf16.msra.mxu0 0
      %1099 = vmatprep.subr.bf16.mxu0 0
      %1100 = vmatpush2.bf16.msra.mxu0 0
      %1101 = vmatprep.subr.bf16.mxu0 0
      %1102 = vmatpush2.bf16.msra.mxu0 0
      %1103 = vmatprep.subr.bf16.mxu0 0
      %1104 = vmatpush2.bf16.msra.mxu0 0
      %1105 = vmatprep.subr.bf16.mxu0 0
      %1106 = vmatpush2.bf16.msra.mxu0 0
      %1107 = vmatprep.subr.bf16.mxu0 0
      %1108 = vmatpush2.bf16.msra.mxu0 0
      %1109 = vmatprep.mubr.bf16.mxu0 0
      %1110 = vmatmul.mubr.bf16.gmra.mxu0 %v1012
      %v1111 = vpop.f32.mrf.mxu0
      %v1112 = vadd.f32 %v1063, %v1111
      %v1113 = vpop.f32.mrf.mxu0
      %v1114 = vpop.f32.mrf.mxu0
      %v1115 = vpop.f32.mrf.mxu0
      %1116 = vdwg.mxu0
      %vm1117 = vcmask 130048
      %v1119 = vsel %vm1117, %v958, 0
      %v1122 = vsel %vm1117, %v961, 0
      %v1125 = vsel %vm1117, %v966, 0
      %v1128 = vsel %vm1117, %v969, 0
      %v1131 = vsel %vm1117, %v974, 0
      %v1134 = vsel %vm1117, %v977, 0
      %v1137 = vsel %vm1117, %v982, 0
      %v1140 = vsel %vm1117, %v985, 0
      %v1143 = vsel %vm1117, %v1049, 0
      %1145 = vmatprep.subr.mxu0 0.0
      %1146 = vmatpush1.xpose.msra.mxu0 0.0
      %1147 = vmatprep.subr.mxu0 0.0
      %1148 = vmatpush1.xpose.msra.mxu0 0.0
      %1149 = vmatprep.subr.mxu0 0.0
      %1150 = vmatpush1.xpose.msra.mxu0 0.0
      %1151 = vmatprep.subr.mxu0 0.0
      %1152 = vmatpush1.xpose.msra.mxu0 0.0
      %1153 = vmatprep.subr.mxu0 0.0
      %1154 = vmatpush1.xpose.msra.mxu0 0.0
      %1155 = vmatprep.subr.mxu0 0.0
      %1156 = vmatpush1.xpose.msra.mxu0 0.0
      %1157 = vmatprep.subr.mxu0 0.0
      %1158 = vmatpush1.xpose.msra.mxu0 0.0
      %1159 = vmatprep.subr.mxu0 0.0
      %1160 = vmatpush1.xpose.msra.mxu0 0.0
      %1161 = vmatprep.subr.mxu0 0.0
      %1162 = vmatpush1.xpose.msra.mxu0 0.0
      %1163 = vmatprep.subr.mxu0 0.0
      %1164 = vmatpush1.xpose.msra.mxu0 0.0
      %1165 = vmatprep.subr.mxu0 0.0
      %1166 = vmatpush1.xpose.msra.mxu0 0.0
      %1167 = vmatprep.subr.mxu0 0.0
      %1168 = vmatpush1.xpose.msra.mxu0 0.0
      %1169 = vmatprep.subr.mxu0 0.0
      %1170 = vmatpush1.xpose.msra.mxu0 0.0
      %1171 = vmatprep.subr.mxu0 0.0
      %1172 = vmatpush1.xpose.msra.mxu0 0.0
      %1173 = vmatprep.subr.mxu0 0.0
      %1174 = vmatpush1.xpose.msra.mxu0 0.0
      %1175 = vmatprep.subr.mxu0 0.0
      %1176 = vmatpush1.xpose.msra.mxu0 %v1143
      %1177 = vmatprep.subr.mxu0 0.0
      %1178 = vmatpush2.xpose.msra.mxu0 0.0
      %1179 = vmatprep.subr.mxu0 0.0
      %1180 = vmatpush2.xpose.msra.mxu0 0.0
      %1181 = vmatprep.subr.mxu0 0.0
      %1182 = vmatpush2.xpose.msra.mxu0 0.0
      %1183 = vmatprep.subr.mxu0 0.0
      %1184 = vmatpush2.xpose.msra.mxu0 0.0
      %1185 = vmatprep.subr.mxu0 0.0
      %1186 = vmatpush2.xpose.msra.mxu0 0.0
      %1187 = vmatprep.subr.mxu0 0.0
      %1188 = vmatpush2.xpose.msra.mxu0 0.0
      %1189 = vmatprep.subr.mxu0 0.0
      %1190 = vmatpush2.xpose.msra.mxu0 0.0
      %1191 = vmatprep.subr.mxu0 0.0
      %1192 = vmatpush2.xpose.msra.mxu0 0.0
      %1193 = vmatprep.subr.mxu0 0.0
      %1194 = vmatpush2.xpose.msra.mxu0 0.0
      %1195 = vmatprep.subr.mxu0 0.0
      %1196 = vmatpush2.xpose.msra.mxu0 0.0
      %1197 = vmatprep.subr.mxu0 0.0
      %1198 = vmatpush2.xpose.msra.mxu0 0.0
      %1199 = vmatprep.subr.mxu0 0.0
      %1200 = vmatpush2.xpose.msra.mxu0 0.0
      %1201 = vmatprep.subr.mxu0 0.0
      %1202 = vmatpush2.xpose.msra.mxu0 0.0
      %1203 = vmatprep.subr.mxu0 0.0
      %1204 = vmatpush2.xpose.msra.mxu0 0.0
      %1205 = vmatprep.subr.mxu0 0.0
      %1206 = vmatpush2.xpose.msra.mxu0 0.0
      %1207 = vmatprep.subr.mxu0 0.0
      %1208 = vmatpush2.xpose.msra.mxu0 0.0
      %1209 = vmatprep.mubr.f32.mxu0 0.0
      %1210 = vmatmul.mubr.f32.gmra.mxu0 %v1119
      %v1211 = vpop.f32.mrf.mxu0
      %v1212 = vadd.f32 0.0, %v1211
      %v1213 = vpop.f32.mrf.mxu0
      %1214 = vmatprep.mubr.f32.mxu0 0.0
      %1215 = vmatmul.mubr.f32.gmra.mxu0 %v1122
      %v1216 = vpop.f32.mrf.mxu0
      %v1217 = vadd.f32 0.0, %v1216
      %v1218 = vpop.f32.mrf.mxu0
      %1219 = vmatprep.mubr.f32.mxu0 0.0
      %1220 = vmatmul.mubr.f32.gmra.mxu0 %v1125
      %v1221 = vpop.f32.mrf.mxu0
      %v1222 = vadd.f32 0.0, %v1221
      %v1223 = vpop.f32.mrf.mxu0
      %1224 = vmatprep.mubr.f32.mxu0 0.0
      %1225 = vmatmul.mubr.f32.gmra.mxu0 %v1128
      %v1226 = vpop.f32.mrf.mxu0
      %v1227 = vadd.f32 0.0, %v1226
      %v1228 = vpop.f32.mrf.mxu0
      %1229 = vmatprep.mubr.f32.mxu0 0.0
      %1230 = vmatmul.mubr.f32.gmra.mxu0 %v1131
      %v1231 = vpop.f32.mrf.mxu0
      %v1232 = vadd.f32 0.0, %v1231
      %v1233 = vpop.f32.mrf.mxu0
      %1234 = vmatprep.mubr.f32.mxu0 0.0
      %1235 = vmatmul.mubr.f32.gmra.mxu0 %v1134
      %v1236 = vpop.f32.mrf.mxu0
      %v1237 = vadd.f32 0.0, %v1236
      %v1238 = vpop.f32.mrf.mxu0
      %1239 = vmatprep.mubr.f32.mxu0 0.0
      %1240 = vmatmul.mubr.f32.gmra.mxu0 %v1137
      %v1241 = vpop.f32.mrf.mxu0
      %v1242 = vadd.f32 0.0, %v1241
      %v1243 = vpop.f32.mrf.mxu0
      %1244 = vmatprep.mubr.f32.mxu0 0.0
      %1245 = vmatmul.mubr.f32.gmra.mxu0 %v1140
      %v1246 = vpop.f32.mrf.mxu0
      %v1247 = vadd.f32 0.0, %v1246
      %v1248 = vpop.f32.mrf.mxu0
      %1249 = vdwg.mxu0
      %vm1250 = vcmask 31744
      %v1251 = vsel %vm1250, %v1212, -inf
      %1252 = vmax.xlane.f32.xlu0 %v1251
      %v1253 = vpop.xlane.xlu0 %1252
      %v1254 = vsel %vm1250, %v1217, -inf
      %1255 = vmax.xlane.f32.xlu0 %v1254
      %v1256 = vpop.xlane.xlu0 %1255
      %v1257 = vsel %vm1250, %v1222, -inf
      %1258 = vmax.xlane.f32.xlu0 %v1257
      %v1259 = vpop.xlane.xlu0 %1258
      %v1260 = vsel %vm1250, %v1227, -inf
      %1261 = vmax.xlane.f32.xlu0 %v1260
      %v1262 = vpop.xlane.xlu0 %1261
      %v1263 = vsel %vm1250, %v1232, -inf
      %1264 = vmax.xlane.f32.xlu0 %v1263
      %v1265 = vpop.xlane.xlu0 %1264
      %v1266 = vsel %vm1250, %v1237, -inf
      %1267 = vmax.xlane.f32.xlu0 %v1266
      %v1268 = vpop.xlane.xlu0 %1267
      %v1269 = vsel %vm1250, %v1242, -inf
      %1270 = vmax.xlane.f32.xlu0 %v1269
      %v1271 = vpop.xlane.xlu0 %1270
      %v1272 = vsel %vm1250, %v1247, -inf
      %1273 = vmax.xlane.f32.xlu0 %v1272
      %v1274 = vpop.xlane.xlu0 %1273
      %v1275 = vsub.f32 %v1212, %v1253
      %v1276 = vsub.f32 %v1217, %v1256
      %v1277 = vsub.f32 %v1222, %v1259
      %v1278 = vsub.f32 %v1227, %v1262
      %v1279 = vsub.f32 %v1232, %v1265
      %v1280 = vsub.f32 %v1237, %v1268
      %v1281 = vsub.f32 %v1242, %v1271
      %v1282 = vsub.f32 %v1247, %v1274
      %v1283 = vmul.f32 %v1275, 1.442695
      %v1284 = vpow.pop %v1283
      %v1285 = vmul.f32 %v1276, 1.442695
      %v1286 = vpow.pop %v1285
      %v1287 = vmul.f32 %v1277, 1.442695
      %v1288 = vpow.pop %v1287
      %v1289 = vmul.f32 %v1278, 1.442695
      %v1290 = vpow.pop %v1289
      %v1291 = vmul.f32 %v1279, 1.442695
      %v1292 = vpow.pop %v1291
      %v1293 = vmul.f32 %v1280, 1.442695
      %v1294 = vpow.pop %v1293
      %v1295 = vmul.f32 %v1281, 1.442695
      %v1296 = vpow.pop %v1295
      %v1297 = vmul.f32 %v1282, 1.442695
      %v1298 = vpow.pop %v1297
      %v1299 = vsel %vm1250, %v1284, 0.0
      %1300 = vadd.xlane.f32.xlu0 %v1299
      %v1301 = vpop.xlane.xlu0 %1300
      %v1302 = vsel %vm1250, %v1286, 0.0
      %1303 = vadd.xlane.f32.xlu0 %v1302
      %v1304 = vpop.xlane.xlu0 %1303
      %v1305 = vsel %vm1250, %v1288, 0.0
      %1306 = vadd.xlane.f32.xlu0 %v1305
      %v1307 = vpop.xlane.xlu0 %1306
      %v1308 = vsel %vm1250, %v1290, 0.0
      %1309 = vadd.xlane.f32.xlu0 %v1308
      %v1310 = vpop.xlane.xlu0 %1309
      %v1311 = vsel %vm1250, %v1292, 0.0
      %1312 = vadd.xlane.f32.xlu0 %v1311
      %v1313 = vpop.xlane.xlu0 %1312
      %v1314 = vsel %vm1250, %v1294, 0.0
      %1315 = vadd.xlane.f32.xlu0 %v1314
      %v1316 = vpop.xlane.xlu0 %1315
      %v1317 = vsel %vm1250, %v1296, 0.0
      %1318 = vadd.xlane.f32.xlu0 %v1317
      %v1319 = vpop.xlane.xlu0 %1318
      %v1320 = vsel %vm1250, %v1298, 0.0
      %1321 = vadd.xlane.f32.xlu0 %v1320
      %v1322 = vpop.xlane.xlu0 %1321
      %v1323 = vrcp.pop %v1301
      %v1324 = vmul.f32 %v1284, %v1323
      %v1325 = vrcp.pop %v1304
      %v1326 = vmul.f32 %v1286, %v1325
      %v1327 = vrcp.pop %v1307
      %v1328 = vmul.f32 %v1288, %v1327
      %v1329 = vrcp.pop %v1310
      %v1330 = vmul.f32 %v1290, %v1329
      %v1331 = vrcp.pop %v1313
      %v1332 = vmul.f32 %v1292, %v1331
      %v1333 = vrcp.pop %v1316
      %v1334 = vmul.f32 %v1294, %v1333
      %v1335 = vrcp.pop %v1319
      %v1336 = vmul.f32 %v1296, %v1335
      %v1337 = vrcp.pop %v1322
      %v1338 = vmul.f32 %v1298, %v1337
      %v1340 = vsel %vm1250, %v1324, 0
      %v1343 = vsel %vm1250, %v1326, 0
      %v1346 = vsel %vm1250, %v1328, 0
      %v1349 = vsel %vm1250, %v1330, 0
      %v1352 = vsel %vm1250, %v1332, 0
      %v1355 = vsel %vm1250, %v1334, 0
      %v1358 = vsel %vm1250, %v1336, 0
      %v1361 = vsel %vm1250, %v1338, 0
      %vm1363 = vcmask 1043456
      %v1365 = vsel %vm1363, %v1112, 0
      %1367 = vmatprep.subr.mxu0 0.0
      %1368 = vmatpush1.msra.mxu0 0.0
      %1369 = vmatprep.subr.mxu0 0.0
      %1370 = vmatpush1.msra.mxu0 0.0
      %1371 = vmatprep.subr.mxu0 0.0
      %1372 = vmatpush1.msra.mxu0 0.0
      %1373 = vmatprep.subr.mxu0 0.0
      %1374 = vmatpush1.msra.mxu0 0.0
      %1375 = vmatprep.subr.mxu0 0.0
      %1376 = vmatpush1.msra.mxu0 0.0
      %1377 = vmatprep.subr.mxu0 0.0
      %1378 = vmatpush1.msra.mxu0 0.0
      %1379 = vmatprep.subr.mxu0 0.0
      %1380 = vmatpush1.msra.mxu0 0.0
      %1381 = vmatprep.subr.mxu0 0.0
      %1382 = vmatpush1.msra.mxu0 0.0
      %1383 = vmatprep.subr.mxu0 0.0
      %1384 = vmatpush1.msra.mxu0 0.0
      %1385 = vmatprep.subr.mxu0 0.0
      %1386 = vmatpush1.msra.mxu0 0.0
      %1387 = vmatprep.subr.mxu0 0.0
      %1388 = vmatpush1.msra.mxu0 0.0
      %1389 = vmatprep.subr.mxu0 0.0
      %1390 = vmatpush1.msra.mxu0 0.0
      %1391 = vmatprep.subr.mxu0 0.0
      %1392 = vmatpush1.msra.mxu0 0.0
      %1393 = vmatprep.subr.mxu0 0.0
      %1394 = vmatpush1.msra.mxu0 0.0
      %1395 = vmatprep.subr.mxu0 0.0
      %1396 = vmatpush1.msra.mxu0 0.0
      %1397 = vmatprep.subr.mxu0 0.0
      %1398 = vmatpush1.msra.mxu0 %v1365
      %1399 = vmatprep.subr.mxu0 0.0
      %1400 = vmatpush2.msra.mxu0 0.0
      %1401 = vmatprep.subr.mxu0 0.0
      %1402 = vmatpush2.msra.mxu0 0.0
      %1403 = vmatprep.subr.mxu0 0.0
      %1404 = vmatpush2.msra.mxu0 0.0
      %1405 = vmatprep.subr.mxu0 0.0
      %1406 = vmatpush2.msra.mxu0 0.0
      %1407 = vmatprep.subr.mxu0 0.0
      %1408 = vmatpush2.msra.mxu0 0.0
      %1409 = vmatprep.subr.mxu0 0.0
      %1410 = vmatpush2.msra.mxu0 0.0
      %1411 = vmatprep.subr.mxu0 0.0
      %1412 = vmatpush2.msra.mxu0 0.0
      %1413 = vmatprep.subr.mxu0 0.0
      %1414 = vmatpush2.msra.mxu0 0.0
      %1415 = vmatprep.subr.mxu0 0.0
      %1416 = vmatpush2.msra.mxu0 0.0
      %1417 = vmatprep.subr.mxu0 0.0
      %1418 = vmatpush2.msra.mxu0 0.0
      %1419 = vmatprep.subr.mxu0 0.0
      %1420 = vmatpush2.msra.mxu0 0.0
      %1421 = vmatprep.subr.mxu0 0.0
      %1422 = vmatpush2.msra.mxu0 0.0
      %1423 = vmatprep.subr.mxu0 0.0
      %1424 = vmatpush2.msra.mxu0 0.0
      %1425 = vmatprep.subr.mxu0 0.0
      %1426 = vmatpush2.msra.mxu0 0.0
      %1427 = vmatprep.subr.mxu0 0.0
      %1428 = vmatpush2.msra.mxu0 0.0
      %1429 = vmatprep.subr.mxu0 0.0
      %1430 = vmatpush2.msra.mxu0 0.0
      %1431 = vmatprep.mubr.f32.mxu0 0.0
      %1432 = vmatmul.mubr.f32.gmra.mxu0 %v1340
      %v1433 = vpop.f32.mrf.mxu0
      %v1434 = vadd.f32 0.0, %v1433
      %v1435 = vpop.f32.mrf.mxu0
      %1436 = vmatprep.mubr.f32.mxu0 0.0
      %1437 = vmatmul.mubr.f32.gmra.mxu0 %v1343
      %v1438 = vpop.f32.mrf.mxu0
      %v1439 = vadd.f32 0.0, %v1438
      %v1440 = vpop.f32.mrf.mxu0
      %1441 = vmatprep.mubr.f32.mxu0 0.0
      %1442 = vmatmul.mubr.f32.gmra.mxu0 %v1346
      %v1443 = vpop.f32.mrf.mxu0
      %v1444 = vadd.f32 0.0, %v1443
      %v1445 = vpop.f32.mrf.mxu0
      %1446 = vmatprep.mubr.f32.mxu0 0.0
      %1447 = vmatmul.mubr.f32.gmra.mxu0 %v1349
      %v1448 = vpop.f32.mrf.mxu0
      %v1449 = vadd.f32 0.0, %v1448
      %v1450 = vpop.f32.mrf.mxu0
      %1451 = vmatprep.mubr.f32.mxu0 0.0
      %1452 = vmatmul.mubr.f32.gmra.mxu0 %v1352
      %v1453 = vpop.f32.mrf.mxu0
      %v1454 = vadd.f32 0.0, %v1453
      %v1455 = vpop.f32.mrf.mxu0
      %1456 = vmatprep.mubr.f32.mxu0 0.0
      %1457 = vmatmul.mubr.f32.gmra.mxu0 %v1355
      %v1458 = vpop.f32.mrf.mxu0
      %v1459 = vadd.f32 0.0, %v1458
      %v1460 = vpop.f32.mrf.mxu0
      %1461 = vmatprep.mubr.f32.mxu0 0.0
      %1462 = vmatmul.mubr.f32.gmra.mxu0 %v1358
      %v1463 = vpop.f32.mrf.mxu0
      %v1464 = vadd.f32 0.0, %v1463
      %v1465 = vpop.f32.mrf.mxu0
      %1466 = vmatprep.mubr.f32.mxu0 0.0
      %1467 = vmatmul.mubr.f32.gmra.mxu0 %v1361
      %v1468 = vpop.f32.mrf.mxu0
      %v1469 = vadd.f32 0.0, %v1468
      %v1470 = vpop.f32.mrf.mxu0
      %1471 = vdwg.mxu0
      %v1472 = vpack.c.bf16 %v1439, %v1434
      %v1473 = vpack.c.bf16 %v1449, %v1444
      %v1474 = vpack.c.bf16 %v1459, %v1454
      %v1475 = vpack.c.bf16 %v1469, %v1464
      %v1476 = vld [vmem:[%s10] sm:$0xf]
      %v1477 = vld [vmem:[%s10 + $0x4] sm:$0xf]
      %s1478 = scalar_lea.vmem %s4, 16
      %v1479 = vld [vmem:[%s1478] sm:$0xf]
      %v1480 = vld [vmem:[%s1478 + $0x4] sm:$0xf]
      %v1481 = vld [vmem:[%s1478 + $0x8] sm:$0xf]
      %v1482 = vld [vmem:[%s1478 + $0xc] sm:$0xf]
      %s1483 = scalar_lea.vmem %s5, 1
      %v1484 = vld [vmem:[%s1483] sm:$0x1]
      %v1486 = vlaneseq
      %v1487 = vshrl.u32 %v1486, 7
      %v1488 = vsub.s32 0, %v1487
      %v1489 = vrot.slane %v1484, %v1488
      %v1495 = vunpack.c.l.b16 %v1479
      %v1496 = vunpack.c.l.b16 %v1480
      %v1497 = vunpack.c.l.b16 %v1481
      %v1498 = vunpack.c.l.b16 %v1482
      %v1499 = vpack.c.b16 %v1496, %v1495
      %v1500 = vpack.c.b16 %v1498, %v1497
      %1503 = vmatprep.subr.bf16.mxu0 0
      %1504 = vmatpush1.bf16.msra.mxu0 0
      %1505 = vmatprep.subr.bf16.mxu0 0
      %1506 = vmatpush1.bf16.msra.mxu0 0
      %1507 = vmatprep.subr.bf16.mxu0 0
      %1508 = vmatpush1.bf16.msra.mxu0 0
      %1509 = vmatprep.subr.bf16.mxu0 0
      %1510 = vmatpush1.bf16.msra.mxu0 0
      %1511 = vmatprep.subr.bf16.mxu0 0
      %1512 = vmatpush1.bf16.msra.mxu0 0
      %1513 = vmatprep.subr.bf16.mxu0 0
      %1514 = vmatpush1.bf16.msra.mxu0 0
      %1515 = vmatprep.subr.bf16.mxu0 0
      %1516 = vmatpush1.bf16.msra.mxu0 %v1500
      %1517 = vmatprep.subr.bf16.mxu0 0
      %1518 = vmatpush1.bf16.msra.mxu0 %v1499
      %1519 = vmatprep.subr.bf16.mxu0 0
      %1520 = vmatpush2.bf16.msra.mxu0 0
      %1521 = vmatprep.subr.bf16.mxu0 0
      %1522 = vmatpush2.bf16.msra.mxu0 0
      %1523 = vmatprep.subr.bf16.mxu0 0
      %1524 = vmatpush2.bf16.msra.mxu0 0
      %1525 = vmatprep.subr.bf16.mxu0 0
      %1526 = vmatpush2.bf16.msra.mxu0 0
      %1527 = vmatprep.subr.bf16.mxu0 0
      %1528 = vmatpush2.bf16.msra.mxu0 0
      %1529 = vmatprep.subr.bf16.mxu0 0
      %1530 = vmatpush2.bf16.msra.mxu0 0
      %1531 = vmatprep.subr.bf16.mxu0 0
      %1532 = vmatpush2.bf16.msra.mxu0 0
      %1533 = vmatprep.subr.bf16.mxu0 0
      %1534 = vmatpush2.bf16.msra.mxu0 0
      %1535 = vmatprep.mubr.bf16.mxu0 0
      %1536 = vmatmul.mubr.bf16.gmra.mxu0 %v912
      %v1537 = vpop.f32.mrf.mxu0
      %v1538 = vadd.f32 %v1489, %v1537
      %v1539 = vpop.f32.mrf.mxu0
      %v1540 = vpop.f32.mrf.mxu0
      %v1541 = vadd.f32 %v1489, %v1540
      %v1542 = vpop.f32.mrf.mxu0
      %1543 = vmatprep.mubr.bf16.mxu0 0
      %1544 = vmatmul.mubr.bf16.gmra.mxu0 %v915
      %v1545 = vpop.f32.mrf.mxu0
      %v1546 = vadd.f32 %v1489, %v1545
      %v1547 = vpop.f32.mrf.mxu0
      %v1548 = vpop.f32.mrf.mxu0
      %v1549 = vadd.f32 %v1489, %v1548
      %v1550 = vpop.f32.mrf.mxu0
      %1551 = vmatprep.mubr.bf16.mxu0 0
      %1552 = vmatmul.mubr.bf16.gmra.mxu0 %v918
      %v1553 = vpop.f32.mrf.mxu0
      %v1554 = vadd.f32 %v1489, %v1553
      %v1555 = vpop.f32.mrf.mxu0
      %v1556 = vpop.f32.mrf.mxu0
      %v1557 = vadd.f32 %v1489, %v1556
      %v1558 = vpop.f32.mrf.mxu0
      %1559 = vmatprep.mubr.bf16.mxu0 0
      %1560 = vmatmul.mubr.bf16.gmra.mxu0 %v921
      %v1561 = vpop.f32.mrf.mxu0
      %v1562 = vadd.f32 %v1489, %v1561
      %v1563 = vpop.f32.mrf.mxu0
      %v1564 = vpop.f32.mrf.mxu0
      %v1565 = vadd.f32 %v1489, %v1564
      %v1566 = vpop.f32.mrf.mxu0
      %1567 = vdwg.mxu0
      %s1568 = scalar_lea.vmem %s6, 16
      %v1569 = vld [vmem:[%s1568] sm:$0xf]
      %v1570 = vld [vmem:[%s1568 + $0x4] sm:$0xf]
      %v1571 = vld [vmem:[%s1568 + $0x8] sm:$0xf]
      %v1572 = vld [vmem:[%s1568 + $0xc] sm:$0xf]
      %s1573 = scalar_lea.vmem %s7, 1
      %v1574 = vld [vmem:[%s1573] sm:$0x1]
      %v1576 = vlaneseq
      %v1577 = vshrl.u32 %v1576, 7
      %v1578 = vsub.s32 0, %v1577
      %v1579 = vrot.slane %v1574, %v1578
      %v1585 = vunpack.c.l.b16 %v1569
      %v1586 = vunpack.c.l.b16 %v1570
      %v1587 = vunpack.c.l.b16 %v1571
      %v1588 = vunpack.c.l.b16 %v1572
      %v1589 = vpack.c.b16 %v1586, %v1585
      %v1590 = vpack.c.b16 %v1588, %v1587
      %1593 = vmatprep.subr.bf16.mxu0 0
      %1594 = vmatpush1.bf16.msra.mxu0 0
      %1595 = vmatprep.subr.bf16.mxu0 0
      %1596 = vmatpush1.bf16.msra.mxu0 0
      %1597 = vmatprep.subr.bf16.mxu0 0
      %1598 = vmatpush1.bf16.msra.mxu0 0
      %1599 = vmatprep.subr.bf16.mxu0 0
      %1600 = vmatpush1.bf16.msra.mxu0 0
      %1601 = vmatprep.subr.bf16.mxu0 0
      %1602 = vmatpush1.bf16.msra.mxu0 0
      %1603 = vmatprep.subr.bf16.mxu0 0
      %1604 = vmatpush1.bf16.msra.mxu0 0
      %1605 = vmatprep.subr.bf16.mxu0 0
      %1606 = vmatpush1.bf16.msra.mxu0 %v1590
      %1607 = vmatprep.subr.bf16.mxu0 0
      %1608 = vmatpush1.bf16.msra.mxu0 %v1589
      %1609 = vmatprep.subr.bf16.mxu0 0
      %1610 = vmatpush2.bf16.msra.mxu0 0
      %1611 = vmatprep.subr.bf16.mxu0 0
      %1612 = vmatpush2.bf16.msra.mxu0 0
      %1613 = vmatprep.subr.bf16.mxu0 0
      %1614 = vmatpush2.bf16.msra.mxu0 0
      %1615 = vmatprep.subr.bf16.mxu0 0
      %1616 = vmatpush2.bf16.msra.mxu0 0
      %1617 = vmatprep.subr.bf16.mxu0 0
      %1618 = vmatpush2.bf16.msra.mxu0 0
      %1619 = vmatprep.subr.bf16.mxu0 0
      %1620 = vmatpush2.bf16.msra.mxu0 0
      %1621 = vmatprep.subr.bf16.mxu0 0
      %1622 = vmatpush2.bf16.msra.mxu0 0
      %1623 = vmatprep.subr.bf16.mxu0 0
      %1624 = vmatpush2.bf16.msra.mxu0 0
      %1625 = vmatprep.mubr.bf16.mxu0 0
      %1626 = vmatmul.mubr.bf16.gmra.mxu0 %v1012
      %v1627 = vpop.f32.mrf.mxu0
      %v1628 = vadd.f32 %v1579, %v1627
      %v1629 = vpop.f32.mrf.mxu0
      %v1630 = vpop.f32.mrf.mxu0
      %v1631 = vpop.f32.mrf.mxu0
      %1632 = vdwg.mxu0
      %s1633 = scalar_lea.vmem %s8, 16
      %v1634 = vld [vmem:[%s1633] sm:$0xf]
      %v1635 = vld [vmem:[%s1633 + $0x4] sm:$0xf]
      %v1636 = vld [vmem:[%s1633 + $0x8] sm:$0xf]
      %v1637 = vld [vmem:[%s1633 + $0xc] sm:$0xf]
      %s1638 = scalar_lea.vmem %s9, 1
      %v1639 = vld [vmem:[%s1638] sm:$0x1]
      %v1641 = vlaneseq
      %v1642 = vshrl.u32 %v1641, 7
      %v1643 = vsub.s32 0, %v1642
      %v1644 = vrot.slane %v1639, %v1643
      %v1650 = vunpack.c.l.b16 %v1634
      %v1651 = vunpack.c.l.b16 %v1635
      %v1652 = vunpack.c.l.b16 %v1636
      %v1653 = vunpack.c.l.b16 %v1637
      %v1654 = vpack.c.b16 %v1651, %v1650
      %v1655 = vpack.c.b16 %v1653, %v1652
      %1658 = vmatprep.subr.bf16.mxu0 0
      %1659 = vmatpush1.bf16.msra.mxu0 0
      %1660 = vmatprep.subr.bf16.mxu0 0
      %1661 = vmatpush1.bf16.msra.mxu0 0
      %1662 = vmatprep.subr.bf16.mxu0 0
      %1663 = vmatpush1.bf16.msra.mxu0 0
      %1664 = vmatprep.subr.bf16.mxu0 0
      %1665 = vmatpush1.bf16.msra.mxu0 0
      %1666 = vmatprep.subr.bf16.mxu0 0
      %1667 = vmatpush1.bf16.msra.mxu0 0
      %1668 = vmatprep.subr.bf16.mxu0 0
      %1669 = vmatpush1.bf16.msra.mxu0 0
      %1670 = vmatprep.subr.bf16.mxu0 0
      %1671 = vmatpush1.bf16.msra.mxu0 %v1655
      %1672 = vmatprep.subr.bf16.mxu0 0
      %1673 = vmatpush1.bf16.msra.mxu0 %v1654
      %1674 = vmatprep.subr.bf16.mxu0 0
      %1675 = vmatpush2.bf16.msra.mxu0 0
      %1676 = vmatprep.subr.bf16.mxu0 0
      %1677 = vmatpush2.bf16.msra.mxu0 0
      %1678 = vmatprep.subr.bf16.mxu0 0
      %1679 = vmatpush2.bf16.msra.mxu0 0
      %1680 = vmatprep.subr.bf16.mxu0 0
      %1681 = vmatpush2.bf16.msra.mxu0 0
      %1682 = vmatprep.subr.bf16.mxu0 0
      %1683 = vmatpush2.bf16.msra.mxu0 0
      %1684 = vmatprep.subr.bf16.mxu0 0
      %1685 = vmatpush2.bf16.msra.mxu0 0
      %1686 = vmatprep.subr.bf16.mxu0 0
      %1687 = vmatpush2.bf16.msra.mxu0 0
      %1688 = vmatprep.subr.bf16.mxu0 0
      %1689 = vmatpush2.bf16.msra.mxu0 0
      %1690 = vmatprep.mubr.bf16.mxu0 0
      %1691 = vmatmul.mubr.bf16.gmra.mxu0 %v1012
      %v1692 = vpop.f32.mrf.mxu0
      %v1693 = vadd.f32 %v1644, %v1692
      %v1694 = vpop.f32.mrf.mxu0
      %v1695 = vpop.f32.mrf.mxu0
      %v1696 = vpop.f32.mrf.mxu0
      %1697 = vdwg.mxu0
      %v1699 = vsel %vm1117, %v1538, 0
      %v1702 = vsel %vm1117, %v1541, 0
      %v1705 = vsel %vm1117, %v1546, 0
      %v1708 = vsel %vm1117, %v1549, 0
      %v1711 = vsel %vm1117, %v1554, 0
      %v1714 = vsel %vm1117, %v1557, 0
      %v1717 = vsel %vm1117, %v1562, 0
      %v1720 = vsel %vm1117, %v1565, 0
      %v1723 = vsel %vm1117, %v1628, 0
      %1725 = vmatprep.subr.mxu0 0.0
      %1726 = vmatpush1.xpose.msra.mxu0 0.0
      %1727 = vmatprep.subr.mxu0 0.0
      %1728 = vmatpush1.xpose.msra.mxu0 0.0
      %1729 = vmatprep.subr.mxu0 0.0
      %1730 = vmatpush1.xpose.msra.mxu0 0.0
      %1731 = vmatprep.subr.mxu0 0.0
      %1732 = vmatpush1.xpose.msra.mxu0 0.0
      %1733 = vmatprep.subr.mxu0 0.0
      %1734 = vmatpush1.xpose.msra.mxu0 0.0
      %1735 = vmatprep.subr.mxu0 0.0
      %1736 = vmatpush1.xpose.msra.mxu0 0.0
      %1737 = vmatprep.subr.mxu0 0.0
      %1738 = vmatpush1.xpose.msra.mxu0 0.0
      %1739 = vmatprep.subr.mxu0 0.0
      %1740 = vmatpush1.xpose.msra.mxu0 0.0
      %1741 = vmatprep.subr.mxu0 0.0
      %1742 = vmatpush1.xpose.msra.mxu0 0.0
      %1743 = vmatprep.subr.mxu0 0.0
      %1744 = vmatpush1.xpose.msra.mxu0 0.0
      %1745 = vmatprep.subr.mxu0 0.0
      %1746 = vmatpush1.xpose.msra.mxu0 0.0
      %1747 = vmatprep.subr.mxu0 0.0
      %1748 = vmatpush1.xpose.msra.mxu0 0.0
      %1749 = vmatprep.subr.mxu0 0.0
      %1750 = vmatpush1.xpose.msra.mxu0 0.0
      %1751 = vmatprep.subr.mxu0 0.0
      %1752 = vmatpush1.xpose.msra.mxu0 0.0
      %1753 = vmatprep.subr.mxu0 0.0
      %1754 = vmatpush1.xpose.msra.mxu0 0.0
      %1755 = vmatprep.subr.mxu0 0.0
      %1756 = vmatpush1.xpose.msra.mxu0 %v1723
      %1757 = vmatprep.subr.mxu0 0.0
      %1758 = vmatpush2.xpose.msra.mxu0 0.0
      %1759 = vmatprep.subr.mxu0 0.0
      %1760 = vmatpush2.xpose.msra.mxu0 0.0
      %1761 = vmatprep.subr.mxu0 0.0
      %1762 = vmatpush2.xpose.msra.mxu0 0.0
      %1763 = vmatprep.subr.mxu0 0.0
      %1764 = vmatpush2.xpose.msra.mxu0 0.0
      %1765 = vmatprep.subr.mxu0 0.0
      %1766 = vmatpush2.xpose.msra.mxu0 0.0
      %1767 = vmatprep.subr.mxu0 0.0
      %1768 = vmatpush2.xpose.msra.mxu0 0.0
      %1769 = vmatprep.subr.mxu0 0.0
      %1770 = vmatpush2.xpose.msra.mxu0 0.0
      %1771 = vmatprep.subr.mxu0 0.0
      %1772 = vmatpush2.xpose.msra.mxu0 0.0
      %1773 = vmatprep.subr.mxu0 0.0
      %1774 = vmatpush2.xpose.msra.mxu0 0.0
      %1775 = vmatprep.subr.mxu0 0.0
      %1776 = vmatpush2.xpose.msra.mxu0 0.0
      %1777 = vmatprep.subr.mxu0 0.0
      %1778 = vmatpush2.xpose.msra.mxu0 0.0
      %1779 = vmatprep.subr.mxu0 0.0
      %1780 = vmatpush2.xpose.msra.mxu0 0.0
      %1781 = vmatprep.subr.mxu0 0.0
      %1782 = vmatpush2.xpose.msra.mxu0 0.0
      %1783 = vmatprep.subr.mxu0 0.0
      %1784 = vmatpush2.xpose.msra.mxu0 0.0
      %1785 = vmatprep.subr.mxu0 0.0
      %1786 = vmatpush2.xpose.msra.mxu0 0.0
      %1787 = vmatprep.subr.mxu0 0.0
      %1788 = vmatpush2.xpose.msra.mxu0 0.0
      %1789 = vmatprep.mubr.f32.mxu0 0.0
      %1790 = vmatmul.mubr.f32.gmra.mxu0 %v1699
      %v1791 = vpop.f32.mrf.mxu0
      %v1792 = vadd.f32 0.0, %v1791
      %v1793 = vpop.f32.mrf.mxu0
      %1794 = vmatprep.mubr.f32.mxu0 0.0
      %1795 = vmatmul.mubr.f32.gmra.mxu0 %v1702
      %v1796 = vpop.f32.mrf.mxu0
      %v1797 = vadd.f32 0.0, %v1796
      %v1798 = vpop.f32.mrf.mxu0
      %1799 = vmatprep.mubr.f32.mxu0 0.0
      %1800 = vmatmul.mubr.f32.gmra.mxu0 %v1705
      %v1801 = vpop.f32.mrf.mxu0
      %v1802 = vadd.f32 0.0, %v1801
      %v1803 = vpop.f32.mrf.mxu0
      %1804 = vmatprep.mubr.f32.mxu0 0.0
      %1805 = vmatmul.mubr.f32.gmra.mxu0 %v1708
      %v1806 = vpop.f32.mrf.mxu0
      %v1807 = vadd.f32 0.0, %v1806
      %v1808 = vpop.f32.mrf.mxu0
      %1809 = vmatprep.mubr.f32.mxu0 0.0
      %1810 = vmatmul.mubr.f32.gmra.mxu0 %v1711
      %v1811 = vpop.f32.mrf.mxu0
      %v1812 = vadd.f32 0.0, %v1811
      %v1813 = vpop.f32.mrf.mxu0
      %1814 = vmatprep.mubr.f32.mxu0 0.0
      %1815 = vmatmul.mubr.f32.gmra.mxu0 %v1714
      %v1816 = vpop.f32.mrf.mxu0
      %v1817 = vadd.f32 0.0, %v1816
      %v1818 = vpop.f32.mrf.mxu0
      %1819 = vmatprep.mubr.f32.mxu0 0.0
      %1820 = vmatmul.mubr.f32.gmra.mxu0 %v1717
      %v1821 = vpop.f32.mrf.mxu0
      %v1822 = vadd.f32 0.0, %v1821
      %v1823 = vpop.f32.mrf.mxu0
      %1824 = vmatprep.mubr.f32.mxu0 0.0
      %1825 = vmatmul.mubr.f32.gmra.mxu0 %v1720
      %v1826 = vpop.f32.mrf.mxu0
      %v1827 = vadd.f32 0.0, %v1826
      %v1828 = vpop.f32.mrf.mxu0
      %1829 = vdwg.mxu0
      %v1830 = vsel %vm1250, %v1792, -inf
      %1831 = vmax.xlane.f32.xlu0 %v1830
      %v1832 = vpop.xlane.xlu0 %1831
      %v1833 = vsel %vm1250, %v1797, -inf
      %1834 = vmax.xlane.f32.xlu0 %v1833
      %v1835 = vpop.xlane.xlu0 %1834
      %v1836 = vsel %vm1250, %v1802, -inf
      %1837 = vmax.xlane.f32.xlu0 %v1836
      %v1838 = vpop.xlane.xlu0 %1837
      %v1839 = vsel %vm1250, %v1807, -inf
      %1840 = vmax.xlane.f32.xlu0 %v1839
      %v1841 = vpop.xlane.xlu0 %1840
      %v1842 = vsel %vm1250, %v1812, -inf
      %1843 = vmax.xlane.f32.xlu0 %v1842
      %v1844 = vpop.xlane.xlu0 %1843
      %v1845 = vsel %vm1250, %v1817, -inf
      %1846 = vmax.xlane.f32.xlu0 %v1845
      %v1847 = vpop.xlane.xlu0 %1846
      %v1848 = vsel %vm1250, %v1822, -inf
      %1849 = vmax.xlane.f32.xlu0 %v1848
      %v1850 = vpop.xlane.xlu0 %1849
      %v1851 = vsel %vm1250, %v1827, -inf
      %1852 = vmax.xlane.f32.xlu0 %v1851
      %v1853 = vpop.xlane.xlu0 %1852
      %v1854 = vsub.f32 %v1792, %v1832
      %v1855 = vsub.f32 %v1797, %v1835
      %v1856 = vsub.f32 %v1802, %v1838
      %v1857 = vsub.f32 %v1807, %v1841
      %v1858 = vsub.f32 %v1812, %v1844
      %v1859 = vsub.f32 %v1817, %v1847
      %v1860 = vsub.f32 %v1822, %v1850
      %v1861 = vsub.f32 %v1827, %v1853
      %v1862 = vmul.f32 %v1854, 1.442695
      %v1863 = vpow.pop %v1862
      %v1864 = vmul.f32 %v1855, 1.442695
      %v1865 = vpow.pop %v1864
      %v1866 = vmul.f32 %v1856, 1.442695
      %v1867 = vpow.pop %v1866
      %v1868 = vmul.f32 %v1857, 1.442695
      %v1869 = vpow.pop %v1868
      %v1870 = vmul.f32 %v1858, 1.442695
      %v1871 = vpow.pop %v1870
      %v1872 = vmul.f32 %v1859, 1.442695
      %v1873 = vpow.pop %v1872
      %v1874 = vmul.f32 %v1860, 1.442695
      %v1875 = vpow.pop %v1874
      %v1876 = vmul.f32 %v1861, 1.442695
      %v1877 = vpow.pop %v1876
      %v1878 = vsel %vm1250, %v1863, 0.0
      %1879 = vadd.xlane.f32.xlu0 %v1878
      %v1880 = vpop.xlane.xlu0 %1879
      %v1881 = vsel %vm1250, %v1865, 0.0
      %1882 = vadd.xlane.f32.xlu0 %v1881
      %v1883 = vpop.xlane.xlu0 %1882
      %v1884 = vsel %vm1250, %v1867, 0.0
      %1885 = vadd.xlane.f32.xlu0 %v1884
      %v1886 = vpop.xlane.xlu0 %1885
      %v1887 = vsel %vm1250, %v1869, 0.0
      %1888 = vadd.xlane.f32.xlu0 %v1887
      %v1889 = vpop.xlane.xlu0 %1888
      %v1890 = vsel %vm1250, %v1871, 0.0
      %1891 = vadd.xlane.f32.xlu0 %v1890
      %v1892 = vpop.xlane.xlu0 %1891
      %v1893 = vsel %vm1250, %v1873, 0.0
      %1894 = vadd.xlane.f32.xlu0 %v1893
      %v1895 = vpop.xlane.xlu0 %1894
      %v1896 = vsel %vm1250, %v1875, 0.0
      %1897 = vadd.xlane.f32.xlu0 %v1896
      %v1898 = vpop.xlane.xlu0 %1897
      %v1899 = vsel %vm1250, %v1877, 0.0
      %1900 = vadd.xlane.f32.xlu0 %v1899
      %v1901 = vpop.xlane.xlu0 %1900
      %v1902 = vrcp.pop %v1880
      %v1903 = vmul.f32 %v1863, %v1902
      %v1904 = vrcp.pop %v1883
      %v1905 = vmul.f32 %v1865, %v1904
      %v1906 = vrcp.pop %v1886
      %v1907 = vmul.f32 %v1867, %v1906
      %v1908 = vrcp.pop %v1889
      %v1909 = vmul.f32 %v1869, %v1908
      %v1910 = vrcp.pop %v1892
      %v1911 = vmul.f32 %v1871, %v1910
      %v1912 = vrcp.pop %v1895
      %v1913 = vmul.f32 %v1873, %v1912
      %v1914 = vrcp.pop %v1898
      %v1915 = vmul.f32 %v1875, %v1914
      %v1916 = vrcp.pop %v1901
      %v1917 = vmul.f32 %v1877, %v1916
      %v1919 = vsel %vm1250, %v1903, 0
      %v1922 = vsel %vm1250, %v1905, 0
      %v1925 = vsel %vm1250, %v1907, 0
      %v1928 = vsel %vm1250, %v1909, 0
      %v1931 = vsel %vm1250, %v1911, 0
      %v1934 = vsel %vm1250, %v1913, 0
      %v1937 = vsel %vm1250, %v1915, 0
      %v1940 = vsel %vm1250, %v1917, 0
      %v1943 = vsel %vm1363, %v1693, 0
      %1945 = vmatprep.subr.mxu0 0.0
      %1946 = vmatpush1.msra.mxu0 0.0
      %1947 = vmatprep.subr.mxu0 0.0
      %1948 = vmatpush1.msra.mxu0 0.0
      %1949 = vmatprep.subr.mxu0 0.0
      %1950 = vmatpush1.msra.mxu0 0.0
      %1951 = vmatprep.subr.mxu0 0.0
      %1952 = vmatpush1.msra.mxu0 0.0
      %1953 = vmatprep.subr.mxu0 0.0
      %1954 = vmatpush1.msra.mxu0 0.0
      %1955 = vmatprep.subr.mxu0 0.0
      %1956 = vmatpush1.msra.mxu0 0.0
      %1957 = vmatprep.subr.mxu0 0.0
      %1958 = vmatpush1.msra.mxu0 0.0
      %1959 = vmatprep.subr.mxu0 0.0
      %1960 = vmatpush1.msra.mxu0 0.0
      %1961 = vmatprep.subr.mxu0 0.0
      %1962 = vmatpush1.msra.mxu0 0.0
      %1963 = vmatprep.subr.mxu0 0.0
      %1964 = vmatpush1.msra.mxu0 0.0
      %1965 = vmatprep.subr.mxu0 0.0
      %1966 = vmatpush1.msra.mxu0 0.0
      %1967 = vmatprep.subr.mxu0 0.0
      %1968 = vmatpush1.msra.mxu0 0.0
      %1969 = vmatprep.subr.mxu0 0.0
      %1970 = vmatpush1.msra.mxu0 0.0
      %1971 = vmatprep.subr.mxu0 0.0
      %1972 = vmatpush1.msra.mxu0 0.0
      %1973 = vmatprep.subr.mxu0 0.0
      %1974 = vmatpush1.msra.mxu0 0.0
      %1975 = vmatprep.subr.mxu0 0.0
      %1976 = vmatpush1.msra.mxu0 %v1943
      %1977 = vmatprep.subr.mxu0 0.0
      %1978 = vmatpush2.msra.mxu0 0.0
      %1979 = vmatprep.subr.mxu0 0.0
      %1980 = vmatpush2.msra.mxu0 0.0
      %1981 = vmatprep.subr.mxu0 0.0
      %1982 = vmatpush2.msra.mxu0 0.0
      %1983 = vmatprep.subr.mxu0 0.0
      %1984 = vmatpush2.msra.mxu0 0.0
      %1985 = vmatprep.subr.mxu0 0.0
      %1986 = vmatpush2.msra.mxu0 0.0
      %1987 = vmatprep.subr.mxu0 0.0
      %1988 = vmatpush2.msra.mxu0 0.0
      %1989 = vmatprep.subr.mxu0 0.0
      %1990 = vmatpush2.msra.mxu0 0.0
      %1991 = vmatprep.subr.mxu0 0.0
      %1992 = vmatpush2.msra.mxu0 0.0
      %1993 = vmatprep.subr.mxu0 0.0
      %1994 = vmatpush2.msra.mxu0 0.0
      %1995 = vmatprep.subr.mxu0 0.0
      %1996 = vmatpush2.msra.mxu0 0.0
      %1997 = vmatprep.subr.mxu0 0.0
      %1998 = vmatpush2.msra.mxu0 0.0
      %1999 = vmatprep.subr.mxu0 0.0
      %2000 = vmatpush2.msra.mxu0 0.0
      %2001 = vmatprep.subr.mxu0 0.0
      %2002 = vmatpush2.msra.mxu0 0.0
      %2003 = vmatprep.subr.mxu0 0.0
      %2004 = vmatpush2.msra.mxu0 0.0
      %2005 = vmatprep.subr.mxu0 0.0
      %2006 = vmatpush2.msra.mxu0 0.0
      %2007 = vmatprep.subr.mxu0 0.0
      %2008 = vmatpush2.msra.mxu0 0.0
      %2009 = vmatprep.mubr.f32.mxu0 0.0
      %2010 = vmatmul.mubr.f32.gmra.mxu0 %v1919
      %v2011 = vpop.f32.mrf.mxu0
      %v2012 = vadd.f32 0.0, %v2011
      %v2013 = vpop.f32.mrf.mxu0
      %2014 = vmatprep.mubr.f32.mxu0 0.0
      %2015 = vmatmul.mubr.f32.gmra.mxu0 %v1922
      %v2016 = vpop.f32.mrf.mxu0
      %v2017 = vadd.f32 0.0, %v2016
      %v2018 = vpop.f32.mrf.mxu0
      %2019 = vmatprep.mubr.f32.mxu0 0.0
      %2020 = vmatmul.mubr.f32.gmra.mxu0 %v1925
      %v2021 = vpop.f32.mrf.mxu0
      %v2022 = vadd.f32 0.0, %v2021
      %v2023 = vpop.f32.mrf.mxu0
      %2024 = vmatprep.mubr.f32.mxu0 0.0
      %2025 = vmatmul.mubr.f32.gmra.mxu0 %v1928
      %v2026 = vpop.f32.mrf.mxu0
      %v2027 = vadd.f32 0.0, %v2026
      %v2028 = vpop.f32.mrf.mxu0
      %2029 = vmatprep.mubr.f32.mxu0 0.0
      %2030 = vmatmul.mubr.f32.gmra.mxu0 %v1931
      %v2031 = vpop.f32.mrf.mxu0
      %v2032 = vadd.f32 0.0, %v2031
      %v2033 = vpop.f32.mrf.mxu0
      %2034 = vmatprep.mubr.f32.mxu0 0.0
      %2035 = vmatmul.mubr.f32.gmra.mxu0 %v1934
      %v2036 = vpop.f32.mrf.mxu0
      %v2037 = vadd.f32 0.0, %v2036
      %v2038 = vpop.f32.mrf.mxu0
      %2039 = vmatprep.mubr.f32.mxu0 0.0
      %2040 = vmatmul.mubr.f32.gmra.mxu0 %v1937
      %v2041 = vpop.f32.mrf.mxu0
      %v2042 = vadd.f32 0.0, %v2041
      %v2043 = vpop.f32.mrf.mxu0
      %2044 = vmatprep.mubr.f32.mxu0 0.0
      %2045 = vmatmul.mubr.f32.gmra.mxu0 %v1940
      %v2046 = vpop.f32.mrf.mxu0
      %v2047 = vadd.f32 0.0, %v2046
      %v2048 = vpop.f32.mrf.mxu0
      %2049 = vdwg.mxu0
      %v2050 = vpack.c.bf16 %v2017, %v2012
      %v2051 = vpack.c.bf16 %v2027, %v2022
      %v2052 = vpack.c.bf16 %v2037, %v2032
      %v2053 = vpack.c.bf16 %v2047, %v2042
      %s2054 = scalar_lea.vmem %s10, 8
      %v2055 = vld [vmem:[%s2054] sm:$0xf]
      %v2056 = vld [vmem:[%s2054 + $0x4] sm:$0xf]
      %v2059 = vunpack.c.l.b16 %v2055
      %v2060 = vunpack.c.l.b16 %v2056
      %v2061 = vpack.c.b16 %v2060, %v2059
      %v2064 = vsel %vm1117, %v2050, 0
      %v2067 = vsel %vm1117, %v2051, 0
      %v2070 = vsel %vm1117, %v2052, 0
      %v2073 = vsel %vm1117, %v2053, 0
      %2075 = vmatprep.subr.bf16.mxu0 0
      %2076 = vmatpush1.bf16.msra.mxu0 0
      %2077 = vmatprep.subr.bf16.mxu0 0
      %2078 = vmatpush1.bf16.msra.mxu0 0
      %2079 = vmatprep.subr.bf16.mxu0 0
      %2080 = vmatpush1.bf16.msra.mxu0 0
      %2081 = vmatprep.subr.bf16.mxu0 0
      %2082 = vmatpush1.bf16.msra.mxu0 0
      %2083 = vmatprep.subr.bf16.mxu0 0
      %2084 = vmatpush1.bf16.msra.mxu0 0
      %2085 = vmatprep.subr.bf16.mxu0 0
      %2086 = vmatpush1.bf16.msra.mxu0 0
      %2087 = vmatprep.subr.bf16.mxu0 0
      %2088 = vmatpush1.bf16.msra.mxu0 0
      %2089 = vmatprep.subr.bf16.mxu0 0
      %2090 = vmatpush1.bf16.msra.mxu0 %v2061
      %2091 = vmatprep.subr.bf16.mxu0 0
      %2092 = vmatpush2.bf16.msra.mxu0 0
      %2093 = vmatprep.subr.bf16.mxu0 0
      %2094 = vmatpush2.bf16.msra.mxu0 0
      %2095 = vmatprep.subr.bf16.mxu0 0
      %2096 = vmatpush2.bf16.msra.mxu0 0
      %2097 = vmatprep.subr.bf16.mxu0 0
      %2098 = vmatpush2.bf16.msra.mxu0 0
      %2099 = vmatprep.subr.bf16.mxu0 0
      %2100 = vmatpush2.bf16.msra.mxu0 0
      %2101 = vmatprep.subr.bf16.mxu0 0
      %2102 = vmatpush2.bf16.msra.mxu0 0
      %2103 = vmatprep.subr.bf16.mxu0 0
      %2104 = vmatpush2.bf16.msra.mxu0 0
      %2105 = vmatprep.subr.bf16.mxu0 0
      %2106 = vmatpush2.bf16.msra.mxu0 0
      %2107 = vmatprep.mubr.bf16.mxu0 0
      %2108 = vmatmul.mubr.bf16.gmra.mxu0 %v2064
      %v2109 = vpop.f32.mrf.mxu0
      %v2110 = vadd.f32 0.0, %v2109
      %v2111 = vpop.f32.mrf.mxu0
      %v2112 = vpop.f32.mrf.mxu0
      %v2113 = vadd.f32 0.0, %v2112
      %v2114 = vpop.f32.mrf.mxu0
      %2115 = vmatprep.mubr.bf16.mxu0 0
      %2116 = vmatmul.mubr.bf16.gmra.mxu0 %v2067
      %v2117 = vpop.f32.mrf.mxu0
      %v2118 = vadd.f32 0.0, %v2117
      %v2119 = vpop.f32.mrf.mxu0
      %v2120 = vpop.f32.mrf.mxu0
      %v2121 = vadd.f32 0.0, %v2120
      %v2122 = vpop.f32.mrf.mxu0
      %2123 = vmatprep.mubr.bf16.mxu0 0
      %2124 = vmatmul.mubr.bf16.gmra.mxu0 %v2070
      %v2125 = vpop.f32.mrf.mxu0
      %v2126 = vadd.f32 0.0, %v2125
      %v2127 = vpop.f32.mrf.mxu0
      %v2128 = vpop.f32.mrf.mxu0
      %v2129 = vadd.f32 0.0, %v2128
      %v2130 = vpop.f32.mrf.mxu0
      %2131 = vmatprep.mubr.bf16.mxu0 0
      %2132 = vmatmul.mubr.bf16.gmra.mxu0 %v2073
      %v2133 = vpop.f32.mrf.mxu0
      %v2134 = vadd.f32 0.0, %v2133
      %v2135 = vpop.f32.mrf.mxu0
      %v2136 = vpop.f32.mrf.mxu0
      %v2137 = vadd.f32 0.0, %v2136
      %v2138 = vpop.f32.mrf.mxu0
      %2139 = vdwg.mxu0
      %v2142 = vunpack.c.l.b16 %v1476
      %v2143 = vunpack.c.l.b16 %v1477
      %v2144 = vpack.c.b16 %v2143, %v2142
      %v2147 = vsel %vm1117, %v1472, 0
      %v2150 = vsel %vm1117, %v1473, 0
      %v2153 = vsel %vm1117, %v1474, 0
      %v2156 = vsel %vm1117, %v1475, 0
      %2158 = vmatprep.subr.bf16.mxu0 0
      %2159 = vmatpush1.bf16.msra.mxu0 0
      %2160 = vmatprep.subr.bf16.mxu0 0
      %2161 = vmatpush1.bf16.msra.mxu0 0
      %2162 = vmatprep.subr.bf16.mxu0 0
      %2163 = vmatpush1.bf16.msra.mxu0 0
      %2164 = vmatprep.subr.bf16.mxu0 0
      %2165 = vmatpush1.bf16.msra.mxu0 0
      %2166 = vmatprep.subr.bf16.mxu0 0
      %2167 = vmatpush1.bf16.msra.mxu0 0
      %2168 = vmatprep.subr.bf16.mxu0 0
      %2169 = vmatpush1.bf16.msra.mxu0 0
      %2170 = vmatprep.subr.bf16.mxu0 0
      %2171 = vmatpush1.bf16.msra.mxu0 0
      %2172 = vmatprep.subr.bf16.mxu0 0
      %2173 = vmatpush1.bf16.msra.mxu0 %v2144
      %2174 = vmatprep.subr.bf16.mxu0 0
      %2175 = vmatpush2.bf16.msra.mxu0 0
      %2176 = vmatprep.subr.bf16.mxu0 0
      %2177 = vmatpush2.bf16.msra.mxu0 0
      %2178 = vmatprep.subr.bf16.mxu0 0
      %2179 = vmatpush2.bf16.msra.mxu0 0
      %2180 = vmatprep.subr.bf16.mxu0 0
      %2181 = vmatpush2.bf16.msra.mxu0 0
      %2182 = vmatprep.subr.bf16.mxu0 0
      %2183 = vmatpush2.bf16.msra.mxu0 0
      %2184 = vmatprep.subr.bf16.mxu0 0
      %2185 = vmatpush2.bf16.msra.mxu0 0
      %2186 = vmatprep.subr.bf16.mxu0 0
      %2187 = vmatpush2.bf16.msra.mxu0 0
      %2188 = vmatprep.subr.bf16.mxu0 0
      %2189 = vmatpush2.bf16.msra.mxu0 0
      %2190 = vmatprep.mubr.bf16.mxu0 0
      %2191 = vmatmul.mubr.bf16.gmra.mxu0 %v2147
      %v2192 = vpop.f32.mrf.mxu0
      %v2193 = vadd.f32 %v2110, %v2192
      %v2194 = vpop.f32.mrf.mxu0
      %v2195 = vpop.f32.mrf.mxu0
      %v2196 = vadd.f32 %v2113, %v2195
      %v2197 = vpop.f32.mrf.mxu0
      %2198 = vmatprep.mubr.bf16.mxu0 0
      %2199 = vmatmul.mubr.bf16.gmra.mxu0 %v2150
      %v2200 = vpop.f32.mrf.mxu0
      %v2201 = vadd.f32 %v2118, %v2200
      %v2202 = vpop.f32.mrf.mxu0
      %v2203 = vpop.f32.mrf.mxu0
      %v2204 = vadd.f32 %v2121, %v2203
      %v2205 = vpop.f32.mrf.mxu0
      %2206 = vmatprep.mubr.bf16.mxu0 0
      %2207 = vmatmul.mubr.bf16.gmra.mxu0 %v2153
      %v2208 = vpop.f32.mrf.mxu0
      %v2209 = vadd.f32 %v2126, %v2208
      %v2210 = vpop.f32.mrf.mxu0
      %v2211 = vpop.f32.mrf.mxu0
      %v2212 = vadd.f32 %v2129, %v2211
      %v2213 = vpop.f32.mrf.mxu0
      %2214 = vmatprep.mubr.bf16.mxu0 0
      %2215 = vmatmul.mubr.bf16.gmra.mxu0 %v2156
      %v2216 = vpop.f32.mrf.mxu0
      %v2217 = vadd.f32 %v2134, %v2216
      %v2218 = vpop.f32.mrf.mxu0
      %v2219 = vpop.f32.mrf.mxu0
      %v2220 = vadd.f32 %v2137, %v2219
      %v2221 = vpop.f32.mrf.mxu0
      %2222 = vdwg.mxu0
      %s2223 = scalar_lea.vmem %s4, 32
      %v2224 = vld [vmem:[%s2223] sm:$0xf]
      %v2225 = vld [vmem:[%s2223 + $0x4] sm:$0xf]
      %v2226 = vld [vmem:[%s2223 + $0x8] sm:$0xf]
      %v2227 = vld [vmem:[%s2223 + $0xc] sm:$0xf]
      %s2228 = scalar_lea.vmem %s5, 2
      %v2229 = vld [vmem:[%s2228] sm:$0x1]
      %v2231 = vlaneseq
      %v2232 = vshrl.u32 %v2231, 7
      %v2233 = vsub.s32 0, %v2232
      %v2234 = vrot.slane %v2229, %v2233
      %v2240 = vunpack.c.l.b16 %v2224
      %v2241 = vunpack.c.l.b16 %v2225
      %v2242 = vunpack.c.l.b16 %v2226
      %v2243 = vunpack.c.l.b16 %v2227
      %v2244 = vpack.c.b16 %v2241, %v2240
      %v2245 = vpack.c.b16 %v2243, %v2242
      %2248 = vmatprep.subr.bf16.mxu0 0
      %2249 = vmatpush1.bf16.msra.mxu0 0
      %2250 = vmatprep.subr.bf16.mxu0 0
      %2251 = vmatpush1.bf16.msra.mxu0 0
      %2252 = vmatprep.subr.bf16.mxu0 0
      %2253 = vmatpush1.bf16.msra.mxu0 0
      %2254 = vmatprep.subr.bf16.mxu0 0
      %2255 = vmatpush1.bf16.msra.mxu0 0
      %2256 = vmatprep.subr.bf16.mxu0 0
      %2257 = vmatpush1.bf16.msra.mxu0 0
      %2258 = vmatprep.subr.bf16.mxu0 0
      %2259 = vmatpush1.bf16.msra.mxu0 0
      %2260 = vmatprep.subr.bf16.mxu0 0
      %2261 = vmatpush1.bf16.msra.mxu0 %v2245
      %2262 = vmatprep.subr.bf16.mxu0 0
      %2263 = vmatpush1.bf16.msra.mxu0 %v2244
      %2264 = vmatprep.subr.bf16.mxu0 0
      %2265 = vmatpush2.bf16.msra.mxu0 0
      %2266 = vmatprep.subr.bf16.mxu0 0
      %2267 = vmatpush2.bf16.msra.mxu0 0
      %2268 = vmatprep.subr.bf16.mxu0 0
      %2269 = vmatpush2.bf16.msra.mxu0 0
      %2270 = vmatprep.subr.bf16.mxu0 0
      %2271 = vmatpush2.bf16.msra.mxu0 0
      %2272 = vmatprep.subr.bf16.mxu0 0
      %2273 = vmatpush2.bf16.msra.mxu0 0
      %2274 = vmatprep.subr.bf16.mxu0 0
      %2275 = vmatpush2.bf16.msra.mxu0 0
      %2276 = vmatprep.subr.bf16.mxu0 0
      %2277 = vmatpush2.bf16.msra.mxu0 0
      %2278 = vmatprep.subr.bf16.mxu0 0
      %2279 = vmatpush2.bf16.msra.mxu0 0
      %2280 = vmatprep.mubr.bf16.mxu0 0
      %2281 = vmatmul.mubr.bf16.gmra.mxu0 %v912
      %v2282 = vpop.f32.mrf.mxu0
      %v2283 = vadd.f32 %v2234, %v2282
      %v2284 = vpop.f32.mrf.mxu0
      %v2285 = vpop.f32.mrf.mxu0
      %v2286 = vadd.f32 %v2234, %v2285
      %v2287 = vpop.f32.mrf.mxu0
      %2288 = vmatprep.mubr.bf16.mxu0 0
      %2289 = vmatmul.mubr.bf16.gmra.mxu0 %v915
      %v2290 = vpop.f32.mrf.mxu0
      %v2291 = vadd.f32 %v2234, %v2290
      %v2292 = vpop.f32.mrf.mxu0
      %v2293 = vpop.f32.mrf.mxu0
      %v2294 = vadd.f32 %v2234, %v2293
      %v2295 = vpop.f32.mrf.mxu0
      %2296 = vmatprep.mubr.bf16.mxu0 0
      %2297 = vmatmul.mubr.bf16.gmra.mxu0 %v918
      %v2298 = vpop.f32.mrf.mxu0
      %v2299 = vadd.f32 %v2234, %v2298
      %v2300 = vpop.f32.mrf.mxu0
      %v2301 = vpop.f32.mrf.mxu0
      %v2302 = vadd.f32 %v2234, %v2301
      %v2303 = vpop.f32.mrf.mxu0
      %2304 = vmatprep.mubr.bf16.mxu0 0
      %2305 = vmatmul.mubr.bf16.gmra.mxu0 %v921
      %v2306 = vpop.f32.mrf.mxu0
      %v2307 = vadd.f32 %v2234, %v2306
      %v2308 = vpop.f32.mrf.mxu0
      %v2309 = vpop.f32.mrf.mxu0
      %v2310 = vadd.f32 %v2234, %v2309
      %v2311 = vpop.f32.mrf.mxu0
      %2312 = vdwg.mxu0
      %s2313 = scalar_lea.vmem %s6, 32
      %v2314 = vld [vmem:[%s2313] sm:$0xf]
      %v2315 = vld [vmem:[%s2313 + $0x4] sm:$0xf]
      %v2316 = vld [vmem:[%s2313 + $0x8] sm:$0xf]
      %v2317 = vld [vmem:[%s2313 + $0xc] sm:$0xf]
      %s2318 = scalar_lea.vmem %s7, 2
      %v2319 = vld [vmem:[%s2318] sm:$0x1]
      %v2321 = vlaneseq
      %v2322 = vshrl.u32 %v2321, 7
      %v2323 = vsub.s32 0, %v2322
      %v2324 = vrot.slane %v2319, %v2323
      %v2330 = vunpack.c.l.b16 %v2314
      %v2331 = vunpack.c.l.b16 %v2315
      %v2332 = vunpack.c.l.b16 %v2316
      %v2333 = vunpack.c.l.b16 %v2317
      %v2334 = vpack.c.b16 %v2331, %v2330
      %v2335 = vpack.c.b16 %v2333, %v2332
      %2338 = vmatprep.subr.bf16.mxu0 0
      %2339 = vmatpush1.bf16.msra.mxu0 0
      %2340 = vmatprep.subr.bf16.mxu0 0
      %2341 = vmatpush1.bf16.msra.mxu0 0
      %2342 = vmatprep.subr.bf16.mxu0 0
      %2343 = vmatpush1.bf16.msra.mxu0 0
      %2344 = vmatprep.subr.bf16.mxu0 0
      %2345 = vmatpush1.bf16.msra.mxu0 0
      %2346 = vmatprep.subr.bf16.mxu0 0
      %2347 = vmatpush1.bf16.msra.mxu0 0
      %2348 = vmatprep.subr.bf16.mxu0 0
      %2349 = vmatpush1.bf16.msra.mxu0 0
      %2350 = vmatprep.subr.bf16.mxu0 0
      %2351 = vmatpush1.bf16.msra.mxu0 %v2335
      %2352 = vmatprep.subr.bf16.mxu0 0
      %2353 = vmatpush1.bf16.msra.mxu0 %v2334
      %2354 = vmatprep.subr.bf16.mxu0 0
      %2355 = vmatpush2.bf16.msra.mxu0 0
      %2356 = vmatprep.subr.bf16.mxu0 0
      %2357 = vmatpush2.bf16.msra.mxu0 0
      %2358 = vmatprep.subr.bf16.mxu0 0
      %2359 = vmatpush2.bf16.msra.mxu0 0
      %2360 = vmatprep.subr.bf16.mxu0 0
      %2361 = vmatpush2.bf16.msra.mxu0 0
      %2362 = vmatprep.subr.bf16.mxu0 0
      %2363 = vmatpush2.bf16.msra.mxu0 0
      %2364 = vmatprep.subr.bf16.mxu0 0
      %2365 = vmatpush2.bf16.msra.mxu0 0
      %2366 = vmatprep.subr.bf16.mxu0 0
      %2367 = vmatpush2.bf16.msra.mxu0 0
      %2368 = vmatprep.subr.bf16.mxu0 0
      %2369 = vmatpush2.bf16.msra.mxu0 0
      %2370 = vmatprep.mubr.bf16.mxu0 0
      %2371 = vmatmul.mubr.bf16.gmra.mxu0 %v1012
      %v2372 = vpop.f32.mrf.mxu0
      %v2373 = vadd.f32 %v2324, %v2372
      %v2374 = vpop.f32.mrf.mxu0
      %v2375 = vpop.f32.mrf.mxu0
      %v2376 = vpop.f32.mrf.mxu0
      %2377 = vdwg.mxu0
      %s2378 = scalar_lea.vmem %s8, 32
      %v2379 = vld [vmem:[%s2378] sm:$0xf]
      %v2380 = vld [vmem:[%s2378 + $0x4] sm:$0xf]
      %v2381 = vld [vmem:[%s2378 + $0x8] sm:$0xf]
      %v2382 = vld [vmem:[%s2378 + $0xc] sm:$0xf]
      %s2383 = scalar_lea.vmem %s9, 2
      %v2384 = vld [vmem:[%s2383] sm:$0x1]
      %v2386 = vlaneseq
      %v2387 = vshrl.u32 %v2386, 7
      %v2388 = vsub.s32 0, %v2387
      %v2389 = vrot.slane %v2384, %v2388
      %v2395 = vunpack.c.l.b16 %v2379
      %v2396 = vunpack.c.l.b16 %v2380
      %v2397 = vunpack.c.l.b16 %v2381
      %v2398 = vunpack.c.l.b16 %v2382
      %v2399 = vpack.c.b16 %v2396, %v2395
      %v2400 = vpack.c.b16 %v2398, %v2397
      %2403 = vmatprep.subr.bf16.mxu0 0
      %2404 = vmatpush1.bf16.msra.mxu0 0
      %2405 = vmatprep.subr.bf16.mxu0 0
      %2406 = vmatpush1.bf16.msra.mxu0 0
      %2407 = vmatprep.subr.bf16.mxu0 0
      %2408 = vmatpush1.bf16.msra.mxu0 0
      %2409 = vmatprep.subr.bf16.mxu0 0
      %2410 = vmatpush1.bf16.msra.mxu0 0
      %2411 = vmatprep.subr.bf16.mxu0 0
      %2412 = vmatpush1.bf16.msra.mxu0 0
      %2413 = vmatprep.subr.bf16.mxu0 0
      %2414 = vmatpush1.bf16.msra.mxu0 0
      %2415 = vmatprep.subr.bf16.mxu0 0
      %2416 = vmatpush1.bf16.msra.mxu0 %v2400
      %2417 = vmatprep.subr.bf16.mxu0 0
      %2418 = vmatpush1.bf16.msra.mxu0 %v2399
      %2419 = vmatprep.subr.bf16.mxu0 0
      %2420 = vmatpush2.bf16.msra.mxu0 0
      %2421 = vmatprep.subr.bf16.mxu0 0
      %2422 = vmatpush2.bf16.msra.mxu0 0
      %2423 = vmatprep.subr.bf16.mxu0 0
      %2424 = vmatpush2.bf16.msra.mxu0 0
      %2425 = vmatprep.subr.bf16.mxu0 0
      %2426 = vmatpush2.bf16.msra.mxu0 0
      %2427 = vmatprep.subr.bf16.mxu0 0
      %2428 = vmatpush2.bf16.msra.mxu0 0
      %2429 = vmatprep.subr.bf16.mxu0 0
      %2430 = vmatpush2.bf16.msra.mxu0 0
      %2431 = vmatprep.subr.bf16.mxu0 0
      %2432 = vmatpush2.bf16.msra.mxu0 0
      %2433 = vmatprep.subr.bf16.mxu0 0
      %2434 = vmatpush2.bf16.msra.mxu0 0
      %2435 = vmatprep.mubr.bf16.mxu0 0
      %2436 = vmatmul.mubr.bf16.gmra.mxu0 %v1012
      %v2437 = vpop.f32.mrf.mxu0
      %v2438 = vadd.f32 %v2389, %v2437
      %v2439 = vpop.f32.mrf.mxu0
      %v2440 = vpop.f32.mrf.mxu0
      %v2441 = vpop.f32.mrf.mxu0
      %2442 = vdwg.mxu0
      %v2444 = vsel %vm1117, %v2283, 0
      %v2447 = vsel %vm1117, %v2286, 0
      %v2450 = vsel %vm1117, %v2291, 0
      %v2453 = vsel %vm1117, %v2294, 0
      %v2456 = vsel %vm1117, %v2299, 0
      %v2459 = vsel %vm1117, %v2302, 0
      %v2462 = vsel %vm1117, %v2307, 0
      %v2465 = vsel %vm1117, %v2310, 0
      %v2468 = vsel %vm1117, %v2373, 0
      %2470 = vmatprep.subr.mxu0 0.0
      %2471 = vmatpush1.xpose.msra.mxu0 0.0
      %2472 = vmatprep.subr.mxu0 0.0
      %2473 = vmatpush1.xpose.msra.mxu0 0.0
      %2474 = vmatprep.subr.mxu0 0.0
      %2475 = vmatpush1.xpose.msra.mxu0 0.0
      %2476 = vmatprep.subr.mxu0 0.0
      %2477 = vmatpush1.xpose.msra.mxu0 0.0
      %2478 = vmatprep.subr.mxu0 0.0
      %2479 = vmatpush1.xpose.msra.mxu0 0.0
      %2480 = vmatprep.subr.mxu0 0.0
      %2481 = vmatpush1.xpose.msra.mxu0 0.0
      %2482 = vmatprep.subr.mxu0 0.0
      %2483 = vmatpush1.xpose.msra.mxu0 0.0
      %2484 = vmatprep.subr.mxu0 0.0
      %2485 = vmatpush1.xpose.msra.mxu0 0.0
      %2486 = vmatprep.subr.mxu0 0.0
      %2487 = vmatpush1.xpose.msra.mxu0 0.0
      %2488 = vmatprep.subr.mxu0 0.0
      %2489 = vmatpush1.xpose.msra.mxu0 0.0
      %2490 = vmatprep.subr.mxu0 0.0
      %2491 = vmatpush1.xpose.msra.mxu0 0.0
      %2492 = vmatprep.subr.mxu0 0.0
      %2493 = vmatpush1.xpose.msra.mxu0 0.0
      %2494 = vmatprep.subr.mxu0 0.0
      %2495 = vmatpush1.xpose.msra.mxu0 0.0
      %2496 = vmatprep.subr.mxu0 0.0
      %2497 = vmatpush1.xpose.msra.mxu0 0.0
      %2498 = vmatprep.subr.mxu0 0.0
      %2499 = vmatpush1.xpose.msra.mxu0 0.0
      %2500 = vmatprep.subr.mxu0 0.0
      %2501 = vmatpush1.xpose.msra.mxu0 %v2468
      %2502 = vmatprep.subr.mxu0 0.0
      %2503 = vmatpush2.xpose.msra.mxu0 0.0
      %2504 = vmatprep.subr.mxu0 0.0
      %2505 = vmatpush2.xpose.msra.mxu0 0.0
      %2506 = vmatprep.subr.mxu0 0.0
      %2507 = vmatpush2.xpose.msra.mxu0 0.0
      %2508 = vmatprep.subr.mxu0 0.0
      %2509 = vmatpush2.xpose.msra.mxu0 0.0
      %2510 = vmatprep.subr.mxu0 0.0
      %2511 = vmatpush2.xpose.msra.mxu0 0.0
      %2512 = vmatprep.subr.mxu0 0.0
      %2513 = vmatpush2.xpose.msra.mxu0 0.0
      %2514 = vmatprep.subr.mxu0 0.0
      %2515 = vmatpush2.xpose.msra.mxu0 0.0
      %2516 = vmatprep.subr.mxu0 0.0
      %2517 = vmatpush2.xpose.msra.mxu0 0.0
      %2518 = vmatprep.subr.mxu0 0.0
      %2519 = vmatpush2.xpose.msra.mxu0 0.0
      %2520 = vmatprep.subr.mxu0 0.0
      %2521 = vmatpush2.xpose.msra.mxu0 0.0
      %2522 = vmatprep.subr.mxu0 0.0
      %2523 = vmatpush2.xpose.msra.mxu0 0.0
      %2524 = vmatprep.subr.mxu0 0.0
      %2525 = vmatpush2.xpose.msra.mxu0 0.0
      %2526 = vmatprep.subr.mxu0 0.0
      %2527 = vmatpush2.xpose.msra.mxu0 0.0
      %2528 = vmatprep.subr.mxu0 0.0
      %2529 = vmatpush2.xpose.msra.mxu0 0.0
      %2530 = vmatprep.subr.mxu0 0.0
      %2531 = vmatpush2.xpose.msra.mxu0 0.0
      %2532 = vmatprep.subr.mxu0 0.0
      %2533 = vmatpush2.xpose.msra.mxu0 0.0
      %2534 = vmatprep.mubr.f32.mxu0 0.0
      %2535 = vmatmul.mubr.f32.gmra.mxu0 %v2444
      %v2536 = vpop.f32.mrf.mxu0
      %v2537 = vadd.f32 0.0, %v2536
      %v2538 = vpop.f32.mrf.mxu0
      %2539 = vmatprep.mubr.f32.mxu0 0.0
      %2540 = vmatmul.mubr.f32.gmra.mxu0 %v2447
      %v2541 = vpop.f32.mrf.mxu0
      %v2542 = vadd.f32 0.0, %v2541
      %v2543 = vpop.f32.mrf.mxu0
      %2544 = vmatprep.mubr.f32.mxu0 0.0
      %2545 = vmatmul.mubr.f32.gmra.mxu0 %v2450
      %v2546 = vpop.f32.mrf.mxu0
      %v2547 = vadd.f32 0.0, %v2546
      %v2548 = vpop.f32.mrf.mxu0
      %2549 = vmatprep.mubr.f32.mxu0 0.0
      %2550 = vmatmul.mubr.f32.gmra.mxu0 %v2453
      %v2551 = vpop.f32.mrf.mxu0
      %v2552 = vadd.f32 0.0, %v2551
      %v2553 = vpop.f32.mrf.mxu0
      %2554 = vmatprep.mubr.f32.mxu0 0.0
      %2555 = vmatmul.mubr.f32.gmra.mxu0 %v2456
      %v2556 = vpop.f32.mrf.mxu0
      %v2557 = vadd.f32 0.0, %v2556
      %v2558 = vpop.f32.mrf.mxu0
      %2559 = vmatprep.mubr.f32.mxu0 0.0
      %2560 = vmatmul.mubr.f32.gmra.mxu0 %v2459
      %v2561 = vpop.f32.mrf.mxu0
      %v2562 = vadd.f32 0.0, %v2561
      %v2563 = vpop.f32.mrf.mxu0
      %2564 = vmatprep.mubr.f32.mxu0 0.0
      %2565 = vmatmul.mubr.f32.gmra.mxu0 %v2462
      %v2566 = vpop.f32.mrf.mxu0
      %v2567 = vadd.f32 0.0, %v2566
      %v2568 = vpop.f32.mrf.mxu0
      %2569 = vmatprep.mubr.f32.mxu0 0.0
      %2570 = vmatmul.mubr.f32.gmra.mxu0 %v2465
      %v2571 = vpop.f32.mrf.mxu0
      %v2572 = vadd.f32 0.0, %v2571
      %v2573 = vpop.f32.mrf.mxu0
      %2574 = vdwg.mxu0
      %v2575 = vsel %vm1250, %v2537, -inf
      %2576 = vmax.xlane.f32.xlu0 %v2575
      %v2577 = vpop.xlane.xlu0 %2576
      %v2578 = vsel %vm1250, %v2542, -inf
      %2579 = vmax.xlane.f32.xlu0 %v2578
      %v2580 = vpop.xlane.xlu0 %2579
      %v2581 = vsel %vm1250, %v2547, -inf
      %2582 = vmax.xlane.f32.xlu0 %v2581
      %v2583 = vpop.xlane.xlu0 %2582
      %v2584 = vsel %vm1250, %v2552, -inf
      %2585 = vmax.xlane.f32.xlu0 %v2584
      %v2586 = vpop.xlane.xlu0 %2585
      %v2587 = vsel %vm1250, %v2557, -inf
      %2588 = vmax.xlane.f32.xlu0 %v2587
      %v2589 = vpop.xlane.xlu0 %2588
      %v2590 = vsel %vm1250, %v2562, -inf
      %2591 = vmax.xlane.f32.xlu0 %v2590
      %v2592 = vpop.xlane.xlu0 %2591
      %v2593 = vsel %vm1250, %v2567, -inf
      %2594 = vmax.xlane.f32.xlu0 %v2593
      %v2595 = vpop.xlane.xlu0 %2594
      %v2596 = vsel %vm1250, %v2572, -inf
      %2597 = vmax.xlane.f32.xlu0 %v2596
      %v2598 = vpop.xlane.xlu0 %2597
      %v2599 = vsub.f32 %v2537, %v2577
      %v2600 = vsub.f32 %v2542, %v2580
      %v2601 = vsub.f32 %v2547, %v2583
      %v2602 = vsub.f32 %v2552, %v2586
      %v2603 = vsub.f32 %v2557, %v2589
      %v2604 = vsub.f32 %v2562, %v2592
      %v2605 = vsub.f32 %v2567, %v2595
      %v2606 = vsub.f32 %v2572, %v2598
      %v2607 = vmul.f32 %v2599, 1.442695
      %v2608 = vpow.pop %v2607
      %v2609 = vmul.f32 %v2600, 1.442695
      %v2610 = vpow.pop %v2609
      %v2611 = vmul.f32 %v2601, 1.442695
      %v2612 = vpow.pop %v2611
      %v2613 = vmul.f32 %v2602, 1.442695
      %v2614 = vpow.pop %v2613
      %v2615 = vmul.f32 %v2603, 1.442695
      %v2616 = vpow.pop %v2615
      %v2617 = vmul.f32 %v2604, 1.442695
      %v2618 = vpow.pop %v2617
      %v2619 = vmul.f32 %v2605, 1.442695
      %v2620 = vpow.pop %v2619
      %v2621 = vmul.f32 %v2606, 1.442695
      %v2622 = vpow.pop %v2621
      %v2623 = vsel %vm1250, %v2608, 0.0
      %2624 = vadd.xlane.f32.xlu0 %v2623
      %v2625 = vpop.xlane.xlu0 %2624
      %v2626 = vsel %vm1250, %v2610, 0.0
      %2627 = vadd.xlane.f32.xlu0 %v2626
      %v2628 = vpop.xlane.xlu0 %2627
      %v2629 = vsel %vm1250, %v2612, 0.0
      %2630 = vadd.xlane.f32.xlu0 %v2629
      %v2631 = vpop.xlane.xlu0 %2630
      %v2632 = vsel %vm1250, %v2614, 0.0
      %2633 = vadd.xlane.f32.xlu0 %v2632
      %v2634 = vpop.xlane.xlu0 %2633
      %v2635 = vsel %vm1250, %v2616, 0.0
      %2636 = vadd.xlane.f32.xlu0 %v2635
      %v2637 = vpop.xlane.xlu0 %2636
      %v2638 = vsel %vm1250, %v2618, 0.0
      %2639 = vadd.xlane.f32.xlu0 %v2638
      %v2640 = vpop.xlane.xlu0 %2639
      %v2641 = vsel %vm1250, %v2620, 0.0
      %2642 = vadd.xlane.f32.xlu0 %v2641
      %v2643 = vpop.xlane.xlu0 %2642
      %v2644 = vsel %vm1250, %v2622, 0.0
      %2645 = vadd.xlane.f32.xlu0 %v2644
      %v2646 = vpop.xlane.xlu0 %2645
      %v2647 = vrcp.pop %v2625
      %v2648 = vmul.f32 %v2608, %v2647
      %v2649 = vrcp.pop %v2628
      %v2650 = vmul.f32 %v2610, %v2649
      %v2651 = vrcp.pop %v2631
      %v2652 = vmul.f32 %v2612, %v2651
      %v2653 = vrcp.pop %v2634
      %v2654 = vmul.f32 %v2614, %v2653
      %v2655 = vrcp.pop %v2637
      %v2656 = vmul.f32 %v2616, %v2655
      %v2657 = vrcp.pop %v2640
      %v2658 = vmul.f32 %v2618, %v2657
      %v2659 = vrcp.pop %v2643
      %v2660 = vmul.f32 %v2620, %v2659
      %v2661 = vrcp.pop %v2646
      %v2662 = vmul.f32 %v2622, %v2661
      %v2664 = vsel %vm1250, %v2648, 0
      %v2667 = vsel %vm1250, %v2650, 0
      %v2670 = vsel %vm1250, %v2652, 0
      %v2673 = vsel %vm1250, %v2654, 0
      %v2676 = vsel %vm1250, %v2656, 0
      %v2679 = vsel %vm1250, %v2658, 0
      %v2682 = vsel %vm1250, %v2660, 0
      %v2685 = vsel %vm1250, %v2662, 0
      %v2688 = vsel %vm1363, %v2438, 0
      %2690 = vmatprep.subr.mxu0 0.0
      %2691 = vmatpush1.msra.mxu0 0.0
      %2692 = vmatprep.subr.mxu0 0.0
      %2693 = vmatpush1.msra.mxu0 0.0
      %2694 = vmatprep.subr.mxu0 0.0
      %2695 = vmatpush1.msra.mxu0 0.0
      %2696 = vmatprep.subr.mxu0 0.0
      %2697 = vmatpush1.msra.mxu0 0.0
      %2698 = vmatprep.subr.mxu0 0.0
      %2699 = vmatpush1.msra.mxu0 0.0
      %2700 = vmatprep.subr.mxu0 0.0
      %2701 = vmatpush1.msra.mxu0 0.0
      %2702 = vmatprep.subr.mxu0 0.0
      %2703 = vmatpush1.msra.mxu0 0.0
      %2704 = vmatprep.subr.mxu0 0.0
      %2705 = vmatpush1.msra.mxu0 0.0
      %2706 = vmatprep.subr.mxu0 0.0
      %2707 = vmatpush1.msra.mxu0 0.0
      %2708 = vmatprep.subr.mxu0 0.0
      %2709 = vmatpush1.msra.mxu0 0.0
      %2710 = vmatprep.subr.mxu0 0.0
      %2711 = vmatpush1.msra.mxu0 0.0
      %2712 = vmatprep.subr.mxu0 0.0
      %2713 = vmatpush1.msra.mxu0 0.0
      %2714 = vmatprep.subr.mxu0 0.0
      %2715 = vmatpush1.msra.mxu0 0.0
      %2716 = vmatprep.subr.mxu0 0.0
      %2717 = vmatpush1.msra.mxu0 0.0
      %2718 = vmatprep.subr.mxu0 0.0
      %2719 = vmatpush1.msra.mxu0 0.0
      %2720 = vmatprep.subr.mxu0 0.0
      %2721 = vmatpush1.msra.mxu0 %v2688
      %2722 = vmatprep.subr.mxu0 0.0
      %2723 = vmatpush2.msra.mxu0 0.0
      %2724 = vmatprep.subr.mxu0 0.0
      %2725 = vmatpush2.msra.mxu0 0.0
      %2726 = vmatprep.subr.mxu0 0.0
      %2727 = vmatpush2.msra.mxu0 0.0
      %2728 = vmatprep.subr.mxu0 0.0
      %2729 = vmatpush2.msra.mxu0 0.0
      %2730 = vmatprep.subr.mxu0 0.0
      %2731 = vmatpush2.msra.mxu0 0.0
      %2732 = vmatprep.subr.mxu0 0.0
      %2733 = vmatpush2.msra.mxu0 0.0
      %2734 = vmatprep.subr.mxu0 0.0
      %2735 = vmatpush2.msra.mxu0 0.0
      %2736 = vmatprep.subr.mxu0 0.0
      %2737 = vmatpush2.msra.mxu0 0.0
      %2738 = vmatprep.subr.mxu0 0.0
      %2739 = vmatpush2.msra.mxu0 0.0
      %2740 = vmatprep.subr.mxu0 0.0
      %2741 = vmatpush2.msra.mxu0 0.0
      %2742 = vmatprep.subr.mxu0 0.0
      %2743 = vmatpush2.msra.mxu0 0.0
      %2744 = vmatprep.subr.mxu0 0.0
      %2745 = vmatpush2.msra.mxu0 0.0
      %2746 = vmatprep.subr.mxu0 0.0
      %2747 = vmatpush2.msra.mxu0 0.0
      %2748 = vmatprep.subr.mxu0 0.0
      %2749 = vmatpush2.msra.mxu0 0.0
      %2750 = vmatprep.subr.mxu0 0.0
      %2751 = vmatpush2.msra.mxu0 0.0
      %2752 = vmatprep.subr.mxu0 0.0
      %2753 = vmatpush2.msra.mxu0 0.0
      %2754 = vmatprep.mubr.f32.mxu0 0.0
      %2755 = vmatmul.mubr.f32.gmra.mxu0 %v2664
      %v2756 = vpop.f32.mrf.mxu0
      %v2757 = vadd.f32 0.0, %v2756
      %v2758 = vpop.f32.mrf.mxu0
      %2759 = vmatprep.mubr.f32.mxu0 0.0
      %2760 = vmatmul.mubr.f32.gmra.mxu0 %v2667
      %v2761 = vpop.f32.mrf.mxu0
      %v2762 = vadd.f32 0.0, %v2761
      %v2763 = vpop.f32.mrf.mxu0
      %2764 = vmatprep.mubr.f32.mxu0 0.0
      %2765 = vmatmul.mubr.f32.gmra.mxu0 %v2670
      %v2766 = vpop.f32.mrf.mxu0
      %v2767 = vadd.f32 0.0, %v2766
      %v2768 = vpop.f32.mrf.mxu0
      %2769 = vmatprep.mubr.f32.mxu0 0.0
      %2770 = vmatmul.mubr.f32.gmra.mxu0 %v2673
      %v2771 = vpop.f32.mrf.mxu0
      %v2772 = vadd.f32 0.0, %v2771
      %v2773 = vpop.f32.mrf.mxu0
      %2774 = vmatprep.mubr.f32.mxu0 0.0
      %2775 = vmatmul.mubr.f32.gmra.mxu0 %v2676
      %v2776 = vpop.f32.mrf.mxu0
      %v2777 = vadd.f32 0.0, %v2776
      %v2778 = vpop.f32.mrf.mxu0
      %2779 = vmatprep.mubr.f32.mxu0 0.0
      %2780 = vmatmul.mubr.f32.gmra.mxu0 %v2679
      %v2781 = vpop.f32.mrf.mxu0
      %v2782 = vadd.f32 0.0, %v2781
      %v2783 = vpop.f32.mrf.mxu0
      %2784 = vmatprep.mubr.f32.mxu0 0.0
      %2785 = vmatmul.mubr.f32.gmra.mxu0 %v2682
      %v2786 = vpop.f32.mrf.mxu0
      %v2787 = vadd.f32 0.0, %v2786
      %v2788 = vpop.f32.mrf.mxu0
      %2789 = vmatprep.mubr.f32.mxu0 0.0
      %2790 = vmatmul.mubr.f32.gmra.mxu0 %v2685
      %v2791 = vpop.f32.mrf.mxu0
      %v2792 = vadd.f32 0.0, %v2791
      %v2793 = vpop.f32.mrf.mxu0
      %2794 = vdwg.mxu0
      %v2795 = vpack.c.bf16 %v2762, %v2757
      %v2796 = vpack.c.bf16 %v2772, %v2767
      %v2797 = vpack.c.bf16 %v2782, %v2777
      %v2798 = vpack.c.bf16 %v2792, %v2787
      %s2799 = scalar_lea.vmem %s10, 16
      %v2800 = vld [vmem:[%s2799] sm:$0xf]
      %v2801 = vld [vmem:[%s2799 + $0x4] sm:$0xf]
      %v2804 = vunpack.c.l.b16 %v2800
      %v2805 = vunpack.c.l.b16 %v2801
      %v2806 = vpack.c.b16 %v2805, %v2804
      %v2809 = vsel %vm1117, %v2795, 0
      %v2812 = vsel %vm1117, %v2796, 0
      %v2815 = vsel %vm1117, %v2797, 0
      %v2818 = vsel %vm1117, %v2798, 0
      %2820 = vmatprep.subr.bf16.mxu0 0
      %2821 = vmatpush1.bf16.msra.mxu0 0
      %2822 = vmatprep.subr.bf16.mxu0 0
      %2823 = vmatpush1.bf16.msra.mxu0 0
      %2824 = vmatprep.subr.bf16.mxu0 0
      %2825 = vmatpush1.bf16.msra.mxu0 0
      %2826 = vmatprep.subr.bf16.mxu0 0
      %2827 = vmatpush1.bf16.msra.mxu0 0
      %2828 = vmatprep.subr.bf16.mxu0 0
      %2829 = vmatpush1.bf16.msra.mxu0 0
      %2830 = vmatprep.subr.bf16.mxu0 0
      %2831 = vmatpush1.bf16.msra.mxu0 0
      %2832 = vmatprep.subr.bf16.mxu0 0
      %2833 = vmatpush1.bf16.msra.mxu0 0
      %2834 = vmatprep.subr.bf16.mxu0 0
      %2835 = vmatpush1.bf16.msra.mxu0 %v2806
      %2836 = vmatprep.subr.bf16.mxu0 0
      %2837 = vmatpush2.bf16.msra.mxu0 0
      %2838 = vmatprep.subr.bf16.mxu0 0
      %2839 = vmatpush2.bf16.msra.mxu0 0
      %2840 = vmatprep.subr.bf16.mxu0 0
      %2841 = vmatpush2.bf16.msra.mxu0 0
      %2842 = vmatprep.subr.bf16.mxu0 0
      %2843 = vmatpush2.bf16.msra.mxu0 0
      %2844 = vmatprep.subr.bf16.mxu0 0
      %2845 = vmatpush2.bf16.msra.mxu0 0
      %2846 = vmatprep.subr.bf16.mxu0 0
      %2847 = vmatpush2.bf16.msra.mxu0 0
      %2848 = vmatprep.subr.bf16.mxu0 0
      %2849 = vmatpush2.bf16.msra.mxu0 0
      %2850 = vmatprep.subr.bf16.mxu0 0
      %2851 = vmatpush2.bf16.msra.mxu0 0
      %2852 = vmatprep.mubr.bf16.mxu0 0
      %2853 = vmatmul.mubr.bf16.gmra.mxu0 %v2809
      %v2854 = vpop.f32.mrf.mxu0
      %v2855 = vadd.f32 0.0, %v2854
      %v2856 = vpop.f32.mrf.mxu0
      %v2857 = vpop.f32.mrf.mxu0
      %v2858 = vadd.f32 0.0, %v2857
      %v2859 = vpop.f32.mrf.mxu0
      %2860 = vmatprep.mubr.bf16.mxu0 0
      %2861 = vmatmul.mubr.bf16.gmra.mxu0 %v2812
      %v2862 = vpop.f32.mrf.mxu0
      %v2863 = vadd.f32 0.0, %v2862
      %v2864 = vpop.f32.mrf.mxu0
      %v2865 = vpop.f32.mrf.mxu0
      %v2866 = vadd.f32 0.0, %v2865
      %v2867 = vpop.f32.mrf.mxu0
      %2868 = vmatprep.mubr.bf16.mxu0 0
      %2869 = vmatmul.mubr.bf16.gmra.mxu0 %v2815
      %v2870 = vpop.f32.mrf.mxu0
      %v2871 = vadd.f32 0.0, %v2870
      %v2872 = vpop.f32.mrf.mxu0
      %v2873 = vpop.f32.mrf.mxu0
      %v2874 = vadd.f32 0.0, %v2873
      %v2875 = vpop.f32.mrf.mxu0
      %2876 = vmatprep.mubr.bf16.mxu0 0
      %2877 = vmatmul.mubr.bf16.gmra.mxu0 %v2818
      %v2878 = vpop.f32.mrf.mxu0
      %v2879 = vadd.f32 0.0, %v2878
      %v2880 = vpop.f32.mrf.mxu0
      %v2881 = vpop.f32.mrf.mxu0
      %v2882 = vadd.f32 0.0, %v2881
      %v2883 = vpop.f32.mrf.mxu0
      %2884 = vdwg.mxu0
      %v2885 = vadd.f32 %v2193, %v2855
      %v2886 = vadd.f32 %v2196, %v2858
      %v2887 = vadd.f32 %v2201, %v2863
      %v2888 = vadd.f32 %v2204, %v2866
      %v2889 = vadd.f32 %v2209, %v2871
      %v2890 = vadd.f32 %v2212, %v2874
      %v2891 = vadd.f32 %v2217, %v2879
      %v2892 = vadd.f32 %v2220, %v2882
      %s2893 = scalar_lea.vmem %s4, 48
      %v2894 = vld [vmem:[%s2893] sm:$0xf]
      %v2895 = vld [vmem:[%s2893 + $0x4] sm:$0xf]
      %v2896 = vld [vmem:[%s2893 + $0x8] sm:$0xf]
      %v2897 = vld [vmem:[%s2893 + $0xc] sm:$0xf]
      %s2898 = scalar_lea.vmem %s5, 3
      %v2899 = vld [vmem:[%s2898] sm:$0x1]
      %v2901 = vlaneseq
      %v2902 = vshrl.u32 %v2901, 7
      %v2903 = vsub.s32 0, %v2902
      %v2904 = vrot.slane %v2899, %v2903
      %v2910 = vunpack.c.l.b16 %v2894
      %v2911 = vunpack.c.l.b16 %v2895
      %v2912 = vunpack.c.l.b16 %v2896
      %v2913 = vunpack.c.l.b16 %v2897
      %v2914 = vpack.c.b16 %v2911, %v2910
      %v2915 = vpack.c.b16 %v2913, %v2912
      %2918 = vmatprep.subr.bf16.mxu0 0
      %2919 = vmatpush1.bf16.msra.mxu0 0
      %2920 = vmatprep.subr.bf16.mxu0 0
      %2921 = vmatpush1.bf16.msra.mxu0 0
      %2922 = vmatprep.subr.bf16.mxu0 0
      %2923 = vmatpush1.bf16.msra.mxu0 0
      %2924 = vmatprep.subr.bf16.mxu0 0
      %2925 = vmatpush1.bf16.msra.mxu0 0
      %2926 = vmatprep.subr.bf16.mxu0 0
      %2927 = vmatpush1.bf16.msra.mxu0 0
      %2928 = vmatprep.subr.bf16.mxu0 0
      %2929 = vmatpush1.bf16.msra.mxu0 0
      %2930 = vmatprep.subr.bf16.mxu0 0
      %2931 = vmatpush1.bf16.msra.mxu0 %v2915
      %2932 = vmatprep.subr.bf16.mxu0 0
      %2933 = vmatpush1.bf16.msra.mxu0 %v2914
      %2934 = vmatprep.subr.bf16.mxu0 0
      %2935 = vmatpush2.bf16.msra.mxu0 0
      %2936 = vmatprep.subr.bf16.mxu0 0
      %2937 = vmatpush2.bf16.msra.mxu0 0
      %2938 = vmatprep.subr.bf16.mxu0 0
      %2939 = vmatpush2.bf16.msra.mxu0 0
      %2940 = vmatprep.subr.bf16.mxu0 0
      %2941 = vmatpush2.bf16.msra.mxu0 0
      %2942 = vmatprep.subr.bf16.mxu0 0
      %2943 = vmatpush2.bf16.msra.mxu0 0
      %2944 = vmatprep.subr.bf16.mxu0 0
      %2945 = vmatpush2.bf16.msra.mxu0 0
      %2946 = vmatprep.subr.bf16.mxu0 0
      %2947 = vmatpush2.bf16.msra.mxu0 0
      %2948 = vmatprep.subr.bf16.mxu0 0
      %2949 = vmatpush2.bf16.msra.mxu0 0
      %2950 = vmatprep.mubr.bf16.mxu0 0
      %2951 = vmatmul.mubr.bf16.gmra.mxu0 %v912
      %v2952 = vpop.f32.mrf.mxu0
      %v2953 = vadd.f32 %v2904, %v2952
      %v2954 = vpop.f32.mrf.mxu0
      %v2955 = vpop.f32.mrf.mxu0
      %v2956 = vadd.f32 %v2904, %v2955
      %v2957 = vpop.f32.mrf.mxu0
      %2958 = vmatprep.mubr.bf16.mxu0 0
      %2959 = vmatmul.mubr.bf16.gmra.mxu0 %v915
      %v2960 = vpop.f32.mrf.mxu0
      %v2961 = vadd.f32 %v2904, %v2960
      %v2962 = vpop.f32.mrf.mxu0
      %v2963 = vpop.f32.mrf.mxu0
      %v2964 = vadd.f32 %v2904, %v2963
      %v2965 = vpop.f32.mrf.mxu0
      %2966 = vmatprep.mubr.bf16.mxu0 0
      %2967 = vmatmul.mubr.bf16.gmra.mxu0 %v918
      %v2968 = vpop.f32.mrf.mxu0
      %v2969 = vadd.f32 %v2904, %v2968
      %v2970 = vpop.f32.mrf.mxu0
      %v2971 = vpop.f32.mrf.mxu0
      %v2972 = vadd.f32 %v2904, %v2971
      %v2973 = vpop.f32.mrf.mxu0
      %2974 = vmatprep.mubr.bf16.mxu0 0
      %2975 = vmatmul.mubr.bf16.gmra.mxu0 %v921
      %v2976 = vpop.f32.mrf.mxu0
      %v2977 = vadd.f32 %v2904, %v2976
      %v2978 = vpop.f32.mrf.mxu0
      %v2979 = vpop.f32.mrf.mxu0
      %v2980 = vadd.f32 %v2904, %v2979
      %v2981 = vpop.f32.mrf.mxu0
      %2982 = vdwg.mxu0
      %s2983 = scalar_lea.vmem %s6, 48
      %v2984 = vld [vmem:[%s2983] sm:$0xf]
      %v2985 = vld [vmem:[%s2983 + $0x4] sm:$0xf]
      %v2986 = vld [vmem:[%s2983 + $0x8] sm:$0xf]
      %v2987 = vld [vmem:[%s2983 + $0xc] sm:$0xf]
      %s2988 = scalar_lea.vmem %s7, 3
      %v2989 = vld [vmem:[%s2988] sm:$0x1]
      %v2991 = vlaneseq
      %v2992 = vshrl.u32 %v2991, 7
      %v2993 = vsub.s32 0, %v2992
      %v2994 = vrot.slane %v2989, %v2993
      %v3000 = vunpack.c.l.b16 %v2984
      %v3001 = vunpack.c.l.b16 %v2985
      %v3002 = vunpack.c.l.b16 %v2986
      %v3003 = vunpack.c.l.b16 %v2987
      %v3004 = vpack.c.b16 %v3001, %v3000
      %v3005 = vpack.c.b16 %v3003, %v3002
      %3008 = vmatprep.subr.bf16.mxu0 0
      %3009 = vmatpush1.bf16.msra.mxu0 0
      %3010 = vmatprep.subr.bf16.mxu0 0
      %3011 = vmatpush1.bf16.msra.mxu0 0
      %3012 = vmatprep.subr.bf16.mxu0 0
      %3013 = vmatpush1.bf16.msra.mxu0 0
      %3014 = vmatprep.subr.bf16.mxu0 0
      %3015 = vmatpush1.bf16.msra.mxu0 0
      %3016 = vmatprep.subr.bf16.mxu0 0
      %3017 = vmatpush1.bf16.msra.mxu0 0
      %3018 = vmatprep.subr.bf16.mxu0 0
      %3019 = vmatpush1.bf16.msra.mxu0 0
      %3020 = vmatprep.subr.bf16.mxu0 0
      %3021 = vmatpush1.bf16.msra.mxu0 %v3005
      %3022 = vmatprep.subr.bf16.mxu0 0
      %3023 = vmatpush1.bf16.msra.mxu0 %v3004
      %3024 = vmatprep.subr.bf16.mxu0 0
      %3025 = vmatpush2.bf16.msra.mxu0 0
      %3026 = vmatprep.subr.bf16.mxu0 0
      %3027 = vmatpush2.bf16.msra.mxu0 0
      %3028 = vmatprep.subr.bf16.mxu0 0
      %3029 = vmatpush2.bf16.msra.mxu0 0
      %3030 = vmatprep.subr.bf16.mxu0 0
      %3031 = vmatpush2.bf16.msra.mxu0 0
      %3032 = vmatprep.subr.bf16.mxu0 0
      %3033 = vmatpush2.bf16.msra.mxu0 0
      %3034 = vmatprep.subr.bf16.mxu0 0
      %3035 = vmatpush2.bf16.msra.mxu0 0
      %3036 = vmatprep.subr.bf16.mxu0 0
      %3037 = vmatpush2.bf16.msra.mxu0 0
      %3038 = vmatprep.subr.bf16.mxu0 0
      %3039 = vmatpush2.bf16.msra.mxu0 0
      %3040 = vmatprep.mubr.bf16.mxu0 0
      %3041 = vmatmul.mubr.bf16.gmra.mxu0 %v1012
      %v3042 = vpop.f32.mrf.mxu0
      %v3043 = vadd.f32 %v2994, %v3042
      %v3044 = vpop.f32.mrf.mxu0
      %v3045 = vpop.f32.mrf.mxu0
      %v3046 = vpop.f32.mrf.mxu0
      %3047 = vdwg.mxu0
      %s3048 = scalar_lea.vmem %s8, 48
      %v3049 = vld [vmem:[%s3048] sm:$0xf]
      %v3050 = vld [vmem:[%s3048 + $0x4] sm:$0xf]
      %v3051 = vld [vmem:[%s3048 + $0x8] sm:$0xf]
      %v3052 = vld [vmem:[%s3048 + $0xc] sm:$0xf]
      %s3053 = scalar_lea.vmem %s9, 3
      %v3054 = vld [vmem:[%s3053] sm:$0x1]
      %v3056 = vlaneseq
      %v3057 = vshrl.u32 %v3056, 7
      %v3058 = vsub.s32 0, %v3057
      %v3059 = vrot.slane %v3054, %v3058
      %v3065 = vunpack.c.l.b16 %v3049
      %v3066 = vunpack.c.l.b16 %v3050
      %v3067 = vunpack.c.l.b16 %v3051
      %v3068 = vunpack.c.l.b16 %v3052
      %v3069 = vpack.c.b16 %v3066, %v3065
      %v3070 = vpack.c.b16 %v3068, %v3067
      %3073 = vmatprep.subr.bf16.mxu0 0
      %3074 = vmatpush1.bf16.msra.mxu0 0
      %3075 = vmatprep.subr.bf16.mxu0 0
      %3076 = vmatpush1.bf16.msra.mxu0 0
      %3077 = vmatprep.subr.bf16.mxu0 0
      %3078 = vmatpush1.bf16.msra.mxu0 0
      %3079 = vmatprep.subr.bf16.mxu0 0
      %3080 = vmatpush1.bf16.msra.mxu0 0
      %3081 = vmatprep.subr.bf16.mxu0 0
      %3082 = vmatpush1.bf16.msra.mxu0 0
      %3083 = vmatprep.subr.bf16.mxu0 0
      %3084 = vmatpush1.bf16.msra.mxu0 0
      %3085 = vmatprep.subr.bf16.mxu0 0
      %3086 = vmatpush1.bf16.msra.mxu0 %v3070
      %3087 = vmatprep.subr.bf16.mxu0 0
      %3088 = vmatpush1.bf16.msra.mxu0 %v3069
      %3089 = vmatprep.subr.bf16.mxu0 0
      %3090 = vmatpush2.bf16.msra.mxu0 0
      %3091 = vmatprep.subr.bf16.mxu0 0
      %3092 = vmatpush2.bf16.msra.mxu0 0
      %3093 = vmatprep.subr.bf16.mxu0 0
      %3094 = vmatpush2.bf16.msra.mxu0 0
      %3095 = vmatprep.subr.bf16.mxu0 0
      %3096 = vmatpush2.bf16.msra.mxu0 0
      %3097 = vmatprep.subr.bf16.mxu0 0
      %3098 = vmatpush2.bf16.msra.mxu0 0
      %3099 = vmatprep.subr.bf16.mxu0 0
      %3100 = vmatpush2.bf16.msra.mxu0 0
      %3101 = vmatprep.subr.bf16.mxu0 0
      %3102 = vmatpush2.bf16.msra.mxu0 0
      %3103 = vmatprep.subr.bf16.mxu0 0
      %3104 = vmatpush2.bf16.msra.mxu0 0
      %3105 = vmatprep.mubr.bf16.mxu0 0
      %3106 = vmatmul.mubr.bf16.gmra.mxu0 %v1012
      %v3107 = vpop.f32.mrf.mxu0
      %v3108 = vadd.f32 %v3059, %v3107
      %v3109 = vpop.f32.mrf.mxu0
      %v3110 = vpop.f32.mrf.mxu0
      %v3111 = vpop.f32.mrf.mxu0
      %3112 = vdwg.mxu0
      %v3114 = vsel %vm1117, %v2953, 0
      %v3117 = vsel %vm1117, %v2956, 0
      %v3120 = vsel %vm1117, %v2961, 0
      %v3123 = vsel %vm1117, %v2964, 0
      %v3126 = vsel %vm1117, %v2969, 0
      %v3129 = vsel %vm1117, %v2972, 0
      %v3132 = vsel %vm1117, %v2977, 0
      %v3135 = vsel %vm1117, %v2980, 0
      %v3138 = vsel %vm1117, %v3043, 0
      %3140 = vmatprep.subr.mxu0 0.0
      %3141 = vmatpush1.xpose.msra.mxu0 0.0
      %3142 = vmatprep.subr.mxu0 0.0
      %3143 = vmatpush1.xpose.msra.mxu0 0.0
      %3144 = vmatprep.subr.mxu0 0.0
      %3145 = vmatpush1.xpose.msra.mxu0 0.0
      %3146 = vmatprep.subr.mxu0 0.0
      %3147 = vmatpush1.xpose.msra.mxu0 0.0
      %3148 = vmatprep.subr.mxu0 0.0
      %3149 = vmatpush1.xpose.msra.mxu0 0.0
      %3150 = vmatprep.subr.mxu0 0.0
      %3151 = vmatpush1.xpose.msra.mxu0 0.0
      %3152 = vmatprep.subr.mxu0 0.0
      %3153 = vmatpush1.xpose.msra.mxu0 0.0
      %3154 = vmatprep.subr.mxu0 0.0
      %3155 = vmatpush1.xpose.msra.mxu0 0.0
      %3156 = vmatprep.subr.mxu0 0.0
      %3157 = vmatpush1.xpose.msra.mxu0 0.0
      %3158 = vmatprep.subr.mxu0 0.0
      %3159 = vmatpush1.xpose.msra.mxu0 0.0
      %3160 = vmatprep.subr.mxu0 0.0
      %3161 = vmatpush1.xpose.msra.mxu0 0.0
      %3162 = vmatprep.subr.mxu0 0.0
      %3163 = vmatpush1.xpose.msra.mxu0 0.0
      %3164 = vmatprep.subr.mxu0 0.0
      %3165 = vmatpush1.xpose.msra.mxu0 0.0
      %3166 = vmatprep.subr.mxu0 0.0
      %3167 = vmatpush1.xpose.msra.mxu0 0.0
      %3168 = vmatprep.subr.mxu0 0.0
      %3169 = vmatpush1.xpose.msra.mxu0 0.0
      %3170 = vmatprep.subr.mxu0 0.0
      %3171 = vmatpush1.xpose.msra.mxu0 %v3138
      %3172 = vmatprep.subr.mxu0 0.0
      %3173 = vmatpush2.xpose.msra.mxu0 0.0
      %3174 = vmatprep.subr.mxu0 0.0
      %3175 = vmatpush2.xpose.msra.mxu0 0.0
      %3176 = vmatprep.subr.mxu0 0.0
      %3177 = vmatpush2.xpose.msra.mxu0 0.0
      %3178 = vmatprep.subr.mxu0 0.0
      %3179 = vmatpush2.xpose.msra.mxu0 0.0
      %3180 = vmatprep.subr.mxu0 0.0
      %3181 = vmatpush2.xpose.msra.mxu0 0.0
      %3182 = vmatprep.subr.mxu0 0.0
      %3183 = vmatpush2.xpose.msra.mxu0 0.0
      %3184 = vmatprep.subr.mxu0 0.0
      %3185 = vmatpush2.xpose.msra.mxu0 0.0
      %3186 = vmatprep.subr.mxu0 0.0
      %3187 = vmatpush2.xpose.msra.mxu0 0.0
      %3188 = vmatprep.subr.mxu0 0.0
      %3189 = vmatpush2.xpose.msra.mxu0 0.0
      %3190 = vmatprep.subr.mxu0 0.0
      %3191 = vmatpush2.xpose.msra.mxu0 0.0
      %3192 = vmatprep.subr.mxu0 0.0
      %3193 = vmatpush2.xpose.msra.mxu0 0.0
      %3194 = vmatprep.subr.mxu0 0.0
      %3195 = vmatpush2.xpose.msra.mxu0 0.0
      %3196 = vmatprep.subr.mxu0 0.0
      %3197 = vmatpush2.xpose.msra.mxu0 0.0
      %3198 = vmatprep.subr.mxu0 0.0
      %3199 = vmatpush2.xpose.msra.mxu0 0.0
      %3200 = vmatprep.subr.mxu0 0.0
      %3201 = vmatpush2.xpose.msra.mxu0 0.0
      %3202 = vmatprep.subr.mxu0 0.0
      %3203 = vmatpush2.xpose.msra.mxu0 0.0
      %3204 = vmatprep.mubr.f32.mxu0 0.0
      %3205 = vmatmul.mubr.f32.gmra.mxu0 %v3114
      %v3206 = vpop.f32.mrf.mxu0
      %v3207 = vadd.f32 0.0, %v3206
      %v3208 = vpop.f32.mrf.mxu0
      %3209 = vmatprep.mubr.f32.mxu0 0.0
      %3210 = vmatmul.mubr.f32.gmra.mxu0 %v3117
      %v3211 = vpop.f32.mrf.mxu0
      %v3212 = vadd.f32 0.0, %v3211
      %v3213 = vpop.f32.mrf.mxu0
      %3214 = vmatprep.mubr.f32.mxu0 0.0
      %3215 = vmatmul.mubr.f32.gmra.mxu0 %v3120
      %v3216 = vpop.f32.mrf.mxu0
      %v3217 = vadd.f32 0.0, %v3216
      %v3218 = vpop.f32.mrf.mxu0
      %3219 = vmatprep.mubr.f32.mxu0 0.0
      %3220 = vmatmul.mubr.f32.gmra.mxu0 %v3123
      %v3221 = vpop.f32.mrf.mxu0
      %v3222 = vadd.f32 0.0, %v3221
      %v3223 = vpop.f32.mrf.mxu0
      %3224 = vmatprep.mubr.f32.mxu0 0.0
      %3225 = vmatmul.mubr.f32.gmra.mxu0 %v3126
      %v3226 = vpop.f32.mrf.mxu0
      %v3227 = vadd.f32 0.0, %v3226
      %v3228 = vpop.f32.mrf.mxu0
      %3229 = vmatprep.mubr.f32.mxu0 0.0
      %3230 = vmatmul.mubr.f32.gmra.mxu0 %v3129
      %v3231 = vpop.f32.mrf.mxu0
      %v3232 = vadd.f32 0.0, %v3231
      %v3233 = vpop.f32.mrf.mxu0
      %3234 = vmatprep.mubr.f32.mxu0 0.0
      %3235 = vmatmul.mubr.f32.gmra.mxu0 %v3132
      %v3236 = vpop.f32.mrf.mxu0
      %v3237 = vadd.f32 0.0, %v3236
      %v3238 = vpop.f32.mrf.mxu0
      %3239 = vmatprep.mubr.f32.mxu0 0.0
      %3240 = vmatmul.mubr.f32.gmra.mxu0 %v3135
      %v3241 = vpop.f32.mrf.mxu0
      %v3242 = vadd.f32 0.0, %v3241
      %v3243 = vpop.f32.mrf.mxu0
      %3244 = vdwg.mxu0
      %v3245 = vsel %vm1250, %v3207, -inf
      %3246 = vmax.xlane.f32.xlu0 %v3245
      %v3247 = vpop.xlane.xlu0 %3246
      %v3248 = vsel %vm1250, %v3212, -inf
      %3249 = vmax.xlane.f32.xlu0 %v3248
      %v3250 = vpop.xlane.xlu0 %3249
      %v3251 = vsel %vm1250, %v3217, -inf
      %3252 = vmax.xlane.f32.xlu0 %v3251
      %v3253 = vpop.xlane.xlu0 %3252
      %v3254 = vsel %vm1250, %v3222, -inf
      %3255 = vmax.xlane.f32.xlu0 %v3254
      %v3256 = vpop.xlane.xlu0 %3255
      %v3257 = vsel %vm1250, %v3227, -inf
      %3258 = vmax.xlane.f32.xlu0 %v3257
      %v3259 = vpop.xlane.xlu0 %3258
      %v3260 = vsel %vm1250, %v3232, -inf
      %3261 = vmax.xlane.f32.xlu0 %v3260
      %v3262 = vpop.xlane.xlu0 %3261
      %v3263 = vsel %vm1250, %v3237, -inf
      %3264 = vmax.xlane.f32.xlu0 %v3263
      %v3265 = vpop.xlane.xlu0 %3264
      %v3266 = vsel %vm1250, %v3242, -inf
      %3267 = vmax.xlane.f32.xlu0 %v3266
      %v3268 = vpop.xlane.xlu0 %3267
      %v3269 = vsub.f32 %v3207, %v3247
      %v3270 = vsub.f32 %v3212, %v3250
      %v3271 = vsub.f32 %v3217, %v3253
      %v3272 = vsub.f32 %v3222, %v3256
      %v3273 = vsub.f32 %v3227, %v3259
      %v3274 = vsub.f32 %v3232, %v3262
      %v3275 = vsub.f32 %v3237, %v3265
      %v3276 = vsub.f32 %v3242, %v3268
      %v3277 = vmul.f32 %v3269, 1.442695
      %v3278 = vpow.pop %v3277
      %v3279 = vmul.f32 %v3270, 1.442695
      %v3280 = vpow.pop %v3279
      %v3281 = vmul.f32 %v3271, 1.442695
      %v3282 = vpow.pop %v3281
      %v3283 = vmul.f32 %v3272, 1.442695
      %v3284 = vpow.pop %v3283
      %v3285 = vmul.f32 %v3273, 1.442695
      %v3286 = vpow.pop %v3285
      %v3287 = vmul.f32 %v3274, 1.442695
      %v3288 = vpow.pop %v3287
      %v3289 = vmul.f32 %v3275, 1.442695
      %v3290 = vpow.pop %v3289
      %v3291 = vmul.f32 %v3276, 1.442695
      %v3292 = vpow.pop %v3291
      %v3293 = vsel %vm1250, %v3278, 0.0
      %3294 = vadd.xlane.f32.xlu0 %v3293
      %v3295 = vpop.xlane.xlu0 %3294
      %v3296 = vsel %vm1250, %v3280, 0.0
      %3297 = vadd.xlane.f32.xlu0 %v3296
      %v3298 = vpop.xlane.xlu0 %3297
      %v3299 = vsel %vm1250, %v3282, 0.0
      %3300 = vadd.xlane.f32.xlu0 %v3299
      %v3301 = vpop.xlane.xlu0 %3300
      %v3302 = vsel %vm1250, %v3284, 0.0
      %3303 = vadd.xlane.f32.xlu0 %v3302
      %v3304 = vpop.xlane.xlu0 %3303
      %v3305 = vsel %vm1250, %v3286, 0.0
      %3306 = vadd.xlane.f32.xlu0 %v3305
      %v3307 = vpop.xlane.xlu0 %3306
      %v3308 = vsel %vm1250, %v3288, 0.0
      %3309 = vadd.xlane.f32.xlu0 %v3308
      %v3310 = vpop.xlane.xlu0 %3309
      %v3311 = vsel %vm1250, %v3290, 0.0
      %3312 = vadd.xlane.f32.xlu0 %v3311
      %v3313 = vpop.xlane.xlu0 %3312
      %v3314 = vsel %vm1250, %v3292, 0.0
      %3315 = vadd.xlane.f32.xlu0 %v3314
      %v3316 = vpop.xlane.xlu0 %3315
      %v3317 = vrcp.pop %v3295
      %v3318 = vmul.f32 %v3278, %v3317
      %v3319 = vrcp.pop %v3298
      %v3320 = vmul.f32 %v3280, %v3319
      %v3321 = vrcp.pop %v3301
      %v3322 = vmul.f32 %v3282, %v3321
      %v3323 = vrcp.pop %v3304
      %v3324 = vmul.f32 %v3284, %v3323
      %v3325 = vrcp.pop %v3307
      %v3326 = vmul.f32 %v3286, %v3325
      %v3327 = vrcp.pop %v3310
      %v3328 = vmul.f32 %v3288, %v3327
      %v3329 = vrcp.pop %v3313
      %v3330 = vmul.f32 %v3290, %v3329
      %v3331 = vrcp.pop %v3316
      %v3332 = vmul.f32 %v3292, %v3331
      %v3334 = vsel %vm1250, %v3318, 0
      %v3337 = vsel %vm1250, %v3320, 0
      %v3340 = vsel %vm1250, %v3322, 0
      %v3343 = vsel %vm1250, %v3324, 0
      %v3346 = vsel %vm1250, %v3326, 0
      %v3349 = vsel %vm1250, %v3328, 0
      %v3352 = vsel %vm1250, %v3330, 0
      %v3355 = vsel %vm1250, %v3332, 0
      %v3358 = vsel %vm1363, %v3108, 0
      %3360 = vmatprep.subr.mxu0 0.0
      %3361 = vmatpush1.msra.mxu0 0.0
      %3362 = vmatprep.subr.mxu0 0.0
      %3363 = vmatpush1.msra.mxu0 0.0
      %3364 = vmatprep.subr.mxu0 0.0
      %3365 = vmatpush1.msra.mxu0 0.0
      %3366 = vmatprep.subr.mxu0 0.0
      %3367 = vmatpush1.msra.mxu0 0.0
      %3368 = vmatprep.subr.mxu0 0.0
      %3369 = vmatpush1.msra.mxu0 0.0
      %3370 = vmatprep.subr.mxu0 0.0
      %3371 = vmatpush1.msra.mxu0 0.0
      %3372 = vmatprep.subr.mxu0 0.0
      %3373 = vmatpush1.msra.mxu0 0.0
      %3374 = vmatprep.subr.mxu0 0.0
      %3375 = vmatpush1.msra.mxu0 0.0
      %3376 = vmatprep.subr.mxu0 0.0
      %3377 = vmatpush1.msra.mxu0 0.0
      %3378 = vmatprep.subr.mxu0 0.0
      %3379 = vmatpush1.msra.mxu0 0.0
      %3380 = vmatprep.subr.mxu0 0.0
      %3381 = vmatpush1.msra.mxu0 0.0
      %3382 = vmatprep.subr.mxu0 0.0
      %3383 = vmatpush1.msra.mxu0 0.0
      %3384 = vmatprep.subr.mxu0 0.0
      %3385 = vmatpush1.msra.mxu0 0.0
      %3386 = vmatprep.subr.mxu0 0.0
      %3387 = vmatpush1.msra.mxu0 0.0
      %3388 = vmatprep.subr.mxu0 0.0
      %3389 = vmatpush1.msra.mxu0 0.0
      %3390 = vmatprep.subr.mxu0 0.0
      %3391 = vmatpush1.msra.mxu0 %v3358
      %3392 = vmatprep.subr.mxu0 0.0
      %3393 = vmatpush2.msra.mxu0 0.0
      %3394 = vmatprep.subr.mxu0 0.0
      %3395 = vmatpush2.msra.mxu0 0.0
      %3396 = vmatprep.subr.mxu0 0.0
      %3397 = vmatpush2.msra.mxu0 0.0
      %3398 = vmatprep.subr.mxu0 0.0
      %3399 = vmatpush2.msra.mxu0 0.0
      %3400 = vmatprep.subr.mxu0 0.0
      %3401 = vmatpush2.msra.mxu0 0.0
      %3402 = vmatprep.subr.mxu0 0.0
      %3403 = vmatpush2.msra.mxu0 0.0
      %3404 = vmatprep.subr.mxu0 0.0
      %3405 = vmatpush2.msra.mxu0 0.0
      %3406 = vmatprep.subr.mxu0 0.0
      %3407 = vmatpush2.msra.mxu0 0.0
      %3408 = vmatprep.subr.mxu0 0.0
      %3409 = vmatpush2.msra.mxu0 0.0
      %3410 = vmatprep.subr.mxu0 0.0
      %3411 = vmatpush2.msra.mxu0 0.0
      %3412 = vmatprep.subr.mxu0 0.0
      %3413 = vmatpush2.msra.mxu0 0.0
      %3414 = vmatprep.subr.mxu0 0.0
      %3415 = vmatpush2.msra.mxu0 0.0
      %3416 = vmatprep.subr.mxu0 0.0
      %3417 = vmatpush2.msra.mxu0 0.0
      %3418 = vmatprep.subr.mxu0 0.0
      %3419 = vmatpush2.msra.mxu0 0.0
      %3420 = vmatprep.subr.mxu0 0.0
      %3421 = vmatpush2.msra.mxu0 0.0
      %3422 = vmatprep.subr.mxu0 0.0
      %3423 = vmatpush2.msra.mxu0 0.0
      %3424 = vmatprep.mubr.f32.mxu0 0.0
      %3425 = vmatmul.mubr.f32.gmra.mxu0 %v3334
      %v3426 = vpop.f32.mrf.mxu0
      %v3427 = vadd.f32 0.0, %v3426
      %v3428 = vpop.f32.mrf.mxu0
      %3429 = vmatprep.mubr.f32.mxu0 0.0
      %3430 = vmatmul.mubr.f32.gmra.mxu0 %v3337
      %v3431 = vpop.f32.mrf.mxu0
      %v3432 = vadd.f32 0.0, %v3431
      %v3433 = vpop.f32.mrf.mxu0
      %3434 = vmatprep.mubr.f32.mxu0 0.0
      %3435 = vmatmul.mubr.f32.gmra.mxu0 %v3340
      %v3436 = vpop.f32.mrf.mxu0
      %v3437 = vadd.f32 0.0, %v3436
      %v3438 = vpop.f32.mrf.mxu0
      %3439 = vmatprep.mubr.f32.mxu0 0.0
      %3440 = vmatmul.mubr.f32.gmra.mxu0 %v3343
      %v3441 = vpop.f32.mrf.mxu0
      %v3442 = vadd.f32 0.0, %v3441
      %v3443 = vpop.f32.mrf.mxu0
      %3444 = vmatprep.mubr.f32.mxu0 0.0
      %3445 = vmatmul.mubr.f32.gmra.mxu0 %v3346
      %v3446 = vpop.f32.mrf.mxu0
      %v3447 = vadd.f32 0.0, %v3446
      %v3448 = vpop.f32.mrf.mxu0
      %3449 = vmatprep.mubr.f32.mxu0 0.0
      %3450 = vmatmul.mubr.f32.gmra.mxu0 %v3349
      %v3451 = vpop.f32.mrf.mxu0
      %v3452 = vadd.f32 0.0, %v3451
      %v3453 = vpop.f32.mrf.mxu0
      %3454 = vmatprep.mubr.f32.mxu0 0.0
      %3455 = vmatmul.mubr.f32.gmra.mxu0 %v3352
      %v3456 = vpop.f32.mrf.mxu0
      %v3457 = vadd.f32 0.0, %v3456
      %v3458 = vpop.f32.mrf.mxu0
      %3459 = vmatprep.mubr.f32.mxu0 0.0
      %3460 = vmatmul.mubr.f32.gmra.mxu0 %v3355
      %v3461 = vpop.f32.mrf.mxu0
      %v3462 = vadd.f32 0.0, %v3461
      %v3463 = vpop.f32.mrf.mxu0
      %3464 = vdwg.mxu0
      %v3465 = vpack.c.bf16 %v3432, %v3427
      %v3466 = vpack.c.bf16 %v3442, %v3437
      %v3467 = vpack.c.bf16 %v3452, %v3447
      %v3468 = vpack.c.bf16 %v3462, %v3457
      %s3469 = scalar_lea.vmem %s10, 24
      %v3470 = vld [vmem:[%s3469] sm:$0xf]
      %v3471 = vld [vmem:[%s3469 + $0x4] sm:$0xf]
      %v3474 = vunpack.c.l.b16 %v3470
      %v3475 = vunpack.c.l.b16 %v3471
      %v3476 = vpack.c.b16 %v3475, %v3474
      %v3479 = vsel %vm1117, %v3465, 0
      %v3482 = vsel %vm1117, %v3466, 0
      %v3485 = vsel %vm1117, %v3467, 0
      %v3488 = vsel %vm1117, %v3468, 0
      %3490 = vmatprep.subr.bf16.mxu0 0
      %3491 = vmatpush1.bf16.msra.mxu0 0
      %3492 = vmatprep.subr.bf16.mxu0 0
      %3493 = vmatpush1.bf16.msra.mxu0 0
      %3494 = vmatprep.subr.bf16.mxu0 0
      %3495 = vmatpush1.bf16.msra.mxu0 0
      %3496 = vmatprep.subr.bf16.mxu0 0
      %3497 = vmatpush1.bf16.msra.mxu0 0
      %3498 = vmatprep.subr.bf16.mxu0 0
      %3499 = vmatpush1.bf16.msra.mxu0 0
      %3500 = vmatprep.subr.bf16.mxu0 0
      %3501 = vmatpush1.bf16.msra.mxu0 0
      %3502 = vmatprep.subr.bf16.mxu0 0
      %3503 = vmatpush1.bf16.msra.mxu0 0
      %3504 = vmatprep.subr.bf16.mxu0 0
      %3505 = vmatpush1.bf16.msra.mxu0 %v3476
      %3506 = vmatprep.subr.bf16.mxu0 0
      %3507 = vmatpush2.bf16.msra.mxu0 0
      %3508 = vmatprep.subr.bf16.mxu0 0
      %3509 = vmatpush2.bf16.msra.mxu0 0
      %3510 = vmatprep.subr.bf16.mxu0 0
      %3511 = vmatpush2.bf16.msra.mxu0 0
      %3512 = vmatprep.subr.bf16.mxu0 0
      %3513 = vmatpush2.bf16.msra.mxu0 0
      %3514 = vmatprep.subr.bf16.mxu0 0
      %3515 = vmatpush2.bf16.msra.mxu0 0
      %3516 = vmatprep.subr.bf16.mxu0 0
      %3517 = vmatpush2.bf16.msra.mxu0 0
      %3518 = vmatprep.subr.bf16.mxu0 0
      %3519 = vmatpush2.bf16.msra.mxu0 0
      %3520 = vmatprep.subr.bf16.mxu0 0
      %3521 = vmatpush2.bf16.msra.mxu0 0
      %3522 = vmatprep.mubr.bf16.mxu0 0
      %3523 = vmatmul.mubr.bf16.gmra.mxu0 %v3479
      %v3524 = vpop.f32.mrf.mxu0
      %v3525 = vadd.f32 0.0, %v3524
      %v3526 = vpop.f32.mrf.mxu0
      %v3527 = vpop.f32.mrf.mxu0
      %v3528 = vadd.f32 0.0, %v3527
      %v3529 = vpop.f32.mrf.mxu0
      %3530 = vmatprep.mubr.bf16.mxu0 0
      %3531 = vmatmul.mubr.bf16.gmra.mxu0 %v3482
      %v3532 = vpop.f32.mrf.mxu0
      %v3533 = vadd.f32 0.0, %v3532
      %v3534 = vpop.f32.mrf.mxu0
      %v3535 = vpop.f32.mrf.mxu0
      %v3536 = vadd.f32 0.0, %v3535
      %v3537 = vpop.f32.mrf.mxu0
      %3538 = vmatprep.mubr.bf16.mxu0 0
      %3539 = vmatmul.mubr.bf16.gmra.mxu0 %v3485
      %v3540 = vpop.f32.mrf.mxu0
      %v3541 = vadd.f32 0.0, %v3540
      %v3542 = vpop.f32.mrf.mxu0
      %v3543 = vpop.f32.mrf.mxu0
      %v3544 = vadd.f32 0.0, %v3543
      %v3545 = vpop.f32.mrf.mxu0
      %3546 = vmatprep.mubr.bf16.mxu0 0
      %3547 = vmatmul.mubr.bf16.gmra.mxu0 %v3488
      %v3548 = vpop.f32.mrf.mxu0
      %v3549 = vadd.f32 0.0, %v3548
      %v3550 = vpop.f32.mrf.mxu0
      %v3551 = vpop.f32.mrf.mxu0
      %v3552 = vadd.f32 0.0, %v3551
      %v3553 = vpop.f32.mrf.mxu0
      %3554 = vdwg.mxu0
      %v3555 = vadd.f32 %v2885, %v3525
      %v3556 = vadd.f32 %v2886, %v3528
      %v3557 = vadd.f32 %v2887, %v3533
      %v3558 = vadd.f32 %v2888, %v3536
      %v3559 = vadd.f32 %v2889, %v3541
      %v3560 = vadd.f32 %v2890, %v3544
      %v3561 = vadd.f32 %v2891, %v3549
      %v3562 = vadd.f32 %v2892, %v3552
      %v3563 = vld [vmem:[%s11] sm:$0x1]
      %v3565 = vlaneseq
      %v3566 = vshrl.u32 %v3565, 7
      %v3567 = vsub.s32 0, %v3566
      %v3568 = vrot.slane %v3563, %v3567
      %v3570 = vadd.f32 %v3555, %v3568
      %v3571 = vadd.f32 %v3556, %v3568
      %v3572 = vadd.f32 %v3557, %v3568
      %v3573 = vadd.f32 %v3558, %v3568
      %v3574 = vadd.f32 %v3559, %v3568
      %v3575 = vadd.f32 %v3560, %v3568
      %v3576 = vadd.f32 %v3561, %v3568
      %v3577 = vadd.f32 %v3562, %v3568
      %v3578 = vadd.f32 %v800, %v3570
      %v3579 = vadd.f32 %v805, %v3571
      %v3580 = vadd.f32 %v810, %v3572
      %v3581 = vadd.f32 %v815, %v3573
      %v3582 = vadd.f32 %v820, %v3574
      %v3583 = vadd.f32 %v825, %v3575
      %v3584 = vadd.f32 %v830, %v3576
      %v3585 = vadd.f32 %v835, %v3577
      %v3586 = vld [vmem:[%s12] sm:$0x1]
      %v3587 = vld [vmem:[%s13] sm:$0x1]
      %v3588 = vsel %vm910, %v3578, 0.0
      %3589 = vadd.xlane.f32.xlu0 %v3588
      %v3590 = vpop.xlane.xlu0 %3589
      %v3591 = vsel %vm910, %v3579, 0.0
      %3592 = vadd.xlane.f32.xlu0 %v3591
      %v3593 = vpop.xlane.xlu0 %3592
      %v3594 = vsel %vm910, %v3580, 0.0
      %3595 = vadd.xlane.f32.xlu0 %v3594
      %v3596 = vpop.xlane.xlu0 %3595
      %v3597 = vsel %vm910, %v3581, 0.0
      %3598 = vadd.xlane.f32.xlu0 %v3597
      %v3599 = vpop.xlane.xlu0 %3598
      %v3600 = vsel %vm910, %v3582, 0.0
      %3601 = vadd.xlane.f32.xlu0 %v3600
      %v3602 = vpop.xlane.xlu0 %3601
      %v3603 = vsel %vm910, %v3583, 0.0
      %3604 = vadd.xlane.f32.xlu0 %v3603
      %v3605 = vpop.xlane.xlu0 %3604
      %v3606 = vsel %vm910, %v3584, 0.0
      %3607 = vadd.xlane.f32.xlu0 %v3606
      %v3608 = vpop.xlane.xlu0 %3607
      %v3609 = vsel %vm910, %v3585, 0.0
      %3610 = vadd.xlane.f32.xlu0 %v3609
      %v3611 = vpop.xlane.xlu0 %3610
      %v3612 = vrcp.pop 32.0
      %v3613 = vmul.f32 %v3590, %v3612
      %v3614 = vmul.f32 %v3593, %v3612
      %v3615 = vmul.f32 %v3596, %v3612
      %v3616 = vmul.f32 %v3599, %v3612
      %v3617 = vmul.f32 %v3602, %v3612
      %v3618 = vmul.f32 %v3605, %v3612
      %v3619 = vmul.f32 %v3608, %v3612
      %v3620 = vmul.f32 %v3611, %v3612
      %v3621 = vsub.f32 %v3578, %v3613
      %v3622 = vsub.f32 %v3579, %v3614
      %v3623 = vsub.f32 %v3580, %v3615
      %v3624 = vsub.f32 %v3581, %v3616
      %v3625 = vsub.f32 %v3582, %v3617
      %v3626 = vsub.f32 %v3583, %v3618
      %v3627 = vsub.f32 %v3584, %v3619
      %v3628 = vsub.f32 %v3585, %v3620
      %v3629 = vmul.f32 %v3621, %v3621
      %v3630 = vmul.f32 %v3622, %v3622
      %v3631 = vmul.f32 %v3623, %v3623
      %v3632 = vmul.f32 %v3624, %v3624
      %v3633 = vmul.f32 %v3625, %v3625
      %v3634 = vmul.f32 %v3626, %v3626
      %v3635 = vmul.f32 %v3627, %v3627
      %v3636 = vmul.f32 %v3628, %v3628
      %v3637 = vsel %vm910, %v3629, 0.0
      %3638 = vadd.xlane.f32.xlu0 %v3637
      %v3639 = vpop.xlane.xlu0 %3638
      %v3640 = vsel %vm910, %v3630, 0.0
      %3641 = vadd.xlane.f32.xlu0 %v3640
      %v3642 = vpop.xlane.xlu0 %3641
      %v3643 = vsel %vm910, %v3631, 0.0
      %3644 = vadd.xlane.f32.xlu0 %v3643
      %v3645 = vpop.xlane.xlu0 %3644
      %v3646 = vsel %vm910, %v3632, 0.0
      %3647 = vadd.xlane.f32.xlu0 %v3646
      %v3648 = vpop.xlane.xlu0 %3647
      %v3649 = vsel %vm910, %v3633, 0.0
      %3650 = vadd.xlane.f32.xlu0 %v3649
      %v3651 = vpop.xlane.xlu0 %3650
      %v3652 = vsel %vm910, %v3634, 0.0
      %3653 = vadd.xlane.f32.xlu0 %v3652
      %v3654 = vpop.xlane.xlu0 %3653
      %v3655 = vsel %vm910, %v3635, 0.0
      %3656 = vadd.xlane.f32.xlu0 %v3655
      %v3657 = vpop.xlane.xlu0 %3656
      %v3658 = vsel %vm910, %v3636, 0.0
      %3659 = vadd.xlane.f32.xlu0 %v3658
      %v3660 = vpop.xlane.xlu0 %3659
      %v3661 = vmul.f32 %v3639, %v3612
      %v3662 = vmul.f32 %v3642, %v3612
      %v3663 = vmul.f32 %v3645, %v3612
      %v3664 = vmul.f32 %v3648, %v3612
      %v3665 = vmul.f32 %v3651, %v3612
      %v3666 = vmul.f32 %v3654, %v3612
      %v3667 = vmul.f32 %v3657, %v3612
      %v3668 = vmul.f32 %v3660, %v3612
      %v3669 = vadd.f32 %v3661, 1e-05
      %v3670 = vadd.f32 %v3662, 1e-05
      %v3671 = vadd.f32 %v3663, 1e-05
      %v3672 = vadd.f32 %v3664, 1e-05
      %v3673 = vadd.f32 %v3665, 1e-05
      %v3674 = vadd.f32 %v3666, 1e-05
      %v3675 = vadd.f32 %v3667, 1e-05
      %v3676 = vadd.f32 %v3668, 1e-05
      %v3677 = vrsqrt.pop %v3669
      %v3678 = vrsqrt.pop %v3670
      %v3679 = vrsqrt.pop %v3671
      %v3680 = vrsqrt.pop %v3672
      %v3681 = vrsqrt.pop %v3673
      %v3682 = vrsqrt.pop %v3674
      %v3683 = vrsqrt.pop %v3675
      %v3684 = vrsqrt.pop %v3676
      %v3685 = vmul.f32 %v3621, %v3677
      %v3686 = vmul.f32 %v3622, %v3678
      %v3687 = vmul.f32 %v3623, %v3679
      %v3688 = vmul.f32 %v3624, %v3680
      %v3689 = vmul.f32 %v3625, %v3681
      %v3690 = vmul.f32 %v3626, %v3682
      %v3691 = vmul.f32 %v3627, %v3683
      %v3692 = vmul.f32 %v3628, %v3684
      %v3694 = vlaneseq
      %v3695 = vshrl.u32 %v3694, 7
      %v3696 = vsub.s32 0, %v3695
      %v3697 = vrot.slane %v3586, %v3696
      %v3699 = vmul.f32 %v3685, %v3697
      %v3700 = vmul.f32 %v3686, %v3697
      %v3701 = vmul.f32 %v3687, %v3697
      %v3702 = vmul.f32 %v3688, %v3697
      %v3703 = vmul.f32 %v3689, %v3697
      %v3704 = vmul.f32 %v3690, %v3697
      %v3705 = vmul.f32 %v3691, %v3697
      %v3706 = vmul.f32 %v3692, %v3697
      %v3708 = vlaneseq
      %v3709 = vshrl.u32 %v3708, 7
      %v3710 = vsub.s32 0, %v3709
      %v3711 = vrot.slane %v3587, %v3710
      %v3713 = vadd.f32 %v3699, %v3711
      %v3714 = vadd.f32 %v3700, %v3711
      %v3715 = vadd.f32 %v3701, %v3711
      %v3716 = vadd.f32 %v3702, %v3711
      %v3717 = vadd.f32 %v3703, %v3711
      %v3718 = vadd.f32 %v3704, %v3711
      %v3719 = vadd.f32 %v3705, %v3711
      %v3720 = vadd.f32 %v3706, %v3711
      %v3721 = vpack.c.bf16 %v3714, %v3713
      %v3722 = vpack.c.bf16 %v3716, %v3715
      %v3723 = vpack.c.bf16 %v3718, %v3717
      %v3724 = vpack.c.bf16 %v3720, %v3719
      %v3725 = vld [vmem:[%s14] sm:$0xf]
      %v3726 = vld [vmem:[%s14 + $0x4] sm:$0xf]
      %v3727 = vld [vmem:[%s14 + $0x8] sm:$0xf]
      %v3728 = vld [vmem:[%s14 + $0xc] sm:$0xf]
      %v3729 = vld [vmem:[%s15] sm:$0x1]
      %v3731 = vlaneseq
      %v3732 = vshrl.u32 %v3731, 7
      %v3733 = vsub.s32 0, %v3732
      %v3734 = vrot.slane %v3729, %v3733
      %v3740 = vunpack.c.l.b16 %v3725
      %v3741 = vunpack.c.l.b16 %v3726
      %v3742 = vunpack.c.l.b16 %v3727
      %v3743 = vunpack.c.l.b16 %v3728
      %v3744 = vpack.c.b16 %v3741, %v3740
      %v3745 = vpack.c.b16 %v3743, %v3742
      %v3749 = vsel %vm910, %v3721, 0
      %v3752 = vsel %vm910, %v3722, 0
      %v3755 = vsel %vm910, %v3723, 0
      %v3758 = vsel %vm910, %v3724, 0
      %3760 = vmatprep.subr.bf16.mxu0 0
      %3761 = vmatpush1.bf16.msra.mxu0 0
      %3762 = vmatprep.subr.bf16.mxu0 0
      %3763 = vmatpush1.bf16.msra.mxu0 0
      %3764 = vmatprep.subr.bf16.mxu0 0
      %3765 = vmatpush1.bf16.msra.mxu0 0
      %3766 = vmatprep.subr.bf16.mxu0 0
      %3767 = vmatpush1.bf16.msra.mxu0 0
      %3768 = vmatprep.subr.bf16.mxu0 0
      %3769 = vmatpush1.bf16.msra.mxu0 0
      %3770 = vmatprep.subr.bf16.mxu0 0
      %3771 = vmatpush1.bf16.msra.mxu0 0
      %3772 = vmatprep.subr.bf16.mxu0 0
      %3773 = vmatpush1.bf16.msra.mxu0 %v3745
      %3774 = vmatprep.subr.bf16.mxu0 0
      %3775 = vmatpush1.bf16.msra.mxu0 %v3744
      %3776 = vmatprep.subr.bf16.mxu0 0
      %3777 = vmatpush2.bf16.msra.mxu0 0
      %3778 = vmatprep.subr.bf16.mxu0 0
      %3779 = vmatpush2.bf16.msra.mxu0 0
      %3780 = vmatprep.subr.bf16.mxu0 0
      %3781 = vmatpush2.bf16.msra.mxu0 0
      %3782 = vmatprep.subr.bf16.mxu0 0
      %3783 = vmatpush2.bf16.msra.mxu0 0
      %3784 = vmatprep.subr.bf16.mxu0 0
      %3785 = vmatpush2.bf16.msra.mxu0 0
      %3786 = vmatprep.subr.bf16.mxu0 0
      %3787 = vmatpush2.bf16.msra.mxu0 0
      %3788 = vmatprep.subr.bf16.mxu0 0
      %3789 = vmatpush2.bf16.msra.mxu0 0
      %3790 = vmatprep.subr.bf16.mxu0 0
      %3791 = vmatpush2.bf16.msra.mxu0 0
      %3792 = vmatprep.mubr.bf16.mxu0 0
      %3793 = vmatmul.mubr.bf16.gmra.mxu0 %v3749
      %v3794 = vpop.f32.mrf.mxu0
      %v3795 = vadd.f32 %v3734, %v3794
      %v3796 = vpop.f32.mrf.mxu0
      %v3797 = vpop.f32.mrf.mxu0
      %v3798 = vadd.f32 %v3734, %v3797
      %v3799 = vpop.f32.mrf.mxu0
      %3800 = vmatprep.mubr.bf16.mxu0 0
      %3801 = vmatmul.mubr.bf16.gmra.mxu0 %v3752
      %v3802 = vpop.f32.mrf.mxu0
      %v3803 = vadd.f32 %v3734, %v3802
      %v3804 = vpop.f32.mrf.mxu0
      %v3805 = vpop.f32.mrf.mxu0
      %v3806 = vadd.f32 %v3734, %v3805
      %v3807 = vpop.f32.mrf.mxu0
      %3808 = vmatprep.mubr.bf16.mxu0 0
      %3809 = vmatmul.mubr.bf16.gmra.mxu0 %v3755
      %v3810 = vpop.f32.mrf.mxu0
      %v3811 = vadd.f32 %v3734, %v3810
      %v3812 = vpop.f32.mrf.mxu0
      %v3813 = vpop.f32.mrf.mxu0
      %v3814 = vadd.f32 %v3734, %v3813
      %v3815 = vpop.f32.mrf.mxu0
      %3816 = vmatprep.mubr.bf16.mxu0 0
      %3817 = vmatmul.mubr.bf16.gmra.mxu0 %v3758
      %v3818 = vpop.f32.mrf.mxu0
      %v3819 = vadd.f32 %v3734, %v3818
      %v3820 = vpop.f32.mrf.mxu0
      %v3821 = vpop.f32.mrf.mxu0
      %v3822 = vadd.f32 %v3734, %v3821
      %v3823 = vpop.f32.mrf.mxu0
      %3824 = vdwg.mxu0
      %v3825 = vmul.f32 %v3795, %v3795
      %v3826 = vmul.f32 %v3798, %v3798
      %v3827 = vmul.f32 %v3803, %v3803
      %v3828 = vmul.f32 %v3806, %v3806
      %v3829 = vmul.f32 %v3811, %v3811
      %v3830 = vmul.f32 %v3814, %v3814
      %v3831 = vmul.f32 %v3819, %v3819
      %v3832 = vmul.f32 %v3822, %v3822
      %v3833 = vmul.f32 %v3795, %v3825
      %v3834 = vmul.f32 %v3798, %v3826
      %v3835 = vmul.f32 %v3803, %v3827
      %v3836 = vmul.f32 %v3806, %v3828
      %v3837 = vmul.f32 %v3811, %v3829
      %v3838 = vmul.f32 %v3814, %v3830
      %v3839 = vmul.f32 %v3819, %v3831
      %v3840 = vmul.f32 %v3822, %v3832
      %v3841 = vmul.f32 %v3833, 0.044715
      %v3842 = vmul.f32 %v3834, 0.044715
      %v3843 = vmul.f32 %v3835, 0.044715
      %v3844 = vmul.f32 %v3836, 0.044715
      %v3845 = vmul.f32 %v3837, 0.044715
      %v3846 = vmul.f32 %v3838, 0.044715
      %v3847 = vmul.f32 %v3839, 0.044715
      %v3848 = vmul.f32 %v3840, 0.044715
      %v3849 = vadd.f32 %v3795, %v3841
      %v3850 = vadd.f32 %v3798, %v3842
      %v3851 = vadd.f32 %v3803, %v3843
      %v3852 = vadd.f32 %v3806, %v3844
      %v3853 = vadd.f32 %v3811, %v3845
      %v3854 = vadd.f32 %v3814, %v3846
      %v3855 = vadd.f32 %v3819, %v3847
      %v3856 = vadd.f32 %v3822, %v3848
      %v3857 = vmul.f32 %v3849, 0.7978846
      %v3858 = vmul.f32 %v3850, 0.7978846
      %v3859 = vmul.f32 %v3851, 0.7978846
      %v3860 = vmul.f32 %v3852, 0.7978846
      %v3861 = vmul.f32 %v3853, 0.7978846
      %v3862 = vmul.f32 %v3854, 0.7978846
      %v3863 = vmul.f32 %v3855, 0.7978846
      %v3864 = vmul.f32 %v3856, 0.7978846
      %v3865 = vtanh.pop %v3857
      %v3866 = vtanh.pop %v3858
      %v3867 = vtanh.pop %v3859
      %v3868 = vtanh.pop %v3860
      %v3869 = vtanh.pop %v3861
      %v3870 = vtanh.pop %v3862
      %v3871 = vtanh.pop %v3863
      %v3872 = vtanh.pop %v3864
      %v3873 = vadd.f32 %v3865, 1.0
      %v3874 = vadd.f32 %v3866, 1.0
      %v3875 = vadd.f32 %v3867, 1.0
      %v3876 = vadd.f32 %v3868, 1.0
      %v3877 = vadd.f32 %v3869, 1.0
      %v3878 = vadd.f32 %v3870, 1.0
      %v3879 = vadd.f32 %v3871, 1.0
      %v3880 = vadd.f32 %v3872, 1.0
      %v3881 = vmul.f32 %v3873, 0.5
      %v3882 = vmul.f32 %v3874, 0.5
      %v3883 = vmul.f32 %v3875, 0.5
      %v3884 = vmul.f32 %v3876, 0.5
      %v3885 = vmul.f32 %v3877, 0.5
      %v3886 = vmul.f32 %v3878, 0.5
      %v3887 = vmul.f32 %v3879, 0.5
      %v3888 = vmul.f32 %v3880, 0.5
      %v3889 = vmul.f32 %v3795, %v3881
      %v3890 = vmul.f32 %v3798, %v3882
      %v3891 = vmul.f32 %v3803, %v3883
      %v3892 = vmul.f32 %v3806, %v3884
      %v3893 = vmul.f32 %v3811, %v3885
      %v3894 = vmul.f32 %v3814, %v3886
      %v3895 = vmul.f32 %v3819, %v3887
      %v3896 = vmul.f32 %v3822, %v3888
      %v3897 = vpack.c.bf16 %v3890, %v3889
      %v3898 = vpack.c.bf16 %v3892, %v3891
      %v3899 = vpack.c.bf16 %v3894, %v3893
      %v3900 = vpack.c.bf16 %v3896, %v3895
      %v3901 = vld [vmem:[%s16] sm:$0xf]
      %v3902 = vld [vmem:[%s16 + $0x4] sm:$0xf]
      %v3903 = vld [vmem:[%s16 + $0x8] sm:$0xf]
      %v3904 = vld [vmem:[%s16 + $0xc] sm:$0xf]
      %v3905 = vld [vmem:[%s16 + $0x10] sm:$0xf]
      %v3906 = vld [vmem:[%s16 + $0x14] sm:$0xf]
      %v3907 = vld [vmem:[%s16 + $0x18] sm:$0xf]
      %v3908 = vld [vmem:[%s16 + $0x1c] sm:$0xf]
      %v3909 = vld [vmem:[%s17] sm:$0x1]
      %v3911 = vlaneseq
      %v3912 = vshrl.u32 %v3911, 7
      %v3913 = vsub.s32 0, %v3912
      %v3914 = vrot.slane %v3909, %v3913
      %v3924 = vunpack.c.l.b16 %v3901
      %v3925 = vunpack.c.l.b16 %v3902
      %v3926 = vunpack.c.l.b16 %v3903
      %v3927 = vunpack.c.l.b16 %v3904
      %v3928 = vunpack.c.l.b16 %v3905
      %v3929 = vunpack.c.l.b16 %v3906
      %v3930 = vunpack.c.l.b16 %v3907
      %v3931 = vunpack.c.l.b16 %v3908
      %v3932 = vpack.c.b16 %v3925, %v3924
      %v3933 = vpack.c.b16 %v3927, %v3926
      %v3934 = vpack.c.b16 %v3929, %v3928
      %v3935 = vpack.c.b16 %v3931, %v3930
      %v3941 = vsel %vm708, %v3897, 0
      %v3944 = vsel %vm708, %v3898, 0
      %v3947 = vsel %vm708, %v3899, 0
      %v3950 = vsel %vm708, %v3900, 0
      %3952 = vmatprep.subr.bf16.mxu0 0
      %3953 = vmatpush1.bf16.msra.mxu0 0
      %3954 = vmatprep.subr.bf16.mxu0 0
      %3955 = vmatpush1.bf16.msra.mxu0 0
      %3956 = vmatprep.subr.bf16.mxu0 0
      %3957 = vmatpush1.bf16.msra.mxu0 0
      %3958 = vmatprep.subr.bf16.mxu0 0
      %3959 = vmatpush1.bf16.msra.mxu0 0
      %3960 = vmatprep.subr.bf16.mxu0 0
      %3961 = vmatpush1.bf16.msra.mxu0 %v3935
      %3962 = vmatprep.subr.bf16.mxu0 0
      %3963 = vmatpush1.bf16.msra.mxu0 %v3934
      %3964 = vmatprep.subr.bf16.mxu0 0
      %3965 = vmatpush1.bf16.msra.mxu0 %v3933
      %3966 = vmatprep.subr.bf16.mxu0 0
      %3967 = vmatpush1.bf16.msra.mxu0 %v3932
      %3968 = vmatprep.subr.bf16.mxu0 0
      %3969 = vmatpush2.bf16.msra.mxu0 0
      %3970 = vmatprep.subr.bf16.mxu0 0
      %3971 = vmatpush2.bf16.msra.mxu0 0
      %3972 = vmatprep.subr.bf16.mxu0 0
      %3973 = vmatpush2.bf16.msra.mxu0 0
      %3974 = vmatprep.subr.bf16.mxu0 0
      %3975 = vmatpush2.bf16.msra.mxu0 0
      %3976 = vmatprep.subr.bf16.mxu0 0
      %3977 = vmatpush2.bf16.msra.mxu0 0
      %3978 = vmatprep.subr.bf16.mxu0 0
      %3979 = vmatpush2.bf16.msra.mxu0 0
      %3980 = vmatprep.subr.bf16.mxu0 0
      %3981 = vmatpush2.bf16.msra.mxu0 0
      %3982 = vmatprep.subr.bf16.mxu0 0
      %3983 = vmatpush2.bf16.msra.mxu0 0
      %3984 = vmatprep.mubr.bf16.mxu0 0
      %3985 = vmatmul.mubr.bf16.gmra.mxu0 %v3941
      %v3986 = vpop.f32.mrf.mxu0
      %v3987 = vadd.f32 %v3914, %v3986
      %v3988 = vpop.f32.mrf.mxu0
      %v3989 = vpop.f32.mrf.mxu0
      %v3990 = vadd.f32 %v3914, %v3989
      %v3991 = vpop.f32.mrf.mxu0
      %3992 = vmatprep.mubr.bf16.mxu0 0
      %3993 = vmatmul.mubr.bf16.gmra.mxu0 %v3944
      %v3994 = vpop.f32.mrf.mxu0
      %v3995 = vadd.f32 %v3914, %v3994
      %v3996 = vpop.f32.mrf.mxu0
      %v3997 = vpop.f32.mrf.mxu0
      %v3998 = vadd.f32 %v3914, %v3997
      %v3999 = vpop.f32.mrf.mxu0
      %4000 = vmatprep.mubr.bf16.mxu0 0
      %4001 = vmatmul.mubr.bf16.gmra.mxu0 %v3947
      %v4002 = vpop.f32.mrf.mxu0
      %v4003 = vadd.f32 %v3914, %v4002
      %v4004 = vpop.f32.mrf.mxu0
      %v4005 = vpop.f32.mrf.mxu0
      %v4006 = vadd.f32 %v3914, %v4005
      %v4007 = vpop.f32.mrf.mxu0
      %4008 = vmatprep.mubr.bf16.mxu0 0
      %4009 = vmatmul.mubr.bf16.gmra.mxu0 %v3950
      %v4010 = vpop.f32.mrf.mxu0
      %v4011 = vadd.f32 %v3914, %v4010
      %v4012 = vpop.f32.mrf.mxu0
      %v4013 = vpop.f32.mrf.mxu0
      %v4014 = vadd.f32 %v3914, %v4013
      %v4015 = vpop.f32.mrf.mxu0
      %4016 = vdwg.mxu0
      %v4017 = vadd.f32 %v3713, %v3987
      %v4018 = vadd.f32 %v3714, %v3990
      %v4019 = vadd.f32 %v3715, %v3995
      %v4020 = vadd.f32 %v3716, %v3998
      %v4021 = vadd.f32 %v3717, %v4003
      %v4022 = vadd.f32 %v3718, %v4006
      %v4023 = vadd.f32 %v3719, %v4011
      %v4024 = vadd.f32 %v3720, %v4014
      %v4025 = vld [vmem:[%s18] sm:$0x1]
      %v4026 = vld [vmem:[%s19] sm:$0x1]
      %v4027 = vsel %vm910, %v4017, 0.0
      %4028 = vadd.xlane.f32.xlu0 %v4027
      %v4029 = vpop.xlane.xlu0 %4028
      %v4030 = vsel %vm910, %v4018, 0.0
      %4031 = vadd.xlane.f32.xlu0 %v4030
      %v4032 = vpop.xlane.xlu0 %4031
      %v4033 = vsel %vm910, %v4019, 0.0
      %4034 = vadd.xlane.f32.xlu0 %v4033
      %v4035 = vpop.xlane.xlu0 %4034
      %v4036 = vsel %vm910, %v4020, 0.0
      %4037 = vadd.xlane.f32.xlu0 %v4036
      %v4038 = vpop.xlane.xlu0 %4037
      %v4039 = vsel %vm910, %v4021, 0.0
      %4040 = vadd.xlane.f32.xlu0 %v4039
      %v4041 = vpop.xlane.xlu0 %4040
      %v4042 = vsel %vm910, %v4022, 0.0
      %4043 = vadd.xlane.f32.xlu0 %v4042
      %v4044 = vpop.xlane.xlu0 %4043
      %v4045 = vsel %vm910, %v4023, 0.0
      %4046 = vadd.xlane.f32.xlu0 %v4045
      %v4047 = vpop.xlane.xlu0 %4046
      %v4048 = vsel %vm910, %v4024, 0.0
      %4049 = vadd.xlane.f32.xlu0 %v4048
      %v4050 = vpop.xlane.xlu0 %4049
      %v4051 = vmul.f32 %v4029, %v3612
      %v4052 = vmul.f32 %v4032, %v3612
      %v4053 = vmul.f32 %v4035, %v3612
      %v4054 = vmul.f32 %v4038, %v3612
      %v4055 = vmul.f32 %v4041, %v3612
      %v4056 = vmul.f32 %v4044, %v3612
      %v4057 = vmul.f32 %v4047, %v3612
      %v4058 = vmul.f32 %v4050, %v3612
      %v4059 = vsub.f32 %v4017, %v4051
      %v4060 = vsub.f32 %v4018, %v4052
      %v4061 = vsub.f32 %v4019, %v4053
      %v4062 = vsub.f32 %v4020, %v4054
      %v4063 = vsub.f32 %v4021, %v4055
      %v4064 = vsub.f32 %v4022, %v4056
      %v4065 = vsub.f32 %v4023, %v4057
      %v4066 = vsub.f32 %v4024, %v4058
      %v4067 = vmul.f32 %v4059, %v4059
      %v4068 = vmul.f32 %v4060, %v4060
      %v4069 = vmul.f32 %v4061, %v4061
      %v4070 = vmul.f32 %v4062, %v4062
      %v4071 = vmul.f32 %v4063, %v4063
      %v4072 = vmul.f32 %v4064, %v4064
      %v4073 = vmul.f32 %v4065, %v4065
      %v4074 = vmul.f32 %v4066, %v4066
      %v4075 = vsel %vm910, %v4067, 0.0
      %4076 = vadd.xlane.f32.xlu0 %v4075
      %v4077 = vpop.xlane.xlu0 %4076
      %v4078 = vsel %vm910, %v4068, 0.0
      %4079 = vadd.xlane.f32.xlu0 %v4078
      %v4080 = vpop.xlane.xlu0 %4079
      %v4081 = vsel %vm910, %v4069, 0.0
      %4082 = vadd.xlane.f32.xlu0 %v4081
      %v4083 = vpop.xlane.xlu0 %4082
      %v4084 = vsel %vm910, %v4070, 0.0
      %4085 = vadd.xlane.f32.xlu0 %v4084
      %v4086 = vpop.xlane.xlu0 %4085
      %v4087 = vsel %vm910, %v4071, 0.0
      %4088 = vadd.xlane.f32.xlu0 %v4087
      %v4089 = vpop.xlane.xlu0 %4088
      %v4090 = vsel %vm910, %v4072, 0.0
      %4091 = vadd.xlane.f32.xlu0 %v4090
      %v4092 = vpop.xlane.xlu0 %4091
      %v4093 = vsel %vm910, %v4073, 0.0
      %4094 = vadd.xlane.f32.xlu0 %v4093
      %v4095 = vpop.xlane.xlu0 %4094
      %v4096 = vsel %vm910, %v4074, 0.0
      %4097 = vadd.xlane.f32.xlu0 %v4096
      %v4098 = vpop.xlane.xlu0 %4097
      %v4099 = vmul.f32 %v4077, %v3612
      %v4100 = vmul.f32 %v4080, %v3612
      %v4101 = vmul.f32 %v4083, %v3612
      %v4102 = vmul.f32 %v4086, %v3612
      %v4103 = vmul.f32 %v4089, %v3612
      %v4104 = vmul.f32 %v4092, %v3612
      %v4105 = vmul.f32 %v4095, %v3612
      %v4106 = vmul.f32 %v4098, %v3612
      %v4107 = vadd.f32 %v4099, 1e-05
      %v4108 = vadd.f32 %v4100, 1e-05
      %v4109 = vadd.f32 %v4101, 1e-05
      %v4110 = vadd.f32 %v4102, 1e-05
      %v4111 = vadd.f32 %v4103, 1e-05
      %v4112 = vadd.f32 %v4104, 1e-05
      %v4113 = vadd.f32 %v4105, 1e-05
      %v4114 = vadd.f32 %v4106, 1e-05
      %v4115 = vrsqrt.pop %v4107
      %v4116 = vrsqrt.pop %v4108
      %v4117 = vrsqrt.pop %v4109
      %v4118 = vrsqrt.pop %v4110
      %v4119 = vrsqrt.pop %v4111
      %v4120 = vrsqrt.pop %v4112
      %v4121 = vrsqrt.pop %v4113
      %v4122 = vrsqrt.pop %v4114
      %v4123 = vmul.f32 %v4059, %v4115
      %v4124 = vmul.f32 %v4060, %v4116
      %v4125 = vmul.f32 %v4061, %v4117
      %v4126 = vmul.f32 %v4062, %v4118
      %v4127 = vmul.f32 %v4063, %v4119
      %v4128 = vmul.f32 %v4064, %v4120
      %v4129 = vmul.f32 %v4065, %v4121
      %v4130 = vmul.f32 %v4066, %v4122
      %v4132 = vlaneseq
      %v4133 = vshrl.u32 %v4132, 7
      %v4134 = vsub.s32 0, %v4133
      %v4135 = vrot.slane %v4025, %v4134
      %v4137 = vmul.f32 %v4123, %v4135
      %v4138 = vmul.f32 %v4124, %v4135
      %v4139 = vmul.f32 %v4125, %v4135
      %v4140 = vmul.f32 %v4126, %v4135
      %v4141 = vmul.f32 %v4127, %v4135
      %v4142 = vmul.f32 %v4128, %v4135
      %v4143 = vmul.f32 %v4129, %v4135
      %v4144 = vmul.f32 %v4130, %v4135
      %v4146 = vlaneseq
      %v4147 = vshrl.u32 %v4146, 7
      %v4148 = vsub.s32 0, %v4147
      %v4149 = vrot.slane %v4026, %v4148
      %v4151 = vadd.f32 %v4137, %v4149
      %v4152 = vadd.f32 %v4138, %v4149
      %v4153 = vadd.f32 %v4139, %v4149
      %v4154 = vadd.f32 %v4140, %v4149
      %v4155 = vadd.f32 %v4141, %v4149
      %v4156 = vadd.f32 %v4142, %v4149
      %v4157 = vadd.f32 %v4143, %v4149
      %v4158 = vadd.f32 %v4144, %v4149
      %v4159 = vpack.c.bf16 %v4152, %v4151
      %v4160 = vpack.c.bf16 %v4154, %v4153
      %v4161 = vpack.c.bf16 %v4156, %v4155
      %v4162 = vpack.c.bf16 %v4158, %v4157
      %4163 = vmatprep.subr.bf16.mxu0 0
      %4164 = vmatpush1.bf16.msra.mxu0 0
      %4165 = vmatprep.subr.bf16.mxu0 0
      %4166 = vmatpush1.bf16.msra.mxu0 0
      %4167 = vmatprep.subr.bf16.mxu0 0
      %4168 = vmatpush1.bf16.msra.mxu0 0
      %4169 = vmatprep.subr.bf16.mxu0 0
      %4170 = vmatpush1.bf16.msra.mxu0 0
      %4171 = vmatprep.subr.bf16.mxu0 0
      %4172 = vmatpush1.bf16.msra.mxu0 %v4162
      %4173 = vmatprep.subr.bf16.mxu0 0
      %4174 = vmatpush1.bf16.msra.mxu0 %v4161
      %4175 = vmatprep.subr.bf16.mxu0 0
      %4176 = vmatpush1.bf16.msra.mxu0 %v4160
      %4177 = vmatprep.subr.bf16.mxu0 0
      %4178 = vmatpush1.bf16.msra.mxu0 %v4159
      %4179 = vmatprep.subr.bf16.mxu0 0
      %4180 = vmatpush2.bf16.msra.mxu0 0
      %4181 = vmatprep.subr.bf16.mxu0 0
      %4182 = vmatpush2.bf16.msra.mxu0 0
      %4183 = vmatprep.subr.bf16.mxu0 0
      %4184 = vmatpush2.bf16.msra.mxu0 0
      %4185 = vmatprep.subr.bf16.mxu0 0
      %4186 = vmatpush2.bf16.msra.mxu0 0
      %4187 = vmatprep.subr.bf16.mxu0 0
      %4188 = vmatpush2.bf16.msra.mxu0 0
      %4189 = vmatprep.subr.bf16.mxu0 0
      %4190 = vmatpush2.bf16.msra.mxu0 0
      %4191 = vmatprep.subr.bf16.mxu0 0
      %4192 = vmatpush2.bf16.msra.mxu0 0
      %4193 = vmatprep.subr.bf16.mxu0 0
      %4194 = vmatpush2.bf16.msra.mxu0 0
      %4195 = vmatprep.mubr.bf16.mxu0 0
      %4196 = vmatmul.mubr.bf16.gmra.mxu0 %v844
      %v4197 = vpop.f32.mrf.mxu0
      %v4198 = vadd.f32 0.0, %v4197
      %v4199 = vpop.f32.mrf.mxu0
      %v4200 = vpop.f32.mrf.mxu0
      %v4201 = vpop.f32.mrf.mxu0
      %4202 = vdwg.mxu0
      %v4203 = vpack.c.bf16 %v4198, %v4198
      %s4204 = scalar_lea.vmem %s4, 64
      %v4205 = vld [vmem:[%s4204] sm:$0xf]
      %v4206 = vld [vmem:[%s4204 + $0x4] sm:$0xf]
      %v4207 = vld [vmem:[%s4204 + $0x8] sm:$0xf]
      %v4208 = vld [vmem:[%s4204 + $0xc] sm:$0xf]
      %s4209 = scalar_lea.vmem %s5, 4
      %v4210 = vld [vmem:[%s4209] sm:$0x1]
      %v4212 = vlaneseq
      %v4213 = vshrl.u32 %v4212, 7
      %v4214 = vsub.s32 0, %v4213
      %v4215 = vrot.slane %v4210, %v4214
      %v4221 = vunpack.c.l.b16 %v4205
      %v4222 = vunpack.c.l.b16 %v4206
      %v4223 = vunpack.c.l.b16 %v4207
      %v4224 = vunpack.c.l.b16 %v4208
      %v4225 = vpack.c.b16 %v4222, %v4221
      %v4226 = vpack.c.b16 %v4224, %v4223
      %v4230 = vsel %vm910, %v4159, 0
      %v4233 = vsel %vm910, %v4160, 0
      %v4236 = vsel %vm910, %v4161, 0
      %v4239 = vsel %vm910, %v4162, 0
      %4241 = vmatprep.subr.bf16.mxu0 0
      %4242 = vmatpush1.bf16.msra.mxu0 0
      %4243 = vmatprep.subr.bf16.mxu0 0
      %4244 = vmatpush1.bf16.msra.mxu0 0
      %4245 = vmatprep.subr.bf16.mxu0 0
      %4246 = vmatpush1.bf16.msra.mxu0 0
      %4247 = vmatprep.subr.bf16.mxu0 0
      %4248 = vmatpush1.bf16.msra.mxu0 0
      %4249 = vmatprep.subr.bf16.mxu0 0
      %4250 = vmatpush1.bf16.msra.mxu0 0
      %4251 = vmatprep.subr.bf16.mxu0 0
      %4252 = vmatpush1.bf16.msra.mxu0 0
      %4253 = vmatprep.subr.bf16.mxu0 0
      %4254 = vmatpush1.bf16.msra.mxu0 %v4226
      %4255 = vmatprep.subr.bf16.mxu0 0
      %4256 = vmatpush1.bf16.msra.mxu0 %v4225
      %4257 = vmatprep.subr.bf16.mxu0 0
      %4258 = vmatpush2.bf16.msra.mxu0 0
      %4259 = vmatprep.subr.bf16.mxu0 0
      %4260 = vmatpush2.bf16.msra.mxu0 0
      %4261 = vmatprep.subr.bf16.mxu0 0
      %4262 = vmatpush2.bf16.msra.mxu0 0
      %4263 = vmatprep.subr.bf16.mxu0 0
      %4264 = vmatpush2.bf16.msra.mxu0 0
      %4265 = vmatprep.subr.bf16.mxu0 0
      %4266 = vmatpush2.bf16.msra.mxu0 0
      %4267 = vmatprep.subr.bf16.mxu0 0
      %4268 = vmatpush2.bf16.msra.mxu0 0
      %4269 = vmatprep.subr.bf16.mxu0 0
      %4270 = vmatpush2.bf16.msra.mxu0 0
      %4271 = vmatprep.subr.bf16.mxu0 0
      %4272 = vmatpush2.bf16.msra.mxu0 0
      %4273 = vmatprep.mubr.bf16.mxu0 0
      %4274 = vmatmul.mubr.bf16.gmra.mxu0 %v4230
      %v4275 = vpop.f32.mrf.mxu0
      %v4276 = vadd.f32 %v4215, %v4275
      %v4277 = vpop.f32.mrf.mxu0
      %v4278 = vpop.f32.mrf.mxu0
      %v4279 = vadd.f32 %v4215, %v4278
      %v4280 = vpop.f32.mrf.mxu0
      %4281 = vmatprep.mubr.bf16.mxu0 0
      %4282 = vmatmul.mubr.bf16.gmra.mxu0 %v4233
      %v4283 = vpop.f32.mrf.mxu0
      %v4284 = vadd.f32 %v4215, %v4283
      %v4285 = vpop.f32.mrf.mxu0
      %v4286 = vpop.f32.mrf.mxu0
      %v4287 = vadd.f32 %v4215, %v4286
      %v4288 = vpop.f32.mrf.mxu0
      %4289 = vmatprep.mubr.bf16.mxu0 0
      %4290 = vmatmul.mubr.bf16.gmra.mxu0 %v4236
      %v4291 = vpop.f32.mrf.mxu0
      %v4292 = vadd.f32 %v4215, %v4291
      %v4293 = vpop.f32.mrf.mxu0
      %v4294 = vpop.f32.mrf.mxu0
      %v4295 = vadd.f32 %v4215, %v4294
      %v4296 = vpop.f32.mrf.mxu0
      %4297 = vmatprep.mubr.bf16.mxu0 0
      %4298 = vmatmul.mubr.bf16.gmra.mxu0 %v4239
      %v4299 = vpop.f32.mrf.mxu0
      %v4300 = vadd.f32 %v4215, %v4299
      %v4301 = vpop.f32.mrf.mxu0
      %v4302 = vpop.f32.mrf.mxu0
      %v4303 = vadd.f32 %v4215, %v4302
      %v4304 = vpop.f32.mrf.mxu0
      %4305 = vdwg.mxu0
      %s4306 = scalar_lea.vmem %s6, 64
      %v4307 = vld [vmem:[%s4306] sm:$0xf]
      %v4308 = vld [vmem:[%s4306 + $0x4] sm:$0xf]
      %v4309 = vld [vmem:[%s4306 + $0x8] sm:$0xf]
      %v4310 = vld [vmem:[%s4306 + $0xc] sm:$0xf]
      %s4311 = scalar_lea.vmem %s7, 4
      %v4312 = vld [vmem:[%s4311] sm:$0x1]
      %v4314 = vlaneseq
      %v4315 = vshrl.u32 %v4314, 7
      %v4316 = vsub.s32 0, %v4315
      %v4317 = vrot.slane %v4312, %v4316
      %v4323 = vunpack.c.l.b16 %v4307
      %v4324 = vunpack.c.l.b16 %v4308
      %v4325 = vunpack.c.l.b16 %v4309
      %v4326 = vunpack.c.l.b16 %v4310
      %v4327 = vpack.c.b16 %v4324, %v4323
      %v4328 = vpack.c.b16 %v4326, %v4325
      %v4332 = vsel %vm910, %v4203, 0
      %4334 = vmatprep.subr.bf16.mxu0 0
      %4335 = vmatpush1.bf16.msra.mxu0 0
      %4336 = vmatprep.subr.bf16.mxu0 0
      %4337 = vmatpush1.bf16.msra.mxu0 0
      %4338 = vmatprep.subr.bf16.mxu0 0
      %4339 = vmatpush1.bf16.msra.mxu0 0
      %4340 = vmatprep.subr.bf16.mxu0 0
      %4341 = vmatpush1.bf16.msra.mxu0 0
      %4342 = vmatprep.subr.bf16.mxu0 0
      %4343 = vmatpush1.bf16.msra.mxu0 0
      %4344 = vmatprep.subr.bf16.mxu0 0
      %4345 = vmatpush1.bf16.msra.mxu0 0
      %4346 = vmatprep.subr.bf16.mxu0 0
      %4347 = vmatpush1.bf16.msra.mxu0 %v4328
      %4348 = vmatprep.subr.bf16.mxu0 0
      %4349 = vmatpush1.bf16.msra.mxu0 %v4327
      %4350 = vmatprep.subr.bf16.mxu0 0
      %4351 = vmatpush2.bf16.msra.mxu0 0
      %4352 = vmatprep.subr.bf16.mxu0 0
      %4353 = vmatpush2.bf16.msra.mxu0 0
      %4354 = vmatprep.subr.bf16.mxu0 0
      %4355 = vmatpush2.bf16.msra.mxu0 0
      %4356 = vmatprep.subr.bf16.mxu0 0
      %4357 = vmatpush2.bf16.msra.mxu0 0
      %4358 = vmatprep.subr.bf16.mxu0 0
      %4359 = vmatpush2.bf16.msra.mxu0 0
      %4360 = vmatprep.subr.bf16.mxu0 0
      %4361 = vmatpush2.bf16.msra.mxu0 0
      %4362 = vmatprep.subr.bf16.mxu0 0
      %4363 = vmatpush2.bf16.msra.mxu0 0
      %4364 = vmatprep.subr.bf16.mxu0 0
      %4365 = vmatpush2.bf16.msra.mxu0 0
      %4366 = vmatprep.mubr.bf16.mxu0 0
      %4367 = vmatmul.mubr.bf16.gmra.mxu0 %v4332
      %v4368 = vpop.f32.mrf.mxu0
      %v4369 = vadd.f32 %v4317, %v4368
      %v4370 = vpop.f32.mrf.mxu0
      %v4371 = vpop.f32.mrf.mxu0
      %v4372 = vpop.f32.mrf.mxu0
      %4373 = vdwg.mxu0
      %s4374 = scalar_lea.vmem %s8, 64
      %v4375 = vld [vmem:[%s4374] sm:$0xf]
      %v4376 = vld [vmem:[%s4374 + $0x4] sm:$0xf]
      %v4377 = vld [vmem:[%s4374 + $0x8] sm:$0xf]
      %v4378 = vld [vmem:[%s4374 + $0xc] sm:$0xf]
      %s4379 = scalar_lea.vmem %s9, 4
      %v4380 = vld [vmem:[%s4379] sm:$0x1]
      %v4382 = vlaneseq
      %v4383 = vshrl.u32 %v4382, 7
      %v4384 = vsub.s32 0, %v4383
      %v4385 = vrot.slane %v4380, %v4384
      %v4391 = vunpack.c.l.b16 %v4375
      %v4392 = vunpack.c.l.b16 %v4376
      %v4393 = vunpack.c.l.b16 %v4377
      %v4394 = vunpack.c.l.b16 %v4378
      %v4395 = vpack.c.b16 %v4392, %v4391
      %v4396 = vpack.c.b16 %v4394, %v4393
      %4399 = vmatprep.subr.bf16.mxu0 0
      %4400 = vmatpush1.bf16.msra.mxu0 0
      %4401 = vmatprep.subr.bf16.mxu0 0
      %4402 = vmatpush1.bf16.msra.mxu0 0
      %4403 = vmatprep.subr.bf16.mxu0 0
      %4404 = vmatpush1.bf16.msra.mxu0 0
      %4405 = vmatprep.subr.bf16.mxu0 0
      %4406 = vmatpush1.bf16.msra.mxu0 0
      %4407 = vmatprep.subr.bf16.mxu0 0
      %4408 = vmatpush1.bf16.msra.mxu0 0
      %4409 = vmatprep.subr.bf16.mxu0 0
      %4410 = vmatpush1.bf16.msra.mxu0 0
      %4411 = vmatprep.subr.bf16.mxu0 0
      %4412 = vmatpush1.bf16.msra.mxu0 %v4396
      %4413 = vmatprep.subr.bf16.mxu0 0
      %4414 = vmatpush1.bf16.msra.mxu0 %v4395
      %4415 = vmatprep.subr.bf16.mxu0 0
      %4416 = vmatpush2.bf16.msra.mxu0 0
      %4417 = vmatprep.subr.bf16.mxu0 0
      %4418 = vmatpush2.bf16.msra.mxu0 0
      %4419 = vmatprep.subr.bf16.mxu0 0
      %4420 = vmatpush2.bf16.msra.mxu0 0
      %4421 = vmatprep.subr.bf16.mxu0 0
      %4422 = vmatpush2.bf16.msra.mxu0 0
      %4423 = vmatprep.subr.bf16.mxu0 0
      %4424 = vmatpush2.bf16.msra.mxu0 0
      %4425 = vmatprep.subr.bf16.mxu0 0
      %4426 = vmatpush2.bf16.msra.mxu0 0
      %4427 = vmatprep.subr.bf16.mxu0 0
      %4428 = vmatpush2.bf16.msra.mxu0 0
      %4429 = vmatprep.subr.bf16.mxu0 0
      %4430 = vmatpush2.bf16.msra.mxu0 0
      %4431 = vmatprep.mubr.bf16.mxu0 0
      %4432 = vmatmul.mubr.bf16.gmra.mxu0 %v4332
      %v4433 = vpop.f32.mrf.mxu0
      %v4434 = vadd.f32 %v4385, %v4433
      %v4435 = vpop.f32.mrf.mxu0
      %v4436 = vpop.f32.mrf.mxu0
      %v4437 = vpop.f32.mrf.mxu0
      %4438 = vdwg.mxu0
      %v4440 = vsel %vm1117, %v4276, 0
      %v4443 = vsel %vm1117, %v4279, 0
      %v4446 = vsel %vm1117, %v4284, 0
      %v4449 = vsel %vm1117, %v4287, 0
      %v4452 = vsel %vm1117, %v4292, 0
      %v4455 = vsel %vm1117, %v4295, 0
      %v4458 = vsel %vm1117, %v4300, 0
      %v4461 = vsel %vm1117, %v4303, 0
      %v4464 = vsel %vm1117, %v4369, 0
      %4466 = vmatprep.subr.mxu0 0.0
      %4467 = vmatpush1.xpose.msra.mxu0 0.0
      %4468 = vmatprep.subr.mxu0 0.0
      %4469 = vmatpush1.xpose.msra.mxu0 0.0
      %4470 = vmatprep.subr.mxu0 0.0
      %4471 = vmatpush1.xpose.msra.mxu0 0.0
      %4472 = vmatprep.subr.mxu0 0.0
      %4473 = vmatpush1.xpose.msra.mxu0 0.0
      %4474 = vmatprep.subr.mxu0 0.0
      %4475 = vmatpush1.xpose.msra.mxu0 0.0
      %4476 = vmatprep.subr.mxu0 0.0
      %4477 = vmatpush1.xpose.msra.mxu0 0.0
      %4478 = vmatprep.subr.mxu0 0.0
      %4479 = vmatpush1.xpose.msra.mxu0 0.0
      %4480 = vmatprep.subr.mxu0 0.0
      %4481 = vmatpush1.xpose.msra.mxu0 0.0
      %4482 = vmatprep.subr.mxu0 0.0
      %4483 = vmatpush1.xpose.msra.mxu0 0.0
      %4484 = vmatprep.subr.mxu0 0.0
      %4485 = vmatpush1.xpose.msra.mxu0 0.0
      %4486 = vmatprep.subr.mxu0 0.0
      %4487 = vmatpush1.xpose.msra.mxu0 0.0
      %4488 = vmatprep.subr.mxu0 0.0
      %4489 = vmatpush1.xpose.msra.mxu0 0.0
      %4490 = vmatprep.subr.mxu0 0.0
      %4491 = vmatpush1.xpose.msra.mxu0 0.0
      %4492 = vmatprep.subr.mxu0 0.0
      %4493 = vmatpush1.xpose.msra.mxu0 0.0
      %4494 = vmatprep.subr.mxu0 0.0
      %4495 = vmatpush1.xpose.msra.mxu0 0.0
      %4496 = vmatprep.subr.mxu0 0.0
      %4497 = vmatpush1.xpose.msra.mxu0 %v4464
      %4498 = vmatprep.subr.mxu0 0.0
      %4499 = vmatpush2.xpose.msra.mxu0 0.0
      %4500 = vmatprep.subr.mxu0 0.0
      %4501 = vmatpush2.xpose.msra.mxu0 0.0
      %4502 = vmatprep.subr.mxu0 0.0
      %4503 = vmatpush2.xpose.msra.mxu0 0.0
      %4504 = vmatprep.subr.mxu0 0.0
      %4505 = vmatpush2.xpose.msra.mxu0 0.0
      %4506 = vmatprep.subr.mxu0 0.0
      %4507 = vmatpush2.xpose.msra.mxu0 0.0
      %4508 = vmatprep.subr.mxu0 0.0
      %4509 = vmatpush2.xpose.msra.mxu0 0.0
      %4510 = vmatprep.subr.mxu0 0.0
      %4511 = vmatpush2.xpose.msra.mxu0 0.0
      %4512 = vmatprep.subr.mxu0 0.0
      %4513 = vmatpush2.xpose.msra.mxu0 0.0
      %4514 = vmatprep.subr.mxu0 0.0
      %4515 = vmatpush2.xpose.msra.mxu0 0.0
      %4516 = vmatprep.subr.mxu0 0.0
      %4517 = vmatpush2.xpose.msra.mxu0 0.0
      %4518 = vmatprep.subr.mxu0 0.0
      %4519 = vmatpush2.xpose.msra.mxu0 0.0
      %4520 = vmatprep.subr.mxu0 0.0
      %4521 = vmatpush2.xpose.msra.mxu0 0.0
      %4522 = vmatprep.subr.mxu0 0.0
      %4523 = vmatpush2.xpose.msra.mxu0 0.0
      %4524 = vmatprep.subr.mxu0 0.0
      %4525 = vmatpush2.xpose.msra.mxu0 0.0
      %4526 = vmatprep.subr.mxu0 0.0
      %4527 = vmatpush2.xpose.msra.mxu0 0.0
      %4528 = vmatprep.subr.mxu0 0.0
      %4529 = vmatpush2.xpose.msra.mxu0 0.0
      %4530 = vmatprep.mubr.f32.mxu0 0.0
      %4531 = vmatmul.mubr.f32.gmra.mxu0 %v4440
      %v4532 = vpop.f32.mrf.mxu0
      %v4533 = vadd.f32 0.0, %v4532
      %v4534 = vpop.f32.mrf.mxu0
      %4535 = vmatprep.mubr.f32.mxu0 0.0
      %4536 = vmatmul.mubr.f32.gmra.mxu0 %v4443
      %v4537 = vpop.f32.mrf.mxu0
      %v4538 = vadd.f32 0.0, %v4537
      %v4539 = vpop.f32.mrf.mxu0
      %4540 = vmatprep.mubr.f32.mxu0 0.0
      %4541 = vmatmul.mubr.f32.gmra.mxu0 %v4446
      %v4542 = vpop.f32.mrf.mxu0
      %v4543 = vadd.f32 0.0, %v4542
      %v4544 = vpop.f32.mrf.mxu0
      %4545 = vmatprep.mubr.f32.mxu0 0.0
      %4546 = vmatmul.mubr.f32.gmra.mxu0 %v4449
      %v4547 = vpop.f32.mrf.mxu0
      %v4548 = vadd.f32 0.0, %v4547
      %v4549 = vpop.f32.mrf.mxu0
      %4550 = vmatprep.mubr.f32.mxu0 0.0
      %4551 = vmatmul.mubr.f32.gmra.mxu0 %v4452
      %v4552 = vpop.f32.mrf.mxu0
      %v4553 = vadd.f32 0.0, %v4552
      %v4554 = vpop.f32.mrf.mxu0
      %4555 = vmatprep.mubr.f32.mxu0 0.0
      %4556 = vmatmul.mubr.f32.gmra.mxu0 %v4455
      %v4557 = vpop.f32.mrf.mxu0
      %v4558 = vadd.f32 0.0, %v4557
      %v4559 = vpop.f32.mrf.mxu0
      %4560 = vmatprep.mubr.f32.mxu0 0.0
      %4561 = vmatmul.mubr.f32.gmra.mxu0 %v4458
      %v4562 = vpop.f32.mrf.mxu0
      %v4563 = vadd.f32 0.0, %v4562
      %v4564 = vpop.f32.mrf.mxu0
      %4565 = vmatprep.mubr.f32.mxu0 0.0
      %4566 = vmatmul.mubr.f32.gmra.mxu0 %v4461
      %v4567 = vpop.f32.mrf.mxu0
      %v4568 = vadd.f32 0.0, %v4567
      %v4569 = vpop.f32.mrf.mxu0
      %4570 = vdwg.mxu0
      %v4571 = vsel %vm1250, %v4533, -inf
      %4572 = vmax.xlane.f32.xlu0 %v4571
      %v4573 = vpop.xlane.xlu0 %4572
      %v4574 = vsel %vm1250, %v4538, -inf
      %4575 = vmax.xlane.f32.xlu0 %v4574
      %v4576 = vpop.xlane.xlu0 %4575
      %v4577 = vsel %vm1250, %v4543, -inf
      %4578 = vmax.xlane.f32.xlu0 %v4577
      %v4579 = vpop.xlane.xlu0 %4578
      %v4580 = vsel %vm1250, %v4548, -inf
      %4581 = vmax.xlane.f32.xlu0 %v4580
      %v4582 = vpop.xlane.xlu0 %4581
      %v4583 = vsel %vm1250, %v4553, -inf
      %4584 = vmax.xlane.f32.xlu0 %v4583
      %v4585 = vpop.xlane.xlu0 %4584
      %v4586 = vsel %vm1250, %v4558, -inf
      %4587 = vmax.xlane.f32.xlu0 %v4586
      %v4588 = vpop.xlane.xlu0 %4587
      %v4589 = vsel %vm1250, %v4563, -inf
      %4590 = vmax.xlane.f32.xlu0 %v4589
      %v4591 = vpop.xlane.xlu0 %4590
      %v4592 = vsel %vm1250, %v4568, -inf
      %4593 = vmax.xlane.f32.xlu0 %v4592
      %v4594 = vpop.xlane.xlu0 %4593
      %v4595 = vsub.f32 %v4533, %v4573
      %v4596 = vsub.f32 %v4538, %v4576
      %v4597 = vsub.f32 %v4543, %v4579
      %v4598 = vsub.f32 %v4548, %v4582
      %v4599 = vsub.f32 %v4553, %v4585
      %v4600 = vsub.f32 %v4558, %v4588
      %v4601 = vsub.f32 %v4563, %v4591
      %v4602 = vsub.f32 %v4568, %v4594
      %v4603 = vmul.f32 %v4595, 1.442695
      %v4604 = vpow.pop %v4603
      %v4605 = vmul.f32 %v4596, 1.442695
      %v4606 = vpow.pop %v4605
      %v4607 = vmul.f32 %v4597, 1.442695
      %v4608 = vpow.pop %v4607
      %v4609 = vmul.f32 %v4598, 1.442695
      %v4610 = vpow.pop %v4609
      %v4611 = vmul.f32 %v4599, 1.442695
      %v4612 = vpow.pop %v4611
      %v4613 = vmul.f32 %v4600, 1.442695
      %v4614 = vpow.pop %v4613
      %v4615 = vmul.f32 %v4601, 1.442695
      %v4616 = vpow.pop %v4615
      %v4617 = vmul.f32 %v4602, 1.442695
      %v4618 = vpow.pop %v4617
      %v4619 = vsel %vm1250, %v4604, 0.0
      %4620 = vadd.xlane.f32.xlu0 %v4619
      %v4621 = vpop.xlane.xlu0 %4620
      %v4622 = vsel %vm1250, %v4606, 0.0
      %4623 = vadd.xlane.f32.xlu0 %v4622
      %v4624 = vpop.xlane.xlu0 %4623
      %v4625 = vsel %vm1250, %v4608, 0.0
      %4626 = vadd.xlane.f32.xlu0 %v4625
      %v4627 = vpop.xlane.xlu0 %4626
      %v4628 = vsel %vm1250, %v4610, 0.0
      %4629 = vadd.xlane.f32.xlu0 %v4628
      %v4630 = vpop.xlane.xlu0 %4629
      %v4631 = vsel %vm1250, %v4612, 0.0
      %4632 = vadd.xlane.f32.xlu0 %v4631
      %v4633 = vpop.xlane.xlu0 %4632
      %v4634 = vsel %vm1250, %v4614, 0.0
      %4635 = vadd.xlane.f32.xlu0 %v4634
      %v4636 = vpop.xlane.xlu0 %4635
      %v4637 = vsel %vm1250, %v4616, 0.0
      %4638 = vadd.xlane.f32.xlu0 %v4637
      %v4639 = vpop.xlane.xlu0 %4638
      %v4640 = vsel %vm1250, %v4618, 0.0
      %4641 = vadd.xlane.f32.xlu0 %v4640
      %v4642 = vpop.xlane.xlu0 %4641
      %v4643 = vrcp.pop %v4621
      %v4644 = vmul.f32 %v4604, %v4643
      %v4645 = vrcp.pop %v4624
      %v4646 = vmul.f32 %v4606, %v4645
      %v4647 = vrcp.pop %v4627
      %v4648 = vmul.f32 %v4608, %v4647
      %v4649 = vrcp.pop %v4630
      %v4650 = vmul.f32 %v4610, %v4649
      %v4651 = vrcp.pop %v4633
      %v4652 = vmul.f32 %v4612, %v4651
      %v4653 = vrcp.pop %v4636
      %v4654 = vmul.f32 %v4614, %v4653
      %v4655 = vrcp.pop %v4639
      %v4656 = vmul.f32 %v4616, %v4655
      %v4657 = vrcp.pop %v4642
      %v4658 = vmul.f32 %v4618, %v4657
      %v4660 = vsel %vm1250, %v4644, 0
      %v4663 = vsel %vm1250, %v4646, 0
      %v4666 = vsel %vm1250, %v4648, 0
      %v4669 = vsel %vm1250, %v4650, 0
      %v4672 = vsel %vm1250, %v4652, 0
      %v4675 = vsel %vm1250, %v4654, 0
      %v4678 = vsel %vm1250, %v4656, 0
      %v4681 = vsel %vm1250, %v4658, 0
      %v4684 = vsel %vm1363, %v4434, 0
      %4686 = vmatprep.subr.mxu0 0.0
      %4687 = vmatpush1.msra.mxu0 0.0
      %4688 = vmatprep.subr.mxu0 0.0
      %4689 = vmatpush1.msra.mxu0 0.0
      %4690 = vmatprep.subr.mxu0 0.0
      %4691 = vmatpush1.msra.mxu0 0.0
      %4692 = vmatprep.subr.mxu0 0.0
      %4693 = vmatpush1.msra.mxu0 0.0
      %4694 = vmatprep.subr.mxu0 0.0
      %4695 = vmatpush1.msra.mxu0 0.0
      %4696 = vmatprep.subr.mxu0 0.0
      %4697 = vmatpush1.msra.mxu0 0.0
      %4698 = vmatprep.subr.mxu0 0.0
      %4699 = vmatpush1.msra.mxu0 0.0
      %4700 = vmatprep.subr.mxu0 0.0
      %4701 = vmatpush1.msra.mxu0 0.0
      %4702 = vmatprep.subr.mxu0 0.0
      %4703 = vmatpush1.msra.mxu0 0.0
      %4704 = vmatprep.subr.mxu0 0.0
      %4705 = vmatpush1.msra.mxu0 0.0
      %4706 = vmatprep.subr.mxu0 0.0
      %4707 = vmatpush1.msra.mxu0 0.0
      %4708 = vmatprep.subr.mxu0 0.0
      %4709 = vmatpush1.msra.mxu0 0.0
      %4710 = vmatprep.subr.mxu0 0.0
      %4711 = vmatpush1.msra.mxu0 0.0
      %4712 = vmatprep.subr.mxu0 0.0
      %4713 = vmatpush1.msra.mxu0 0.0
      %4714 = vmatprep.subr.mxu0 0.0
      %4715 = vmatpush1.msra.mxu0 0.0
      %4716 = vmatprep.subr.mxu0 0.0
      %4717 = vmatpush1.msra.mxu0 %v4684
      %4718 = vmatprep.subr.mxu0 0.0
      %4719 = vmatpush2.msra.mxu0 0.0
      %4720 = vmatprep.subr.mxu0 0.0
      %4721 = vmatpush2.msra.mxu0 0.0
      %4722 = vmatprep.subr.mxu0 0.0
      %4723 = vmatpush2.msra.mxu0 0.0
      %4724 = vmatprep.subr.mxu0 0.0
      %4725 = vmatpush2.msra.mxu0 0.0
      %4726 = vmatprep.subr.mxu0 0.0
      %4727 = vmatpush2.msra.mxu0 0.0
      %4728 = vmatprep.subr.mxu0 0.0
      %4729 = vmatpush2.msra.mxu0 0.0
      %4730 = vmatprep.subr.mxu0 0.0
      %4731 = vmatpush2.msra.mxu0 0.0
      %4732 = vmatprep.subr.mxu0 0.0
      %4733 = vmatpush2.msra.mxu0 0.0
      %4734 = vmatprep.subr.mxu0 0.0
      %4735 = vmatpush2.msra.mxu0 0.0
      %4736 = vmatprep.subr.mxu0 0.0
      %4737 = vmatpush2.msra.mxu0 0.0
      %4738 = vmatprep.subr.mxu0 0.0
      %4739 = vmatpush2.msra.mxu0 0.0
      %4740 = vmatprep.subr.mxu0 0.0
      %4741 = vmatpush2.msra.mxu0 0.0
      %4742 = vmatprep.subr.mxu0 0.0
      %4743 = vmatpush2.msra.mxu0 0.0
      %4744 = vmatprep.subr.mxu0 0.0
      %4745 = vmatpush2.msra.mxu0 0.0
      %4746 = vmatprep.subr.mxu0 0.0
      %4747 = vmatpush2.msra.mxu0 0.0
      %4748 = vmatprep.subr.mxu0 0.0
      %4749 = vmatpush2.msra.mxu0 0.0
      %4750 = vmatprep.mubr.f32.mxu0 0.0
      %4751 = vmatmul.mubr.f32.gmra.mxu0 %v4660
      %v4752 = vpop.f32.mrf.mxu0
      %v4753 = vadd.f32 0.0, %v4752
      %v4754 = vpop.f32.mrf.mxu0
      %4755 = vmatprep.mubr.f32.mxu0 0.0
      %4756 = vmatmul.mubr.f32.gmra.mxu0 %v4663
      %v4757 = vpop.f32.mrf.mxu0
      %v4758 = vadd.f32 0.0, %v4757
      %v4759 = vpop.f32.mrf.mxu0
      %4760 = vmatprep.mubr.f32.mxu0 0.0
      %4761 = vmatmul.mubr.f32.gmra.mxu0 %v4666
      %v4762 = vpop.f32.mrf.mxu0
      %v4763 = vadd.f32 0.0, %v4762
      %v4764 = vpop.f32.mrf.mxu0
      %4765 = vmatprep.mubr.f32.mxu0 0.0
      %4766 = vmatmul.mubr.f32.gmra.mxu0 %v4669
      %v4767 = vpop.f32.mrf.mxu0
      %v4768 = vadd.f32 0.0, %v4767
      %v4769 = vpop.f32.mrf.mxu0
      %4770 = vmatprep.mubr.f32.mxu0 0.0
      %4771 = vmatmul.mubr.f32.gmra.mxu0 %v4672
      %v4772 = vpop.f32.mrf.mxu0
      %v4773 = vadd.f32 0.0, %v4772
      %v4774 = vpop.f32.mrf.mxu0
      %4775 = vmatprep.mubr.f32.mxu0 0.0
      %4776 = vmatmul.mubr.f32.gmra.mxu0 %v4675
      %v4777 = vpop.f32.mrf.mxu0
      %v4778 = vadd.f32 0.0, %v4777
      %v4779 = vpop.f32.mrf.mxu0
      %4780 = vmatprep.mubr.f32.mxu0 0.0
      %4781 = vmatmul.mubr.f32.gmra.mxu0 %v4678
      %v4782 = vpop.f32.mrf.mxu0
      %v4783 = vadd.f32 0.0, %v4782
      %v4784 = vpop.f32.mrf.mxu0
      %4785 = vmatprep.mubr.f32.mxu0 0.0
      %4786 = vmatmul.mubr.f32.gmra.mxu0 %v4681
      %v4787 = vpop.f32.mrf.mxu0
      %v4788 = vadd.f32 0.0, %v4787
      %v4789 = vpop.f32.mrf.mxu0
      %4790 = vdwg.mxu0
      %v4791 = vpack.c.bf16 %v4758, %v4753
      %v4792 = vpack.c.bf16 %v4768, %v4763
      %v4793 = vpack.c.bf16 %v4778, %v4773
      %v4794 = vpack.c.bf16 %v4788, %v4783
      %s4795 = scalar_lea.vmem %s10, 32
      %v4796 = vld [vmem:[%s4795] sm:$0xf]
      %v4797 = vld [vmem:[%s4795 + $0x4] sm:$0xf]
      %s4798 = scalar_lea.vmem %s4, 80
      %v4799 = vld [vmem:[%s4798] sm:$0xf]
      %v4800 = vld [vmem:[%s4798 + $0x4] sm:$0xf]
      %v4801 = vld [vmem:[%s4798 + $0x8] sm:$0xf]
      %v4802 = vld [vmem:[%s4798 + $0xc] sm:$0xf]
      %s4803 = scalar_lea.vmem %s5, 5
      %v4804 = vld [vmem:[%s4803] sm:$0x1]
      %v4806 = vlaneseq
      %v4807 = vshrl.u32 %v4806, 7
      %v4808 = vsub.s32 0, %v4807
      %v4809 = vrot.slane %v4804, %v4808
      %v4815 = vunpack.c.l.b16 %v4799
      %v4816 = vunpack.c.l.b16 %v4800
      %v4817 = vunpack.c.l.b16 %v4801
      %v4818 = vunpack.c.l.b16 %v4802
      %v4819 = vpack.c.b16 %v4816, %v4815
      %v4820 = vpack.c.b16 %v4818, %v4817
      %4823 = vmatprep.subr.bf16.mxu0 0
      %4824 = vmatpush1.bf16.msra.mxu0 0
      %4825 = vmatprep.subr.bf16.mxu0 0
      %4826 = vmatpush1.bf16.msra.mxu0 0
      %4827 = vmatprep.subr.bf16.mxu0 0
      %4828 = vmatpush1.bf16.msra.mxu0 0
      %4829 = vmatprep.subr.bf16.mxu0 0
      %4830 = vmatpush1.bf16.msra.mxu0 0
      %4831 = vmatprep.subr.bf16.mxu0 0
      %4832 = vmatpush1.bf16.msra.mxu0 0
      %4833 = vmatprep.subr.bf16.mxu0 0
      %4834 = vmatpush1.bf16.msra.mxu0 0
      %4835 = vmatprep.subr.bf16.mxu0 0
      %4836 = vmatpush1.bf16.msra.mxu0 %v4820
      %4837 = vmatprep.subr.bf16.mxu0 0
      %4838 = vmatpush1.bf16.msra.mxu0 %v4819
      %4839 = vmatprep.subr.bf16.mxu0 0
      %4840 = vmatpush2.bf16.msra.mxu0 0
      %4841 = vmatprep.subr.bf16.mxu0 0
      %4842 = vmatpush2.bf16.msra.mxu0 0
      %4843 = vmatprep.subr.bf16.mxu0 0
      %4844 = vmatpush2.bf16.msra.mxu0 0
      %4845 = vmatprep.subr.bf16.mxu0 0
      %4846 = vmatpush2.bf16.msra.mxu0 0
      %4847 = vmatprep.subr.bf16.mxu0 0
      %4848 = vmatpush2.bf16.msra.mxu0 0
      %4849 = vmatprep.subr.bf16.mxu0 0
      %4850 = vmatpush2.bf16.msra.mxu0 0
      %4851 = vmatprep.subr.bf16.mxu0 0
      %4852 = vmatpush2.bf16.msra.mxu0 0
      %4853 = vmatprep.subr.bf16.mxu0 0
      %4854 = vmatpush2.bf16.msra.mxu0 0
      %4855 = vmatprep.mubr.bf16.mxu0 0
      %4856 = vmatmul.mubr.bf16.gmra.mxu0 %v4230
      %v4857 = vpop.f32.mrf.mxu0
      %v4858 = vadd.f32 %v4809, %v4857
      %v4859 = vpop.f32.mrf.mxu0
      %v4860 = vpop.f32.mrf.mxu0
      %v4861 = vadd.f32 %v4809, %v4860
      %v4862 = vpop.f32.mrf.mxu0
      %4863 = vmatprep.mubr.bf16.mxu0 0
      %4864 = vmatmul.mubr.bf16.gmra.mxu0 %v4233
      %v4865 = vpop.f32.mrf.mxu0
      %v4866 = vadd.f32 %v4809, %v4865
      %v4867 = vpop.f32.mrf.mxu0
      %v4868 = vpop.f32.mrf.mxu0
      %v4869 = vadd.f32 %v4809, %v4868
      %v4870 = vpop.f32.mrf.mxu0
      %4871 = vmatprep.mubr.bf16.mxu0 0
      %4872 = vmatmul.mubr.bf16.gmra.mxu0 %v4236
      %v4873 = vpop.f32.mrf.mxu0
      %v4874 = vadd.f32 %v4809, %v4873
      %v4875 = vpop.f32.mrf.mxu0
      %v4876 = vpop.f32.mrf.mxu0
      %v4877 = vadd.f32 %v4809, %v4876
      %v4878 = vpop.f32.mrf.mxu0
      %4879 = vmatprep.mubr.bf16.mxu0 0
      %4880 = vmatmul.mubr.bf16.gmra.mxu0 %v4239
      %v4881 = vpop.f32.mrf.mxu0
      %v4882 = vadd.f32 %v4809, %v4881
      %v4883 = vpop.f32.mrf.mxu0
      %v4884 = vpop.f32.mrf.mxu0
      %v4885 = vadd.f32 %v4809, %v4884
      %v4886 = vpop.f32.mrf.mxu0
      %4887 = vdwg.mxu0
      %s4888 = scalar_lea.vmem %s6, 80
      %v4889 = vld [vmem:[%s4888] sm:$0xf]
      %v4890 = vld [vmem:[%s4888 + $0x4] sm:$0xf]
      %v4891 = vld [vmem:[%s4888 + $0x8] sm:$0xf]
      %v4892 = vld [vmem:[%s4888 + $0xc] sm:$0xf]
      %s4893 = scalar_lea.vmem %s7, 5
      %v4894 = vld [vmem:[%s4893] sm:$0x1]
      %v4896 = vlaneseq
      %v4897 = vshrl.u32 %v4896, 7
      %v4898 = vsub.s32 0, %v4897
      %v4899 = vrot.slane %v4894, %v4898
      %v4905 = vunpack.c.l.b16 %v4889
      %v4906 = vunpack.c.l.b16 %v4890
      %v4907 = vunpack.c.l.b16 %v4891
      %v4908 = vunpack.c.l.b16 %v4892
      %v4909 = vpack.c.b16 %v4906, %v4905
      %v4910 = vpack.c.b16 %v4908, %v4907
      %4913 = vmatprep.subr.bf16.mxu0 0
      %4914 = vmatpush1.bf16.msra.mxu0 0
      %4915 = vmatprep.subr.bf16.mxu0 0
      %4916 = vmatpush1.bf16.msra.mxu0 0
      %4917 = vmatprep.subr.bf16.mxu0 0
      %4918 = vmatpush1.bf16.msra.mxu0 0
      %4919 = vmatprep.subr.bf16.mxu0 0
      %4920 = vmatpush1.bf16.msra.mxu0 0
      %4921 = vmatprep.subr.bf16.mxu0 0
      %4922 = vmatpush1.bf16.msra.mxu0 0
      %4923 = vmatprep.subr.bf16.mxu0 0
      %4924 = vmatpush1.bf16.msra.mxu0 0
      %4925 = vmatprep.subr.bf16.mxu0 0
      %4926 = vmatpush1.bf16.msra.mxu0 %v4910
      %4927 = vmatprep.subr.bf16.mxu0 0
      %4928 = vmatpush1.bf16.msra.mxu0 %v4909
      %4929 = vmatprep.subr.bf16.mxu0 0
      %4930 = vmatpush2.bf16.msra.mxu0 0
      %4931 = vmatprep.subr.bf16.mxu0 0
      %4932 = vmatpush2.bf16.msra.mxu0 0
      %4933 = vmatprep.subr.bf16.mxu0 0
      %4934 = vmatpush2.bf16.msra.mxu0 0
      %4935 = vmatprep.subr.bf16.mxu0 0
      %4936 = vmatpush2.bf16.msra.mxu0 0
      %4937 = vmatprep.subr.bf16.mxu0 0
      %4938 = vmatpush2.bf16.msra.mxu0 0
      %4939 = vmatprep.subr.bf16.mxu0 0
      %4940 = vmatpush2.bf16.msra.mxu0 0
      %4941 = vmatprep.subr.bf16.mxu0 0
      %4942 = vmatpush2.bf16.msra.mxu0 0
      %4943 = vmatprep.subr.bf16.mxu0 0
      %4944 = vmatpush2.bf16.msra.mxu0 0
      %4945 = vmatprep.mubr.bf16.mxu0 0
      %4946 = vmatmul.mubr.bf16.gmra.mxu0 %v4332
      %v4947 = vpop.f32.mrf.mxu0
      %v4948 = vadd.f32 %v4899, %v4947
      %v4949 = vpop.f32.mrf.mxu0
      %v4950 = vpop.f32.mrf.mxu0
      %v4951 = vpop.f32.mrf.mxu0
      %4952 = vdwg.mxu0
      %s4953 = scalar_lea.vmem %s8, 80
      %v4954 = vld [vmem:[%s4953] sm:$0xf]
      %v4955 = vld [vmem:[%s4953 + $0x4] sm:$0xf]
      %v4956 = vld [vmem:[%s4953 + $0x8] sm:$0xf]
      %v4957 = vld [vmem:[%s4953 + $0xc] sm:$0xf]
      %s4958 = scalar_lea.vmem %s9, 5
      %v4959 = vld [vmem:[%s4958] sm:$0x1]
      %v4961 = vlaneseq
      %v4962 = vshrl.u32 %v4961, 7
      %v4963 = vsub.s32 0, %v4962
      %v4964 = vrot.slane %v4959, %v4963
      %v4970 = vunpack.c.l.b16 %v4954
      %v4971 = vunpack.c.l.b16 %v4955
      %v4972 = vunpack.c.l.b16 %v4956
      %v4973 = vunpack.c.l.b16 %v4957
      %v4974 = vpack.c.b16 %v4971, %v4970
      %v4975 = vpack.c.b16 %v4973, %v4972
      %4978 = vmatprep.subr.bf16.mxu0 0
      %4979 = vmatpush1.bf16.msra.mxu0 0
      %4980 = vmatprep.subr.bf16.mxu0 0
      %4981 = vmatpush1.bf16.msra.mxu0 0
      %4982 = vmatprep.subr.bf16.mxu0 0
      %4983 = vmatpush1.bf16.msra.mxu0 0
      %4984 = vmatprep.subr.bf16.mxu0 0
      %4985 = vmatpush1.bf16.msra.mxu0 0
      %4986 = vmatprep.subr.bf16.mxu0 0
      %4987 = vmatpush1.bf16.msra.mxu0 0
      %4988 = vmatprep.subr.bf16.mxu0 0
      %4989 = vmatpush1.bf16.msra.mxu0 0
      %4990 = vmatprep.subr.bf16.mxu0 0
      %4991 = vmatpush1.bf16.msra.mxu0 %v4975
      %4992 = vmatprep.subr.bf16.mxu0 0
      %4993 = vmatpush1.bf16.msra.mxu0 %v4974
      %4994 = vmatprep.subr.bf16.mxu0 0
      %4995 = vmatpush2.bf16.msra.mxu0 0
      %4996 = vmatprep.subr.bf16.mxu0 0
      %4997 = vmatpush2.bf16.msra.mxu0 0
      %4998 = vmatprep.subr.bf16.mxu0 0
      %4999 = vmatpush2.bf16.msra.mxu0 0
      %5000 = vmatprep.subr.bf16.mxu0 0
      %5001 = vmatpush2.bf16.msra.mxu0 0
      %5002 = vmatprep.subr.bf16.mxu0 0
      %5003 = vmatpush2.bf16.msra.mxu0 0
      %5004 = vmatprep.subr.bf16.mxu0 0
      %5005 = vmatpush2.bf16.msra.mxu0 0
      %5006 = vmatprep.subr.bf16.mxu0 0
      %5007 = vmatpush2.bf16.msra.mxu0 0
      %5008 = vmatprep.subr.bf16.mxu0 0
      %5009 = vmatpush2.bf16.msra.mxu0 0
      %5010 = vmatprep.mubr.bf16.mxu0 0
      %5011 = vmatmul.mubr.bf16.gmra.mxu0 %v4332
      %v5012 = vpop.f32.mrf.mxu0
      %v5013 = vadd.f32 %v4964, %v5012
      %v5014 = vpop.f32.mrf.mxu0
      %v5015 = vpop.f32.mrf.mxu0
      %v5016 = vpop.f32.mrf.mxu0
      %5017 = vdwg.mxu0
      %v5019 = vsel %vm1117, %v4858, 0
      %v5022 = vsel %vm1117, %v4861, 0
      %v5025 = vsel %vm1117, %v4866, 0
      %v5028 = vsel %vm1117, %v4869, 0
      %v5031 = vsel %vm1117, %v4874, 0
      %v5034 = vsel %vm1117, %v4877, 0
      %v5037 = vsel %vm1117, %v4882, 0
      %v5040 = vsel %vm1117, %v4885, 0
      %v5043 = vsel %vm1117, %v4948, 0
      %5045 = vmatprep.subr.mxu0 0.0
      %5046 = vmatpush1.xpose.msra.mxu0 0.0
      %5047 = vmatprep.subr.mxu0 0.0
      %5048 = vmatpush1.xpose.msra.mxu0 0.0
      %5049 = vmatprep.subr.mxu0 0.0
      %5050 = vmatpush1.xpose.msra.mxu0 0.0
      %5051 = vmatprep.subr.mxu0 0.0
      %5052 = vmatpush1.xpose.msra.mxu0 0.0
      %5053 = vmatprep.subr.mxu0 0.0
      %5054 = vmatpush1.xpose.msra.mxu0 0.0
      %5055 = vmatprep.subr.mxu0 0.0
      %5056 = vmatpush1.xpose.msra.mxu0 0.0
      %5057 = vmatprep.subr.mxu0 0.0
      %5058 = vmatpush1.xpose.msra.mxu0 0.0
      %5059 = vmatprep.subr.mxu0 0.0
      %5060 = vmatpush1.xpose.msra.mxu0 0.0
      %5061 = vmatprep.subr.mxu0 0.0
      %5062 = vmatpush1.xpose.msra.mxu0 0.0
      %5063 = vmatprep.subr.mxu0 0.0
      %5064 = vmatpush1.xpose.msra.mxu0 0.0
      %5065 = vmatprep.subr.mxu0 0.0
      %5066 = vmatpush1.xpose.msra.mxu0 0.0
      %5067 = vmatprep.subr.mxu0 0.0
      %5068 = vmatpush1.xpose.msra.mxu0 0.0
      %5069 = vmatprep.subr.mxu0 0.0
      %5070 = vmatpush1.xpose.msra.mxu0 0.0
      %5071 = vmatprep.subr.mxu0 0.0
      %5072 = vmatpush1.xpose.msra.mxu0 0.0
      %5073 = vmatprep.subr.mxu0 0.0
      %5074 = vmatpush1.xpose.msra.mxu0 0.0
      %5075 = vmatprep.subr.mxu0 0.0
      %5076 = vmatpush1.xpose.msra.mxu0 %v5043
      %5077 = vmatprep.subr.mxu0 0.0
      %5078 = vmatpush2.xpose.msra.mxu0 0.0
      %5079 = vmatprep.subr.mxu0 0.0
      %5080 = vmatpush2.xpose.msra.mxu0 0.0
      %5081 = vmatprep.subr.mxu0 0.0
      %5082 = vmatpush2.xpose.msra.mxu0 0.0
      %5083 = vmatprep.subr.mxu0 0.0
      %5084 = vmatpush2.xpose.msra.mxu0 0.0
      %5085 = vmatprep.subr.mxu0 0.0
      %5086 = vmatpush2.xpose.msra.mxu0 0.0
      %5087 = vmatprep.subr.mxu0 0.0
      %5088 = vmatpush2.xpose.msra.mxu0 0.0
      %5089 = vmatprep.subr.mxu0 0.0
      %5090 = vmatpush2.xpose.msra.mxu0 0.0
      %5091 = vmatprep.subr.mxu0 0.0
      %5092 = vmatpush2.xpose.msra.mxu0 0.0
      %5093 = vmatprep.subr.mxu0 0.0
      %5094 = vmatpush2.xpose.msra.mxu0 0.0
      %5095 = vmatprep.subr.mxu0 0.0
      %5096 = vmatpush2.xpose.msra.mxu0 0.0
      %5097 = vmatprep.subr.mxu0 0.0
      %5098 = vmatpush2.xpose.msra.mxu0 0.0
      %5099 = vmatprep.subr.mxu0 0.0
      %5100 = vmatpush2.xpose.msra.mxu0 0.0
      %5101 = vmatprep.subr.mxu0 0.0
      %5102 = vmatpush2.xpose.msra.mxu0 0.0
      %5103 = vmatprep.subr.mxu0 0.0
      %5104 = vmatpush2.xpose.msra.mxu0 0.0
      %5105 = vmatprep.subr.mxu0 0.0
      %5106 = vmatpush2.xpose.msra.mxu0 0.0
      %5107 = vmatprep.subr.mxu0 0.0
      %5108 = vmatpush2.xpose.msra.mxu0 0.0
      %5109 = vmatprep.mubr.f32.mxu0 0.0
      %5110 = vmatmul.mubr.f32.gmra.mxu0 %v5019
      %v5111 = vpop.f32.mrf.mxu0
      %v5112 = vadd.f32 0.0, %v5111
      %v5113 = vpop.f32.mrf.mxu0
      %5114 = vmatprep.mubr.f32.mxu0 0.0
      %5115 = vmatmul.mubr.f32.gmra.mxu0 %v5022
      %v5116 = vpop.f32.mrf.mxu0
      %v5117 = vadd.f32 0.0, %v5116
      %v5118 = vpop.f32.mrf.mxu0
      %5119 = vmatprep.mubr.f32.mxu0 0.0
      %5120 = vmatmul.mubr.f32.gmra.mxu0 %v5025
      %v5121 = vpop.f32.mrf.mxu0
      %v5122 = vadd.f32 0.0, %v5121
      %v5123 = vpop.f32.mrf.mxu0
      %5124 = vmatprep.mubr.f32.mxu0 0.0
      %5125 = vmatmul.mubr.f32.gmra.mxu0 %v5028
      %v5126 = vpop.f32.mrf.mxu0
      %v5127 = vadd.f32 0.0, %v5126
      %v5128 = vpop.f32.mrf.mxu0
      %5129 = vmatprep.mubr.f32.mxu0 0.0
      %5130 = vmatmul.mubr.f32.gmra.mxu0 %v5031
      %v5131 = vpop.f32.mrf.mxu0
      %v5132 = vadd.f32 0.0, %v5131
      %v5133 = vpop.f32.mrf.mxu0
      %5134 = vmatprep.mubr.f32.mxu0 0.0
      %5135 = vmatmul.mubr.f32.gmra.mxu0 %v5034
      %v5136 = vpop.f32.mrf.mxu0
      %v5137 = vadd.f32 0.0, %v5136
      %v5138 = vpop.f32.mrf.mxu0
      %5139 = vmatprep.mubr.f32.mxu0 0.0
      %5140 = vmatmul.mubr.f32.gmra.mxu0 %v5037
      %v5141 = vpop.f32.mrf.mxu0
      %v5142 = vadd.f32 0.0, %v5141
      %v5143 = vpop.f32.mrf.mxu0
      %5144 = vmatprep.mubr.f32.mxu0 0.0
      %5145 = vmatmul.mubr.f32.gmra.mxu0 %v5040
      %v5146 = vpop.f32.mrf.mxu0
      %v5147 = vadd.f32 0.0, %v5146
      %v5148 = vpop.f32.mrf.mxu0
      %5149 = vdwg.mxu0
      %v5150 = vsel %vm1250, %v5112, -inf
      %5151 = vmax.xlane.f32.xlu0 %v5150
      %v5152 = vpop.xlane.xlu0 %5151
      %v5153 = vsel %vm1250, %v5117, -inf
      %5154 = vmax.xlane.f32.xlu0 %v5153
      %v5155 = vpop.xlane.xlu0 %5154
      %v5156 = vsel %vm1250, %v5122, -inf
      %5157 = vmax.xlane.f32.xlu0 %v5156
      %v5158 = vpop.xlane.xlu0 %5157
      %v5159 = vsel %vm1250, %v5127, -inf
      %5160 = vmax.xlane.f32.xlu0 %v5159
      %v5161 = vpop.xlane.xlu0 %5160
      %v5162 = vsel %vm1250, %v5132, -inf
      %5163 = vmax.xlane.f32.xlu0 %v5162
      %v5164 = vpop.xlane.xlu0 %5163
      %v5165 = vsel %vm1250, %v5137, -inf
      %5166 = vmax.xlane.f32.xlu0 %v5165
      %v5167 = vpop.xlane.xlu0 %5166
      %v5168 = vsel %vm1250, %v5142, -inf
      %5169 = vmax.xlane.f32.xlu0 %v5168
      %v5170 = vpop.xlane.xlu0 %5169
      %v5171 = vsel %vm1250, %v5147, -inf
      %5172 = vmax.xlane.f32.xlu0 %v5171
      %v5173 = vpop.xlane.xlu0 %5172
      %v5174 = vsub.f32 %v5112, %v5152
      %v5175 = vsub.f32 %v5117, %v5155
      %v5176 = vsub.f32 %v5122, %v5158
      %v5177 = vsub.f32 %v5127, %v5161
      %v5178 = vsub.f32 %v5132, %v5164
      %v5179 = vsub.f32 %v5137, %v5167
      %v5180 = vsub.f32 %v5142, %v5170
      %v5181 = vsub.f32 %v5147, %v5173
      %v5182 = vmul.f32 %v5174, 1.442695
      %v5183 = vpow.pop %v5182
      %v5184 = vmul.f32 %v5175, 1.442695
      %v5185 = vpow.pop %v5184
      %v5186 = vmul.f32 %v5176, 1.442695
      %v5187 = vpow.pop %v5186
      %v5188 = vmul.f32 %v5177, 1.442695
      %v5189 = vpow.pop %v5188
      %v5190 = vmul.f32 %v5178, 1.442695
      %v5191 = vpow.pop %v5190
      %v5192 = vmul.f32 %v5179, 1.442695
      %v5193 = vpow.pop %v5192
      %v5194 = vmul.f32 %v5180, 1.442695
      %v5195 = vpow.pop %v5194
      %v5196 = vmul.f32 %v5181, 1.442695
      %v5197 = vpow.pop %v5196
      %v5198 = vsel %vm1250, %v5183, 0.0
      %5199 = vadd.xlane.f32.xlu0 %v5198
      %v5200 = vpop.xlane.xlu0 %5199
      %v5201 = vsel %vm1250, %v5185, 0.0
      %5202 = vadd.xlane.f32.xlu0 %v5201
      %v5203 = vpop.xlane.xlu0 %5202
      %v5204 = vsel %vm1250, %v5187, 0.0
      %5205 = vadd.xlane.f32.xlu0 %v5204
      %v5206 = vpop.xlane.xlu0 %5205
      %v5207 = vsel %vm1250, %v5189, 0.0
      %5208 = vadd.xlane.f32.xlu0 %v5207
      %v5209 = vpop.xlane.xlu0 %5208
      %v5210 = vsel %vm1250, %v5191, 0.0
      %5211 = vadd.xlane.f32.xlu0 %v5210
      %v5212 = vpop.xlane.xlu0 %5211
      %v5213 = vsel %vm1250, %v5193, 0.0
      %5214 = vadd.xlane.f32.xlu0 %v5213
      %v5215 = vpop.xlane.xlu0 %5214
      %v5216 = vsel %vm1250, %v5195, 0.0
      %5217 = vadd.xlane.f32.xlu0 %v5216
      %v5218 = vpop.xlane.xlu0 %5217
      %v5219 = vsel %vm1250, %v5197, 0.0
      %5220 = vadd.xlane.f32.xlu0 %v5219
      %v5221 = vpop.xlane.xlu0 %5220
      %v5222 = vrcp.pop %v5200
      %v5223 = vmul.f32 %v5183, %v5222
      %v5224 = vrcp.pop %v5203
      %v5225 = vmul.f32 %v5185, %v5224
      %v5226 = vrcp.pop %v5206
      %v5227 = vmul.f32 %v5187, %v5226
      %v5228 = vrcp.pop %v5209
      %v5229 = vmul.f32 %v5189, %v5228
      %v5230 = vrcp.pop %v5212
      %v5231 = vmul.f32 %v5191, %v5230
      %v5232 = vrcp.pop %v5215
      %v5233 = vmul.f32 %v5193, %v5232
      %v5234 = vrcp.pop %v5218
      %v5235 = vmul.f32 %v5195, %v5234
      %v5236 = vrcp.pop %v5221
      %v5237 = vmul.f32 %v5197, %v5236
      %v5239 = vsel %vm1250, %v5223, 0
      %v5242 = vsel %vm1250, %v5225, 0
      %v5245 = vsel %vm1250, %v5227, 0
      %v5248 = vsel %vm1250, %v5229, 0
      %v5251 = vsel %vm1250, %v5231, 0
      %v5254 = vsel %vm1250, %v5233, 0
      %v5257 = vsel %vm1250, %v5235, 0
      %v5260 = vsel %vm1250, %v5237, 0
      %v5263 = vsel %vm1363, %v5013, 0
      %5265 = vmatprep.subr.mxu0 0.0
      %5266 = vmatpush1.msra.mxu0 0.0
      %5267 = vmatprep.subr.mxu0 0.0
      %5268 = vmatpush1.msra.mxu0 0.0
      %5269 = vmatprep.subr.mxu0 0.0
      %5270 = vmatpush1.msra.mxu0 0.0
      %5271 = vmatprep.subr.mxu0 0.0
      %5272 = vmatpush1.msra.mxu0 0.0
      %5273 = vmatprep.subr.mxu0 0.0
      %5274 = vmatpush1.msra.mxu0 0.0
      %5275 = vmatprep.subr.mxu0 0.0
      %5276 = vmatpush1.msra.mxu0 0.0
      %5277 = vmatprep.subr.mxu0 0.0
      %5278 = vmatpush1.msra.mxu0 0.0
      %5279 = vmatprep.subr.mxu0 0.0
      %5280 = vmatpush1.msra.mxu0 0.0
      %5281 = vmatprep.subr.mxu0 0.0
      %5282 = vmatpush1.msra.mxu0 0.0
      %5283 = vmatprep.subr.mxu0 0.0
      %5284 = vmatpush1.msra.mxu0 0.0
      %5285 = vmatprep.subr.mxu0 0.0
      %5286 = vmatpush1.msra.mxu0 0.0
      %5287 = vmatprep.subr.mxu0 0.0
      %5288 = vmatpush1.msra.mxu0 0.0
      %5289 = vmatprep.subr.mxu0 0.0
      %5290 = vmatpush1.msra.mxu0 0.0
      %5291 = vmatprep.subr.mxu0 0.0
      %5292 = vmatpush1.msra.mxu0 0.0
      %5293 = vmatprep.subr.mxu0 0.0
      %5294 = vmatpush1.msra.mxu0 0.0
      %5295 = vmatprep.subr.mxu0 0.0
      %5296 = vmatpush1.msra.mxu0 %v5263
      %5297 = vmatprep.subr.mxu0 0.0
      %5298 = vmatpush2.msra.mxu0 0.0
      %5299 = vmatprep.subr.mxu0 0.0
      %5300 = vmatpush2.msra.mxu0 0.0
      %5301 = vmatprep.subr.mxu0 0.0
      %5302 = vmatpush2.msra.mxu0 0.0
      %5303 = vmatprep.subr.mxu0 0.0
      %5304 = vmatpush2.msra.mxu0 0.0
      %5305 = vmatprep.subr.mxu0 0.0
      %5306 = vmatpush2.msra.mxu0 0.0
      %5307 = vmatprep.subr.mxu0 0.0
      %5308 = vmatpush2.msra.mxu0 0.0
      %5309 = vmatprep.subr.mxu0 0.0
      %5310 = vmatpush2.msra.mxu0 0.0
      %5311 = vmatprep.subr.mxu0 0.0
      %5312 = vmatpush2.msra.mxu0 0.0
      %5313 = vmatprep.subr.mxu0 0.0
      %5314 = vmatpush2.msra.mxu0 0.0
      %5315 = vmatprep.subr.mxu0 0.0
      %5316 = vmatpush2.msra.mxu0 0.0
      %5317 = vmatprep.subr.mxu0 0.0
      %5318 = vmatpush2.msra.mxu0 0.0
      %5319 = vmatprep.subr.mxu0 0.0
      %5320 = vmatpush2.msra.mxu0 0.0
      %5321 = vmatprep.subr.mxu0 0.0
      %5322 = vmatpush2.msra.mxu0 0.0
      %5323 = vmatprep.subr.mxu0 0.0
      %5324 = vmatpush2.msra.mxu0 0.0
      %5325 = vmatprep.subr.mxu0 0.0
      %5326 = vmatpush2.msra.mxu0 0.0
      %5327 = vmatprep.subr.mxu0 0.0
      %5328 = vmatpush2.msra.mxu0 0.0
      %5329 = vmatprep.mubr.f32.mxu0 0.0
      %5330 = vmatmul.mubr.f32.gmra.mxu0 %v5239
      %v5331 = vpop.f32.mrf.mxu0
      %v5332 = vadd.f32 0.0, %v5331
      %v5333 = vpop.f32.mrf.mxu0
      %5334 = vmatprep.mubr.f32.mxu0 0.0
      %5335 = vmatmul.mubr.f32.gmra.mxu0 %v5242
      %v5336 = vpop.f32.mrf.mxu0
      %v5337 = vadd.f32 0.0, %v5336
      %v5338 = vpop.f32.mrf.mxu0
      %5339 = vmatprep.mubr.f32.mxu0 0.0
      %5340 = vmatmul.mubr.f32.gmra.mxu0 %v5245
      %v5341 = vpop.f32.mrf.mxu0
      %v5342 = vadd.f32 0.0, %v5341
      %v5343 = vpop.f32.mrf.mxu0
      %5344 = vmatprep.mubr.f32.mxu0 0.0
      %5345 = vmatmul.mubr.f32.gmra.mxu0 %v5248
      %v5346 = vpop.f32.mrf.mxu0
      %v5347 = vadd.f32 0.0, %v5346
      %v5348 = vpop.f32.mrf.mxu0
      %5349 = vmatprep.mubr.f32.mxu0 0.0
      %5350 = vmatmul.mubr.f32.gmra.mxu0 %v5251
      %v5351 = vpop.f32.mrf.mxu0
      %v5352 = vadd.f32 0.0, %v5351
      %v5353 = vpop.f32.mrf.mxu0
      %5354 = vmatprep.mubr.f32.mxu0 0.0
      %5355 = vmatmul.mubr.f32.gmra.mxu0 %v5254
      %v5356 = vpop.f32.mrf.mxu0
      %v5357 = vadd.f32 0.0, %v5356
      %v5358 = vpop.f32.mrf.mxu0
      %5359 = vmatprep.mubr.f32.mxu0 0.0
      %5360 = vmatmul.mubr.f32.gmra.mxu0 %v5257
      %v5361 = vpop.f32.mrf.mxu0
      %v5362 = vadd.f32 0.0, %v5361
      %v5363 = vpop.f32.mrf.mxu0
      %5364 = vmatprep.mubr.f32.mxu0 0.0
      %5365 = vmatmul.mubr.f32.gmra.mxu0 %v5260
      %v5366 = vpop.f32.mrf.mxu0
      %v5367 = vadd.f32 0.0, %v5366
      %v5368 = vpop.f32.mrf.mxu0
      %5369 = vdwg.mxu0
      %v5370 = vpack.c.bf16 %v5337, %v5332
      %v5371 = vpack.c.bf16 %v5347, %v5342
      %v5372 = vpack.c.bf16 %v5357, %v5352
      %v5373 = vpack.c.bf16 %v5367, %v5362
      %s5374 = scalar_lea.vmem %s10, 40
      %v5375 = vld [vmem:[%s5374] sm:$0xf]
      %v5376 = vld [vmem:[%s5374 + $0x4] sm:$0xf]
      %v5379 = vunpack.c.l.b16 %v5375
      %v5380 = vunpack.c.l.b16 %v5376
      %v5381 = vpack.c.b16 %v5380, %v5379
      %v5384 = vsel %vm1117, %v5370, 0
      %v5387 = vsel %vm1117, %v5371, 0
      %v5390 = vsel %vm1117, %v5372, 0
      %v5393 = vsel %vm1117, %v5373, 0
      %5395 = vmatprep.subr.bf16.mxu0 0
      %5396 = vmatpush1.bf16.msra.mxu0 0
      %5397 = vmatprep.subr.bf16.mxu0 0
      %5398 = vmatpush1.bf16.msra.mxu0 0
      %5399 = vmatprep.subr.bf16.mxu0 0
      %5400 = vmatpush1.bf16.msra.mxu0 0
      %5401 = vmatprep.subr.bf16.mxu0 0
      %5402 = vmatpush1.bf16.msra.mxu0 0
      %5403 = vmatprep.subr.bf16.mxu0 0
      %5404 = vmatpush1.bf16.msra.mxu0 0
      %5405 = vmatprep.subr.bf16.mxu0 0
      %5406 = vmatpush1.bf16.msra.mxu0 0
      %5407 = vmatprep.subr.bf16.mxu0 0
      %5408 = vmatpush1.bf16.msra.mxu0 0
      %5409 = vmatprep.subr.bf16.mxu0 0
      %5410 = vmatpush1.bf16.msra.mxu0 %v5381
      %5411 = vmatprep.subr.bf16.mxu0 0
      %5412 = vmatpush2.bf16.msra.mxu0 0
      %5413 = vmatprep.subr.bf16.mxu0 0
      %5414 = vmatpush2.bf16.msra.mxu0 0
      %5415 = vmatprep.subr.bf16.mxu0 0
      %5416 = vmatpush2.bf16.msra.mxu0 0
      %5417 = vmatprep.subr.bf16.mxu0 0
      %5418 = vmatpush2.bf16.msra.mxu0 0
      %5419 = vmatprep.subr.bf16.mxu0 0
      %5420 = vmatpush2.bf16.msra.mxu0 0
      %5421 = vmatprep.subr.bf16.mxu0 0
      %5422 = vmatpush2.bf16.msra.mxu0 0
      %5423 = vmatprep.subr.bf16.mxu0 0
      %5424 = vmatpush2.bf16.msra.mxu0 0
      %5425 = vmatprep.subr.bf16.mxu0 0
      %5426 = vmatpush2.bf16.msra.mxu0 0
      %5427 = vmatprep.mubr.bf16.mxu0 0
      %5428 = vmatmul.mubr.bf16.gmra.mxu0 %v5384
      %v5429 = vpop.f32.mrf.mxu0
      %v5430 = vadd.f32 0.0, %v5429
      %v5431 = vpop.f32.mrf.mxu0
      %v5432 = vpop.f32.mrf.mxu0
      %v5433 = vadd.f32 0.0, %v5432
      %v5434 = vpop.f32.mrf.mxu0
      %5435 = vmatprep.mubr.bf16.mxu0 0
      %5436 = vmatmul.mubr.bf16.gmra.mxu0 %v5387
      %v5437 = vpop.f32.mrf.mxu0
      %v5438 = vadd.f32 0.0, %v5437
      %v5439 = vpop.f32.mrf.mxu0
      %v5440 = vpop.f32.mrf.mxu0
      %v5441 = vadd.f32 0.0, %v5440
      %v5442 = vpop.f32.mrf.mxu0
      %5443 = vmatprep.mubr.bf16.mxu0 0
      %5444 = vmatmul.mubr.bf16.gmra.mxu0 %v5390
      %v5445 = vpop.f32.mrf.mxu0
      %v5446 = vadd.f32 0.0, %v5445
      %v5447 = vpop.f32.mrf.mxu0
      %v5448 = vpop.f32.mrf.mxu0
      %v5449 = vadd.f32 0.0, %v5448
      %v5450 = vpop.f32.mrf.mxu0
      %5451 = vmatprep.mubr.bf16.mxu0 0
      %5452 = vmatmul.mubr.bf16.gmra.mxu0 %v5393
      %v5453 = vpop.f32.mrf.mxu0
      %v5454 = vadd.f32 0.0, %v5453
      %v5455 = vpop.f32.mrf.mxu0
      %v5456 = vpop.f32.mrf.mxu0
      %v5457 = vadd.f32 0.0, %v5456
      %v5458 = vpop.f32.mrf.mxu0
      %5459 = vdwg.mxu0
      %v5462 = vunpack.c.l.b16 %v4796
      %v5463 = vunpack.c.l.b16 %v4797
      %v5464 = vpack.c.b16 %v5463, %v5462
      %v5467 = vsel %vm1117, %v4791, 0
      %v5470 = vsel %vm1117, %v4792, 0
      %v5473 = vsel %vm1117, %v4793, 0
      %v5476 = vsel %vm1117, %v4794, 0
      %5478 = vmatprep.subr.bf16.mxu0 0
      %5479 = vmatpush1.bf16.msra.mxu0 0
      %5480 = vmatprep.subr.bf16.mxu0 0
      %5481 = vmatpush1.bf16.msra.mxu0 0
      %5482 = vmatprep.subr.bf16.mxu0 0
      %5483 = vmatpush1.bf16.msra.mxu0 0
      %5484 = vmatprep.subr.bf16.mxu0 0
      %5485 = vmatpush1.bf16.msra.mxu0 0
      %5486 = vmatprep.subr.bf16.mxu0 0
      %5487 = vmatpush1.bf16.msra.mxu0 0
      %5488 = vmatprep.subr.bf16.mxu0 0
      %5489 = vmatpush1.bf16.msra.mxu0 0
      %5490 = vmatprep.subr.bf16.mxu0 0
      %5491 = vmatpush1.bf16.msra.mxu0 0
      %5492 = vmatprep.subr.bf16.mxu0 0
      %5493 = vmatpush1.bf16.msra.mxu0 %v5464
      %5494 = vmatprep.subr.bf16.mxu0 0
      %5495 = vmatpush2.bf16.msra.mxu0 0
      %5496 = vmatprep.subr.bf16.mxu0 0
      %5497 = vmatpush2.bf16.msra.mxu0 0
      %5498 = vmatprep.subr.bf16.mxu0 0
      %5499 = vmatpush2.bf16.msra.mxu0 0
      %5500 = vmatprep.subr.bf16.mxu0 0
      %5501 = vmatpush2.bf16.msra.mxu0 0
      %5502 = vmatprep.subr.bf16.mxu0 0
      %5503 = vmatpush2.bf16.msra.mxu0 0
      %5504 = vmatprep.subr.bf16.mxu0 0
      %5505 = vmatpush2.bf16.msra.mxu0 0
      %5506 = vmatprep.subr.bf16.mxu0 0
      %5507 = vmatpush2.bf16.msra.mxu0 0
      %5508 = vmatprep.subr.bf16.mxu0 0
      %5509 = vmatpush2.bf16.msra.mxu0 0
      %5510 = vmatprep.mubr.bf16.mxu0 0
      %5511 = vmatmul.mubr.bf16.gmra.mxu0 %v5467
      %v5512 = vpop.f32.mrf.mxu0
      %v5513 = vadd.f32 %v5430, %v5512
      %v5514 = vpop.f32.mrf.mxu0
      %v5515 = vpop.f32.mrf.mxu0
      %v5516 = vadd.f32 %v5433, %v5515
      %v5517 = vpop.f32.mrf.mxu0
      %5518 = vmatprep.mubr.bf16.mxu0 0
      %5519 = vmatmul.mubr.bf16.gmra.mxu0 %v5470
      %v5520 = vpop.f32.mrf.mxu0
      %v5521 = vadd.f32 %v5438, %v5520
      %v5522 = vpop.f32.mrf.mxu0
      %v5523 = vpop.f32.mrf.mxu0
      %v5524 = vadd.f32 %v5441, %v5523
      %v5525 = vpop.f32.mrf.mxu0
      %5526 = vmatprep.mubr.bf16.mxu0 0
      %5527 = vmatmul.mubr.bf16.gmra.mxu0 %v5473
      %v5528 = vpop.f32.mrf.mxu0
      %v5529 = vadd.f32 %v5446, %v5528
      %v5530 = vpop.f32.mrf.mxu0
      %v5531 = vpop.f32.mrf.mxu0
      %v5532 = vadd.f32 %v5449, %v5531
      %v5533 = vpop.f32.mrf.mxu0
      %5534 = vmatprep.mubr.bf16.mxu0 0
      %5535 = vmatmul.mubr.bf16.gmra.mxu0 %v5476
      %v5536 = vpop.f32.mrf.mxu0
      %v5537 = vadd.f32 %v5454, %v5536
      %v5538 = vpop.f32.mrf.mxu0
      %v5539 = vpop.f32.mrf.mxu0
      %v5540 = vadd.f32 %v5457, %v5539
      %v5541 = vpop.f32.mrf.mxu0
      %5542 = vdwg.mxu0
      %s5543 = scalar_lea.vmem %s4, 96
      %v5544 = vld [vmem:[%s5543] sm:$0xf]
      %v5545 = vld [vmem:[%s5543 + $0x4] sm:$0xf]
      %v5546 = vld [vmem:[%s5543 + $0x8] sm:$0xf]
      %v5547 = vld [vmem:[%s5543 + $0xc] sm:$0xf]
      %s5548 = scalar_lea.vmem %s5, 6
      %v5549 = vld [vmem:[%s5548] sm:$0x1]
      %v5551 = vlaneseq
      %v5552 = vshrl.u32 %v5551, 7
      %v5553 = vsub.s32 0, %v5552
      %v5554 = vrot.slane %v5549, %v5553
      %v5560 = vunpack.c.l.b16 %v5544
      %v5561 = vunpack.c.l.b16 %v5545
      %v5562 = vunpack.c.l.b16 %v5546
      %v5563 = vunpack.c.l.b16 %v5547
      %v5564 = vpack.c.b16 %v5561, %v5560
      %v5565 = vpack.c.b16 %v5563, %v5562
      %5568 = vmatprep.subr.bf16.mxu0 0
      %5569 = vmatpush1.bf16.msra.mxu0 0
      %5570 = vmatprep.subr.bf16.mxu0 0
      %5571 = vmatpush1.bf16.msra.mxu0 0
      %5572 = vmatprep.subr.bf16.mxu0 0
      %5573 = vmatpush1.bf16.msra.mxu0 0
      %5574 = vmatprep.subr.bf16.mxu0 0
      %5575 = vmatpush1.bf16.msra.mxu0 0
      %5576 = vmatprep.subr.bf16.mxu0 0
      %5577 = vmatpush1.bf16.msra.mxu0 0
      %5578 = vmatprep.subr.bf16.mxu0 0
      %5579 = vmatpush1.bf16.msra.mxu0 0
      %5580 = vmatprep.subr.bf16.mxu0 0
      %5581 = vmatpush1.bf16.msra.mxu0 %v5565
      %5582 = vmatprep.subr.bf16.mxu0 0
      %5583 = vmatpush1.bf16.msra.mxu0 %v5564
      %5584 = vmatprep.subr.bf16.mxu0 0
      %5585 = vmatpush2.bf16.msra.mxu0 0
      %5586 = vmatprep.subr.bf16.mxu0 0
      %5587 = vmatpush2.bf16.msra.mxu0 0
      %5588 = vmatprep.subr.bf16.mxu0 0
      %5589 = vmatpush2.bf16.msra.mxu0 0
      %5590 = vmatprep.subr.bf16.mxu0 0
      %5591 = vmatpush2.bf16.msra.mxu0 0
      %5592 = vmatprep.subr.bf16.mxu0 0
      %5593 = vmatpush2.bf16.msra.mxu0 0
      %5594 = vmatprep.subr.bf16.mxu0 0
      %5595 = vmatpush2.bf16.msra.mxu0 0
      %5596 = vmatprep.subr.bf16.mxu0 0
      %5597 = vmatpush2.bf16.msra.mxu0 0
      %5598 = vmatprep.subr.bf16.mxu0 0
      %5599 = vmatpush2.bf16.msra.mxu0 0
      %5600 = vmatprep.mubr.bf16.mxu0 0
      %5601 = vmatmul.mubr.bf16.gmra.mxu0 %v4230
      %v5602 = vpop.f32.mrf.mxu0
      %v5603 = vadd.f32 %v5554, %v5602
      %v5604 = vpop.f32.mrf.mxu0
      %v5605 = vpop.f32.mrf.mxu0
      %v5606 = vadd.f32 %v5554, %v5605
      %v5607 = vpop.f32.mrf.mxu0
      %5608 = vmatprep.mubr.bf16.mxu0 0
      %5609 = vmatmul.mubr.bf16.gmra.mxu0 %v4233
      %v5610 = vpop.f32.mrf.mxu0
      %v5611 = vadd.f32 %v5554, %v5610
      %v5612 = vpop.f32.mrf.mxu0
      %v5613 = vpop.f32.mrf.mxu0
      %v5614 = vadd.f32 %v5554, %v5613
      %v5615 = vpop.f32.mrf.mxu0
      %5616 = vmatprep.mubr.bf16.mxu0 0
      %5617 = vmatmul.mubr.bf16.gmra.mxu0 %v4236
      %v5618 = vpop.f32.mrf.mxu0
      %v5619 = vadd.f32 %v5554, %v5618
      %v5620 = vpop.f32.mrf.mxu0
      %v5621 = vpop.f32.mrf.mxu0
      %v5622 = vadd.f32 %v5554, %v5621
      %v5623 = vpop.f32.mrf.mxu0
      %5624 = vmatprep.mubr.bf16.mxu0 0
      %5625 = vmatmul.mubr.bf16.gmra.mxu0 %v4239
      %v5626 = vpop.f32.mrf.mxu0
      %v5627 = vadd.f32 %v5554, %v5626
      %v5628 = vpop.f32.mrf.mxu0
      %v5629 = vpop.f32.mrf.mxu0
      %v5630 = vadd.f32 %v5554, %v5629
      %v5631 = vpop.f32.mrf.mxu0
      %5632 = vdwg.mxu0
      %s5633 = scalar_lea.vmem %s6, 96
      %v5634 = vld [vmem:[%s5633] sm:$0xf]
      %v5635 = vld [vmem:[%s5633 + $0x4] sm:$0xf]
      %v5636 = vld [vmem:[%s5633 + $0x8] sm:$0xf]
      %v5637 = vld [vmem:[%s5633 + $0xc] sm:$0xf]
      %s5638 = scalar_lea.vmem %s7, 6
      %v5639 = vld [vmem:[%s5638] sm:$0x1]
      %v5641 = vlaneseq
      %v5642 = vshrl.u32 %v5641, 7
      %v5643 = vsub.s32 0, %v5642
      %v5644 = vrot.slane %v5639, %v5643
      %v5650 = vunpack.c.l.b16 %v5634
      %v5651 = vunpack.c.l.b16 %v5635
      %v5652 = vunpack.c.l.b16 %v5636
      %v5653 = vunpack.c.l.b16 %v5637
      %v5654 = vpack.c.b16 %v5651, %v5650
      %v5655 = vpack.c.b16 %v5653, %v5652
      %5658 = vmatprep.subr.bf16.mxu0 0
      %5659 = vmatpush1.bf16.msra.mxu0 0
      %5660 = vmatprep.subr.bf16.mxu0 0
      %5661 = vmatpush1.bf16.msra.mxu0 0
      %5662 = vmatprep.subr.bf16.mxu0 0
      %5663 = vmatpush1.bf16.msra.mxu0 0
      %5664 = vmatprep.subr.bf16.mxu0 0
      %5665 = vmatpush1.bf16.msra.mxu0 0
      %5666 = vmatprep.subr.bf16.mxu0 0
      %5667 = vmatpush1.bf16.msra.mxu0 0
      %5668 = vmatprep.subr.bf16.mxu0 0
      %5669 = vmatpush1.bf16.msra.mxu0 0
      %5670 = vmatprep.subr.bf16.mxu0 0
      %5671 = vmatpush1.bf16.msra.mxu0 %v5655
      %5672 = vmatprep.subr.bf16.mxu0 0
      %5673 = vmatpush1.bf16.msra.mxu0 %v5654
      %5674 = vmatprep.subr.bf16.mxu0 0
      %5675 = vmatpush2.bf16.msra.mxu0 0
      %5676 = vmatprep.subr.bf16.mxu0 0
      %5677 = vmatpush2.bf16.msra.mxu0 0
      %5678 = vmatprep.subr.bf16.mxu0 0
      %5679 = vmatpush2.bf16.msra.mxu0 0
      %5680 = vmatprep.subr.bf16.mxu0 0
      %5681 = vmatpush2.bf16.msra.mxu0 0
      %5682 = vmatprep.subr.bf16.mxu0 0
      %5683 = vmatpush2.bf16.msra.mxu0 0
      %5684 = vmatprep.subr.bf16.mxu0 0
      %5685 = vmatpush2.bf16.msra.mxu0 0
      %5686 = vmatprep.subr.bf16.mxu0 0
      %5687 = vmatpush2.bf16.msra.mxu0 0
      %5688 = vmatprep.subr.bf16.mxu0 0
      %5689 = vmatpush2.bf16.msra.mxu0 0
      %5690 = vmatprep.mubr.bf16.mxu0 0
      %5691 = vmatmul.mubr.bf16.gmra.mxu0 %v4332
      %v5692 = vpop.f32.mrf.mxu0
      %v5693 = vadd.f32 %v5644, %v5692
      %v5694 = vpop.f32.mrf.mxu0
      %v5695 = vpop.f32.mrf.mxu0
      %v5696 = vpop.f32.mrf.mxu0
      %5697 = vdwg.mxu0
      %s5698 = scalar_lea.vmem %s8, 96
      %v5699 = vld [vmem:[%s5698] sm:$0xf]
      %v5700 = vld [vmem:[%s5698 + $0x4] sm:$0xf]
      %v5701 = vld [vmem:[%s5698 + $0x8] sm:$0xf]
      %v5702 = vld [vmem:[%s5698 + $0xc] sm:$0xf]
      %s5703 = scalar_lea.vmem %s9, 6
      %v5704 = vld [vmem:[%s5703] sm:$0x1]
      %v5706 = vlaneseq
      %v5707 = vshrl.u32 %v5706, 7
      %v5708 = vsub.s32 0, %v5707
      %v5709 = vrot.slane %v5704, %v5708
      %v5715 = vunpack.c.l.b16 %v5699
      %v5716 = vunpack.c.l.b16 %v5700
      %v5717 = vunpack.c.l.b16 %v5701
      %v5718 = vunpack.c.l.b16 %v5702
      %v5719 = vpack.c.b16 %v5716, %v5715
      %v5720 = vpack.c.b16 %v5718, %v5717
      %5723 = vmatprep.subr.bf16.mxu0 0
      %5724 = vmatpush1.bf16.msra.mxu0 0
      %5725 = vmatprep.subr.bf16.mxu0 0
      %5726 = vmatpush1.bf16.msra.mxu0 0
      %5727 = vmatprep.subr.bf16.mxu0 0
      %5728 = vmatpush1.bf16.msra.mxu0 0
      %5729 = vmatprep.subr.bf16.mxu0 0
      %5730 = vmatpush1.bf16.msra.mxu0 0
      %5731 = vmatprep.subr.bf16.mxu0 0
      %5732 = vmatpush1.bf16.msra.mxu0 0
      %5733 = vmatprep.subr.bf16.mxu0 0
      %5734 = vmatpush1.bf16.msra.mxu0 0
      %5735 = vmatprep.subr.bf16.mxu0 0
      %5736 = vmatpush1.bf16.msra.mxu0 %v5720
      %5737 = vmatprep.subr.bf16.mxu0 0
      %5738 = vmatpush1.bf16.msra.mxu0 %v5719
      %5739 = vmatprep.subr.bf16.mxu0 0
      %5740 = vmatpush2.bf16.msra.mxu0 0
      %5741 = vmatprep.subr.bf16.mxu0 0
      %5742 = vmatpush2.bf16.msra.mxu0 0
      %5743 = vmatprep.subr.bf16.mxu0 0
      %5744 = vmatpush2.bf16.msra.mxu0 0
      %5745 = vmatprep.subr.bf16.mxu0 0
      %5746 = vmatpush2.bf16.msra.mxu0 0
      %5747 = vmatprep.subr.bf16.mxu0 0
      %5748 = vmatpush2.bf16.msra.mxu0 0
      %5749 = vmatprep.subr.bf16.mxu0 0
      %5750 = vmatpush2.bf16.msra.mxu0 0
      %5751 = vmatprep.subr.bf16.mxu0 0
      %5752 = vmatpush2.bf16.msra.mxu0 0
      %5753 = vmatprep.subr.bf16.mxu0 0
      %5754 = vmatpush2.bf16.msra.mxu0 0
      %5755 = vmatprep.mubr.bf16.mxu0 0
      %5756 = vmatmul.mubr.bf16.gmra.mxu0 %v4332
      %v5757 = vpop.f32.mrf.mxu0
      %v5758 = vadd.f32 %v5709, %v5757
      %v5759 = vpop.f32.mrf.mxu0
      %v5760 = vpop.f32.mrf.mxu0
      %v5761 = vpop.f32.mrf.mxu0
      %5762 = vdwg.mxu0
      %v5764 = vsel %vm1117, %v5603, 0
      %v5767 = vsel %vm1117, %v5606, 0
      %v5770 = vsel %vm1117, %v5611, 0
      %v5773 = vsel %vm1117, %v5614, 0
      %v5776 = vsel %vm1117, %v5619, 0
      %v5779 = vsel %vm1117, %v5622, 0
      %v5782 = vsel %vm1117, %v5627, 0
      %v5785 = vsel %vm1117, %v5630, 0
      %v5788 = vsel %vm1117, %v5693, 0
      %5790 = vmatprep.subr.mxu0 0.0
      %5791 = vmatpush1.xpose.msra.mxu0 0.0
      %5792 = vmatprep.subr.mxu0 0.0
      %5793 = vmatpush1.xpose.msra.mxu0 0.0
      %5794 = vmatprep.subr.mxu0 0.0
      %5795 = vmatpush1.xpose.msra.mxu0 0.0
      %5796 = vmatprep.subr.mxu0 0.0
      %5797 = vmatpush1.xpose.msra.mxu0 0.0
      %5798 = vmatprep.subr.mxu0 0.0
      %5799 = vmatpush1.xpose.msra.mxu0 0.0
      %5800 = vmatprep.subr.mxu0 0.0
      %5801 = vmatpush1.xpose.msra.mxu0 0.0
      %5802 = vmatprep.subr.mxu0 0.0
      %5803 = vmatpush1.xpose.msra.mxu0 0.0
      %5804 = vmatprep.subr.mxu0 0.0
      %5805 = vmatpush1.xpose.msra.mxu0 0.0
      %5806 = vmatprep.subr.mxu0 0.0
      %5807 = vmatpush1.xpose.msra.mxu0 0.0
      %5808 = vmatprep.subr.mxu0 0.0
      %5809 = vmatpush1.xpose.msra.mxu0 0.0
      %5810 = vmatprep.subr.mxu0 0.0
      %5811 = vmatpush1.xpose.msra.mxu0 0.0
      %5812 = vmatprep.subr.mxu0 0.0
      %5813 = vmatpush1.xpose.msra.mxu0 0.0
      %5814 = vmatprep.subr.mxu0 0.0
      %5815 = vmatpush1.xpose.msra.mxu0 0.0
      %5816 = vmatprep.subr.mxu0 0.0
      %5817 = vmatpush1.xpose.msra.mxu0 0.0
      %5818 = vmatprep.subr.mxu0 0.0
      %5819 = vmatpush1.xpose.msra.mxu0 0.0
      %5820 = vmatprep.subr.mxu0 0.0
      %5821 = vmatpush1.xpose.msra.mxu0 %v5788
      %5822 = vmatprep.subr.mxu0 0.0
      %5823 = vmatpush2.xpose.msra.mxu0 0.0
      %5824 = vmatprep.subr.mxu0 0.0
      %5825 = vmatpush2.xpose.msra.mxu0 0.0
      %5826 = vmatprep.subr.mxu0 0.0
      %5827 = vmatpush2.xpose.msra.mxu0 0.0
      %5828 = vmatprep.subr.mxu0 0.0
      %5829 = vmatpush2.xpose.msra.mxu0 0.0
      %5830 = vmatprep.subr.mxu0 0.0
      %5831 = vmatpush2.xpose.msra.mxu0 0.0
      %5832 = vmatprep.subr.mxu0 0.0
      %5833 = vmatpush2.xpose.msra.mxu0 0.0
      %5834 = vmatprep.subr.mxu0 0.0
      %5835 = vmatpush2.xpose.msra.mxu0 0.0
      %5836 = vmatprep.subr.mxu0 0.0
      %5837 = vmatpush2.xpose.msra.mxu0 0.0
      %5838 = vmatprep.subr.mxu0 0.0
      %5839 = vmatpush2.xpose.msra.mxu0 0.0
      %5840 = vmatprep.subr.mxu0 0.0
      %5841 = vmatpush2.xpose.msra.mxu0 0.0
      %5842 = vmatprep.subr.mxu0 0.0
      %5843 = vmatpush2.xpose.msra.mxu0 0.0
      %5844 = vmatprep.subr.mxu0 0.0
      %5845 = vmatpush2.xpose.msra.mxu0 0.0
      %5846 = vmatprep.subr.mxu0 0.0
      %5847 = vmatpush2.xpose.msra.mxu0 0.0
      %5848 = vmatprep.subr.mxu0 0.0
      %5849 = vmatpush2.xpose.msra.mxu0 0.0
      %5850 = vmatprep.subr.mxu0 0.0
      %5851 = vmatpush2.xpose.msra.mxu0 0.0
      %5852 = vmatprep.subr.mxu0 0.0
      %5853 = vmatpush2.xpose.msra.mxu0 0.0
      %5854 = vmatprep.mubr.f32.mxu0 0.0
      %5855 = vmatmul.mubr.f32.gmra.mxu0 %v5764
      %v5856 = vpop.f32.mrf.mxu0
      %v5857 = vadd.f32 0.0, %v5856
      %v5858 = vpop.f32.mrf.mxu0
      %5859 = vmatprep.mubr.f32.mxu0 0.0
      %5860 = vmatmul.mubr.f32.gmra.mxu0 %v5767
      %v5861 = vpop.f32.mrf.mxu0
      %v5862 = vadd.f32 0.0, %v5861
      %v5863 = vpop.f32.mrf.mxu0
      %5864 = vmatprep.mubr.f32.mxu0 0.0
      %5865 = vmatmul.mubr.f32.gmra.mxu0 %v5770
      %v5866 = vpop.f32.mrf.mxu0
      %v5867 = vadd.f32 0.0, %v5866
      %v5868 = vpop.f32.mrf.mxu0
      %5869 = vmatprep.mubr.f32.mxu0 0.0
      %5870 = vmatmul.mubr.f32.gmra.mxu0 %v5773
      %v5871 = vpop.f32.mrf.mxu0
      %v5872 = vadd.f32 0.0, %v5871
      %v5873 = vpop.f32.mrf.mxu0
      %5874 = vmatprep.mubr.f32.mxu0 0.0
      %5875 = vmatmul.mubr.f32.gmra.mxu0 %v5776
      %v5876 = vpop.f32.mrf.mxu0
      %v5877 = vadd.f32 0.0, %v5876
      %v5878 = vpop.f32.mrf.mxu0
      %5879 = vmatprep.mubr.f32.mxu0 0.0
      %5880 = vmatmul.mubr.f32.gmra.mxu0 %v5779
      %v5881 = vpop.f32.mrf.mxu0
      %v5882 = vadd.f32 0.0, %v5881
      %v5883 = vpop.f32.mrf.mxu0
      %5884 = vmatprep.mubr.f32.mxu0 0.0
      %5885 = vmatmul.mubr.f32.gmra.mxu0 %v5782
      %v5886 = vpop.f32.mrf.mxu0
      %v5887 = vadd.f32 0.0, %v5886
      %v5888 = vpop.f32.mrf.mxu0
      %5889 = vmatprep.mubr.f32.mxu0 0.0
      %5890 = vmatmul.mubr.f32.gmra.mxu0 %v5785
      %v5891 = vpop.f32.mrf.mxu0
      %v5892 = vadd.f32 0.0, %v5891
      %v5893 = vpop.f32.mrf.mxu0
      %5894 = vdwg.mxu0
      %v5895 = vsel %vm1250, %v5857, -inf
      %5896 = vmax.xlane.f32.xlu0 %v5895
      %v5897 = vpop.xlane.xlu0 %5896
      %v5898 = vsel %vm1250, %v5862, -inf
      %5899 = vmax.xlane.f32.xlu0 %v5898
      %v5900 = vpop.xlane.xlu0 %5899
      %v5901 = vsel %vm1250, %v5867, -inf
      %5902 = vmax.xlane.f32.xlu0 %v5901
      %v5903 = vpop.xlane.xlu0 %5902
      %v5904 = vsel %vm1250, %v5872, -inf
      %5905 = vmax.xlane.f32.xlu0 %v5904
      %v5906 = vpop.xlane.xlu0 %5905
      %v5907 = vsel %vm1250, %v5877, -inf
      %5908 = vmax.xlane.f32.xlu0 %v5907
      %v5909 = vpop.xlane.xlu0 %5908
      %v5910 = vsel %vm1250, %v5882, -inf
      %5911 = vmax.xlane.f32.xlu0 %v5910
      %v5912 = vpop.xlane.xlu0 %5911
      %v5913 = vsel %vm1250, %v5887, -inf
      %5914 = vmax.xlane.f32.xlu0 %v5913
      %v5915 = vpop.xlane.xlu0 %5914
      %v5916 = vsel %vm1250, %v5892, -inf
      %5917 = vmax.xlane.f32.xlu0 %v5916
      %v5918 = vpop.xlane.xlu0 %5917
      %v5919 = vsub.f32 %v5857, %v5897
      %v5920 = vsub.f32 %v5862, %v5900
      %v5921 = vsub.f32 %v5867, %v5903
      %v5922 = vsub.f32 %v5872, %v5906
      %v5923 = vsub.f32 %v5877, %v5909
      %v5924 = vsub.f32 %v5882, %v5912
      %v5925 = vsub.f32 %v5887, %v5915
      %v5926 = vsub.f32 %v5892, %v5918
      %v5927 = vmul.f32 %v5919, 1.442695
      %v5928 = vpow.pop %v5927
      %v5929 = vmul.f32 %v5920, 1.442695
      %v5930 = vpow.pop %v5929
      %v5931 = vmul.f32 %v5921, 1.442695
      %v5932 = vpow.pop %v5931
      %v5933 = vmul.f32 %v5922, 1.442695
      %v5934 = vpow.pop %v5933
      %v5935 = vmul.f32 %v5923, 1.442695
      %v5936 = vpow.pop %v5935
      %v5937 = vmul.f32 %v5924, 1.442695
      %v5938 = vpow.pop %v5937
      %v5939 = vmul.f32 %v5925, 1.442695
      %v5940 = vpow.pop %v5939
      %v5941 = vmul.f32 %v5926, 1.442695
      %v5942 = vpow.pop %v5941
      %v5943 = vsel %vm1250, %v5928, 0.0
      %5944 = vadd.xlane.f32.xlu0 %v5943
      %v5945 = vpop.xlane.xlu0 %5944
      %v5946 = vsel %vm1250, %v5930, 0.0
      %5947 = vadd.xlane.f32.xlu0 %v5946
      %v5948 = vpop.xlane.xlu0 %5947
      %v5949 = vsel %vm1250, %v5932, 0.0
      %5950 = vadd.xlane.f32.xlu0 %v5949
      %v5951 = vpop.xlane.xlu0 %5950
      %v5952 = vsel %vm1250, %v5934, 0.0
      %5953 = vadd.xlane.f32.xlu0 %v5952
      %v5954 = vpop.xlane.xlu0 %5953
      %v5955 = vsel %vm1250, %v5936, 0.0
      %5956 = vadd.xlane.f32.xlu0 %v5955
      %v5957 = vpop.xlane.xlu0 %5956
      %v5958 = vsel %vm1250, %v5938, 0.0
      %5959 = vadd.xlane.f32.xlu0 %v5958
      %v5960 = vpop.xlane.xlu0 %5959
      %v5961 = vsel %vm1250, %v5940, 0.0
      %5962 = vadd.xlane.f32.xlu0 %v5961
      %v5963 = vpop.xlane.xlu0 %5962
      %v5964 = vsel %vm1250, %v5942, 0.0
      %5965 = vadd.xlane.f32.xlu0 %v5964
      %v5966 = vpop.xlane.xlu0 %5965
      %v5967 = vrcp.pop %v5945
      %v5968 = vmul.f32 %v5928, %v5967
      %v5969 = vrcp.pop %v5948
      %v5970 = vmul.f32 %v5930, %v5969
      %v5971 = vrcp.pop %v5951
      %v5972 = vmul.f32 %v5932, %v5971
      %v5973 = vrcp.pop %v5954
      %v5974 = vmul.f32 %v5934, %v5973
      %v5975 = vrcp.pop %v5957
      %v5976 = vmul.f32 %v5936, %v5975
      %v5977 = vrcp.pop %v5960
      %v5978 = vmul.f32 %v5938, %v5977
      %v5979 = vrcp.pop %v5963
      %v5980 = vmul.f32 %v5940, %v5979
      %v5981 = vrcp.pop %v5966
      %v5982 = vmul.f32 %v5942, %v5981
      %v5984 = vsel %vm1250, %v5968, 0
      %v5987 = vsel %vm1250, %v5970, 0
      %v5990 = vsel %vm1250, %v5972, 0
      %v5993 = vsel %vm1250, %v5974, 0
      %v5996 = vsel %vm1250, %v5976, 0
      %v5999 = vsel %vm1250, %v5978, 0
      %v6002 = vsel %vm1250, %v5980, 0
      %v6005 = vsel %vm1250, %v5982, 0
      %v6008 = vsel %vm1363, %v5758, 0
      %6010 = vmatprep.subr.mxu0 0.0
      %6011 = vmatpush1.msra.mxu0 0.0
      %6012 = vmatprep.subr.mxu0 0.0
      %6013 = vmatpush1.msra.mxu0 0.0
      %6014 = vmatprep.subr.mxu0 0.0
      %6015 = vmatpush1.msra.mxu0 0.0
      %6016 = vmatprep.subr.mxu0 0.0
      %6017 = vmatpush1.msra.mxu0 0.0
      %6018 = vmatprep.subr.mxu0 0.0
      %6019 = vmatpush1.msra.mxu0 0.0
      %6020 = vmatprep.subr.mxu0 0.0
      %6021 = vmatpush1.msra.mxu0 0.0
      %6022 = vmatprep.subr.mxu0 0.0
      %6023 = vmatpush1.msra.mxu0 0.0
      %6024 = vmatprep.subr.mxu0 0.0
      %6025 = vmatpush1.msra.mxu0 0.0
      %6026 = vmatprep.subr.mxu0 0.0
      %6027 = vmatpush1.msra.mxu0 0.0
      %6028 = vmatprep.subr.mxu0 0.0
      %6029 = vmatpush1.msra.mxu0 0.0
      %6030 = vmatprep.subr.mxu0 0.0
      %6031 = vmatpush1.msra.mxu0 0.0
      %6032 = vmatprep.subr.mxu0 0.0
      %6033 = vmatpush1.msra.mxu0 0.0
      %6034 = vmatprep.subr.mxu0 0.0
      %6035 = vmatpush1.msra.mxu0 0.0
      %6036 = vmatprep.subr.mxu0 0.0
      %6037 = vmatpush1.msra.mxu0 0.0
      %6038 = vmatprep.subr.mxu0 0.0
      %6039 = vmatpush1.msra.mxu0 0.0
      %6040 = vmatprep.subr.mxu0 0.0
      %6041 = vmatpush1.msra.mxu0 %v6008
      %6042 = vmatprep.subr.mxu0 0.0
      %6043 = vmatpush2.msra.mxu0 0.0
      %6044 = vmatprep.subr.mxu0 0.0
      %6045 = vmatpush2.msra.mxu0 0.0
      %6046 = vmatprep.subr.mxu0 0.0
      %6047 = vmatpush2.msra.mxu0 0.0
      %6048 = vmatprep.subr.mxu0 0.0
      %6049 = vmatpush2.msra.mxu0 0.0
      %6050 = vmatprep.subr.mxu0 0.0
      %6051 = vmatpush2.msra.mxu0 0.0
      %6052 = vmatprep.subr.mxu0 0.0
      %6053 = vmatpush2.msra.mxu0 0.0
      %6054 = vmatprep.subr.mxu0 0.0
      %6055 = vmatpush2.msra.mxu0 0.0
      %6056 = vmatprep.subr.mxu0 0.0
      %6057 = vmatpush2.msra.mxu0 0.0
      %6058 = vmatprep.subr.mxu0 0.0
      %6059 = vmatpush2.msra.mxu0 0.0
      %6060 = vmatprep.subr.mxu0 0.0
      %6061 = vmatpush2.msra.mxu0 0.0
      %6062 = vmatprep.subr.mxu0 0.0
      %6063 = vmatpush2.msra.mxu0 0.0
      %6064 = vmatprep.subr.mxu0 0.0
      %6065 = vmatpush2.msra.mxu0 0.0
      %6066 = vmatprep.subr.mxu0 0.0
      %6067 = vmatpush2.msra.mxu0 0.0
      %6068 = vmatprep.subr.mxu0 0.0
      %6069 = vmatpush2.msra.mxu0 0.0
      %6070 = vmatprep.subr.mxu0 0.0
      %6071 = vmatpush2.msra.mxu0 0.0
      %6072 = vmatprep.subr.mxu0 0.0
      %6073 = vmatpush2.msra.mxu0 0.0
      %6074 = vmatprep.mubr.f32.mxu0 0.0
      %6075 = vmatmul.mubr.f32.gmra.mxu0 %v5984
      %v6076 = vpop.f32.mrf.mxu0
      %v6077 = vadd.f32 0.0, %v6076
      %v6078 = vpop.f32.mrf.mxu0
      %6079 = vmatprep.mubr.f32.mxu0 0.0
      %6080 = vmatmul.mubr.f32.gmra.mxu0 %v5987
      %v6081 = vpop.f32.mrf.mxu0
      %v6082 = vadd.f32 0.0, %v6081
      %v6083 = vpop.f32.mrf.mxu0
      %6084 = vmatprep.mubr.f32.mxu0 0.0
      %6085 = vmatmul.mubr.f32.gmra.mxu0 %v5990
      %v6086 = vpop.f32.mrf.mxu0
      %v6087 = vadd.f32 0.0, %v6086
      %v6088 = vpop.f32.mrf.mxu0
      %6089 = vmatprep.mubr.f32.mxu0 0.0
      %6090 = vmatmul.mubr.f32.gmra.mxu0 %v5993
      %v6091 = vpop.f32.mrf.mxu0
      %v6092 = vadd.f32 0.0, %v6091
      %v6093 = vpop.f32.mrf.mxu0
      %6094 = vmatprep.mubr.f32.mxu0 0.0
      %6095 = vmatmul.mubr.f32.gmra.mxu0 %v5996
      %v6096 = vpop.f32.mrf.mxu0
      %v6097 = vadd.f32 0.0, %v6096
      %v6098 = vpop.f32.mrf.mxu0
      %6099 = vmatprep.mubr.f32.mxu0 0.0
      %6100 = vmatmul.mubr.f32.gmra.mxu0 %v5999
      %v6101 = vpop.f32.mrf.mxu0
      %v6102 = vadd.f32 0.0, %v6101
      %v6103 = vpop.f32.mrf.mxu0
      %6104 = vmatprep.mubr.f32.mxu0 0.0
      %6105 = vmatmul.mubr.f32.gmra.mxu0 %v6002
      %v6106 = vpop.f32.mrf.mxu0
      %v6107 = vadd.f32 0.0, %v6106
      %v6108 = vpop.f32.mrf.mxu0
      %6109 = vmatprep.mubr.f32.mxu0 0.0
      %6110 = vmatmul.mubr.f32.gmra.mxu0 %v6005
      %v6111 = vpop.f32.mrf.mxu0
      %v6112 = vadd.f32 0.0, %v6111
      %v6113 = vpop.f32.mrf.mxu0
      %6114 = vdwg.mxu0
      %v6115 = vpack.c.bf16 %v6082, %v6077
      %v6116 = vpack.c.bf16 %v6092, %v6087
      %v6117 = vpack.c.bf16 %v6102, %v6097
      %v6118 = vpack.c.bf16 %v6112, %v6107
      %s6119 = scalar_lea.vmem %s10, 48
      %v6120 = vld [vmem:[%s6119] sm:$0xf]
      %v6121 = vld [vmem:[%s6119 + $0x4] sm:$0xf]
      %v6124 = vunpack.c.l.b16 %v6120
      %v6125 = vunpack.c.l.b16 %v6121
      %v6126 = vpack.c.b16 %v6125, %v6124
      %v6129 = vsel %vm1117, %v6115, 0
      %v6132 = vsel %vm1117, %v6116, 0
      %v6135 = vsel %vm1117, %v6117, 0
      %v6138 = vsel %vm1117, %v6118, 0
      %6140 = vmatprep.subr.bf16.mxu0 0
      %6141 = vmatpush1.bf16.msra.mxu0 0
      %6142 = vmatprep.subr.bf16.mxu0 0
      %6143 = vmatpush1.bf16.msra.mxu0 0
      %6144 = vmatprep.subr.bf16.mxu0 0
      %6145 = vmatpush1.bf16.msra.mxu0 0
      %6146 = vmatprep.subr.bf16.mxu0 0
      %6147 = vmatpush1.bf16.msra.mxu0 0
      %6148 = vmatprep.subr.bf16.mxu0 0
      %6149 = vmatpush1.bf16.msra.mxu0 0
      %6150 = vmatprep.subr.bf16.mxu0 0
      %6151 = vmatpush1.bf16.msra.mxu0 0
      %6152 = vmatprep.subr.bf16.mxu0 0
      %6153 = vmatpush1.bf16.msra.mxu0 0
      %6154 = vmatprep.subr.bf16.mxu0 0
      %6155 = vmatpush1.bf16.msra.mxu0 %v6126
      %6156 = vmatprep.subr.bf16.mxu0 0
      %6157 = vmatpush2.bf16.msra.mxu0 0
      %6158 = vmatprep.subr.bf16.mxu0 0
      %6159 = vmatpush2.bf16.msra.mxu0 0
      %6160 = vmatprep.subr.bf16.mxu0 0
      %6161 = vmatpush2.bf16.msra.mxu0 0
      %6162 = vmatprep.subr.bf16.mxu0 0
      %6163 = vmatpush2.bf16.msra.mxu0 0
      %6164 = vmatprep.subr.bf16.mxu0 0
      %6165 = vmatpush2.bf16.msra.mxu0 0
      %6166 = vmatprep.subr.bf16.mxu0 0
      %6167 = vmatpush2.bf16.msra.mxu0 0
      %6168 = vmatprep.subr.bf16.mxu0 0
      %6169 = vmatpush2.bf16.msra.mxu0 0
      %6170 = vmatprep.subr.bf16.mxu0 0
      %6171 = vmatpush2.bf16.msra.mxu0 0
      %6172 = vmatprep.mubr.bf16.mxu0 0
      %6173 = vmatmul.mubr.bf16.gmra.mxu0 %v6129
      %v6174 = vpop.f32.mrf.mxu0
      %v6175 = vadd.f32 0.0, %v6174
      %v6176 = vpop.f32.mrf.mxu0
      %v6177 = vpop.f32.mrf.mxu0
      %v6178 = vadd.f32 0.0, %v6177
      %v6179 = vpop.f32.mrf.mxu0
      %6180 = vmatprep.mubr.bf16.mxu0 0
      %6181 = vmatmul.mubr.bf16.gmra.mxu0 %v6132
      %v6182 = vpop.f32.mrf.mxu0
      %v6183 = vadd.f32 0.0, %v6182
      %v6184 = vpop.f32.mrf.mxu0
      %v6185 = vpop.f32.mrf.mxu0
      %v6186 = vadd.f32 0.0, %v6185
      %v6187 = vpop.f32.mrf.mxu0
      %6188 = vmatprep.mubr.bf16.mxu0 0
      %6189 = vmatmul.mubr.bf16.gmra.mxu0 %v6135
      %v6190 = vpop.f32.mrf.mxu0
      %v6191 = vadd.f32 0.0, %v6190
      %v6192 = vpop.f32.mrf.mxu0
      %v6193 = vpop.f32.mrf.mxu0
      %v6194 = vadd.f32 0.0, %v6193
      %v6195 = vpop.f32.mrf.mxu0
      %6196 = vmatprep.mubr.bf16.mxu0 0
      %6197 = vmatmul.mubr.bf16.gmra.mxu0 %v6138
      %v6198 = vpop.f32.mrf.mxu0
      %v6199 = vadd.f32 0.0, %v6198
      %v6200 = vpop.f32.mrf.mxu0
      %v6201 = vpop.f32.mrf.mxu0
      %v6202 = vadd.f32 0.0, %v6201
      %v6203 = vpop.f32.mrf.mxu0
      %6204 = vdwg.mxu0
      %v6205 = vadd.f32 %v5513, %v6175
      %v6206 = vadd.f32 %v5516, %v6178
      %v6207 = vadd.f32 %v5521, %v6183
      %v6208 = vadd.f32 %v5524, %v6186
      %v6209 = vadd.f32 %v5529, %v6191
      %v6210 = vadd.f32 %v5532, %v6194
      %v6211 = vadd.f32 %v5537, %v6199
      %v6212 = vadd.f32 %v5540, %v6202
      %s6213 = scalar_lea.vmem %s4, 112
      %v6214 = vld [vmem:[%s6213] sm:$0xf]
      %v6215 = vld [vmem:[%s6213 + $0x4] sm:$0xf]
      %v6216 = vld [vmem:[%s6213 + $0x8] sm:$0xf]
      %v6217 = vld [vmem:[%s6213 + $0xc] sm:$0xf]
      %s6218 = scalar_lea.vmem %s5, 7
      %v6219 = vld [vmem:[%s6218] sm:$0x1]
      %v6221 = vlaneseq
      %v6222 = vshrl.u32 %v6221, 7
      %v6223 = vsub.s32 0, %v6222
      %v6224 = vrot.slane %v6219, %v6223
      %v6230 = vunpack.c.l.b16 %v6214
      %v6231 = vunpack.c.l.b16 %v6215
      %v6232 = vunpack.c.l.b16 %v6216
      %v6233 = vunpack.c.l.b16 %v6217
      %v6234 = vpack.c.b16 %v6231, %v6230
      %v6235 = vpack.c.b16 %v6233, %v6232
      %6238 = vmatprep.subr.bf16.mxu0 0
      %6239 = vmatpush1.bf16.msra.mxu0 0
      %6240 = vmatprep.subr.bf16.mxu0 0
      %6241 = vmatpush1.bf16.msra.mxu0 0
      %6242 = vmatprep.subr.bf16.mxu0 0
      %6243 = vmatpush1.bf16.msra.mxu0 0
      %6244 = vmatprep.subr.bf16.mxu0 0
      %6245 = vmatpush1.bf16.msra.mxu0 0
      %6246 = vmatprep.subr.bf16.mxu0 0
      %6247 = vmatpush1.bf16.msra.mxu0 0
      %6248 = vmatprep.subr.bf16.mxu0 0
      %6249 = vmatpush1.bf16.msra.mxu0 0
      %6250 = vmatprep.subr.bf16.mxu0 0
      %6251 = vmatpush1.bf16.msra.mxu0 %v6235
      %6252 = vmatprep.subr.bf16.mxu0 0
      %6253 = vmatpush1.bf16.msra.mxu0 %v6234
      %6254 = vmatprep.subr.bf16.mxu0 0
      %6255 = vmatpush2.bf16.msra.mxu0 0
      %6256 = vmatprep.subr.bf16.mxu0 0
      %6257 = vmatpush2.bf16.msra.mxu0 0
      %6258 = vmatprep.subr.bf16.mxu0 0
      %6259 = vmatpush2.bf16.msra.mxu0 0
      %6260 = vmatprep.subr.bf16.mxu0 0
      %6261 = vmatpush2.bf16.msra.mxu0 0
      %6262 = vmatprep.subr.bf16.mxu0 0
      %6263 = vmatpush2.bf16.msra.mxu0 0
      %6264 = vmatprep.subr.bf16.mxu0 0
      %6265 = vmatpush2.bf16.msra.mxu0 0
      %6266 = vmatprep.subr.bf16.mxu0 0
      %6267 = vmatpush2.bf16.msra.mxu0 0
      %6268 = vmatprep.subr.bf16.mxu0 0
      %6269 = vmatpush2.bf16.msra.mxu0 0
      %6270 = vmatprep.mubr.bf16.mxu0 0
      %6271 = vmatmul.mubr.bf16.gmra.mxu0 %v4230
      %v6272 = vpop.f32.mrf.mxu0
      %v6273 = vadd.f32 %v6224, %v6272
      %v6274 = vpop.f32.mrf.mxu0
      %v6275 = vpop.f32.mrf.mxu0
      %v6276 = vadd.f32 %v6224, %v6275
      %v6277 = vpop.f32.mrf.mxu0
      %6278 = vmatprep.mubr.bf16.mxu0 0
      %6279 = vmatmul.mubr.bf16.gmra.mxu0 %v4233
      %v6280 = vpop.f32.mrf.mxu0
      %v6281 = vadd.f32 %v6224, %v6280
      %v6282 = vpop.f32.mrf.mxu0
      %v6283 = vpop.f32.mrf.mxu0
      %v6284 = vadd.f32 %v6224, %v6283
      %v6285 = vpop.f32.mrf.mxu0
      %6286 = vmatprep.mubr.bf16.mxu0 0
      %6287 = vmatmul.mubr.bf16.gmra.mxu0 %v4236
      %v6288 = vpop.f32.mrf.mxu0
      %v6289 = vadd.f32 %v6224, %v6288
      %v6290 = vpop.f32.mrf.mxu0
      %v6291 = vpop.f32.mrf.mxu0
      %v6292 = vadd.f32 %v6224, %v6291
      %v6293 = vpop.f32.mrf.mxu0
      %6294 = vmatprep.mubr.bf16.mxu0 0
      %6295 = vmatmul.mubr.bf16.gmra.mxu0 %v4239
      %v6296 = vpop.f32.mrf.mxu0
      %v6297 = vadd.f32 %v6224, %v6296
      %v6298 = vpop.f32.mrf.mxu0
      %v6299 = vpop.f32.mrf.mxu0
      %v6300 = vadd.f32 %v6224, %v6299
      %v6301 = vpop.f32.mrf.mxu0
      %6302 = vdwg.mxu0
      %s6303 = scalar_lea.vmem %s6, 112
      %v6304 = vld [vmem:[%s6303] sm:$0xf]
      %v6305 = vld [vmem:[%s6303 + $0x4] sm:$0xf]
      %v6306 = vld [vmem:[%s6303 + $0x8] sm:$0xf]
      %v6307 = vld [vmem:[%s6303 + $0xc] sm:$0xf]
      %s6308 = scalar_lea.vmem %s7, 7
      %v6309 = vld [vmem:[%s6308] sm:$0x1]
      %v6311 = vlaneseq
      %v6312 = vshrl.u32 %v6311, 7
      %v6313 = vsub.s32 0, %v6312
      %v6314 = vrot.slane %v6309, %v6313
      %v6320 = vunpack.c.l.b16 %v6304
      %v6321 = vunpack.c.l.b16 %v6305
      %v6322 = vunpack.c.l.b16 %v6306
      %v6323 = vunpack.c.l.b16 %v6307
      %v6324 = vpack.c.b16 %v6321, %v6320
      %v6325 = vpack.c.b16 %v6323, %v6322
      %6328 = vmatprep.subr.bf16.mxu0 0
      %6329 = vmatpush1.bf16.msra.mxu0 0
      %6330 = vmatprep.subr.bf16.mxu0 0
      %6331 = vmatpush1.bf16.msra.mxu0 0
      %6332 = vmatprep.subr.bf16.mxu0 0
      %6333 = vmatpush1.bf16.msra.mxu0 0
      %6334 = vmatprep.subr.bf16.mxu0 0
      %6335 = vmatpush1.bf16.msra.mxu0 0
      %6336 = vmatprep.subr.bf16.mxu0 0
      %6337 = vmatpush1.bf16.msra.mxu0 0
      %6338 = vmatprep.subr.bf16.mxu0 0
      %6339 = vmatpush1.bf16.msra.mxu0 0
      %6340 = vmatprep.subr.bf16.mxu0 0
      %6341 = vmatpush1.bf16.msra.mxu0 %v6325
      %6342 = vmatprep.subr.bf16.mxu0 0
      %6343 = vmatpush1.bf16.msra.mxu0 %v6324
      %6344 = vmatprep.subr.bf16.mxu0 0
      %6345 = vmatpush2.bf16.msra.mxu0 0
      %6346 = vmatprep.subr.bf16.mxu0 0
      %6347 = vmatpush2.bf16.msra.mxu0 0
      %6348 = vmatprep.subr.bf16.mxu0 0
      %6349 = vmatpush2.bf16.msra.mxu0 0
      %6350 = vmatprep.subr.bf16.mxu0 0
      %6351 = vmatpush2.bf16.msra.mxu0 0
      %6352 = vmatprep.subr.bf16.mxu0 0
      %6353 = vmatpush2.bf16.msra.mxu0 0
      %6354 = vmatprep.subr.bf16.mxu0 0
      %6355 = vmatpush2.bf16.msra.mxu0 0
      %6356 = vmatprep.subr.bf16.mxu0 0
      %6357 = vmatpush2.bf16.msra.mxu0 0
      %6358 = vmatprep.subr.bf16.mxu0 0
      %6359 = vmatpush2.bf16.msra.mxu0 0
      %6360 = vmatprep.mubr.bf16.mxu0 0
      %6361 = vmatmul.mubr.bf16.gmra.mxu0 %v4332
      %v6362 = vpop.f32.mrf.mxu0
      %v6363 = vadd.f32 %v6314, %v6362
      %v6364 = vpop.f32.mrf.mxu0
      %v6365 = vpop.f32.mrf.mxu0
      %v6366 = vpop.f32.mrf.mxu0
      %6367 = vdwg.mxu0
      %s6368 = scalar_lea.vmem %s8, 112
      %v6369 = vld [vmem:[%s6368] sm:$0xf]
      %v6370 = vld [vmem:[%s6368 + $0x4] sm:$0xf]
      %v6371 = vld [vmem:[%s6368 + $0x8] sm:$0xf]
      %v6372 = vld [vmem:[%s6368 + $0xc] sm:$0xf]
      %s6373 = scalar_lea.vmem %s9, 7
      %v6374 = vld [vmem:[%s6373] sm:$0x1]
      %v6376 = vlaneseq
      %v6377 = vshrl.u32 %v6376, 7
      %v6378 = vsub.s32 0, %v6377
      %v6379 = vrot.slane %v6374, %v6378
      %v6385 = vunpack.c.l.b16 %v6369
      %v6386 = vunpack.c.l.b16 %v6370
      %v6387 = vunpack.c.l.b16 %v6371
      %v6388 = vunpack.c.l.b16 %v6372
      %v6389 = vpack.c.b16 %v6386, %v6385
      %v6390 = vpack.c.b16 %v6388, %v6387
      %6393 = vmatprep.subr.bf16.mxu0 0
      %6394 = vmatpush1.bf16.msra.mxu0 0
      %6395 = vmatprep.subr.bf16.mxu0 0
      %6396 = vmatpush1.bf16.msra.mxu0 0
      %6397 = vmatprep.subr.bf16.mxu0 0
      %6398 = vmatpush1.bf16.msra.mxu0 0
      %6399 = vmatprep.subr.bf16.mxu0 0
      %6400 = vmatpush1.bf16.msra.mxu0 0
      %6401 = vmatprep.subr.bf16.mxu0 0
      %6402 = vmatpush1.bf16.msra.mxu0 0
      %6403 = vmatprep.subr.bf16.mxu0 0
      %6404 = vmatpush1.bf16.msra.mxu0 0
      %6405 = vmatprep.subr.bf16.mxu0 0
      %6406 = vmatpush1.bf16.msra.mxu0 %v6390
      %6407 = vmatprep.subr.bf16.mxu0 0
      %6408 = vmatpush1.bf16.msra.mxu0 %v6389
      %6409 = vmatprep.subr.bf16.mxu0 0
      %6410 = vmatpush2.bf16.msra.mxu0 0
      %6411 = vmatprep.subr.bf16.mxu0 0
      %6412 = vmatpush2.bf16.msra.mxu0 0
      %6413 = vmatprep.subr.bf16.mxu0 0
      %6414 = vmatpush2.bf16.msra.mxu0 0
      %6415 = vmatprep.subr.bf16.mxu0 0
      %6416 = vmatpush2.bf16.msra.mxu0 0
      %6417 = vmatprep.subr.bf16.mxu0 0
      %6418 = vmatpush2.bf16.msra.mxu0 0
      %6419 = vmatprep.subr.bf16.mxu0 0
      %6420 = vmatpush2.bf16.msra.mxu0 0
      %6421 = vmatprep.subr.bf16.mxu0 0
      %6422 = vmatpush2.bf16.msra.mxu0 0
      %6423 = vmatprep.subr.bf16.mxu0 0
      %6424 = vmatpush2.bf16.msra.mxu0 0
      %6425 = vmatprep.mubr.bf16.mxu0 0
      %6426 = vmatmul.mubr.bf16.gmra.mxu0 %v4332
      %v6427 = vpop.f32.mrf.mxu0
      %v6428 = vadd.f32 %v6379, %v6427
      %v6429 = vpop.f32.mrf.mxu0
      %v6430 = vpop.f32.mrf.mxu0
      %v6431 = vpop.f32.mrf.mxu0
      %6432 = vdwg.mxu0
      %v6434 = vsel %vm1117, %v6273, 0
      %v6437 = vsel %vm1117, %v6276, 0
      %v6440 = vsel %vm1117, %v6281, 0
      %v6443 = vsel %vm1117, %v6284, 0
      %v6446 = vsel %vm1117, %v6289, 0
      %v6449 = vsel %vm1117, %v6292, 0
      %v6452 = vsel %vm1117, %v6297, 0
      %v6455 = vsel %vm1117, %v6300, 0
      %v6458 = vsel %vm1117, %v6363, 0
      %6460 = vmatprep.subr.mxu0 0.0
      %6461 = vmatpush1.xpose.msra.mxu0 0.0
      %6462 = vmatprep.subr.mxu0 0.0
      %6463 = vmatpush1.xpose.msra.mxu0 0.0
      %6464 = vmatprep.subr.mxu0 0.0
      %6465 = vmatpush1.xpose.msra.mxu0 0.0
      %6466 = vmatprep.subr.mxu0 0.0
      %6467 = vmatpush1.xpose.msra.mxu0 0.0
      %6468 = vmatprep.subr.mxu0 0.0
      %6469 = vmatpush1.xpose.msra.mxu0 0.0
      %6470 = vmatprep.subr.mxu0 0.0
      %6471 = vmatpush1.xpose.msra.mxu0 0.0
      %6472 = vmatprep.subr.mxu0 0.0
      %6473 = vmatpush1.xpose.msra.mxu0 0.0
      %6474 = vmatprep.subr.mxu0 0.0
      %6475 = vmatpush1.xpose.msra.mxu0 0.0
      %6476 = vmatprep.subr.mxu0 0.0
      %6477 = vmatpush1.xpose.msra.mxu0 0.0
      %6478 = vmatprep.subr.mxu0 0.0
      %6479 = vmatpush1.xpose.msra.mxu0 0.0
      %6480 = vmatprep.subr.mxu0 0.0
      %6481 = vmatpush1.xpose.msra.mxu0 0.0
      %6482 = vmatprep.subr.mxu0 0.0
      %6483 = vmatpush1.xpose.msra.mxu0 0.0
      %6484 = vmatprep.subr.mxu0 0.0
      %6485 = vmatpush1.xpose.msra.mxu0 0.0
      %6486 = vmatprep.subr.mxu0 0.0
      %6487 = vmatpush1.xpose.msra.mxu0 0.0
      %6488 = vmatprep.subr.mxu0 0.0
      %6489 = vmatpush1.xpose.msra.mxu0 0.0
      %6490 = vmatprep.subr.mxu0 0.0
      %6491 = vmatpush1.xpose.msra.mxu0 %v6458
      %6492 = vmatprep.subr.mxu0 0.0
      %6493 = vmatpush2.xpose.msra.mxu0 0.0
      %6494 = vmatprep.subr.mxu0 0.0
      %6495 = vmatpush2.xpose.msra.mxu0 0.0
      %6496 = vmatprep.subr.mxu0 0.0
      %6497 = vmatpush2.xpose.msra.mxu0 0.0
      %6498 = vmatprep.subr.mxu0 0.0
      %6499 = vmatpush2.xpose.msra.mxu0 0.0
      %6500 = vmatprep.subr.mxu0 0.0
      %6501 = vmatpush2.xpose.msra.mxu0 0.0
      %6502 = vmatprep.subr.mxu0 0.0
      %6503 = vmatpush2.xpose.msra.mxu0 0.0
      %6504 = vmatprep.subr.mxu0 0.0
      %6505 = vmatpush2.xpose.msra.mxu0 0.0
      %6506 = vmatprep.subr.mxu0 0.0
      %6507 = vmatpush2.xpose.msra.mxu0 0.0
      %6508 = vmatprep.subr.mxu0 0.0
      %6509 = vmatpush2.xpose.msra.mxu0 0.0
      %6510 = vmatprep.subr.mxu0 0.0
      %6511 = vmatpush2.xpose.msra.mxu0 0.0
      %6512 = vmatprep.subr.mxu0 0.0
      %6513 = vmatpush2.xpose.msra.mxu0 0.0
      %6514 = vmatprep.subr.mxu0 0.0
      %6515 = vmatpush2.xpose.msra.mxu0 0.0
      %6516 = vmatprep.subr.mxu0 0.0
      %6517 = vmatpush2.xpose.msra.mxu0 0.0
      %6518 = vmatprep.subr.mxu0 0.0
      %6519 = vmatpush2.xpose.msra.mxu0 0.0
      %6520 = vmatprep.subr.mxu0 0.0
      %6521 = vmatpush2.xpose.msra.mxu0 0.0
      %6522 = vmatprep.subr.mxu0 0.0
      %6523 = vmatpush2.xpose.msra.mxu0 0.0
      %6524 = vmatprep.mubr.f32.mxu0 0.0
      %6525 = vmatmul.mubr.f32.gmra.mxu0 %v6434
      %v6526 = vpop.f32.mrf.mxu0
      %v6527 = vadd.f32 0.0, %v6526
      %v6528 = vpop.f32.mrf.mxu0
      %6529 = vmatprep.mubr.f32.mxu0 0.0
      %6530 = vmatmul.mubr.f32.gmra.mxu0 %v6437
      %v6531 = vpop.f32.mrf.mxu0
      %v6532 = vadd.f32 0.0, %v6531
      %v6533 = vpop.f32.mrf.mxu0
      %6534 = vmatprep.mubr.f32.mxu0 0.0
      %6535 = vmatmul.mubr.f32.gmra.mxu0 %v6440
      %v6536 = vpop.f32.mrf.mxu0
      %v6537 = vadd.f32 0.0, %v6536
      %v6538 = vpop.f32.mrf.mxu0
      %6539 = vmatprep.mubr.f32.mxu0 0.0
      %6540 = vmatmul.mubr.f32.gmra.mxu0 %v6443
      %v6541 = vpop.f32.mrf.mxu0
      %v6542 = vadd.f32 0.0, %v6541
      %v6543 = vpop.f32.mrf.mxu0
      %6544 = vmatprep.mubr.f32.mxu0 0.0
      %6545 = vmatmul.mubr.f32.gmra.mxu0 %v6446
      %v6546 = vpop.f32.mrf.mxu0
      %v6547 = vadd.f32 0.0, %v6546
      %v6548 = vpop.f32.mrf.mxu0
      %6549 = vmatprep.mubr.f32.mxu0 0.0
      %6550 = vmatmul.mubr.f32.gmra.mxu0 %v6449
      %v6551 = vpop.f32.mrf.mxu0
      %v6552 = vadd.f32 0.0, %v6551
      %v6553 = vpop.f32.mrf.mxu0
      %6554 = vmatprep.mubr.f32.mxu0 0.0
      %6555 = vmatmul.mubr.f32.gmra.mxu0 %v6452
      %v6556 = vpop.f32.mrf.mxu0
      %v6557 = vadd.f32 0.0, %v6556
      %v6558 = vpop.f32.mrf.mxu0
      %6559 = vmatprep.mubr.f32.mxu0 0.0
      %6560 = vmatmul.mubr.f32.gmra.mxu0 %v6455
      %v6561 = vpop.f32.mrf.mxu0
      %v6562 = vadd.f32 0.0, %v6561
      %v6563 = vpop.f32.mrf.mxu0
      %6564 = vdwg.mxu0
      %v6565 = vsel %vm1250, %v6527, -inf
      %6566 = vmax.xlane.f32.xlu0 %v6565
      %v6567 = vpop.xlane.xlu0 %6566
      %v6568 = vsel %vm1250, %v6532, -inf
      %6569 = vmax.xlane.f32.xlu0 %v6568
      %v6570 = vpop.xlane.xlu0 %6569
      %v6571 = vsel %vm1250, %v6537, -inf
      %6572 = vmax.xlane.f32.xlu0 %v6571
      %v6573 = vpop.xlane.xlu0 %6572
      %v6574 = vsel %vm1250, %v6542, -inf
      %6575 = vmax.xlane.f32.xlu0 %v6574
      %v6576 = vpop.xlane.xlu0 %6575
      %v6577 = vsel %vm1250, %v6547, -inf
      %6578 = vmax.xlane.f32.xlu0 %v6577
      %v6579 = vpop.xlane.xlu0 %6578
      %v6580 = vsel %vm1250, %v6552, -inf
      %6581 = vmax.xlane.f32.xlu0 %v6580
      %v6582 = vpop.xlane.xlu0 %6581
      %v6583 = vsel %vm1250, %v6557, -inf
      %6584 = vmax.xlane.f32.xlu0 %v6583
      %v6585 = vpop.xlane.xlu0 %6584
      %v6586 = vsel %vm1250, %v6562, -inf
      %6587 = vmax.xlane.f32.xlu0 %v6586
      %v6588 = vpop.xlane.xlu0 %6587
      %v6589 = vsub.f32 %v6527, %v6567
      %v6590 = vsub.f32 %v6532, %v6570
      %v6591 = vsub.f32 %v6537, %v6573
      %v6592 = vsub.f32 %v6542, %v6576
      %v6593 = vsub.f32 %v6547, %v6579
      %v6594 = vsub.f32 %v6552, %v6582
      %v6595 = vsub.f32 %v6557, %v6585
      %v6596 = vsub.f32 %v6562, %v6588
      %v6597 = vmul.f32 %v6589, 1.442695
      %v6598 = vpow.pop %v6597
      %v6599 = vmul.f32 %v6590, 1.442695
      %v6600 = vpow.pop %v6599
      %v6601 = vmul.f32 %v6591, 1.442695
      %v6602 = vpow.pop %v6601
      %v6603 = vmul.f32 %v6592, 1.442695
      %v6604 = vpow.pop %v6603
      %v6605 = vmul.f32 %v6593, 1.442695
      %v6606 = vpow.pop %v6605
      %v6607 = vmul.f32 %v6594, 1.442695
      %v6608 = vpow.pop %v6607
      %v6609 = vmul.f32 %v6595, 1.442695
      %v6610 = vpow.pop %v6609
      %v6611 = vmul.f32 %v6596, 1.442695
      %v6612 = vpow.pop %v6611
      %v6613 = vsel %vm1250, %v6598, 0.0
      %6614 = vadd.xlane.f32.xlu0 %v6613
      %v6615 = vpop.xlane.xlu0 %6614
      %v6616 = vsel %vm1250, %v6600, 0.0
      %6617 = vadd.xlane.f32.xlu0 %v6616
      %v6618 = vpop.xlane.xlu0 %6617
      %v6619 = vsel %vm1250, %v6602, 0.0
      %6620 = vadd.xlane.f32.xlu0 %v6619
      %v6621 = vpop.xlane.xlu0 %6620
      %v6622 = vsel %vm1250, %v6604, 0.0
      %6623 = vadd.xlane.f32.xlu0 %v6622
      %v6624 = vpop.xlane.xlu0 %6623
      %v6625 = vsel %vm1250, %v6606, 0.0
      %6626 = vadd.xlane.f32.xlu0 %v6625
      %v6627 = vpop.xlane.xlu0 %6626
      %v6628 = vsel %vm1250, %v6608, 0.0
      %6629 = vadd.xlane.f32.xlu0 %v6628
      %v6630 = vpop.xlane.xlu0 %6629
      %v6631 = vsel %vm1250, %v6610, 0.0
      %6632 = vadd.xlane.f32.xlu0 %v6631
      %v6633 = vpop.xlane.xlu0 %6632
      %v6634 = vsel %vm1250, %v6612, 0.0
      %6635 = vadd.xlane.f32.xlu0 %v6634
      %v6636 = vpop.xlane.xlu0 %6635
      %v6637 = vrcp.pop %v6615
      %v6638 = vmul.f32 %v6598, %v6637
      %v6639 = vrcp.pop %v6618
      %v6640 = vmul.f32 %v6600, %v6639
      %v6641 = vrcp.pop %v6621
      %v6642 = vmul.f32 %v6602, %v6641
      %v6643 = vrcp.pop %v6624
      %v6644 = vmul.f32 %v6604, %v6643
      %v6645 = vrcp.pop %v6627
      %v6646 = vmul.f32 %v6606, %v6645
      %v6647 = vrcp.pop %v6630
      %v6648 = vmul.f32 %v6608, %v6647
      %v6649 = vrcp.pop %v6633
      %v6650 = vmul.f32 %v6610, %v6649
      %v6651 = vrcp.pop %v6636
      %v6652 = vmul.f32 %v6612, %v6651
      %v6654 = vsel %vm1250, %v6638, 0
      %v6657 = vsel %vm1250, %v6640, 0
      %v6660 = vsel %vm1250, %v6642, 0
      %v6663 = vsel %vm1250, %v6644, 0
      %v6666 = vsel %vm1250, %v6646, 0
      %v6669 = vsel %vm1250, %v6648, 0
      %v6672 = vsel %vm1250, %v6650, 0
      %v6675 = vsel %vm1250, %v6652, 0
      %v6678 = vsel %vm1363, %v6428, 0
      %6680 = vmatprep.subr.mxu0 0.0
      %6681 = vmatpush1.msra.mxu0 0.0
      %6682 = vmatprep.subr.mxu0 0.0
      %6683 = vmatpush1.msra.mxu0 0.0
      %6684 = vmatprep.subr.mxu0 0.0
      %6685 = vmatpush1.msra.mxu0 0.0
      %6686 = vmatprep.subr.mxu0 0.0
      %6687 = vmatpush1.msra.mxu0 0.0
      %6688 = vmatprep.subr.mxu0 0.0
      %6689 = vmatpush1.msra.mxu0 0.0
      %6690 = vmatprep.subr.mxu0 0.0
      %6691 = vmatpush1.msra.mxu0 0.0
      %6692 = vmatprep.subr.mxu0 0.0
      %6693 = vmatpush1.msra.mxu0 0.0
      %6694 = vmatprep.subr.mxu0 0.0
      %6695 = vmatpush1.msra.mxu0 0.0
      %6696 = vmatprep.subr.mxu0 0.0
      %6697 = vmatpush1.msra.mxu0 0.0
      %6698 = vmatprep.subr.mxu0 0.0
      %6699 = vmatpush1.msra.mxu0 0.0
      %6700 = vmatprep.subr.mxu0 0.0
      %6701 = vmatpush1.msra.mxu0 0.0
      %6702 = vmatprep.subr.mxu0 0.0
      %6703 = vmatpush1.msra.mxu0 0.0
      %6704 = vmatprep.subr.mxu0 0.0
      %6705 = vmatpush1.msra.mxu0 0.0
      %6706 = vmatprep.subr.mxu0 0.0
      %6707 = vmatpush1.msra.mxu0 0.0
      %6708 = vmatprep.subr.mxu0 0.0
      %6709 = vmatpush1.msra.mxu0 0.0
      %6710 = vmatprep.subr.mxu0 0.0
      %6711 = vmatpush1.msra.mxu0 %v6678
      %6712 = vmatprep.subr.mxu0 0.0
      %6713 = vmatpush2.msra.mxu0 0.0
      %6714 = vmatprep.subr.mxu0 0.0
      %6715 = vmatpush2.msra.mxu0 0.0
      %6716 = vmatprep.subr.mxu0 0.0
      %6717 = vmatpush2.msra.mxu0 0.0
      %6718 = vmatprep.subr.mxu0 0.0
      %6719 = vmatpush2.msra.mxu0 0.0
      %6720 = vmatprep.subr.mxu0 0.0
      %6721 = vmatpush2.msra.mxu0 0.0
      %6722 = vmatprep.subr.mxu0 0.0
      %6723 = vmatpush2.msra.mxu0 0.0
      %6724 = vmatprep.subr.mxu0 0.0
      %6725 = vmatpush2.msra.mxu0 0.0
      %6726 = vmatprep.subr.mxu0 0.0
      %6727 = vmatpush2.msra.mxu0 0.0
      %6728 = vmatprep.subr.mxu0 0.0
      %6729 = vmatpush2.msra.mxu0 0.0
      %6730 = vmatprep.subr.mxu0 0.0
      %6731 = vmatpush2.msra.mxu0 0.0
      %6732 = vmatprep.subr.mxu0 0.0
      %6733 = vmatpush2.msra.mxu0 0.0
      %6734 = vmatprep.subr.mxu0 0.0
      %6735 = vmatpush2.msra.mxu0 0.0
      %6736 = vmatprep.subr.mxu0 0.0
      %6737 = vmatpush2.msra.mxu0 0.0
      %6738 = vmatprep.subr.mxu0 0.0
      %6739 = vmatpush2.msra.mxu0 0.0
      %6740 = vmatprep.subr.mxu0 0.0
      %6741 = vmatpush2.msra.mxu0 0.0
      %6742 = vmatprep.subr.mxu0 0.0
      %6743 = vmatpush2.msra.mxu0 0.0
      %6744 = vmatprep.mubr.f32.mxu0 0.0
      %6745 = vmatmul.mubr.f32.gmra.mxu0 %v6654
      %v6746 = vpop.f32.mrf.mxu0
      %v6747 = vadd.f32 0.0, %v6746
      %v6748 = vpop.f32.mrf.mxu0
      %6749 = vmatprep.mubr.f32.mxu0 0.0
      %6750 = vmatmul.mubr.f32.gmra.mxu0 %v6657
      %v6751 = vpop.f32.mrf.mxu0
      %v6752 = vadd.f32 0.0, %v6751
      %v6753 = vpop.f32.mrf.mxu0
      %6754 = vmatprep.mubr.f32.mxu0 0.0
      %6755 = vmatmul.mubr.f32.gmra.mxu0 %v6660
      %v6756 = vpop.f32.mrf.mxu0
      %v6757 = vadd.f32 0.0, %v6756
      %v6758 = vpop.f32.mrf.mxu0
      %6759 = vmatprep.mubr.f32.mxu0 0.0
      %6760 = vmatmul.mubr.f32.gmra.mxu0 %v6663
      %v6761 = vpop.f32.mrf.mxu0
      %v6762 = vadd.f32 0.0, %v6761
      %v6763 = vpop.f32.mrf.mxu0
      %6764 = vmatprep.mubr.f32.mxu0 0.0
      %6765 = vmatmul.mubr.f32.gmra.mxu0 %v6666
      %v6766 = vpop.f32.mrf.mxu0
      %v6767 = vadd.f32 0.0, %v6766
      %v6768 = vpop.f32.mrf.mxu0
      %6769 = vmatprep.mubr.f32.mxu0 0.0
      %6770 = vmatmul.mubr.f32.gmra.mxu0 %v6669
      %v6771 = vpop.f32.mrf.mxu0
      %v6772 = vadd.f32 0.0, %v6771
      %v6773 = vpop.f32.mrf.mxu0
      %6774 = vmatprep.mubr.f32.mxu0 0.0
      %6775 = vmatmul.mubr.f32.gmra.mxu0 %v6672
      %v6776 = vpop.f32.mrf.mxu0
      %v6777 = vadd.f32 0.0, %v6776
      %v6778 = vpop.f32.mrf.mxu0
      %6779 = vmatprep.mubr.f32.mxu0 0.0
      %6780 = vmatmul.mubr.f32.gmra.mxu0 %v6675
      %v6781 = vpop.f32.mrf.mxu0
      %v6782 = vadd.f32 0.0, %v6781
      %v6783 = vpop.f32.mrf.mxu0
      %6784 = vdwg.mxu0
      %v6785 = vpack.c.bf16 %v6752, %v6747
      %v6786 = vpack.c.bf16 %v6762, %v6757
      %v6787 = vpack.c.bf16 %v6772, %v6767
      %v6788 = vpack.c.bf16 %v6782, %v6777
      %s6789 = scalar_lea.vmem %s10, 56
      %v6790 = vld [vmem:[%s6789] sm:$0xf]
      %v6791 = vld [vmem:[%s6789 + $0x4] sm:$0xf]
      %v6794 = vunpack.c.l.b16 %v6790
      %v6795 = vunpack.c.l.b16 %v6791
      %v6796 = vpack.c.b16 %v6795, %v6794
      %v6799 = vsel %vm1117, %v6785, 0
      %v6802 = vsel %vm1117, %v6786, 0
      %v6805 = vsel %vm1117, %v6787, 0
      %v6808 = vsel %vm1117, %v6788, 0
      %6810 = vmatprep.subr.bf16.mxu0 0
      %6811 = vmatpush1.bf16.msra.mxu0 0
      %6812 = vmatprep.subr.bf16.mxu0 0
      %6813 = vmatpush1.bf16.msra.mxu0 0
      %6814 = vmatprep.subr.bf16.mxu0 0
      %6815 = vmatpush1.bf16.msra.mxu0 0
      %6816 = vmatprep.subr.bf16.mxu0 0
      %6817 = vmatpush1.bf16.msra.mxu0 0
      %6818 = vmatprep.subr.bf16.mxu0 0
      %6819 = vmatpush1.bf16.msra.mxu0 0
      %6820 = vmatprep.subr.bf16.mxu0 0
      %6821 = vmatpush1.bf16.msra.mxu0 0
      %6822 = vmatprep.subr.bf16.mxu0 0
      %6823 = vmatpush1.bf16.msra.mxu0 0
      %6824 = vmatprep.subr.bf16.mxu0 0
      %6825 = vmatpush1.bf16.msra.mxu0 %v6796
      %6826 = vmatprep.subr.bf16.mxu0 0
      %6827 = vmatpush2.bf16.msra.mxu0 0
      %6828 = vmatprep.subr.bf16.mxu0 0
      %6829 = vmatpush2.bf16.msra.mxu0 0
      %6830 = vmatprep.subr.bf16.mxu0 0
      %6831 = vmatpush2.bf16.msra.mxu0 0
      %6832 = vmatprep.subr.bf16.mxu0 0
      %6833 = vmatpush2.bf16.msra.mxu0 0
      %6834 = vmatprep.subr.bf16.mxu0 0
      %6835 = vmatpush2.bf16.msra.mxu0 0
      %6836 = vmatprep.subr.bf16.mxu0 0
      %6837 = vmatpush2.bf16.msra.mxu0 0
      %6838 = vmatprep.subr.bf16.mxu0 0
      %6839 = vmatpush2.bf16.msra.mxu0 0
      %6840 = vmatprep.subr.bf16.mxu0 0
      %6841 = vmatpush2.bf16.msra.mxu0 0
      %6842 = vmatprep.mubr.bf16.mxu0 0
      %6843 = vmatmul.mubr.bf16.gmra.mxu0 %v6799
      %v6844 = vpop.f32.mrf.mxu0
      %v6845 = vadd.f32 0.0, %v6844
      %v6846 = vpop.f32.mrf.mxu0
      %v6847 = vpop.f32.mrf.mxu0
      %v6848 = vadd.f32 0.0, %v6847
      %v6849 = vpop.f32.mrf.mxu0
      %6850 = vmatprep.mubr.bf16.mxu0 0
      %6851 = vmatmul.mubr.bf16.gmra.mxu0 %v6802
      %v6852 = vpop.f32.mrf.mxu0
      %v6853 = vadd.f32 0.0, %v6852
      %v6854 = vpop.f32.mrf.mxu0
      %v6855 = vpop.f32.mrf.mxu0
      %v6856 = vadd.f32 0.0, %v6855
      %v6857 = vpop.f32.mrf.mxu0
      %6858 = vmatprep.mubr.bf16.mxu0 0
      %6859 = vmatmul.mubr.bf16.gmra.mxu0 %v6805
      %v6860 = vpop.f32.mrf.mxu0
      %v6861 = vadd.f32 0.0, %v6860
      %v6862 = vpop.f32.mrf.mxu0
      %v6863 = vpop.f32.mrf.mxu0
      %v6864 = vadd.f32 0.0, %v6863
      %v6865 = vpop.f32.mrf.mxu0
      %6866 = vmatprep.mubr.bf16.mxu0 0
      %6867 = vmatmul.mubr.bf16.gmra.mxu0 %v6808
      %v6868 = vpop.f32.mrf.mxu0
      %v6869 = vadd.f32 0.0, %v6868
      %v6870 = vpop.f32.mrf.mxu0
      %v6871 = vpop.f32.mrf.mxu0
      %v6872 = vadd.f32 0.0, %v6871
      %v6873 = vpop.f32.mrf.mxu0
      %6874 = vdwg.mxu0
      %v6875 = vadd.f32 %v6205, %v6845
      %v6876 = vadd.f32 %v6206, %v6848
      %v6877 = vadd.f32 %v6207, %v6853
      %v6878 = vadd.f32 %v6208, %v6856
      %v6879 = vadd.f32 %v6209, %v6861
      %v6880 = vadd.f32 %v6210, %v6864
      %v6881 = vadd.f32 %v6211, %v6869
      %v6882 = vadd.f32 %v6212, %v6872
      %s6883 = scalar_lea.vmem %s11, 1
      %v6884 = vld [vmem:[%s6883] sm:$0x1]
      %v6886 = vlaneseq
      %v6887 = vshrl.u32 %v6886, 7
      %v6888 = vsub.s32 0, %v6887
      %v6889 = vrot.slane %v6884, %v6888
      %v6891 = vadd.f32 %v6875, %v6889
      %v6892 = vadd.f32 %v6876, %v6889
      %v6893 = vadd.f32 %v6877, %v6889
      %v6894 = vadd.f32 %v6878, %v6889
      %v6895 = vadd.f32 %v6879, %v6889
      %v6896 = vadd.f32 %v6880, %v6889
      %v6897 = vadd.f32 %v6881, %v6889
      %v6898 = vadd.f32 %v6882, %v6889
      %v6899 = vadd.f32 %v4151, %v6891
      %v6900 = vadd.f32 %v4152, %v6892
      %v6901 = vadd.f32 %v4153, %v6893
      %v6902 = vadd.f32 %v4154, %v6894
      %v6903 = vadd.f32 %v4155, %v6895
      %v6904 = vadd.f32 %v4156, %v6896
      %v6905 = vadd.f32 %v4157, %v6897
      %v6906 = vadd.f32 %v4158, %v6898
      %s6907 = scalar_lea.vmem %s12, 1
      %v6908 = vld [vmem:[%s6907] sm:$0x1]
      %s6909 = scalar_lea.vmem %s13, 1
      %v6910 = vld [vmem:[%s6909] sm:$0x1]
      %v6911 = vsel %vm910, %v6899, 0.0
      %6912 = vadd.xlane.f32.xlu0 %v6911
      %v6913 = vpop.xlane.xlu0 %6912
      %v6914 = vsel %vm910, %v6900, 0.0
      %6915 = vadd.xlane.f32.xlu0 %v6914
      %v6916 = vpop.xlane.xlu0 %6915
      %v6917 = vsel %vm910, %v6901, 0.0
      %6918 = vadd.xlane.f32.xlu0 %v6917
      %v6919 = vpop.xlane.xlu0 %6918
      %v6920 = vsel %vm910, %v6902, 0.0
      %6921 = vadd.xlane.f32.xlu0 %v6920
      %v6922 = vpop.xlane.xlu0 %6921
      %v6923 = vsel %vm910, %v6903, 0.0
      %6924 = vadd.xlane.f32.xlu0 %v6923
      %v6925 = vpop.xlane.xlu0 %6924
      %v6926 = vsel %vm910, %v6904, 0.0
      %6927 = vadd.xlane.f32.xlu0 %v6926
      %v6928 = vpop.xlane.xlu0 %6927
      %v6929 = vsel %vm910, %v6905, 0.0
      %6930 = vadd.xlane.f32.xlu0 %v6929
      %v6931 = vpop.xlane.xlu0 %6930
      %v6932 = vsel %vm910, %v6906, 0.0
      %6933 = vadd.xlane.f32.xlu0 %v6932
      %v6934 = vpop.xlane.xlu0 %6933
      %v6935 = vmul.f32 %v6913, %v3612
      %v6936 = vmul.f32 %v6916, %v3612
      %v6937 = vmul.f32 %v6919, %v3612
      %v6938 = vmul.f32 %v6922, %v3612
      %v6939 = vmul.f32 %v6925, %v3612
      %v6940 = vmul.f32 %v6928, %v3612
      %v6941 = vmul.f32 %v6931, %v3612
      %v6942 = vmul.f32 %v6934, %v3612
      %v6943 = vsub.f32 %v6899, %v6935
      %v6944 = vsub.f32 %v6900, %v6936
      %v6945 = vsub.f32 %v6901, %v6937
      %v6946 = vsub.f32 %v6902, %v6938
      %v6947 = vsub.f32 %v6903, %v6939
      %v6948 = vsub.f32 %v6904, %v6940
      %v6949 = vsub.f32 %v6905, %v6941
      %v6950 = vsub.f32 %v6906, %v6942
      %v6951 = vmul.f32 %v6943, %v6943
      %v6952 = vmul.f32 %v6944, %v6944
      %v6953 = vmul.f32 %v6945, %v6945
      %v6954 = vmul.f32 %v6946, %v6946
      %v6955 = vmul.f32 %v6947, %v6947
      %v6956 = vmul.f32 %v6948, %v6948
      %v6957 = vmul.f32 %v6949, %v6949
      %v6958 = vmul.f32 %v6950, %v6950
      %v6959 = vsel %vm910, %v6951, 0.0
      %6960 = vadd.xlane.f32.xlu0 %v6959
      %v6961 = vpop.xlane.xlu0 %6960
      %v6962 = vsel %vm910, %v6952, 0.0
      %6963 = vadd.xlane.f32.xlu0 %v6962
      %v6964 = vpop.xlane.xlu0 %6963
      %v6965 = vsel %vm910, %v6953, 0.0
      %6966 = vadd.xlane.f32.xlu0 %v6965
      %v6967 = vpop.xlane.xlu0 %6966
      %v6968 = vsel %vm910, %v6954, 0.0
      %6969 = vadd.xlane.f32.xlu0 %v6968
      %v6970 = vpop.xlane.xlu0 %6969
      %v6971 = vsel %vm910, %v6955, 0.0
      %6972 = vadd.xlane.f32.xlu0 %v6971
      %v6973 = vpop.xlane.xlu0 %6972
      %v6974 = vsel %vm910, %v6956, 0.0
      %6975 = vadd.xlane.f32.xlu0 %v6974
      %v6976 = vpop.xlane.xlu0 %6975
      %v6977 = vsel %vm910, %v6957, 0.0
      %6978 = vadd.xlane.f32.xlu0 %v6977
      %v6979 = vpop.xlane.xlu0 %6978
      %v6980 = vsel %vm910, %v6958, 0.0
      %6981 = vadd.xlane.f32.xlu0 %v6980
      %v6982 = vpop.xlane.xlu0 %6981
      %v6983 = vmul.f32 %v6961, %v3612
      %v6984 = vmul.f32 %v6964, %v3612
      %v6985 = vmul.f32 %v6967, %v3612
      %v6986 = vmul.f32 %v6970, %v3612
      %v6987 = vmul.f32 %v6973, %v3612
      %v6988 = vmul.f32 %v6976, %v3612
      %v6989 = vmul.f32 %v6979, %v3612
      %v6990 = vmul.f32 %v6982, %v3612
      %v6991 = vadd.f32 %v6983, 1e-05
      %v6992 = vadd.f32 %v6984, 1e-05
      %v6993 = vadd.f32 %v6985, 1e-05
      %v6994 = vadd.f32 %v6986, 1e-05
      %v6995 = vadd.f32 %v6987, 1e-05
      %v6996 = vadd.f32 %v6988, 1e-05
      %v6997 = vadd.f32 %v6989, 1e-05
      %v6998 = vadd.f32 %v6990, 1e-05
      %v6999 = vrsqrt.pop %v6991
      %v7000 = vrsqrt.pop %v6992
      %v7001 = vrsqrt.pop %v6993
      %v7002 = vrsqrt.pop %v6994
      %v7003 = vrsqrt.pop %v6995
      %v7004 = vrsqrt.pop %v6996
      %v7005 = vrsqrt.pop %v6997
      %v7006 = vrsqrt.pop %v6998
      %v7007 = vmul.f32 %v6943, %v6999
      %v7008 = vmul.f32 %v6944, %v7000
      %v7009 = vmul.f32 %v6945, %v7001
      %v7010 = vmul.f32 %v6946, %v7002
      %v7011 = vmul.f32 %v6947, %v7003
      %v7012 = vmul.f32 %v6948, %v7004
      %v7013 = vmul.f32 %v6949, %v7005
      %v7014 = vmul.f32 %v6950, %v7006
      %v7016 = vlaneseq
      %v7017 = vshrl.u32 %v7016, 7
      %v7018 = vsub.s32 0, %v7017
      %v7019 = vrot.slane %v6908, %v7018
      %v7021 = vmul.f32 %v7007, %v7019
      %v7022 = vmul.f32 %v7008, %v7019
      %v7023 = vmul.f32 %v7009, %v7019
      %v7024 = vmul.f32 %v7010, %v7019
      %v7025 = vmul.f32 %v7011, %v7019
      %v7026 = vmul.f32 %v7012, %v7019
      %v7027 = vmul.f32 %v7013, %v7019
      %v7028 = vmul.f32 %v7014, %v7019
      %v7030 = vlaneseq
      %v7031 = vshrl.u32 %v7030, 7
      %v7032 = vsub.s32 0, %v7031
      %v7033 = vrot.slane %v6910, %v7032
      %v7035 = vadd.f32 %v7021, %v7033
      %v7036 = vadd.f32 %v7022, %v7033
      %v7037 = vadd.f32 %v7023, %v7033
      %v7038 = vadd.f32 %v7024, %v7033
      %v7039 = vadd.f32 %v7025, %v7033
      %v7040 = vadd.f32 %v7026, %v7033
      %v7041 = vadd.f32 %v7027, %v7033
      %v7042 = vadd.f32 %v7028, %v7033
      %v7043 = vpack.c.bf16 %v7036, %v7035
      %v7044 = vpack.c.bf16 %v7038, %v7037
      %v7045 = vpack.c.bf16 %v7040, %v7039
      %v7046 = vpack.c.bf16 %v7042, %v7041
      %s7047 = scalar_lea.vmem %s14, 16
      %v7048 = vld [vmem:[%s7047] sm:$0xf]
      %v7049 = vld [vmem:[%s7047 + $0x4] sm:$0xf]
      %v7050 = vld [vmem:[%s7047 + $0x8] sm:$0xf]
      %v7051 = vld [vmem:[%s7047 + $0xc] sm:$0xf]
      %s7052 = scalar_lea.vmem %s15, 1
      %v7053 = vld [vmem:[%s7052] sm:$0x1]
      %v7055 = vlaneseq
      %v7056 = vshrl.u32 %v7055, 7
      %v7057 = vsub.s32 0, %v7056
      %v7058 = vrot.slane %v7053, %v7057
      %v7064 = vunpack.c.l.b16 %v7048
      %v7065 = vunpack.c.l.b16 %v7049
      %v7066 = vunpack.c.l.b16 %v7050
      %v7067 = vunpack.c.l.b16 %v7051
      %v7068 = vpack.c.b16 %v7065, %v7064
      %v7069 = vpack.c.b16 %v7067, %v7066
      %v7073 = vsel %vm910, %v7043, 0
      %v7076 = vsel %vm910, %v7044, 0
      %v7079 = vsel %vm910, %v7045, 0
      %v7082 = vsel %vm910, %v7046, 0
      %7084 = vmatprep.subr.bf16.mxu0 0
      %7085 = vmatpush1.bf16.msra.mxu0 0
      %7086 = vmatprep.subr.bf16.mxu0 0
      %7087 = vmatpush1.bf16.msra.mxu0 0
      %7088 = vmatprep.subr.bf16.mxu0 0
      %7089 = vmatpush1.bf16.msra.mxu0 0
      %7090 = vmatprep.subr.bf16.mxu0 0
      %7091 = vmatpush1.bf16.msra.mxu0 0
      %7092 = vmatprep.subr.bf16.mxu0 0
      %7093 = vmatpush1.bf16.msra.mxu0 0
      %7094 = vmatprep.subr.bf16.mxu0 0
      %7095 = vmatpush1.bf16.msra.mxu0 0
      %7096 = vmatprep.subr.bf16.mxu0 0
      %7097 = vmatpush1.bf16.msra.mxu0 %v7069
      %7098 = vmatprep.subr.bf16.mxu0 0
      %7099 = vmatpush1.bf16.msra.mxu0 %v7068
      %7100 = vmatprep.subr.bf16.mxu0 0
      %7101 = vmatpush2.bf16.msra.mxu0 0
      %7102 = vmatprep.subr.bf16.mxu0 0
      %7103 = vmatpush2.bf16.msra.mxu0 0
      %7104 = vmatprep.subr.bf16.mxu0 0
      %7105 = vmatpush2.bf16.msra.mxu0 0
      %7106 = vmatprep.subr.bf16.mxu0 0
      %7107 = vmatpush2.bf16.msra.mxu0 0
      %7108 = vmatprep.subr.bf16.mxu0 0
      %7109 = vmatpush2.bf16.msra.mxu0 0
      %7110 = vmatprep.subr.bf16.mxu0 0
      %7111 = vmatpush2.bf16.msra.mxu0 0
      %7112 = vmatprep.subr.bf16.mxu0 0
      %7113 = vmatpush2.bf16.msra.mxu0 0
      %7114 = vmatprep.subr.bf16.mxu0 0
      %7115 = vmatpush2.bf16.msra.mxu0 0
      %7116 = vmatprep.mubr.bf16.mxu0 0
      %7117 = vmatmul.mubr.bf16.gmra.mxu0 %v7073
      %v7118 = vpop.f32.mrf.mxu0
      %v7119 = vadd.f32 %v7058, %v7118
      %v7120 = vpop.f32.mrf.mxu0
      %v7121 = vpop.f32.mrf.mxu0
      %v7122 = vadd.f32 %v7058, %v7121
      %v7123 = vpop.f32.mrf.mxu0
      %7124 = vmatprep.mubr.bf16.mxu0 0
      %7125 = vmatmul.mubr.bf16.gmra.mxu0 %v7076
      %v7126 = vpop.f32.mrf.mxu0
      %v7127 = vadd.f32 %v7058, %v7126
      %v7128 = vpop.f32.mrf.mxu0
      %v7129 = vpop.f32.mrf.mxu0
      %v7130 = vadd.f32 %v7058, %v7129
      %v7131 = vpop.f32.mrf.mxu0
      %7132 = vmatprep.mubr.bf16.mxu0 0
      %7133 = vmatmul.mubr.bf16.gmra.mxu0 %v7079
      %v7134 = vpop.f32.mrf.mxu0
      %v7135 = vadd.f32 %v7058, %v7134
      %v7136 = vpop.f32.mrf.mxu0
      %v7137 = vpop.f32.mrf.mxu0
      %v7138 = vadd.f32 %v7058, %v7137
      %v7139 = vpop.f32.mrf.mxu0
      %7140 = vmatprep.mubr.bf16.mxu0 0
      %7141 = vmatmul.mubr.bf16.gmra.mxu0 %v7082
      %v7142 = vpop.f32.mrf.mxu0
      %v7143 = vadd.f32 %v7058, %v7142
      %v7144 = vpop.f32.mrf.mxu0
      %v7145 = vpop.f32.mrf.mxu0
      %v7146 = vadd.f32 %v7058, %v7145
      %v7147 = vpop.f32.mrf.mxu0
      %7148 = vdwg.mxu0
      %v7149 = vmul.f32 %v7119, %v7119
      %v7150 = vmul.f32 %v7122, %v7122
      %v7151 = vmul.f32 %v7127, %v7127
      %v7152 = vmul.f32 %v7130, %v7130
      %v7153 = vmul.f32 %v7135, %v7135
      %v7154 = vmul.f32 %v7138, %v7138
      %v7155 = vmul.f32 %v7143, %v7143
      %v7156 = vmul.f32 %v7146, %v7146
      %v7157 = vmul.f32 %v7119, %v7149
      %v7158 = vmul.f32 %v7122, %v7150
      %v7159 = vmul.f32 %v7127, %v7151
      %v7160 = vmul.f32 %v7130, %v7152
      %v7161 = vmul.f32 %v7135, %v7153
      %v7162 = vmul.f32 %v7138, %v7154
      %v7163 = vmul.f32 %v7143, %v7155
      %v7164 = vmul.f32 %v7146, %v7156
      %v7165 = vmul.f32 %v7157, 0.044715
      %v7166 = vmul.f32 %v7158, 0.044715
      %v7167 = vmul.f32 %v7159, 0.044715
      %v7168 = vmul.f32 %v7160, 0.044715
      %v7169 = vmul.f32 %v7161, 0.044715
      %v7170 = vmul.f32 %v7162, 0.044715
      %v7171 = vmul.f32 %v7163, 0.044715
      %v7172 = vmul.f32 %v7164, 0.044715
      %v7173 = vadd.f32 %v7119, %v7165
      %v7174 = vadd.f32 %v7122, %v7166
      %v7175 = vadd.f32 %v7127, %v7167
      %v7176 = vadd.f32 %v7130, %v7168
      %v7177 = vadd.f32 %v7135, %v7169
      %v7178 = vadd.f32 %v7138, %v7170
      %v7179 = vadd.f32 %v7143, %v7171
      %v7180 = vadd.f32 %v7146, %v7172
      %v7181 = vmul.f32 %v7173, 0.7978846
      %v7182 = vmul.f32 %v7174, 0.7978846
      %v7183 = vmul.f32 %v7175, 0.7978846
      %v7184 = vmul.f32 %v7176, 0.7978846
      %v7185 = vmul.f32 %v7177, 0.7978846
      %v7186 = vmul.f32 %v7178, 0.7978846
      %v7187 = vmul.f32 %v7179, 0.7978846
      %v7188 = vmul.f32 %v7180, 0.7978846
      %v7189 = vtanh.pop %v7181
      %v7190 = vtanh.pop %v7182
      %v7191 = vtanh.pop %v7183
      %v7192 = vtanh.pop %v7184
      %v7193 = vtanh.pop %v7185
      %v7194 = vtanh.pop %v7186
      %v7195 = vtanh.pop %v7187
      %v7196 = vtanh.pop %v7188
      %v7197 = vadd.f32 %v7189, 1.0
      %v7198 = vadd.f32 %v7190, 1.0
      %v7199 = vadd.f32 %v7191, 1.0
      %v7200 = vadd.f32 %v7192, 1.0
      %v7201 = vadd.f32 %v7193, 1.0
      %v7202 = vadd.f32 %v7194, 1.0
      %v7203 = vadd.f32 %v7195, 1.0
      %v7204 = vadd.f32 %v7196, 1.0
      %v7205 = vmul.f32 %v7197, 0.5
      %v7206 = vmul.f32 %v7198, 0.5
      %v7207 = vmul.f32 %v7199, 0.5
      %v7208 = vmul.f32 %v7200, 0.5
      %v7209 = vmul.f32 %v7201, 0.5
      %v7210 = vmul.f32 %v7202, 0.5
      %v7211 = vmul.f32 %v7203, 0.5
      %v7212 = vmul.f32 %v7204, 0.5
      %v7213 = vmul.f32 %v7119, %v7205
      %v7214 = vmul.f32 %v7122, %v7206
      %v7215 = vmul.f32 %v7127, %v7207
      %v7216 = vmul.f32 %v7130, %v7208
      %v7217 = vmul.f32 %v7135, %v7209
      %v7218 = vmul.f32 %v7138, %v7210
      %v7219 = vmul.f32 %v7143, %v7211
      %v7220 = vmul.f32 %v7146, %v7212
      %v7221 = vpack.c.bf16 %v7214, %v7213
      %v7222 = vpack.c.bf16 %v7216, %v7215
      %v7223 = vpack.c.bf16 %v7218, %v7217
      %v7224 = vpack.c.bf16 %v7220, %v7219
      %s7225 = scalar_lea.vmem %s16, 32
      %v7226 = vld [vmem:[%s7225] sm:$0xf]
      %v7227 = vld [vmem:[%s7225 + $0x4] sm:$0xf]
      %v7228 = vld [vmem:[%s7225 + $0x8] sm:$0xf]
      %v7229 = vld [vmem:[%s7225 + $0xc] sm:$0xf]
      %v7230 = vld [vmem:[%s7225 + $0x10] sm:$0xf]
      %v7231 = vld [vmem:[%s7225 + $0x14] sm:$0xf]
      %v7232 = vld [vmem:[%s7225 + $0x18] sm:$0xf]
      %v7233 = vld [vmem:[%s7225 + $0x1c] sm:$0xf]
      %s7234 = scalar_lea.vmem %s17, 1
      %v7235 = vld [vmem:[%s7234] sm:$0x1]
      %v7237 = vlaneseq
      %v7238 = vshrl.u32 %v7237, 7
      %v7239 = vsub.s32 0, %v7238
      %v7240 = vrot.slane %v7235, %v7239
      %v7250 = vunpack.c.l.b16 %v7226
      %v7251 = vunpack.c.l.b16 %v7227
      %v7252 = vunpack.c.l.b16 %v7228
      %v7253 = vunpack.c.l.b16 %v7229
      %v7254 = vunpack.c.l.b16 %v7230
      %v7255 = vunpack.c.l.b16 %v7231
      %v7256 = vunpack.c.l.b16 %v7232
      %v7257 = vunpack.c.l.b16 %v7233
      %v7258 = vpack.c.b16 %v7251, %v7250
      %v7259 = vpack.c.b16 %v7253, %v7252
      %v7260 = vpack.c.b16 %v7255, %v7254
      %v7261 = vpack.c.b16 %v7257, %v7256
      %v7267 = vsel %vm708, %v7221, 0
      %v7270 = vsel %vm708, %v7222, 0
      %v7273 = vsel %vm708, %v7223, 0
      %v7276 = vsel %vm708, %v7224, 0
      %7278 = vmatprep.subr.bf16.mxu0 0
      %7279 = vmatpush1.bf16.msra.mxu0 0
      %7280 = vmatprep.subr.bf16.mxu0 0
      %7281 = vmatpush1.bf16.msra.mxu0 0
      %7282 = vmatprep.subr.bf16.mxu0 0
      %7283 = vmatpush1.bf16.msra.mxu0 0
      %7284 = vmatprep.subr.bf16.mxu0 0
      %7285 = vmatpush1.bf16.msra.mxu0 0
      %7286 = vmatprep.subr.bf16.mxu0 0
      %7287 = vmatpush1.bf16.msra.mxu0 %v7261
      %7288 = vmatprep.subr.bf16.mxu0 0
      %7289 = vmatpush1.bf16.msra.mxu0 %v7260
      %7290 = vmatprep.subr.bf16.mxu0 0
      %7291 = vmatpush1.bf16.msra.mxu0 %v7259
      %7292 = vmatprep.subr.bf16.mxu0 0
      %7293 = vmatpush1.bf16.msra.mxu0 %v7258
      %7294 = vmatprep.subr.bf16.mxu0 0
      %7295 = vmatpush2.bf16.msra.mxu0 0
      %7296 = vmatprep.subr.bf16.mxu0 0
      %7297 = vmatpush2.bf16.msra.mxu0 0
      %7298 = vmatprep.subr.bf16.mxu0 0
      %7299 = vmatpush2.bf16.msra.mxu0 0
      %7300 = vmatprep.subr.bf16.mxu0 0
      %7301 = vmatpush2.bf16.msra.mxu0 0
      %7302 = vmatprep.subr.bf16.mxu0 0
      %7303 = vmatpush2.bf16.msra.mxu0 0
      %7304 = vmatprep.subr.bf16.mxu0 0
      %7305 = vmatpush2.bf16.msra.mxu0 0
      %7306 = vmatprep.subr.bf16.mxu0 0
      %7307 = vmatpush2.bf16.msra.mxu0 0
      %7308 = vmatprep.subr.bf16.mxu0 0
      %7309 = vmatpush2.bf16.msra.mxu0 0
      %7310 = vmatprep.mubr.bf16.mxu0 0
      %7311 = vmatmul.mubr.bf16.gmra.mxu0 %v7267
      %v7312 = vpop.f32.mrf.mxu0
      %v7313 = vadd.f32 %v7240, %v7312
      %v7314 = vpop.f32.mrf.mxu0
      %v7315 = vpop.f32.mrf.mxu0
      %v7316 = vadd.f32 %v7240, %v7315
      %v7317 = vpop.f32.mrf.mxu0
      %7318 = vmatprep.mubr.bf16.mxu0 0
      %7319 = vmatmul.mubr.bf16.gmra.mxu0 %v7270
      %v7320 = vpop.f32.mrf.mxu0
      %v7321 = vadd.f32 %v7240, %v7320
      %v7322 = vpop.f32.mrf.mxu0
      %v7323 = vpop.f32.mrf.mxu0
      %v7324 = vadd.f32 %v7240, %v7323
      %v7325 = vpop.f32.mrf.mxu0
      %7326 = vmatprep.mubr.bf16.mxu0 0
      %7327 = vmatmul.mubr.bf16.gmra.mxu0 %v7273
      %v7328 = vpop.f32.mrf.mxu0
      %v7329 = vadd.f32 %v7240, %v7328
      %v7330 = vpop.f32.mrf.mxu0
      %v7331 = vpop.f32.mrf.mxu0
      %v7332 = vadd.f32 %v7240, %v7331
      %v7333 = vpop.f32.mrf.mxu0
      %7334 = vmatprep.mubr.bf16.mxu0 0
      %7335 = vmatmul.mubr.bf16.gmra.mxu0 %v7276
      %v7336 = vpop.f32.mrf.mxu0
      %v7337 = vadd.f32 %v7240, %v7336
      %v7338 = vpop.f32.mrf.mxu0
      %v7339 = vpop.f32.mrf.mxu0
      %v7340 = vadd.f32 %v7240, %v7339
      %v7341 = vpop.f32.mrf.mxu0
      %7342 = vdwg.mxu0
      %v7343 = vadd.f32 %v7035, %v7313
      %v7344 = vadd.f32 %v7036, %v7316
      %v7345 = vadd.f32 %v7037, %v7321
      %v7346 = vadd.f32 %v7038, %v7324
      %v7347 = vadd.f32 %v7039, %v7329
      %v7348 = vadd.f32 %v7040, %v7332
      %v7349 = vadd.f32 %v7041, %v7337
      %v7350 = vadd.f32 %v7042, %v7340
      %s7351 = scalar_lea.vmem %s18, 1
      %v7352 = vld [vmem:[%s7351] sm:$0x1]
      %s7353 = scalar_lea.vmem %s19, 1
      %v7354 = vld [vmem:[%s7353] sm:$0x1]
      %v7355 = vsel %vm910, %v7343, 0.0
      %7356 = vadd.xlane.f32.xlu0 %v7355
      %v7357 = vpop.xlane.xlu0 %7356
      %v7358 = vsel %vm910, %v7344, 0.0
      %7359 = vadd.xlane.f32.xlu0 %v7358
      %v7360 = vpop.xlane.xlu0 %7359
      %v7361 = vsel %vm910, %v7345, 0.0
      %7362 = vadd.xlane.f32.xlu0 %v7361
      %v7363 = vpop.xlane.xlu0 %7362
      %v7364 = vsel %vm910, %v7346, 0.0
      %7365 = vadd.xlane.f32.xlu0 %v7364
      %v7366 = vpop.xlane.xlu0 %7365
      %v7367 = vsel %vm910, %v7347, 0.0
      %7368 = vadd.xlane.f32.xlu0 %v7367
      %v7369 = vpop.xlane.xlu0 %7368
      %v7370 = vsel %vm910, %v7348, 0.0
      %7371 = vadd.xlane.f32.xlu0 %v7370
      %v7372 = vpop.xlane.xlu0 %7371
      %v7373 = vsel %vm910, %v7349, 0.0
      %7374 = vadd.xlane.f32.xlu0 %v7373
      %v7375 = vpop.xlane.xlu0 %7374
      %v7376 = vsel %vm910, %v7350, 0.0
      %7377 = vadd.xlane.f32.xlu0 %v7376
      %v7378 = vpop.xlane.xlu0 %7377
      %v7379 = vmul.f32 %v7357, %v3612
      %v7380 = vmul.f32 %v7360, %v3612
      %v7381 = vmul.f32 %v7363, %v3612
      %v7382 = vmul.f32 %v7366, %v3612
      %v7383 = vmul.f32 %v7369, %v3612
      %v7384 = vmul.f32 %v7372, %v3612
      %v7385 = vmul.f32 %v7375, %v3612
      %v7386 = vmul.f32 %v7378, %v3612
      %v7387 = vsub.f32 %v7343, %v7379
      %v7388 = vsub.f32 %v7344, %v7380
      %v7389 = vsub.f32 %v7345, %v7381
      %v7390 = vsub.f32 %v7346, %v7382
      %v7391 = vsub.f32 %v7347, %v7383
      %v7392 = vsub.f32 %v7348, %v7384
      %v7393 = vsub.f32 %v7349, %v7385
      %v7394 = vsub.f32 %v7350, %v7386
      %v7395 = vmul.f32 %v7387, %v7387
      %v7396 = vmul.f32 %v7388, %v7388
      %v7397 = vmul.f32 %v7389, %v7389
      %v7398 = vmul.f32 %v7390, %v7390
      %v7399 = vmul.f32 %v7391, %v7391
      %v7400 = vmul.f32 %v7392, %v7392
      %v7401 = vmul.f32 %v7393, %v7393
      %v7402 = vmul.f32 %v7394, %v7394
      %v7403 = vsel %vm910, %v7395, 0.0
      %7404 = vadd.xlane.f32.xlu0 %v7403
      %v7405 = vpop.xlane.xlu0 %7404
      %v7406 = vsel %vm910, %v7396, 0.0
      %7407 = vadd.xlane.f32.xlu0 %v7406
      %v7408 = vpop.xlane.xlu0 %7407
      %v7409 = vsel %vm910, %v7397, 0.0
      %7410 = vadd.xlane.f32.xlu0 %v7409
      %v7411 = vpop.xlane.xlu0 %7410
      %v7412 = vsel %vm910, %v7398, 0.0
      %7413 = vadd.xlane.f32.xlu0 %v7412
      %v7414 = vpop.xlane.xlu0 %7413
      %v7415 = vsel %vm910, %v7399, 0.0
      %7416 = vadd.xlane.f32.xlu0 %v7415
      %v7417 = vpop.xlane.xlu0 %7416
      %v7418 = vsel %vm910, %v7400, 0.0
      %7419 = vadd.xlane.f32.xlu0 %v7418
      %v7420 = vpop.xlane.xlu0 %7419
      %v7421 = vsel %vm910, %v7401, 0.0
      %7422 = vadd.xlane.f32.xlu0 %v7421
      %v7423 = vpop.xlane.xlu0 %7422
      %v7424 = vsel %vm910, %v7402, 0.0
      %7425 = vadd.xlane.f32.xlu0 %v7424
      %v7426 = vpop.xlane.xlu0 %7425
      %v7427 = vmul.f32 %v7405, %v3612
      %v7428 = vmul.f32 %v7408, %v3612
      %v7429 = vmul.f32 %v7411, %v3612
      %v7430 = vmul.f32 %v7414, %v3612
      %v7431 = vmul.f32 %v7417, %v3612
      %v7432 = vmul.f32 %v7420, %v3612
      %v7433 = vmul.f32 %v7423, %v3612
      %v7434 = vmul.f32 %v7426, %v3612
      %v7435 = vadd.f32 %v7427, 1e-05
      %v7436 = vadd.f32 %v7428, 1e-05
      %v7437 = vadd.f32 %v7429, 1e-05
      %v7438 = vadd.f32 %v7430, 1e-05
      %v7439 = vadd.f32 %v7431, 1e-05
      %v7440 = vadd.f32 %v7432, 1e-05
      %v7441 = vadd.f32 %v7433, 1e-05
      %v7442 = vadd.f32 %v7434, 1e-05
      %v7443 = vrsqrt.pop %v7435
      %v7444 = vrsqrt.pop %v7436
      %v7445 = vrsqrt.pop %v7437
      %v7446 = vrsqrt.pop %v7438
      %v7447 = vrsqrt.pop %v7439
      %v7448 = vrsqrt.pop %v7440
      %v7449 = vrsqrt.pop %v7441
      %v7450 = vrsqrt.pop %v7442
      %v7451 = vmul.f32 %v7387, %v7443
      %v7452 = vmul.f32 %v7388, %v7444
      %v7453 = vmul.f32 %v7389, %v7445
      %v7454 = vmul.f32 %v7390, %v7446
      %v7455 = vmul.f32 %v7391, %v7447
      %v7456 = vmul.f32 %v7392, %v7448
      %v7457 = vmul.f32 %v7393, %v7449
      %v7458 = vmul.f32 %v7394, %v7450
      %v7460 = vlaneseq
      %v7461 = vshrl.u32 %v7460, 7
      %v7462 = vsub.s32 0, %v7461
      %v7463 = vrot.slane %v7352, %v7462
      %v7465 = vmul.f32 %v7451, %v7463
      %v7466 = vmul.f32 %v7452, %v7463
      %v7467 = vmul.f32 %v7453, %v7463
      %v7468 = vmul.f32 %v7454, %v7463
      %v7469 = vmul.f32 %v7455, %v7463
      %v7470 = vmul.f32 %v7456, %v7463
      %v7471 = vmul.f32 %v7457, %v7463
      %v7472 = vmul.f32 %v7458, %v7463
      %v7474 = vlaneseq
      %v7475 = vshrl.u32 %v7474, 7
      %v7476 = vsub.s32 0, %v7475
      %v7477 = vrot.slane %v7354, %v7476
      %v7479 = vadd.f32 %v7465, %v7477
      %v7480 = vadd.f32 %v7466, %v7477
      %v7481 = vadd.f32 %v7467, %v7477
      %v7482 = vadd.f32 %v7468, %v7477
      %v7483 = vadd.f32 %v7469, %v7477
      %v7484 = vadd.f32 %v7470, %v7477
      %v7485 = vadd.f32 %v7471, %v7477
      %v7486 = vadd.f32 %v7472, %v7477
      %v7487 = vld [vmem:[%s20] sm:$0xff]
      %v7488 = vld [vmem:[%s20 + $0x8] sm:$0xff]
      %v7489 = vld [vmem:[%s20 + $0x10] sm:$0xff]
      %v7490 = vld [vmem:[%s20 + $0x18] sm:$0xff]
      %v7491 = vld [vmem:[%s21] sm:$0x1]
      %v7493 = vlaneseq
      %v7494 = vshrl.u32 %v7493, 7
      %v7495 = vsub.s32 0, %v7494
      %v7496 = vrot.slane %v7491, %v7495
      %v7499 = vsel %vm910, %v7479, 0
      %v7502 = vsel %vm910, %v7480, 0
      %v7505 = vsel %vm910, %v7481, 0
      %v7508 = vsel %vm910, %v7482, 0
      %v7511 = vsel %vm910, %v7483, 0
      %v7514 = vsel %vm910, %v7484, 0
      %v7517 = vsel %vm910, %v7485, 0
      %v7520 = vsel %vm910, %v7486, 0
      %7522 = vmatprep.subr.mxu0 0.0
      %7523 = vmatpush1.msra.mxu0 0.0
      %7524 = vmatprep.subr.mxu0 0.0
      %7525 = vmatpush1.msra.mxu0 0.0
      %7526 = vmatprep.subr.mxu0 0.0
      %7527 = vmatpush1.msra.mxu0 0.0
      %7528 = vmatprep.subr.mxu0 0.0
      %7529 = vmatpush1.msra.mxu0 0.0
      %7530 = vmatprep.subr.mxu0 0.0
      %7531 = vmatpush1.msra.mxu0 0.0
      %7532 = vmatprep.subr.mxu0 0.0
      %7533 = vmatpush1.msra.mxu0 0.0
      %7534 = vmatprep.subr.mxu0 0.0
      %7535 = vmatpush1.msra.mxu0 0.0
      %7536 = vmatprep.subr.mxu0 0.0
      %7537 = vmatpush1.msra.mxu0 0.0
      %7538 = vmatprep.subr.mxu0 0.0
      %7539 = vmatpush1.msra.mxu0 0.0
      %7540 = vmatprep.subr.mxu0 0.0
      %7541 = vmatpush1.msra.mxu0 0.0
      %7542 = vmatprep.subr.mxu0 0.0
      %7543 = vmatpush1.msra.mxu0 0.0
      %7544 = vmatprep.subr.mxu0 0.0
      %7545 = vmatpush1.msra.mxu0 0.0
      %7546 = vmatprep.subr.mxu0 0.0
      %7547 = vmatpush1.msra.mxu0 %v7490
      %7548 = vmatprep.subr.mxu0 0.0
      %7549 = vmatpush1.msra.mxu0 %v7489
      %7550 = vmatprep.subr.mxu0 0.0
      %7551 = vmatpush1.msra.mxu0 %v7488
      %7552 = vmatprep.subr.mxu0 0.0
      %7553 = vmatpush1.msra.mxu0 %v7487
      %7554 = vmatprep.subr.mxu0 0.0
      %7555 = vmatpush2.msra.mxu0 0.0
      %7556 = vmatprep.subr.mxu0 0.0
      %7557 = vmatpush2.msra.mxu0 0.0
      %7558 = vmatprep.subr.mxu0 0.0
      %7559 = vmatpush2.msra.mxu0 0.0
      %7560 = vmatprep.subr.mxu0 0.0
      %7561 = vmatpush2.msra.mxu0 0.0
      %7562 = vmatprep.subr.mxu0 0.0
      %7563 = vmatpush2.msra.mxu0 0.0
      %7564 = vmatprep.subr.mxu0 0.0
      %7565 = vmatpush2.msra.mxu0 0.0
      %7566 = vmatprep.subr.mxu0 0.0
      %7567 = vmatpush2.msra.mxu0 0.0
      %7568 = vmatprep.subr.mxu0 0.0
      %7569 = vmatpush2.msra.mxu0 0.0
      %7570 = vmatprep.subr.mxu0 0.0
      %7571 = vmatpush2.msra.mxu0 0.0
      %7572 = vmatprep.subr.mxu0 0.0
      %7573 = vmatpush2.msra.mxu0 0.0
      %7574 = vmatprep.subr.mxu0 0.0
      %7575 = vmatpush2.msra.mxu0 0.0
      %7576 = vmatprep.subr.mxu0 0.0
      %7577 = vmatpush2.msra.mxu0 0.0
      %7578 = vmatprep.subr.mxu0 0.0
      %7579 = vmatpush2.msra.mxu0 0.0
      %7580 = vmatprep.subr.mxu0 0.0
      %7581 = vmatpush2.msra.mxu0 0.0
      %7582 = vmatprep.subr.mxu0 0.0
      %7583 = vmatpush2.msra.mxu0 0.0
      %7584 = vmatprep.subr.mxu0 0.0
      %7585 = vmatpush2.msra.mxu0 0.0
      %7586 = vmatprep.mubr.f32.mxu0 0.0
      %7587 = vmatmul.mubr.f32.gmra.mxu0 %v7499
      %v7588 = vpop.f32.mrf.mxu0
      %v7589 = vadd.f32 %v7496, %v7588
      %v7590 = vpop.f32.mrf.mxu0
      %7591 = vmatprep.mubr.f32.mxu0 0.0
      %7592 = vmatmul.mubr.f32.gmra.mxu0 %v7502
      %v7593 = vpop.f32.mrf.mxu0
      %v7594 = vadd.f32 %v7496, %v7593
      %v7595 = vpop.f32.mrf.mxu0
      %7596 = vmatprep.mubr.f32.mxu0 0.0
      %7597 = vmatmul.mubr.f32.gmra.mxu0 %v7505
      %v7598 = vpop.f32.mrf.mxu0
      %v7599 = vadd.f32 %v7496, %v7598
      %v7600 = vpop.f32.mrf.mxu0
      %7601 = vmatprep.mubr.f32.mxu0 0.0
      %7602 = vmatmul.mubr.f32.gmra.mxu0 %v7508
      %v7603 = vpop.f32.mrf.mxu0
      %v7604 = vadd.f32 %v7496, %v7603
      %v7605 = vpop.f32.mrf.mxu0
      %7606 = vmatprep.mubr.f32.mxu0 0.0
      %7607 = vmatmul.mubr.f32.gmra.mxu0 %v7511
      %v7608 = vpop.f32.mrf.mxu0
      %v7609 = vadd.f32 %v7496, %v7608
      %v7610 = vpop.f32.mrf.mxu0
      %7611 = vmatprep.mubr.f32.mxu0 0.0
      %7612 = vmatmul.mubr.f32.gmra.mxu0 %v7514
      %v7613 = vpop.f32.mrf.mxu0
      %v7614 = vadd.f32 %v7496, %v7613
      %v7615 = vpop.f32.mrf.mxu0
      %7616 = vmatprep.mubr.f32.mxu0 0.0
      %7617 = vmatmul.mubr.f32.gmra.mxu0 %v7517
      %v7618 = vpop.f32.mrf.mxu0
      %v7619 = vadd.f32 %v7496, %v7618
      %v7620 = vpop.f32.mrf.mxu0
      %7621 = vmatprep.mubr.f32.mxu0 0.0
      %7622 = vmatmul.mubr.f32.gmra.mxu0 %v7520
      %v7623 = vpop.f32.mrf.mxu0
      %v7624 = vadd.f32 %v7496, %v7623
      %v7625 = vpop.f32.mrf.mxu0
      %7626 = vdwg.mxu0
      %7627 = vst.msk [vmem:[%s683] sm:$0xff] %vm708, %v7589
      %7628 = vst.msk [vmem:[%s683 + $0x8] sm:$0xff] %vm708, %v7594
      %7629 = vst.msk [vmem:[%s683 + $0x10] sm:$0xff] %vm708, %v7599
      %7630 = vst.msk [vmem:[%s683 + $0x18] sm:$0xff] %vm708, %v7604
      %7631 = vst.msk [vmem:[%s683 + $0x20] sm:$0xff] %vm708, %v7609
      %7632 = vst.msk [vmem:[%s683 + $0x28] sm:$0xff] %vm708, %v7614
      %7633 = vst.msk [vmem:[%s683 + $0x30] sm:$0xff] %vm708, %v7619
      %7634 = vst.msk [vmem:[%s683 + $0x38] sm:$0xff] %vm708, %v7624
      %p7635 = scmp.lt.s32.totalorder %s33, 1
      %s7636 = scalar_select %p7635, %s33, 1
      %s7637 = smul.addr %s7636, 8
      %s7638 = smul.addr %s7637, 8
      %s7639 = scalar_lea.vmem %s22, %s7638
      // Predicated region
      $region109: #{image_transformer_pallas.1} parent=107 // pred_check
        %p7640 = pneg %p518
      $region110: #{image_transformer_pallas.1} parent=107 // pred_check_branch
        %7642 = sbr.rel (%p7640) target = $region112
      $region111: #{image_transformer_pallas.1} parent=107 // pred_region
        _
      $region112: #{image_transformer_pallas.1} parent=107 // pred_fallthru
        _
    $region108: #{image_transformer_pallas.1} parent=5 // pred_fallthru
      _
    %p7643 = scmp.le.s32.totalorder 2, %s28
    // Predicated region
    $region113: #{image_transformer_pallas.1} parent=5 // pred_check
      %p7644 = pneg %p7643
    $region114: #{image_transformer_pallas.1} parent=5 // pred_check_branch
      %7646 = sbr.rel (%p7644) target = $region116
    $region115: #{image_transformer_pallas.1} parent=5 // pred_region
      %s7647 = ssub.s32 %s28, 2
      // Predicated region
      $region117: #{image_transformer_pallas.1} parent=115 // pred_check
        %p7648 = pneg %p524
      $region118: #{image_transformer_pallas.1} parent=115 // pred_check_branch
        %7650 = sbr.rel (%p7648) target = $region120
      $region119: #{image_transformer_pallas.1} parent=115 // pred_region
        %p7651 = scmp.lt.s32.totalorder %s34, 1
        %s7652 = scalar_select %p7651, %s34, 1
        %s7653 = smul.addr %s7652, 8
        %s7654 = smul.addr %s7653, 8
        %s7655 = scalar_lea.vmem %s22, %s7654
      $region120: #{image_transformer_pallas.1} parent=115 // pred_fallthru
        _
    $region116: #{image_transformer_pallas.1} parent=5 // pred_fallthru
      _
  $region6: #{image_transformer_pallas.1} parent=0 // loop_footer
    %s32 = sadd.s32 1, %s28
  $region7: #{image_transformer_pallas.1} parent=0 // loop_footer_branch
    %27 = sbr.rel target = $region3
  $region8: #{image_transformer_pallas.1} parent=0 // loop_exit
    _

</llo_original>
